<compile_context>
chip_gen: v7x
topology: tpu7x:2x2x1
jax: 0.10.0
libtpu: 0.0.40
codegen_flags: <defaults>
</compile_context>

<pallas_src>
import math
import functools

import jax
import jax.numpy as jnp
from jax import lax
from jax.experimental import pallas as pl
from jax.experimental.pallas import tpu as pltpu

LANE = 128
NEG_INF = -1e9
LN_EPS = 1e-5


def _round_up(x, m):
    return ((x + m - 1) // m) * m


# ----------------------------------------------------------------------------
# In-kernel helpers
# ----------------------------------------------------------------------------
def _masked_layer_norm(r, gamma, beta, d_model):
    """LayerNorm over the first `d_model` lanes of a lane-padded activation.

    Relies on the invariant that padded lanes (>= d_model) of `r` are exactly
    zero, so sums with a 1/d_model divisor give the exact mean; the variance
    uses an explicit lane mask so (-mean) in padded lanes is excluded.
    gamma/beta are zero in padded lanes, so the output keeps the invariant.
    """
    valid = (lax.broadcasted_iota(jnp.int32, r.shape, 1) < d_model).astype(jnp.float32)
    inv_d = 1.0 / d_model
    mean = jnp.sum(r, axis=-1, keepdims=True) * inv_d
    centered = (r - mean) * valid
    var = jnp.sum(centered * centered, axis=-1, keepdims=True) * inv_d
    return centered * lax.rsqrt(var + LN_EPS) * gamma + beta


# ----------------------------------------------------------------------------
# Pallas kernels
# ----------------------------------------------------------------------------
def _mha_block_kernel(xq_ref, xkv_ref, wq_ref, bq_ref, wkv_ref, bkv_ref,
                      wo_ref, bo_ref, pad_ref, g_ref, beta_ref, o_ref,
                      *, batch, sq, skv, num_heads, d_model, dh_pad, scale,
                      is_causal):
    # Whole (B*Sq, Dp) / (B*Skv, Dp) slabs resident; everything stays in VMEM/vregs.
    xq = xq_ref[...]                                       # (B*Sq, Dp) f32
    dp = xq.shape[-1]

    # Fused projections: one MXU pass for Q, one for K|V (bf16 in, f32 acc).
    # Head h occupies lanes [h*dh_pad, h*dh_pad + Dh) of its 128-lane block.
    q_all = jnp.dot(xq.astype(jnp.bfloat16), wq_ref[...],
                    preferred_element_type=jnp.float32) + bq_ref[...]      # (B*Sq, H*Dhp)
    kv_all = jnp.dot(xkv_ref[...].astype(jnp.bfloat16), wkv_ref[...],
                     preferred_element_type=jnp.float32) + bkv_ref[...]    # (B*Skv, 2*H*Dhp)

    bo = bo_ref[...]
    gamma = g_ref[...]
    beta = beta_ref[...]

    if is_causal:
        row = lax.broadcasted_iota(jnp.int32, (sq, skv), 0)
        col = lax.broadcasted_iota(jnp.int32, (sq, skv), 1)
        causal = jnp.where(col <= row, 0.0, NEG_INF).astype(jnp.float32)

    # Static (batch, head) unroll; all slices are 8-sublane / 128-lane aligned
    # (views, no XLU shuffles).  Out-projection decomposed per head:
    #   concat_h(o_h) @ Wo == sum_h o_h @ Wo[h]
    for b in range(batch):
        mask_b = pad_ref[b]                                # (1, Skv) additive pad mask
        acc = jnp.zeros((sq, dp), jnp.float32)
        for h in range(num_heads):
            qh = q_all[b * sq:(b + 1) * sq, h * dh_pad:(h + 1) * dh_pad]
            kh = kv_all[b * skv:(b + 1) * skv, h * dh_pad:(h + 1) * dh_pad]
            vh = kv_all[b * skv:(b + 1) * skv,
                        (num_heads + h) * dh_pad:(num_heads + h + 1) * dh_pad]
            s = lax.dot_general(qh.astype(jnp.bfloat16), kh.astype(jnp.bfloat16),
                                (((1,), (1,)), ((), ())),
                                preferred_element_type=jnp.float32) * scale
            s = s + mask_b
            if is_causal:
                s = s + causal
            s_max = jnp.max(s, axis=-1, keepdims=True)
            p = jnp.exp(s - s_max)
            p = p / jnp.sum(p, axis=-1, keepdims=True)     # exact softmax division
            oh = jnp.dot(p.astype(jnp.bfloat16), vh.astype(jnp.bfloat16),
                         preferred_element_type=jnp.float32)               # (Sq, Dhp)
            acc = acc + jnp.dot(oh.astype(jnp.bfloat16), wo_ref[h],
                                preferred_element_type=jnp.float32)        # (Sq, Dp)
        # Residual add + LayerNorm (masked to the true d_model lanes).
        r = xq[b * sq:(b + 1) * sq, :] + acc + bo
        o_ref[b * sq:(b + 1) * sq, :] = _masked_layer_norm(r, gamma, beta, d_model)


def _ffn_block_kernel(x_ref, w1_ref, b1_ref, w2_ref, b2_ref, g_ref, beta_ref, o_ref,
                      *, d_model):
    # LayerNorm(x + W2(ReLU(W1 x + b1)) + b2); d_ff intermediate never hits HBM.
    x = x_ref[...]                                         # (B*S, Dp) f32
    h = jnp.maximum(
        jnp.dot(x.astype(jnp.bfloat16), w1_ref[...],
                preferred_element_type=jnp.float32) + b1_ref[...], 0.0)
    f = jnp.dot(h.astype(jnp.bfloat16), w2_ref[...],
                preferred_element_type=jnp.float32) + b2_ref[...]
    r = x + f
    o_ref[...] = _masked_layer_norm(r, g_ref[...], beta_ref[...], d_model)


# ----------------------------------------------------------------------------
# Pallas wrappers (single-program launches over the full lane-padded slab)
# ----------------------------------------------------------------------------
def pallas_mha_block(xq_flat, xkv_flat, pad_mask, p, ln_g, ln_b,
                     *, batch, sq, skv, num_heads, d_model, is_causal):
    """Fused MHA sub-block: LN(x_q + OutProj(Attention(QKV(x_q, x_kv), mask)))."""
    rows_q, dp = xq_flat.shape
    rows_kv = xkv_flat.shape[0]
    dh_pad = p["wq"].shape[1] // num_heads
    scale = 1.0 / math.sqrt(d_model // num_heads)
    kernel = functools.partial(
        _mha_block_kernel, batch=batch, sq=sq, skv=skv, num_heads=num_heads,
        d_model=d_model, dh_pad=dh_pad, scale=scale, is_causal=is_causal)

    flops = int(
        2 * rows_q * dp * num_heads * dh_pad                       # Q proj
        + 2 * rows_kv * dp * 2 * num_heads * dh_pad                # K|V proj
        + batch * num_heads * (2 * sq * skv * dh_pad               # scores
                               + 2 * sq * skv * dh_pad             # context
                               + 2 * sq * dh_pad * dp))            # out proj
    bytes_accessed = int(
        4 * (2 * rows_q * dp + rows_kv * dp)                       # f32 activations in/out
        + 2 * (dp * num_heads * dh_pad + dp * 2 * num_heads * dh_pad
               + num_heads * dh_pad * dp)                          # bf16 weights
        + 4 * (batch * skv + 6 * dp))                              # masks / biases / LN
    cost = pl.CostEstimate(flops=flops,
                           transcendentals=int(batch * num_heads * sq * skv),
                           bytes_accessed=bytes_accessed)

    return pl.pallas_call(
        kernel,
        out_shape=jax.ShapeDtypeStruct((rows_q, dp), jnp.float32),
        grid=(1,),
        in_specs=[
            pl.BlockSpec((rows_q, dp), lambda i: (0, 0)),                   # x_q slab
            pl.BlockSpec((rows_kv, dp), lambda i: (0, 0)),                  # x_kv slab
            pl.BlockSpec((dp, num_heads * dh_pad), lambda i: (0, 0)),       # wq (bf16)
            pl.BlockSpec((1, num_heads * dh_pad), lambda i: (0, 0)),        # bq
            pl.BlockSpec((dp, 2 * num_heads * dh_pad), lambda i: (0, 0)),   # wkv (bf16)
            pl.BlockSpec((1, 2 * num_heads * dh_pad), lambda i: (0, 0)),    # bkv
            pl.BlockSpec((num_heads, dh_pad, dp), lambda i: (0, 0, 0)),     # wo (bf16)
            pl.BlockSpec((1, dp), lambda i: (0, 0)),                        # bo
            pl.BlockSpec((batch, 1, skv), lambda i: (0, 0, 0)),             # padding mask
            pl.BlockSpec((1, dp), lambda i: (0, 0)),                        # ln gamma
            pl.BlockSpec((1, dp), lambda i: (0, 0)),                        # ln beta
        ],
        out_specs=pl.BlockSpec((rows_q, dp), lambda i: (0, 0)),
        compiler_params=pltpu.CompilerParams(dimension_semantics=("arbitrary",)),
        cost_estimate=cost,
    )(xq_flat, xkv_flat, p["wq"], p["bq"], p["wkv"], p["bkv"], p["wo"], p["bo"],
      pad_mask, ln_g, ln_b)


def pallas_ffn_block(x_flat, w1, b1, w2, b2, ln_g, ln_b, *, d_model):
    """Fused FFN sub-block: LN(x + W2(ReLU(W1 x)))."""
    rows, dp = x_flat.shape
    dff = w1.shape[1]
    kernel = functools.partial(_ffn_block_kernel, d_model=d_model)

    flops = int(2 * rows * dp * dff + 2 * rows * dff * dp)
    bytes_accessed = int(4 * 2 * rows * dp + 2 * (dp * dff + dff * dp) + 4 * 4 * dp)
    cost = pl.CostEstimate(flops=flops, transcendentals=rows,
                           bytes_accessed=bytes_accessed)

    return pl.pallas_call(
        kernel,
        out_shape=jax.ShapeDtypeStruct((rows, dp), jnp.float32),
        grid=(1,),
        in_specs=[
            pl.BlockSpec((rows, dp), lambda i: (0, 0)),
            pl.BlockSpec((dp, dff), lambda i: (0, 0)),       # w1 (bf16)
            pl.BlockSpec((1, dff), lambda i: (0, 0)),        # b1
            pl.BlockSpec((dff, dp), lambda i: (0, 0)),       # w2 (bf16)
            pl.BlockSpec((1, dp), lambda i: (0, 0)),         # b2
            pl.BlockSpec((1, dp), lambda i: (0, 0)),         # ln gamma
            pl.BlockSpec((1, dp), lambda i: (0, 0)),         # ln beta
        ],
        out_specs=pl.BlockSpec((rows, dp), lambda i: (0, 0)),
        compiler_params=pltpu.CompilerParams(dimension_semantics=("arbitrary",)),
        cost_estimate=cost,
    )(x_flat, w1, b1, w2, b2, ln_g, ln_b)


# ----------------------------------------------------------------------------
# Model glue (plain JAX): masks, PE table, padded weight layouts, composition
# ----------------------------------------------------------------------------
def padding_mask(tokenized_seqs, pad_token_id):
    m = jnp.where(tokenized_seqs == pad_token_id, NEG_INF, 0.0).astype(jnp.float32)
    return m[:, None, :]                                       # (B, 1, S)


def sinusoidal_pe(max_len, d_model):
    pos = jnp.arange(max_len, dtype=jnp.float32)[:, None]
    div = jnp.exp(
        jnp.arange(0, d_model, 2, dtype=jnp.float32) * (-math.log(10000.0) / d_model)
    )
    pe = jnp.zeros((max_len, d_model), dtype=jnp.float32)
    pe = pe.at[:, 0::2].set(jnp.sin(pos * div))
    pe = pe.at[:, 1::2].set(jnp.cos(pos * div))
    return pe[None]                                            # (1, max_len, d_model)


def _pad_and_flatten(x, dp):
    B, S, D = x.shape
    xp = jnp.pad(x, ((0, 0), (0, 0), (0, dp - D)))
    return xp.reshape(B * S, dp)


# --- padded / head-blocked parameter layouts (built once at init) -----------
def _layout_q_weight(w, num_heads, dh, dp, dh_pad):
    d = w.shape[0]
    out = jnp.zeros((dp, num_heads * dh_pad), jnp.float32)
    for h in range(num_heads):
        out = out.at[:d, h * dh_pad:h * dh_pad + dh].set(w[:, h * dh:(h + 1) * dh])
    return out.astype(jnp.bfloat16)


def _layout_q_bias(b, num_heads, dh, dh_pad):
    out = jnp.zeros((1, num_heads * dh_pad), jnp.float32)
    for h in range(num_heads):
        out = out.at[0, h * dh_pad:h * dh_pad + dh].set(b[h * dh:(h + 1) * dh])
    return out


def _layout_kv_weight(wk, wv, num_heads, dh, dp, dh_pad):
    d = wk.shape[0]
    out = jnp.zeros((dp, 2 * num_heads * dh_pad), jnp.float32)
    for h in range(num_heads):
        out = out.at[:d, h * dh_pad:h * dh_pad + dh].set(wk[:, h * dh:(h + 1) * dh])
        off = (num_heads + h) * dh_pad
        out = out.at[:d, off:off + dh].set(wv[:, h * dh:(h + 1) * dh])
    return out.astype(jnp.bfloat16)


def _layout_kv_bias(bk, bv, num_heads, dh, dh_pad):
    out = jnp.zeros((1, 2 * num_heads * dh_pad), jnp.float32)
    for h in range(num_heads):
        out = out.at[0, h * dh_pad:h * dh_pad + dh].set(bk[h * dh:(h + 1) * dh])
        off = (num_heads + h) * dh_pad
        out = out.at[0, off:off + dh].set(bv[h * dh:(h + 1) * dh])
    return out


def _layout_o_weight(w, num_heads, dh, dh_pad, dp):
    d = w.shape[1]
    out = jnp.zeros((num_heads, dh_pad, dp), jnp.float32)
    for h in range(num_heads):
        out = out.at[h, :dh, :d].set(w[h * dh:(h + 1) * dh, :])
    return out.astype(jnp.bfloat16)


def _pad_row(v, cols):
    out = jnp.zeros((1, cols), jnp.float32)
    return out.at[0, :v.shape[0]].set(v)


def _pad_mat(w, rows, cols, dtype=jnp.bfloat16):
    out = jnp.zeros((rows, cols), jnp.float32)
    out = out.at[:w.shape[0], :w.shape[1]].set(w)
    return out.astype(dtype)


def init_params(key, d_model, num_heads, n_layers, d_ff):
    dp = _round_up(d_model, LANE)
    dh = d_model // num_heads
    dh_pad = _round_up(dh, LANE)
    dff_pad = _round_up(d_ff, LANE)

    def dense(k, fan_in, fan_out):
        return jax.random.normal(k, (fan_in, fan_out), jnp.float32) * 0.02

    def attn_params(k):
        ks = jax.random.split(k, 4)
        wq = dense(ks[0], d_model, d_model)
        wk = dense(ks[1], d_model, d_model)
        wv = dense(ks[2], d_model, d_model)
        wo = dense(ks[3], d_model, d_model)
        zeros_d = jnp.zeros((d_model,), jnp.float32)
        return {
            "wq": _layout_q_weight(wq, num_heads, dh, dp, dh_pad),
            "bq": _layout_q_bias(zeros_d, num_heads, dh, dh_pad),
            "wkv": _layout_kv_weight(wk, wv, num_heads, dh, dp, dh_pad),
            "bkv": _layout_kv_bias(zeros_d, zeros_d, num_heads, dh, dh_pad),
            "wo": _layout_o_weight(wo, num_heads, dh, dh_pad, dp),
            "bo": _pad_row(zeros_d, dp),
        }

    ln_g = _pad_row(jnp.ones((d_model,), jnp.float32), dp)
    ln_b = _pad_row(jnp.zeros((d_model,), jnp.float32), dp)

    encoders, decoders = [], []
    keys = jax.random.split(key, 2 * n_layers)
    for i in range(n_layers):
        ek = jax.random.split(keys[i], 3)
        encoders.append({
            "attn": attn_params(ek[0]),
            "ln1_g": ln_g, "ln1_b": ln_b,
            "w1": _pad_mat(dense(ek[1], d_model, d_ff), dp, dff_pad),
            "b1": _pad_row(jnp.zeros((d_ff,), jnp.float32), dff_pad),
            "w2": _pad_mat(dense(ek[2], d_ff, d_model), dff_pad, dp),
            "b2": _pad_row(jnp.zeros((d_model,), jnp.float32), dp),
            "ln2_g": ln_g, "ln2_b": ln_b,
        })
        dk = jax.random.split(keys[n_layers + i], 4)
        decoders.append({
            "self_attn": attn_params(dk[0]),
            "cross_attn": attn_params(dk[1]),
            "ln1_g": ln_g, "ln1_b": ln_b,
            "ln2_g": ln_g, "ln2_b": ln_b,
            "ln3_g": ln_g, "ln3_b": ln_b,
            "w1": _pad_mat(dense(dk[2], d_model, d_ff), dp, dff_pad),
            "b1": _pad_row(jnp.zeros((d_ff,), jnp.float32), dff_pad),
            "w2": _pad_mat(dense(dk[3], d_ff, d_model), dff_pad, dp),
            "b2": _pad_row(jnp.zeros((d_model,), jnp.float32), dp),
        })
    return {"encoders": encoders, "decoders": decoders}


def encoder_layer(x_f, enc_pad, p, *, batch, s, num_heads, d_model):
    a = pallas_mha_block(x_f, x_f, enc_pad, p["attn"], p["ln1_g"], p["ln1_b"],
                         batch=batch, sq=s, skv=s, num_heads=num_heads,
                         d_model=d_model, is_causal=False)
    return pallas_ffn_block(a, p["w1"], p["b1"], p["w2"], p["b2"],
                            p["ln2_g"], p["ln2_b"], d_model=d_model)


def decoder_layer(y_f, enc_out, dec_pad, enc_pad, p, *, batch, sy, sx, num_heads,
                  d_model):
    s = pallas_mha_block(y_f, y_f, dec_pad, p["self_attn"], p["ln1_g"], p["ln1_b"],
                         batch=batch, sq=sy, skv=sy, num_heads=num_heads,
                         d_model=d_model, is_causal=True)
    c = pallas_mha_block(s, enc_out, enc_pad, p["cross_attn"], p["ln2_g"], p["ln2_b"],
                         batch=batch, sq=sy, skv=sx, num_heads=num_heads,
                         d_model=d_model, is_causal=False)
    return pallas_ffn_block(c, p["w1"], p["b1"], p["w2"], p["b2"],
                            p["ln3_g"], p["ln3_b"], d_model=d_model)


def transformer_forward(params, x, y, X_tok, Y_tok, pad_token_id, n_layers,
                        num_heads, d_model, pe_table):
    # mirrors Transformer.forward() from the reference module
    B, Sx, _ = x.shape
    Sy = y.shape[1]
    dp = _round_up(d_model, LANE)

    enc_pad = padding_mask(X_tok, pad_token_id)                # (B, 1, Sx)
    dec_pad = padding_mask(Y_tok, pad_token_id)                # (B, 1, Sy)

    # x_p = x + pe(x), y_p = y + pe(y)  (plain JAX; dropout in PE is identity at eval)
    # TODO(synk): dropout has no inference-time effect; not implemented in-kernel.
    x_p = x + pe_table[:, :Sx, :]
    y_p = y + pe_table[:, :Sy, :]

    # Lane-pad d_model -> 128 and fold batch into the sublane axis once.
    x_f = _pad_and_flatten(x_p, dp)                            # (B*Sx, dp)
    y_f = _pad_and_flatten(y_p, dp)                            # (B*Sy, dp)

    enc_out = x_f
    dec_out = None
    for n in range(n_layers):
        enc_in = x_f if n == 0 else enc_out
        enc_out = encoder_layer(enc_in, enc_pad, params["encoders"][n],
                                batch=B, s=Sx, num_heads=num_heads, d_model=d_model)
        # NOTE: reference code feeds y_p (not dec_out) to every decoder layer.
        dec_out = decoder_layer(y_f, enc_out, dec_pad, enc_pad,
                                params["decoders"][n],
                                batch=B, sy=Sy, sx=Sx, num_heads=num_heads,
                                d_model=d_model)
    return dec_out.reshape(B, Sy, dp)[:, :, :d_model]


# ----------------------------------------------------------------------------
# main
# ----------------------------------------------------------------------------
if __name__ == "__main__":
    B, S, d_model, num_heads, n_layers = 2, 8, 32, 4, 2
    d_ff = 4 * d_model
    max_len = 16
    pad_token_id = 0
    dropout_p = 0.1  # eval-mode identity; unused at inference

    key = jax.random.PRNGKey(0)
    kx, ky, kp = jax.random.split(key, 3)

    x = jax.random.normal(kx, (B, S, d_model), jnp.float32)
    y = jax.random.normal(ky, (B, S, d_model), jnp.float32)
    X_tok = jnp.array([[5, 3, 7, 2, 9, 1, 0, 0],
                       [4, 6, 1, 8, 2, 3, 5, 0]], dtype=jnp.int32)
    Y_tok = jnp.array([[7, 2, 4, 6, 0, 0, 0, 0],
                       [3, 9, 8, 1, 5, 2, 0, 0]], dtype=jnp.int32)

    params = init_params(kp, d_model, num_heads, n_layers, d_ff)
    pe_table = sinusoidal_pe(max_len, d_model)

    fwd = jax.jit(
        functools.partial(
            transformer_forward,
            pad_token_id=pad_token_id,
            n_layers=n_layers,
            num_heads=num_heads,
            d_model=d_model,
            pe_table=pe_table,
        )
    )
    out = fwd(params, x, y, X_tok, Y_tok)
    out = jax.block_until_ready(out)
    assert out.shape == (B, S, d_model)
    assert bool(jnp.all(jnp.isfinite(out)))
    print("KERNEL_OK")
</pallas_src>

<mosaic_0001>
module attributes {stable_mosaic.version = 11 : i64} {
  func.func @_mha_block_kernel(%arg0: i32, %arg1: memref<16x128xf32, #tpu.memory_space<vmem>>, %arg2: memref<16x128xf32, #tpu.memory_space<vmem>>, %arg3: memref<128x512xbf16, #tpu.memory_space<vmem>>, %arg4: memref<1x512xf32, #tpu.memory_space<vmem>>, %arg5: memref<128x1024xbf16, #tpu.memory_space<vmem>>, %arg6: memref<1x1024xf32, #tpu.memory_space<vmem>>, %arg7: memref<4x128x128xbf16, #tpu.memory_space<vmem>>, %arg8: memref<1x128xf32, #tpu.memory_space<vmem>>, %arg9: memref<2x1x8xf32, #tpu.memory_space<vmem>>, %arg10: memref<1x128xf32, #tpu.memory_space<vmem>>, %arg11: memref<1x128xf32, #tpu.memory_space<vmem>>, %arg12: memref<16x128xf32, #tpu.memory_space<vmem>>) attributes {dimension_semantics = [#tpu.dimension_semantics<arbitrary>], iteration_bounds = array<i64: 1>, scalar_prefetch = 0 : i64, scratch_operands = 0 : i64, tpu.core_type = #tpu.core_type<tc>, window_params = [{pipeline_mode = #tpu.pipeline_mode<synchronous>, transform_indices = @transform_0, window_bounds = array<i64: 16, 128>}, {pipeline_mode = #tpu.pipeline_mode<synchronous>, transform_indices = @transform_1, window_bounds = array<i64: 16, 128>}, {pipeline_mode = #tpu.pipeline_mode<synchronous>, transform_indices = @transform_2, window_bounds = array<i64: 128, 512>}, {pipeline_mode = #tpu.pipeline_mode<synchronous>, transform_indices = @transform_3, window_bounds = array<i64: 1, 512>}, {pipeline_mode = #tpu.pipeline_mode<synchronous>, transform_indices = @transform_4, window_bounds = array<i64: 128, 1024>}, {pipeline_mode = #tpu.pipeline_mode<synchronous>, transform_indices = @transform_5, window_bounds = array<i64: 1, 1024>}, {pipeline_mode = #tpu.pipeline_mode<synchronous>, transform_indices = @transform_6, window_bounds = array<i64: 4, 128, 128>}, {pipeline_mode = #tpu.pipeline_mode<synchronous>, transform_indices = @transform_7, window_bounds = array<i64: 1, 128>}, {pipeline_mode = #tpu.pipeline_mode<synchronous>, transform_indices = @transform_8, window_bounds = array<i64: 2, 1, 8>}, {pipeline_mode = #tpu.pipeline_mode<synchronous>, transform_indices = @transform_9, window_bounds = array<i64: 1, 128>}, {pipeline_mode = #tpu.pipeline_mode<synchronous>, transform_indices = @transform_10, window_bounds = array<i64: 1, 128>}, {pipeline_mode = #tpu.pipeline_mode<synchronous>, transform_indices = @transform_11, window_bounds = array<i64: 16, 128>}]} {
    %c0 = arith.constant 0 : index
    %c0_0 = arith.constant 0 : index
    %0 = vector.load %arg1[%c0, %c0_0] : memref<16x128xf32, #tpu.memory_space<vmem>>, vector<16x128xf32>
    %1 = arith.truncf %0 : vector<16x128xf32> to vector<16x128xbf16>
    %c0_1 = arith.constant 0 : index
    %c0_2 = arith.constant 0 : index
    %2 = vector.load %arg3[%c0_1, %c0_2] : memref<128x512xbf16, #tpu.memory_space<vmem>>, vector<128x512xbf16>
    %cst = arith.constant dense<0.000000e+00> : vector<16x512xf32>
    %3 = tpu.matmul %1, %2, %cst {dimension_numbers = #tpu.dot_dimension_numbers<[1], [0], [0], [1], [0, 0, 1, 1], [], []>} : vector<16x128xbf16>, vector<128x512xbf16>, vector<16x512xf32> -> vector<16x512xf32>
    %c0_3 = arith.constant 0 : index
    %c0_4 = arith.constant 0 : index
    %4 = vector.load %arg4[%c0_3, %c0_4] : memref<1x512xf32, #tpu.memory_space<vmem>>, vector<1x512xf32>
    %5 = vector.broadcast %4 : vector<1x512xf32> to vector<16x512xf32>
    %6 = arith.addf %3, %5 : vector<16x512xf32>
    %c0_5 = arith.constant 0 : index
    %c0_6 = arith.constant 0 : index
    %7 = vector.load %arg2[%c0_5, %c0_6] : memref<16x128xf32, #tpu.memory_space<vmem>>, vector<16x128xf32>
    %8 = arith.truncf %7 : vector<16x128xf32> to vector<16x128xbf16>
    %c0_7 = arith.constant 0 : index
    %c0_8 = arith.constant 0 : index
    %9 = vector.load %arg5[%c0_7, %c0_8] : memref<128x1024xbf16, #tpu.memory_space<vmem>>, vector<128x1024xbf16>
    %cst_9 = arith.constant dense<0.000000e+00> : vector<16x1024xf32>
    %10 = tpu.matmul %8, %9, %cst_9 {dimension_numbers = #tpu.dot_dimension_numbers<[1], [0], [0], [1], [0, 0, 1, 1], [], []>} : vector<16x128xbf16>, vector<128x1024xbf16>, vector<16x1024xf32> -> vector<16x1024xf32>
    %c0_10 = arith.constant 0 : index
    %c0_11 = arith.constant 0 : index
    %11 = vector.load %arg6[%c0_10, %c0_11] : memref<1x1024xf32, #tpu.memory_space<vmem>>, vector<1x1024xf32>
    %12 = vector.broadcast %11 : vector<1x1024xf32> to vector<16x1024xf32>
    %13 = arith.addf %10, %12 : vector<16x1024xf32>
    %c0_12 = arith.constant 0 : index
    %c0_13 = arith.constant 0 : index
    %14 = vector.load %arg8[%c0_12, %c0_13] : memref<1x128xf32, #tpu.memory_space<vmem>>, vector<1x128xf32>
    %c0_14 = arith.constant 0 : index
    %c0_15 = arith.constant 0 : index
    %15 = vector.load %arg10[%c0_14, %c0_15] : memref<1x128xf32, #tpu.memory_space<vmem>>, vector<1x128xf32>
    %c0_16 = arith.constant 0 : index
    %c0_17 = arith.constant 0 : index
    %16 = vector.load %arg11[%c0_16, %c0_17] : memref<1x128xf32, #tpu.memory_space<vmem>>, vector<1x128xf32>
    %c0_18 = arith.constant 0 : index
    %c0_19 = arith.constant 0 : index
    %c0_20 = arith.constant 0 : index
    %17 = vector.load %arg9[%c0_18, %c0_19, %c0_20] : memref<2x1x8xf32, #tpu.memory_space<vmem>>, vector<1x1x8xf32>
    %18 = vector.shape_cast %17 : vector<1x1x8xf32> to vector<1x8xf32>
    %cst_21 = arith.constant 0.000000e+00 : f32
    %19 = vector.broadcast %cst_21 : f32 to vector<8x128xf32>
    %20 = vector.extract_strided_slice %6 {offsets = [0, 0], sizes = [8, 128], strides = [1, 1]} : vector<16x512xf32> to vector<8x128xf32>
    %21 = vector.extract_strided_slice %13 {offsets = [0, 0], sizes = [8, 128], strides = [1, 1]} : vector<16x1024xf32> to vector<8x128xf32>
    %22 = vector.extract_strided_slice %13 {offsets = [0, 512], sizes = [8, 128], strides = [1, 1]} : vector<16x1024xf32> to vector<8x128xf32>
    %23 = arith.truncf %20 : vector<8x128xf32> to vector<8x128xbf16>
    %24 = arith.truncf %21 : vector<8x128xf32> to vector<8x128xbf16>
    %cst_22 = arith.constant dense<0.000000e+00> : vector<8x8xf32>
    %25 = tpu.matmul %23, %24, %cst_22 {dimension_numbers = #tpu.dot_dimension_numbers<[1], [1], [0], [0], [0, 0, 1, 0], [], []>} : vector<8x128xbf16>, vector<8x128xbf16>, vector<8x8xf32> -> vector<8x8xf32>
    %cst_23 = arith.constant 0.353553385 : f32
    %26 = vector.broadcast %cst_23 : f32 to vector<8x8xf32>
    %27 = arith.mulf %25, %26 : vector<8x8xf32>
    %28 = vector.broadcast %18 : vector<1x8xf32> to vector<8x8xf32>
    %29 = arith.addf %27, %28 : vector<8x8xf32>
    %cst_24 = arith.constant dense<0xFF800000> : vector<8xf32>
    %30 = vector.multi_reduction <maximumf>, %29, %cst_24 [1] : vector<8x8xf32> to vector<8xf32>
    %31 = vector.shape_cast %30 : vector<8xf32> to vector<8x1xf32>
    %32 = vector.broadcast %31 : vector<8x1xf32> to vector<8x8xf32>
    %33 = arith.subf %29, %32 : vector<8x8xf32>
    %34 = math.exp %33 : vector<8x8xf32>
    %cst_25 = arith.constant dense<0.000000e+00> : vector<8xf32>
    %35 = vector.multi_reduction <add>, %34, %cst_25 [1] : vector<8x8xf32> to vector<8xf32>
    %36 = vector.shape_cast %35 : vector<8xf32> to vector<8x1xf32>
    %37 = vector.broadcast %36 : vector<8x1xf32> to vector<8x8xf32>
    %38 = arith.divf %34, %37 : vector<8x8xf32>
    %39 = arith.truncf %38 : vector<8x8xf32> to vector<8x8xbf16>
    %40 = arith.truncf %22 : vector<8x128xf32> to vector<8x128xbf16>
    %cst_26 = arith.constant dense<0.000000e+00> : vector<8x128xf32>
    %41 = tpu.matmul %39, %40, %cst_26 {dimension_numbers = #tpu.dot_dimension_numbers<[1], [0], [0], [1], [0, 0, 1, 1], [], []>} : vector<8x8xbf16>, vector<8x128xbf16>, vector<8x128xf32> -> vector<8x128xf32>
    %42 = arith.truncf %41 : vector<8x128xf32> to vector<8x128xbf16>
    %c0_27 = arith.constant 0 : index
    %c0_28 = arith.constant 0 : index
    %c0_29 = arith.constant 0 : index
    %43 = vector.load %arg7[%c0_27, %c0_28, %c0_29] : memref<4x128x128xbf16, #tpu.memory_space<vmem>>, vector<1x128x128xbf16>
    %44 = vector.shape_cast %43 : vector<1x128x128xbf16> to vector<128x128xbf16>
    %cst_30 = arith.constant dense<0.000000e+00> : vector<8x128xf32>
    %45 = tpu.matmul %42, %44, %cst_30 {dimension_numbers = #tpu.dot_dimension_numbers<[1], [0], [0], [1], [0, 0, 1, 1], [], []>} : vector<8x128xbf16>, vector<128x128xbf16>, vector<8x128xf32> -> vector<8x128xf32>
    %46 = arith.addf %19, %45 : vector<8x128xf32>
    %47 = vector.extract_strided_slice %6 {offsets = [0, 128], sizes = [8, 128], strides = [1, 1]} : vector<16x512xf32> to vector<8x128xf32>
    %48 = vector.extract_strided_slice %13 {offsets = [0, 128], sizes = [8, 128], strides = [1, 1]} : vector<16x1024xf32> to vector<8x128xf32>
    %49 = vector.extract_strided_slice %13 {offsets = [0, 640], sizes = [8, 128], strides = [1, 1]} : vector<16x1024xf32> to vector<8x128xf32>
    %50 = arith.truncf %47 : vector<8x128xf32> to vector<8x128xbf16>
    %51 = arith.truncf %48 : vector<8x128xf32> to vector<8x128xbf16>
    %cst_31 = arith.constant dense<0.000000e+00> : vector<8x8xf32>
    %52 = tpu.matmul %50, %51, %cst_31 {dimension_numbers = #tpu.dot_dimension_numbers<[1], [1], [0], [0], [0, 0, 1, 0], [], []>} : vector<8x128xbf16>, vector<8x128xbf16>, vector<8x8xf32> -> vector<8x8xf32>
    %cst_32 = arith.constant 0.353553385 : f32
    %53 = vector.broadcast %cst_32 : f32 to vector<8x8xf32>
    %54 = arith.mulf %52, %53 : vector<8x8xf32>
    %55 = vector.broadcast %18 : vector<1x8xf32> to vector<8x8xf32>
    %56 = arith.addf %54, %55 : vector<8x8xf32>
    %cst_33 = arith.constant dense<0xFF800000> : vector<8xf32>
    %57 = vector.multi_reduction <maximumf>, %56, %cst_33 [1] : vector<8x8xf32> to vector<8xf32>
    %58 = vector.shape_cast %57 : vector<8xf32> to vector<8x1xf32>
    %59 = vector.broadcast %58 : vector<8x1xf32> to vector<8x8xf32>
    %60 = arith.subf %56, %59 : vector<8x8xf32>
    %61 = math.exp %60 : vector<8x8xf32>
    %cst_34 = arith.constant dense<0.000000e+00> : vector<8xf32>
    %62 = vector.multi_reduction <add>, %61, %cst_34 [1] : vector<8x8xf32> to vector<8xf32>
    %63 = vector.shape_cast %62 : vector<8xf32> to vector<8x1xf32>
    %64 = vector.broadcast %63 : vector<8x1xf32> to vector<8x8xf32>
    %65 = arith.divf %61, %64 : vector<8x8xf32>
    %66 = arith.truncf %65 : vector<8x8xf32> to vector<8x8xbf16>
    %67 = arith.truncf %49 : vector<8x128xf32> to vector<8x128xbf16>
    %cst_35 = arith.constant dense<0.000000e+00> : vector<8x128xf32>
    %68 = tpu.matmul %66, %67, %cst_35 {dimension_numbers = #tpu.dot_dimension_numbers<[1], [0], [0], [1], [0, 0, 1, 1], [], []>} : vector<8x8xbf16>, vector<8x128xbf16>, vector<8x128xf32> -> vector<8x128xf32>
    %69 = arith.truncf %68 : vector<8x128xf32> to vector<8x128xbf16>
    %c1 = arith.constant 1 : index
    %c0_36 = arith.constant 0 : index
    %c0_37 = arith.constant 0 : index
    %70 = vector.load %arg7[%c1, %c0_36, %c0_37] : memref<4x128x128xbf16, #tpu.memory_space<vmem>>, vector<1x128x128xbf16>
    %71 = vector.shape_cast %70 : vector<1x128x128xbf16> to vector<128x128xbf16>
    %cst_38 = arith.constant dense<0.000000e+00> : vector<8x128xf32>
    %72 = tpu.matmul %69, %71, %cst_38 {dimension_numbers = #tpu.dot_dimension_numbers<[1], [0], [0], [1], [0, 0, 1, 1], [], []>} : vector<8x128xbf16>, vector<128x128xbf16>, vector<8x128xf32> -> vector<8x128xf32>
    %73 = arith.addf %46, %72 : vector<8x128xf32>
    %74 = vector.extract_strided_slice %6 {offsets = [0, 256], sizes = [8, 128], strides = [1, 1]} : vector<16x512xf32> to vector<8x128xf32>
    %75 = vector.extract_strided_slice %13 {offsets = [0, 256], sizes = [8, 128], strides = [1, 1]} : vector<16x1024xf32> to vector<8x128xf32>
    %76 = vector.extract_strided_slice %13 {offsets = [0, 768], sizes = [8, 128], strides = [1, 1]} : vector<16x1024xf32> to vector<8x128xf32>
    %77 = arith.truncf %74 : vector<8x128xf32> to vector<8x128xbf16>
    %78 = arith.truncf %75 : vector<8x128xf32> to vector<8x128xbf16>
    %cst_39 = arith.constant dense<0.000000e+00> : vector<8x8xf32>
    %79 = tpu.matmul %77, %78, %cst_39 {dimension_numbers = #tpu.dot_dimension_numbers<[1], [1], [0], [0], [0, 0, 1, 0], [], []>} : vector<8x128xbf16>, vector<8x128xbf16>, vector<8x8xf32> -> vector<8x8xf32>
    %cst_40 = arith.constant 0.353553385 : f32
    %80 = vector.broadcast %cst_40 : f32 to vector<8x8xf32>
    %81 = arith.mulf %79, %80 : vector<8x8xf32>
    %82 = vector.broadcast %18 : vector<1x8xf32> to vector<8x8xf32>
    %83 = arith.addf %81, %82 : vector<8x8xf32>
    %cst_41 = arith.constant dense<0xFF800000> : vector<8xf32>
    %84 = vector.multi_reduction <maximumf>, %83, %cst_41 [1] : vector<8x8xf32> to vector<8xf32>
    %85 = vector.shape_cast %84 : vector<8xf32> to vector<8x1xf32>
    %86 = vector.broadcast %85 : vector<8x1xf32> to vector<8x8xf32>
    %87 = arith.subf %83, %86 : vector<8x8xf32>
    %88 = math.exp %87 : vector<8x8xf32>
    %cst_42 = arith.constant dense<0.000000e+00> : vector<8xf32>
    %89 = vector.multi_reduction <add>, %88, %cst_42 [1] : vector<8x8xf32> to vector<8xf32>
    %90 = vector.shape_cast %89 : vector<8xf32> to vector<8x1xf32>
    %91 = vector.broadcast %90 : vector<8x1xf32> to vector<8x8xf32>
    %92 = arith.divf %88, %91 : vector<8x8xf32>
    %93 = arith.truncf %92 : vector<8x8xf32> to vector<8x8xbf16>
    %94 = arith.truncf %76 : vector<8x128xf32> to vector<8x128xbf16>
    %cst_43 = arith.constant dense<0.000000e+00> : vector<8x128xf32>
    %95 = tpu.matmul %93, %94, %cst_43 {dimension_numbers = #tpu.dot_dimension_numbers<[1], [0], [0], [1], [0, 0, 1, 1], [], []>} : vector<8x8xbf16>, vector<8x128xbf16>, vector<8x128xf32> -> vector<8x128xf32>
    %96 = arith.truncf %95 : vector<8x128xf32> to vector<8x128xbf16>
    %c2 = arith.constant 2 : index
    %c0_44 = arith.constant 0 : index
    %c0_45 = arith.constant 0 : index
    %97 = vector.load %arg7[%c2, %c0_44, %c0_45] : memref<4x128x128xbf16, #tpu.memory_space<vmem>>, vector<1x128x128xbf16>
    %98 = vector.shape_cast %97 : vector<1x128x128xbf16> to vector<128x128xbf16>
    %cst_46 = arith.constant dense<0.000000e+00> : vector<8x128xf32>
    %99 = tpu.matmul %96, %98, %cst_46 {dimension_numbers = #tpu.dot_dimension_numbers<[1], [0], [0], [1], [0, 0, 1, 1], [], []>} : vector<8x128xbf16>, vector<128x128xbf16>, vector<8x128xf32> -> vector<8x128xf32>
    %100 = arith.addf %73, %99 : vector<8x128xf32>
    %101 = vector.extract_strided_slice %6 {offsets = [0, 384], sizes = [8, 128], strides = [1, 1]} : vector<16x512xf32> to vector<8x128xf32>
    %102 = vector.extract_strided_slice %13 {offsets = [0, 384], sizes = [8, 128], strides = [1, 1]} : vector<16x1024xf32> to vector<8x128xf32>
    %103 = vector.extract_strided_slice %13 {offsets = [0, 896], sizes = [8, 128], strides = [1, 1]} : vector<16x1024xf32> to vector<8x128xf32>
    %104 = arith.truncf %101 : vector<8x128xf32> to vector<8x128xbf16>
    %105 = arith.truncf %102 : vector<8x128xf32> to vector<8x128xbf16>
    %cst_47 = arith.constant dense<0.000000e+00> : vector<8x8xf32>
    %106 = tpu.matmul %104, %105, %cst_47 {dimension_numbers = #tpu.dot_dimension_numbers<[1], [1], [0], [0], [0, 0, 1, 0], [], []>} : vector<8x128xbf16>, vector<8x128xbf16>, vector<8x8xf32> -> vector<8x8xf32>
    %cst_48 = arith.constant 0.353553385 : f32
    %107 = vector.broadcast %cst_48 : f32 to vector<8x8xf32>
    %108 = arith.mulf %106, %107 : vector<8x8xf32>
    %109 = vector.broadcast %18 : vector<1x8xf32> to vector<8x8xf32>
    %110 = arith.addf %108, %109 : vector<8x8xf32>
    %cst_49 = arith.constant dense<0xFF800000> : vector<8xf32>
    %111 = vector.multi_reduction <maximumf>, %110, %cst_49 [1] : vector<8x8xf32> to vector<8xf32>
    %112 = vector.shape_cast %111 : vector<8xf32> to vector<8x1xf32>
    %113 = vector.broadcast %112 : vector<8x1xf32> to vector<8x8xf32>
    %114 = arith.subf %110, %113 : vector<8x8xf32>
    %115 = math.exp %114 : vector<8x8xf32>
    %cst_50 = arith.constant dense<0.000000e+00> : vector<8xf32>
    %116 = vector.multi_reduction <add>, %115, %cst_50 [1] : vector<8x8xf32> to vector<8xf32>
    %117 = vector.shape_cast %116 : vector<8xf32> to vector<8x1xf32>
    %118 = vector.broadcast %117 : vector<8x1xf32> to vector<8x8xf32>
    %119 = arith.divf %115, %118 : vector<8x8xf32>
    %120 = arith.truncf %119 : vector<8x8xf32> to vector<8x8xbf16>
    %121 = arith.truncf %103 : vector<8x128xf32> to vector<8x128xbf16>
    %cst_51 = arith.constant dense<0.000000e+00> : vector<8x128xf32>
    %122 = tpu.matmul %120, %121, %cst_51 {dimension_numbers = #tpu.dot_dimension_numbers<[1], [0], [0], [1], [0, 0, 1, 1], [], []>} : vector<8x8xbf16>, vector<8x128xbf16>, vector<8x128xf32> -> vector<8x128xf32>
    %123 = arith.truncf %122 : vector<8x128xf32> to vector<8x128xbf16>
    %c3 = arith.constant 3 : index
    %c0_52 = arith.constant 0 : index
    %c0_53 = arith.constant 0 : index
    %124 = vector.load %arg7[%c3, %c0_52, %c0_53] : memref<4x128x128xbf16, #tpu.memory_space<vmem>>, vector<1x128x128xbf16>
    %125 = vector.shape_cast %124 : vector<1x128x128xbf16> to vector<128x128xbf16>
    %cst_54 = arith.constant dense<0.000000e+00> : vector<8x128xf32>
    %126 = tpu.matmul %123, %125, %cst_54 {dimension_numbers = #tpu.dot_dimension_numbers<[1], [0], [0], [1], [0, 0, 1, 1], [], []>} : vector<8x128xbf16>, vector<128x128xbf16>, vector<8x128xf32> -> vector<8x128xf32>
    %127 = arith.addf %100, %126 : vector<8x128xf32>
    %128 = vector.extract_strided_slice %0 {offsets = [0, 0], sizes = [8, 128], strides = [1, 1]} : vector<16x128xf32> to vector<8x128xf32>
    %129 = arith.addf %128, %127 : vector<8x128xf32>
    %130 = vector.broadcast %14 : vector<1x128xf32> to vector<8x128xf32>
    %131 = arith.addf %129, %130 : vector<8x128xf32>
    %132 = tpu.iota {dimensions = array<i32: 1>} : vector<8x128xi32>
    %c32_i32 = arith.constant 32 : i32
    %133 = vector.broadcast %c32_i32 : i32 to vector<8x128xi32>
    %134 = arith.cmpi slt, %132, %133 : vector<8x128xi32>
    %135 = arith.extui %134 : vector<8x128xi1> to vector<8x128xi32>
    %136 = arith.sitofp %135 : vector<8x128xi32> to vector<8x128xf32>
    %cst_55 = arith.constant dense<0.000000e+00> : vector<8xf32>
    %137 = vector.multi_reduction <add>, %131, %cst_55 [1] : vector<8x128xf32> to vector<8xf32>
    %138 = vector.shape_cast %137 : vector<8xf32> to vector<8x1xf32>
    %cst_56 = arith.constant 3.125000e-02 : f32
    %139 = vector.broadcast %cst_56 : f32 to vector<8x1xf32>
    %140 = arith.mulf %138, %139 : vector<8x1xf32>
    %141 = vector.broadcast %140 : vector<8x1xf32> to vector<8x128xf32>
    %142 = arith.subf %131, %141 : vector<8x128xf32>
    %143 = arith.mulf %142, %136 : vector<8x128xf32>
    %144 = arith.mulf %143, %143 : vector<8x128xf32>
    %cst_57 = arith.constant dense<0.000000e+00> : vector<8xf32>
    %145 = vector.multi_reduction <add>, %144, %cst_57 [1] : vector<8x128xf32> to vector<8xf32>
    %146 = vector.shape_cast %145 : vector<8xf32> to vector<8x1xf32>
    %cst_58 = arith.constant 3.125000e-02 : f32
    %147 = vector.broadcast %cst_58 : f32 to vector<8x1xf32>
    %148 = arith.mulf %146, %147 : vector<8x1xf32>
    %cst_59 = arith.constant 9.99999974E-6 : f32
    %149 = vector.broadcast %cst_59 : f32 to vector<8x1xf32>
    %150 = arith.addf %148, %149 : vector<8x1xf32>
    %151 = math.rsqrt %150 : vector<8x1xf32>
    %152 = vector.broadcast %151 : vector<8x1xf32> to vector<8x128xf32>
    %153 = arith.mulf %143, %152 : vector<8x128xf32>
    %154 = vector.broadcast %15 : vector<1x128xf32> to vector<8x128xf32>
    %155 = arith.mulf %153, %154 : vector<8x128xf32>
    %156 = vector.broadcast %16 : vector<1x128xf32> to vector<8x128xf32>
    %157 = arith.addf %155, %156 : vector<8x128xf32>
    %c0_60 = arith.constant 0 : index
    %c0_61 = arith.constant 0 : index
    %158 = vector.load %arg12[%c0_60, %c0_61] : memref<16x128xf32, #tpu.memory_space<vmem>>, vector<8x128xf32>
    tpu.vector_store %arg12[%c0_60, %c0_61], %157 {strides = array<i32>} : memref<16x128xf32, #tpu.memory_space<vmem>>, vector<8x128xf32>,
    %c1_62 = arith.constant 1 : index
    %c0_63 = arith.constant 0 : index
    %c0_64 = arith.constant 0 : index
    %159 = vector.load %arg9[%c1_62, %c0_63, %c0_64] : memref<2x1x8xf32, #tpu.memory_space<vmem>>, vector<1x1x8xf32>
    %160 = vector.shape_cast %159 : vector<1x1x8xf32> to vector<1x8xf32>
    %cst_65 = arith.constant 0.000000e+00 : f32
    %161 = vector.broadcast %cst_65 : f32 to vector<8x128xf32>
    %162 = vector.extract_strided_slice %6 {offsets = [8, 0], sizes = [8, 128], strides = [1, 1]} : vector<16x512xf32> to vector<8x128xf32>
    %163 = vector.extract_strided_slice %13 {offsets = [8, 0], sizes = [8, 128], strides = [1, 1]} : vector<16x1024xf32> to vector<8x128xf32>
    %164 = vector.extract_strided_slice %13 {offsets = [8, 512], sizes = [8, 128], strides = [1, 1]} : vector<16x1024xf32> to vector<8x128xf32>
    %165 = arith.truncf %162 : vector<8x128xf32> to vector<8x128xbf16>
    %166 = arith.truncf %163 : vector<8x128xf32> to vector<8x128xbf16>
    %cst_66 = arith.constant dense<0.000000e+00> : vector<8x8xf32>
    %167 = tpu.matmul %165, %166, %cst_66 {dimension_numbers = #tpu.dot_dimension_numbers<[1], [1], [0], [0], [0, 0, 1, 0], [], []>} : vector<8x128xbf16>, vector<8x128xbf16>, vector<8x8xf32> -> vector<8x8xf32>
    %cst_67 = arith.constant 0.353553385 : f32
    %168 = vector.broadcast %cst_67 : f32 to vector<8x8xf32>
    %169 = arith.mulf %167, %168 : vector<8x8xf32>
    %170 = vector.broadcast %160 : vector<1x8xf32> to vector<8x8xf32>
    %171 = arith.addf %169, %170 : vector<8x8xf32>
    %cst_68 = arith.constant dense<0xFF800000> : vector<8xf32>
    %172 = vector.multi_reduction <maximumf>, %171, %cst_68 [1] : vector<8x8xf32> to vector<8xf32>
    %173 = vector.shape_cast %172 : vector<8xf32> to vector<8x1xf32>
    %174 = vector.broadcast %173 : vector<8x1xf32> to vector<8x8xf32>
    %175 = arith.subf %171, %174 : vector<8x8xf32>
    %176 = math.exp %175 : vector<8x8xf32>
    %cst_69 = arith.constant dense<0.000000e+00> : vector<8xf32>
    %177 = vector.multi_reduction <add>, %176, %cst_69 [1] : vector<8x8xf32> to vector<8xf32>
    %178 = vector.shape_cast %177 : vector<8xf32> to vector<8x1xf32>
    %179 = vector.broadcast %178 : vector<8x1xf32> to vector<8x8xf32>
    %180 = arith.divf %176, %179 : vector<8x8xf32>
    %181 = arith.truncf %180 : vector<8x8xf32> to vector<8x8xbf16>
    %182 = arith.truncf %164 : vector<8x128xf32> to vector<8x128xbf16>
    %cst_70 = arith.constant dense<0.000000e+00> : vector<8x128xf32>
    %183 = tpu.matmul %181, %182, %cst_70 {dimension_numbers = #tpu.dot_dimension_numbers<[1], [0], [0], [1], [0, 0, 1, 1], [], []>} : vector<8x8xbf16>, vector<8x128xbf16>, vector<8x128xf32> -> vector<8x128xf32>
    %184 = arith.truncf %183 : vector<8x128xf32> to vector<8x128xbf16>
    %c0_71 = arith.constant 0 : index
    %c0_72 = arith.constant 0 : index
    %c0_73 = arith.constant 0 : index
    %185 = vector.load %arg7[%c0_71, %c0_72, %c0_73] : memref<4x128x128xbf16, #tpu.memory_space<vmem>>, vector<1x128x128xbf16>
    %186 = vector.shape_cast %185 : vector<1x128x128xbf16> to vector<128x128xbf16>
    %cst_74 = arith.constant dense<0.000000e+00> : vector<8x128xf32>
    %187 = tpu.matmul %184, %186, %cst_74 {dimension_numbers = #tpu.dot_dimension_numbers<[1], [0], [0], [1], [0, 0, 1, 1], [], []>} : vector<8x128xbf16>, vector<128x128xbf16>, vector<8x128xf32> -> vector<8x128xf32>
    %188 = arith.addf %161, %187 : vector<8x128xf32>
    %189 = vector.extract_strided_slice %6 {offsets = [8, 128], sizes = [8, 128], strides = [1, 1]} : vector<16x512xf32> to vector<8x128xf32>
    %190 = vector.extract_strided_slice %13 {offsets = [8, 128], sizes = [8, 128], strides = [1, 1]} : vector<16x1024xf32> to vector<8x128xf32>
    %191 = vector.extract_strided_slice %13 {offsets = [8, 640], sizes = [8, 128], strides = [1, 1]} : vector<16x1024xf32> to vector<8x128xf32>
    %192 = arith.truncf %189 : vector<8x128xf32> to vector<8x128xbf16>
    %193 = arith.truncf %190 : vector<8x128xf32> to vector<8x128xbf16>
    %cst_75 = arith.constant dense<0.000000e+00> : vector<8x8xf32>
    %194 = tpu.matmul %192, %193, %cst_75 {dimension_numbers = #tpu.dot_dimension_numbers<[1], [1], [0], [0], [0, 0, 1, 0], [], []>} : vector<8x128xbf16>, vector<8x128xbf16>, vector<8x8xf32> -> vector<8x8xf32>
    %cst_76 = arith.constant 0.353553385 : f32
    %195 = vector.broadcast %cst_76 : f32 to vector<8x8xf32>
    %196 = arith.mulf %194, %195 : vector<8x8xf32>
    %197 = vector.broadcast %160 : vector<1x8xf32> to vector<8x8xf32>
    %198 = arith.addf %196, %197 : vector<8x8xf32>
    %cst_77 = arith.constant dense<0xFF800000> : vector<8xf32>
    %199 = vector.multi_reduction <maximumf>, %198, %cst_77 [1] : vector<8x8xf32> to vector<8xf32>
    %200 = vector.shape_cast %199 : vector<8xf32> to vector<8x1xf32>
    %201 = vector.broadcast %200 : vector<8x1xf32> to vector<8x8xf32>
    %202 = arith.subf %198, %201 : vector<8x8xf32>
    %203 = math.exp %202 : vector<8x8xf32>
    %cst_78 = arith.constant dense<0.000000e+00> : vector<8xf32>
    %204 = vector.multi_reduction <add>, %203, %cst_78 [1] : vector<8x8xf32> to vector<8xf32>
    %205 = vector.shape_cast %204 : vector<8xf32> to vector<8x1xf32>
    %206 = vector.broadcast %205 : vector<8x1xf32> to vector<8x8xf32>
    %207 = arith.divf %203, %206 : vector<8x8xf32>
    %208 = arith.truncf %207 : vector<8x8xf32> to vector<8x8xbf16>
    %209 = arith.truncf %191 : vector<8x128xf32> to vector<8x128xbf16>
    %cst_79 = arith.constant dense<0.000000e+00> : vector<8x128xf32>
    %210 = tpu.matmul %208, %209, %cst_79 {dimension_numbers = #tpu.dot_dimension_numbers<[1], [0], [0], [1], [0, 0, 1, 1], [], []>} : vector<8x8xbf16>, vector<8x128xbf16>, vector<8x128xf32> -> vector<8x128xf32>
    %211 = arith.truncf %210 : vector<8x128xf32> to vector<8x128xbf16>
    %c1_80 = arith.constant 1 : index
    %c0_81 = arith.constant 0 : index
    %c0_82 = arith.constant 0 : index
    %212 = vector.load %arg7[%c1_80, %c0_81, %c0_82] : memref<4x128x128xbf16, #tpu.memory_space<vmem>>, vector<1x128x128xbf16>
    %213 = vector.shape_cast %212 : vector<1x128x128xbf16> to vector<128x128xbf16>
    %cst_83 = arith.constant dense<0.000000e+00> : vector<8x128xf32>
    %214 = tpu.matmul %211, %213, %cst_83 {dimension_numbers = #tpu.dot_dimension_numbers<[1], [0], [0], [1], [0, 0, 1, 1], [], []>} : vector<8x128xbf16>, vector<128x128xbf16>, vector<8x128xf32> -> vector<8x128xf32>
    %215 = arith.addf %188, %214 : vector<8x128xf32>
    %216 = vector.extract_strided_slice %6 {offsets = [8, 256], sizes = [8, 128], strides = [1, 1]} : vector<16x512xf32> to vector<8x128xf32>
    %217 = vector.extract_strided_slice %13 {offsets = [8, 256], sizes = [8, 128], strides = [1, 1]} : vector<16x1024xf32> to vector<8x128xf32>
    %218 = vector.extract_strided_slice %13 {offsets = [8, 768], sizes = [8, 128], strides = [1, 1]} : vector<16x1024xf32> to vector<8x128xf32>
    %219 = arith.truncf %216 : vector<8x128xf32> to vector<8x128xbf16>
    %220 = arith.truncf %217 : vector<8x128xf32> to vector<8x128xbf16>
    %cst_84 = arith.constant dense<0.000000e+00> : vector<8x8xf32>
    %221 = tpu.matmul %219, %220, %cst_84 {dimension_numbers = #tpu.dot_dimension_numbers<[1], [1], [0], [0], [0, 0, 1, 0], [], []>} : vector<8x128xbf16>, vector<8x128xbf16>, vector<8x8xf32> -> vector<8x8xf32>
    %cst_85 = arith.constant 0.353553385 : f32
    %222 = vector.broadcast %cst_85 : f32 to vector<8x8xf32>
    %223 = arith.mulf %221, %222 : vector<8x8xf32>
    %224 = vector.broadcast %160 : vector<1x8xf32> to vector<8x8xf32>
    %225 = arith.addf %223, %224 : vector<8x8xf32>
    %cst_86 = arith.constant dense<0xFF800000> : vector<8xf32>
    %226 = vector.multi_reduction <maximumf>, %225, %cst_86 [1] : vector<8x8xf32> to vector<8xf32>
    %227 = vector.shape_cast %226 : vector<8xf32> to vector<8x1xf32>
    %228 = vector.broadcast %227 : vector<8x1xf32> to vector<8x8xf32>
    %229 = arith.subf %225, %228 : vector<8x8xf32>
    %230 = math.exp %229 : vector<8x8xf32>
    %cst_87 = arith.constant dense<0.000000e+00> : vector<8xf32>
    %231 = vector.multi_reduction <add>, %230, %cst_87 [1] : vector<8x8xf32> to vector<8xf32>
    %232 = vector.shape_cast %231 : vector<8xf32> to vector<8x1xf32>
    %233 = vector.broadcast %232 : vector<8x1xf32> to vector<8x8xf32>
    %234 = arith.divf %230, %233 : vector<8x8xf32>
    %235 = arith.truncf %234 : vector<8x8xf32> to vector<8x8xbf16>
    %236 = arith.truncf %218 : vector<8x128xf32> to vector<8x128xbf16>
    %cst_88 = arith.constant dense<0.000000e+00> : vector<8x128xf32>
    %237 = tpu.matmul %235, %236, %cst_88 {dimension_numbers = #tpu.dot_dimension_numbers<[1], [0], [0], [1], [0, 0, 1, 1], [], []>} : vector<8x8xbf16>, vector<8x128xbf16>, vector<8x128xf32> -> vector<8x128xf32>
    %238 = arith.truncf %237 : vector<8x128xf32> to vector<8x128xbf16>
    %c2_89 = arith.constant 2 : index
    %c0_90 = arith.constant 0 : index
    %c0_91 = arith.constant 0 : index
    %239 = vector.load %arg7[%c2_89, %c0_90, %c0_91] : memref<4x128x128xbf16, #tpu.memory_space<vmem>>, vector<1x128x128xbf16>
    %240 = vector.shape_cast %239 : vector<1x128x128xbf16> to vector<128x128xbf16>
    %cst_92 = arith.constant dense<0.000000e+00> : vector<8x128xf32>
    %241 = tpu.matmul %238, %240, %cst_92 {dimension_numbers = #tpu.dot_dimension_numbers<[1], [0], [0], [1], [0, 0, 1, 1], [], []>} : vector<8x128xbf16>, vector<128x128xbf16>, vector<8x128xf32> -> vector<8x128xf32>
    %242 = arith.addf %215, %241 : vector<8x128xf32>
    %243 = vector.extract_strided_slice %6 {offsets = [8, 384], sizes = [8, 128], strides = [1, 1]} : vector<16x512xf32> to vector<8x128xf32>
    %244 = vector.extract_strided_slice %13 {offsets = [8, 384], sizes = [8, 128], strides = [1, 1]} : vector<16x1024xf32> to vector<8x128xf32>
    %245 = vector.extract_strided_slice %13 {offsets = [8, 896], sizes = [8, 128], strides = [1, 1]} : vector<16x1024xf32> to vector<8x128xf32>
    %246 = arith.truncf %243 : vector<8x128xf32> to vector<8x128xbf16>
    %247 = arith.truncf %244 : vector<8x128xf32> to vector<8x128xbf16>
    %cst_93 = arith.constant dense<0.000000e+00> : vector<8x8xf32>
    %248 = tpu.matmul %246, %247, %cst_93 {dimension_numbers = #tpu.dot_dimension_numbers<[1], [1], [0], [0], [0, 0, 1, 0], [], []>} : vector<8x128xbf16>, vector<8x128xbf16>, vector<8x8xf32> -> vector<8x8xf32>
    %cst_94 = arith.constant 0.353553385 : f32
    %249 = vector.broadcast %cst_94 : f32 to vector<8x8xf32>
    %250 = arith.mulf %248, %249 : vector<8x8xf32>
    %251 = vector.broadcast %160 : vector<1x8xf32> to vector<8x8xf32>
    %252 = arith.addf %250, %251 : vector<8x8xf32>
    %cst_95 = arith.constant dense<0xFF800000> : vector<8xf32>
    %253 = vector.multi_reduction <maximumf>, %252, %cst_95 [1] : vector<8x8xf32> to vector<8xf32>
    %254 = vector.shape_cast %253 : vector<8xf32> to vector<8x1xf32>
    %255 = vector.broadcast %254 : vector<8x1xf32> to vector<8x8xf32>
    %256 = arith.subf %252, %255 : vector<8x8xf32>
    %257 = math.exp %256 : vector<8x8xf32>
    %cst_96 = arith.constant dense<0.000000e+00> : vector<8xf32>
    %258 = vector.multi_reduction <add>, %257, %cst_96 [1] : vector<8x8xf32> to vector<8xf32>
    %259 = vector.shape_cast %258 : vector<8xf32> to vector<8x1xf32>
    %260 = vector.broadcast %259 : vector<8x1xf32> to vector<8x8xf32>
    %261 = arith.divf %257, %260 : vector<8x8xf32>
    %262 = arith.truncf %261 : vector<8x8xf32> to vector<8x8xbf16>
    %263 = arith.truncf %245 : vector<8x128xf32> to vector<8x128xbf16>
    %cst_97 = arith.constant dense<0.000000e+00> : vector<8x128xf32>
    %264 = tpu.matmul %262, %263, %cst_97 {dimension_numbers = #tpu.dot_dimension_numbers<[1], [0], [0], [1], [0, 0, 1, 1], [], []>} : vector<8x8xbf16>, vector<8x128xbf16>, vector<8x128xf32> -> vector<8x128xf32>
    %265 = arith.truncf %264 : vector<8x128xf32> to vector<8x128xbf16>
    %c3_98 = arith.constant 3 : index
    %c0_99 = arith.constant 0 : index
    %c0_100 = arith.constant 0 : index
    %266 = vector.load %arg7[%c3_98, %c0_99, %c0_100] : memref<4x128x128xbf16, #tpu.memory_space<vmem>>, vector<1x128x128xbf16>
    %267 = vector.shape_cast %266 : vector<1x128x128xbf16> to vector<128x128xbf16>
    %cst_101 = arith.constant dense<0.000000e+00> : vector<8x128xf32>
    %268 = tpu.matmul %265, %267, %cst_101 {dimension_numbers = #tpu.dot_dimension_numbers<[1], [0], [0], [1], [0, 0, 1, 1], [], []>} : vector<8x128xbf16>, vector<128x128xbf16>, vector<8x128xf32> -> vector<8x128xf32>
    %269 = arith.addf %242, %268 : vector<8x128xf32>
    %270 = vector.extract_strided_slice %0 {offsets = [8, 0], sizes = [8, 128], strides = [1, 1]} : vector<16x128xf32> to vector<8x128xf32>
    %271 = arith.addf %270, %269 : vector<8x128xf32>
    %272 = vector.broadcast %14 : vector<1x128xf32> to vector<8x128xf32>
    %273 = arith.addf %271, %272 : vector<8x128xf32>
    %274 = tpu.iota {dimensions = array<i32: 1>} : vector<8x128xi32>
    %c32_i32_102 = arith.constant 32 : i32
    %275 = vector.broadcast %c32_i32_102 : i32 to vector<8x128xi32>
    %276 = arith.cmpi slt, %274, %275 : vector<8x128xi32>
    %277 = arith.extui %276 : vector<8x128xi1> to vector<8x128xi32>
    %278 = arith.sitofp %277 : vector<8x128xi32> to vector<8x128xf32>
    %cst_103 = arith.constant dense<0.000000e+00> : vector<8xf32>
    %279 = vector.multi_reduction <add>, %273, %cst_103 [1] : vector<8x128xf32> to vector<8xf32>
    %280 = vector.shape_cast %279 : vector<8xf32> to vector<8x1xf32>
    %cst_104 = arith.constant 3.125000e-02 : f32
    %281 = vector.broadcast %cst_104 : f32 to vector<8x1xf32>
    %282 = arith.mulf %280, %281 : vector<8x1xf32>
    %283 = vector.broadcast %282 : vector<8x1xf32> to vector<8x128xf32>
    %284 = arith.subf %273, %283 : vector<8x128xf32>
    %285 = arith.mulf %284, %278 : vector<8x128xf32>
    %286 = arith.mulf %285, %285 : vector<8x128xf32>
    %cst_105 = arith.constant dense<0.000000e+00> : vector<8xf32>
    %287 = vector.multi_reduction <add>, %286, %cst_105 [1] : vector<8x128xf32> to vector<8xf32>
    %288 = vector.shape_cast %287 : vector<8xf32> to vector<8x1xf32>
    %cst_106 = arith.constant 3.125000e-02 : f32
    %289 = vector.broadcast %cst_106 : f32 to vector<8x1xf32>
    %290 = arith.mulf %288, %289 : vector<8x1xf32>
    %cst_107 = arith.constant 9.99999974E-6 : f32
    %291 = vector.broadcast %cst_107 : f32 to vector<8x1xf32>
    %292 = arith.addf %290, %291 : vector<8x1xf32>
    %293 = math.rsqrt %292 : vector<8x1xf32>
    %294 = vector.broadcast %293 : vector<8x1xf32> to vector<8x128xf32>
    %295 = arith.mulf %285, %294 : vector<8x128xf32>
    %296 = vector.broadcast %15 : vector<1x128xf32> to vector<8x128xf32>
    %297 = arith.mulf %295, %296 : vector<8x128xf32>
    %298 = vector.broadcast %16 : vector<1x128xf32> to vector<8x128xf32>
    %299 = arith.addf %297, %298 : vector<8x128xf32>
    %c8 = arith.constant 8 : index
    %c0_108 = arith.constant 0 : index
    %300 = vector.load %arg12[%c8, %c0_108] : memref<16x128xf32, #tpu.memory_space<vmem>>, vector<8x128xf32>
    tpu.vector_store %arg12[%c8, %c0_108], %299 {strides = array<i32>} : memref<16x128xf32, #tpu.memory_space<vmem>>, vector<8x128xf32>,
    return
  }
  func.func @transform_0(%arg0: i32) -> (i32, i32) {
    %c0_i32 = arith.constant 0 : i32
    %c0_i32_0 = arith.constant 0 : i32
    %c0_i32_1 = arith.constant 0 : i32
    return %c0_i32, %c0_i32_0 : i32, i32
  }
  func.func @transform_1(%arg0: i32) -> (i32, i32) {
    %c0_i32 = arith.constant 0 : i32
    %c0_i32_0 = arith.constant 0 : i32
    %c0_i32_1 = arith.constant 0 : i32
    return %c0_i32, %c0_i32_0 : i32, i32
  }
  func.func @transform_2(%arg0: i32) -> (i32, i32) {
    %c0_i32 = arith.constant 0 : i32
    %c0_i32_0 = arith.constant 0 : i32
    %c0_i32_1 = arith.constant 0 : i32
    return %c0_i32, %c0_i32_0 : i32, i32
  }
  func.func @transform_3(%arg0: i32) -> (i32, i32) {
    %c0_i32 = arith.constant 0 : i32
    %c0_i32_0 = arith.constant 0 : i32
    %c0_i32_1 = arith.constant 0 : i32
    return %c0_i32, %c0_i32_0 : i32, i32
  }
  func.func @transform_4(%arg0: i32) -> (i32, i32) {
    %c0_i32 = arith.constant 0 : i32
    %c0_i32_0 = arith.constant 0 : i32
    %c0_i32_1 = arith.constant 0 : i32
    return %c0_i32, %c0_i32_0 : i32, i32
  }
  func.func @transform_5(%arg0: i32) -> (i32, i32) {
    %c0_i32 = arith.constant 0 : i32
    %c0_i32_0 = arith.constant 0 : i32
    %c0_i32_1 = arith.constant 0 : i32
    return %c0_i32, %c0_i32_0 : i32, i32
  }
  func.func @transform_6(%arg0: i32) -> (i32, i32, i32) {
    %c0_i32 = arith.constant 0 : i32
    %c0_i32_0 = arith.constant 0 : i32
    %c0_i32_1 = arith.constant 0 : i32
    %c0_i32_2 = arith.constant 0 : i32
    return %c0_i32, %c0_i32_0, %c0_i32_1 : i32, i32, i32
  }
  func.func @transform_7(%arg0: i32) -> (i32, i32) {
    %c0_i32 = arith.constant 0 : i32
    %c0_i32_0 = arith.constant 0 : i32
    %c0_i32_1 = arith.constant 0 : i32
    return %c0_i32, %c0_i32_0 : i32, i32
  }
  func.func @transform_8(%arg0: i32) -> (i32, i32, i32) {
    %c0_i32 = arith.constant 0 : i32
    %c0_i32_0 = arith.constant 0 : i32
    %c0_i32_1 = arith.constant 0 : i32
    %c0_i32_2 = arith.constant 0 : i32
    return %c0_i32, %c0_i32_0, %c0_i32_1 : i32, i32, i32
  }
  func.func @transform_9(%arg0: i32) -> (i32, i32) {
    %c0_i32 = arith.constant 0 : i32
    %c0_i32_0 = arith.constant 0 : i32
    %c0_i32_1 = arith.constant 0 : i32
    return %c0_i32, %c0_i32_0 : i32, i32
  }
  func.func @transform_10(%arg0: i32) -> (i32, i32) {
    %c0_i32 = arith.constant 0 : i32
    %c0_i32_0 = arith.constant 0 : i32
    %c0_i32_1 = arith.constant 0 : i32
    return %c0_i32, %c0_i32_0 : i32, i32
  }
  func.func @transform_11(%arg0: i32) -> (i32, i32) {
    %c0_i32 = arith.constant 0 : i32
    %c0_i32_0 = arith.constant 0 : i32
    %c0_i32_1 = arith.constant 0 : i32
    return %c0_i32, %c0_i32_0 : i32, i32
  }
}

module attributes {stable_mosaic.version = 11 : i64} {
  func.func @_ffn_block_kernel(%arg0: i32, %arg1: memref<16x128xf32, #tpu.memory_space<vmem>>, %arg2: memref<128x128xbf16, #tpu.memory_space<vmem>>, %arg3: memref<1x128xf32, #tpu.memory_space<vmem>>, %arg4: memref<128x128xbf16, #tpu.memory_space<vmem>>, %arg5: memref<1x128xf32, #tpu.memory_space<vmem>>, %arg6: memref<1x128xf32, #tpu.memory_space<vmem>>, %arg7: memref<1x128xf32, #tpu.memory_space<vmem>>, %arg8: memref<16x128xf32, #tpu.memory_space<vmem>>) attributes {dimension_semantics = [#tpu.dimension_semantics<arbitrary>], iteration_bounds = array<i64: 1>, scalar_prefetch = 0 : i64, scratch_operands = 0 : i64, tpu.core_type = #tpu.core_type<tc>, window_params = [{pipeline_mode = #tpu.pipeline_mode<synchronous>, transform_indices = @transform_0, window_bounds = array<i64: 16, 128>}, {pipeline_mode = #tpu.pipeline_mode<synchronous>, transform_indices = @transform_1, window_bounds = array<i64: 128, 128>}, {pipeline_mode = #tpu.pipeline_mode<synchronous>, transform_indices = @transform_2, window_bounds = array<i64: 1, 128>}, {pipeline_mode = #tpu.pipeline_mode<synchronous>, transform_indices = @transform_3, window_bounds = array<i64: 128, 128>}, {pipeline_mode = #tpu.pipeline_mode<synchronous>, transform_indices = @transform_4, window_bounds = array<i64: 1, 128>}, {pipeline_mode = #tpu.pipeline_mode<synchronous>, transform_indices = @transform_5, window_bounds = array<i64: 1, 128>}, {pipeline_mode = #tpu.pipeline_mode<synchronous>, transform_indices = @transform_6, window_bounds = array<i64: 1, 128>}, {pipeline_mode = #tpu.pipeline_mode<synchronous>, transform_indices = @transform_7, window_bounds = array<i64: 16, 128>}]} {
    %c0 = arith.constant 0 : index
    %c0_0 = arith.constant 0 : index
    %0 = vector.load %arg1[%c0, %c0_0] : memref<16x128xf32, #tpu.memory_space<vmem>>, vector<16x128xf32>
    %1 = arith.truncf %0 : vector<16x128xf32> to vector<16x128xbf16>
    %c0_1 = arith.constant 0 : index
    %c0_2 = arith.constant 0 : index
    %2 = vector.load %arg2[%c0_1, %c0_2] : memref<128x128xbf16, #tpu.memory_space<vmem>>, vector<128x128xbf16>
    %cst = arith.constant dense<0.000000e+00> : vector<16x128xf32>
    %3 = tpu.matmul %1, %2, %cst {dimension_numbers = #tpu.dot_dimension_numbers<[1], [0], [0], [1], [0, 0, 1, 1], [], []>} : vector<16x128xbf16>, vector<128x128xbf16>, vector<16x128xf32> -> vector<16x128xf32>
    %c0_3 = arith.constant 0 : index
    %c0_4 = arith.constant 0 : index
    %4 = vector.load %arg3[%c0_3, %c0_4] : memref<1x128xf32, #tpu.memory_space<vmem>>, vector<1x128xf32>
    %5 = vector.broadcast %4 : vector<1x128xf32> to vector<16x128xf32>
    %6 = arith.addf %3, %5 : vector<16x128xf32>
    %cst_5 = arith.constant 0.000000e+00 : f32
    %7 = vector.broadcast %cst_5 : f32 to vector<16x128xf32>
    %8 = arith.maximumf %6, %7 : vector<16x128xf32>
    %9 = arith.truncf %8 : vector<16x128xf32> to vector<16x128xbf16>
    %c0_6 = arith.constant 0 : index
    %c0_7 = arith.constant 0 : index
    %10 = vector.load %arg4[%c0_6, %c0_7] : memref<128x128xbf16, #tpu.memory_space<vmem>>, vector<128x128xbf16>
    %cst_8 = arith.constant dense<0.000000e+00> : vector<16x128xf32>
    %11 = tpu.matmul %9, %10, %cst_8 {dimension_numbers = #tpu.dot_dimension_numbers<[1], [0], [0], [1], [0, 0, 1, 1], [], []>} : vector<16x128xbf16>, vector<128x128xbf16>, vector<16x128xf32> -> vector<16x128xf32>
    %c0_9 = arith.constant 0 : index
    %c0_10 = arith.constant 0 : index
    %12 = vector.load %arg5[%c0_9, %c0_10] : memref<1x128xf32, #tpu.memory_space<vmem>>, vector<1x128xf32>
    %13 = vector.broadcast %12 : vector<1x128xf32> to vector<16x128xf32>
    %14 = arith.addf %11, %13 : vector<16x128xf32>
    %15 = arith.addf %0, %14 : vector<16x128xf32>
    %c0_11 = arith.constant 0 : index
    %c0_12 = arith.constant 0 : index
    %16 = vector.load %arg6[%c0_11, %c0_12] : memref<1x128xf32, #tpu.memory_space<vmem>>, vector<1x128xf32>
    %c0_13 = arith.constant 0 : index
    %c0_14 = arith.constant 0 : index
    %17 = vector.load %arg7[%c0_13, %c0_14] : memref<1x128xf32, #tpu.memory_space<vmem>>, vector<1x128xf32>
    %18 = tpu.iota {dimensions = array<i32: 1>} : vector<16x128xi32>
    %c32_i32 = arith.constant 32 : i32
    %19 = vector.broadcast %c32_i32 : i32 to vector<16x128xi32>
    %20 = arith.cmpi slt, %18, %19 : vector<16x128xi32>
    %21 = arith.extui %20 : vector<16x128xi1> to vector<16x128xi32>
    %22 = arith.sitofp %21 : vector<16x128xi32> to vector<16x128xf32>
    %cst_15 = arith.constant dense<0.000000e+00> : vector<16xf32>
    %23 = vector.multi_reduction <add>, %15, %cst_15 [1] : vector<16x128xf32> to vector<16xf32>
    %24 = vector.shape_cast %23 : vector<16xf32> to vector<16x1xf32>
    %cst_16 = arith.constant 3.125000e-02 : f32
    %25 = vector.broadcast %cst_16 : f32 to vector<16x1xf32>
    %26 = arith.mulf %24, %25 : vector<16x1xf32>
    %27 = vector.broadcast %26 : vector<16x1xf32> to vector<16x128xf32>
    %28 = arith.subf %15, %27 : vector<16x128xf32>
    %29 = arith.mulf %28, %22 : vector<16x128xf32>
    %30 = arith.mulf %29, %29 : vector<16x128xf32>
    %cst_17 = arith.constant dense<0.000000e+00> : vector<16xf32>
    %31 = vector.multi_reduction <add>, %30, %cst_17 [1] : vector<16x128xf32> to vector<16xf32>
    %32 = vector.shape_cast %31 : vector<16xf32> to vector<16x1xf32>
    %cst_18 = arith.constant 3.125000e-02 : f32
    %33 = vector.broadcast %cst_18 : f32 to vector<16x1xf32>
    %34 = arith.mulf %32, %33 : vector<16x1xf32>
    %cst_19 = arith.constant 9.99999974E-6 : f32
    %35 = vector.broadcast %cst_19 : f32 to vector<16x1xf32>
    %36 = arith.addf %34, %35 : vector<16x1xf32>
    %37 = math.rsqrt %36 : vector<16x1xf32>
    %38 = vector.broadcast %37 : vector<16x1xf32> to vector<16x128xf32>
    %39 = arith.mulf %29, %38 : vector<16x128xf32>
    %40 = vector.broadcast %16 : vector<1x128xf32> to vector<16x128xf32>
    %41 = arith.mulf %39, %40 : vector<16x128xf32>
    %42 = vector.broadcast %17 : vector<1x128xf32> to vector<16x128xf32>
    %43 = arith.addf %41, %42 : vector<16x128xf32>
    %c0_20 = arith.constant 0 : index
    %c0_21 = arith.constant 0 : index
    %44 = vector.load %arg8[%c0_20, %c0_21] : memref<16x128xf32, #tpu.memory_space<vmem>>, vector<16x128xf32>
    tpu.vector_store %arg8[%c0_20, %c0_21], %43 {strides = array<i32>} : memref<16x128xf32, #tpu.memory_space<vmem>>, vector<16x128xf32>,
    return
  }
  func.func @transform_0(%arg0: i32) -> (i32, i32) {
    %c0_i32 = arith.constant 0 : i32
    %c0_i32_0 = arith.constant 0 : i32
    %c0_i32_1 = arith.constant 0 : i32
    return %c0_i32, %c0_i32_0 : i32, i32
  }
  func.func @transform_1(%arg0: i32) -> (i32, i32) {
    %c0_i32 = arith.constant 0 : i32
    %c0_i32_0 = arith.constant 0 : i32
    %c0_i32_1 = arith.constant 0 : i32
    return %c0_i32, %c0_i32_0 : i32, i32
  }
  func.func @transform_2(%arg0: i32) -> (i32, i32) {
    %c0_i32 = arith.constant 0 : i32
    %c0_i32_0 = arith.constant 0 : i32
    %c0_i32_1 = arith.constant 0 : i32
    return %c0_i32, %c0_i32_0 : i32, i32
  }
  func.func @transform_3(%arg0: i32) -> (i32, i32) {
    %c0_i32 = arith.constant 0 : i32
    %c0_i32_0 = arith.constant 0 : i32
    %c0_i32_1 = arith.constant 0 : i32
    return %c0_i32, %c0_i32_0 : i32, i32
  }
  func.func @transform_4(%arg0: i32) -> (i32, i32) {
    %c0_i32 = arith.constant 0 : i32
    %c0_i32_0 = arith.constant 0 : i32
    %c0_i32_1 = arith.constant 0 : i32
    return %c0_i32, %c0_i32_0 : i32, i32
  }
  func.func @transform_5(%arg0: i32) -> (i32, i32) {
    %c0_i32 = arith.constant 0 : i32
    %c0_i32_0 = arith.constant 0 : i32
    %c0_i32_1 = arith.constant 0 : i32
    return %c0_i32, %c0_i32_0 : i32, i32
  }
  func.func @transform_6(%arg0: i32) -> (i32, i32) {
    %c0_i32 = arith.constant 0 : i32
    %c0_i32_0 = arith.constant 0 : i32
    %c0_i32_1 = arith.constant 0 : i32
    return %c0_i32, %c0_i32_0 : i32, i32
  }
  func.func @transform_7(%arg0: i32) -> (i32, i32) {
    %c0_i32 = arith.constant 0 : i32
    %c0_i32_0 = arith.constant 0 : i32
    %c0_i32_1 = arith.constant 0 : i32
    return %c0_i32, %c0_i32_0 : i32, i32
  }
}

module attributes {stable_mosaic.version = 11 : i64} {
  func.func @_ffn_block_kernel(%arg0: i32, %arg1: memref<16x128xf32, #tpu.memory_space<vmem>>, %arg2: memref<128x128xbf16, #tpu.memory_space<vmem>>, %arg3: memref<1x128xf32, #tpu.memory_space<vmem>>, %arg4: memref<128x128xbf16, #tpu.memory_space<vmem>>, %arg5: memref<1x128xf32, #tpu.memory_space<vmem>>, %arg6: memref<1x128xf32, #tpu.memory_space<vmem>>, %arg7: memref<1x128xf32, #tpu.memory_space<vmem>>, %arg8: memref<16x128xf32, #tpu.memory_space<vmem>>) attributes {dimension_semantics = [#tpu.dimension_semantics<arbitrary>], iteration_bounds = array<i64: 1>, scalar_prefetch = 0 : i64, scratch_operands = 0 : i64, tpu.core_type = #tpu.core_type<tc>, window_params = [{pipeline_mode = #tpu.pipeline_mode<synchronous>, transform_indices = @transform_0, window_bounds = array<i64: 16, 128>}, {pipeline_mode = #tpu.pipeline_mode<synchronous>, transform_indices = @transform_1, window_bounds = array<i64: 128, 128>}, {pipeline_mode = #tpu.pipeline_mode<synchronous>, transform_indices = @transform_2, window_bounds = array<i64: 1, 128>}, {pipeline_mode = #tpu.pipeline_mode<synchronous>, transform_indices = @transform_3, window_bounds = array<i64: 128, 128>}, {pipeline_mode = #tpu.pipeline_mode<synchronous>, transform_indices = @transform_4, window_bounds = array<i64: 1, 128>}, {pipeline_mode = #tpu.pipeline_mode<synchronous>, transform_indices = @transform_5, window_bounds = array<i64: 1, 128>}, {pipeline_mode = #tpu.pipeline_mode<synchronous>, transform_indices = @transform_6, window_bounds = array<i64: 1, 128>}, {pipeline_mode = #tpu.pipeline_mode<synchronous>, transform_indices = @transform_7, window_bounds = array<i64: 16, 128>}]} {
    %c0 = arith.constant 0 : index
    %c0_0 = arith.constant 0 : index
    %0 = vector.load %arg1[%c0, %c0_0] : memref<16x128xf32, #tpu.memory_space<vmem>>, vector<16x128xf32>
    %1 = arith.truncf %0 : vector<16x128xf32> to vector<16x128xbf16>
    %c0_1 = arith.constant 0 : index
    %c0_2 = arith.constant 0 : index
    %2 = vector.load %arg2[%c0_1, %c0_2] : memref<128x128xbf16, #tpu.memory_space<vmem>>, vector<128x128xbf16>
    %cst = arith.constant dense<0.000000e+00> : vector<16x128xf32>
    %3 = tpu.matmul %1, %2, %cst {dimension_numbers = #tpu.dot_dimension_numbers<[1], [0], [0], [1], [0, 0, 1, 1], [], []>} : vector<16x128xbf16>, vector<128x128xbf16>, vector<16x128xf32> -> vector<16x128xf32>
    %c0_3 = arith.constant 0 : index
    %c0_4 = arith.constant 0 : index
    %4 = vector.load %arg3[%c0_3, %c0_4] : memref<1x128xf32, #tpu.memory_space<vmem>>, vector<1x128xf32>
    %5 = vector.broadcast %4 : vector<1x128xf32> to vector<16x128xf32>
    %6 = arith.addf %3, %5 : vector<16x128xf32>
    %cst_5 = arith.constant 0.000000e+00 : f32
    %7 = vector.broadcast %cst_5 : f32 to vector<16x128xf32>
    %8 = arith.maximumf %6, %7 : vector<16x128xf32>
    %9 = arith.truncf %8 : vector<16x128xf32> to vector<16x128xbf16>
    %c0_6 = arith.constant 0 : index
    %c0_7 = arith.constant 0 : index
    %10 = vector.load %arg4[%c0_6, %c0_7] : memref<128x128xbf16, #tpu.memory_space<vmem>>, vector<128x128xbf16>
    %cst_8 = arith.constant dense<0.000000e+00> : vector<16x128xf32>
    %11 = tpu.matmul %9, %10, %cst_8 {dimension_numbers = #tpu.dot_dimension_numbers<[1], [0], [0], [1], [0, 0, 1, 1], [], []>} : vector<16x128xbf16>, vector<128x128xbf16>, vector<16x128xf32> -> vector<16x128xf32>
    %c0_9 = arith.constant 0 : index
    %c0_10 = arith.constant 0 : index
    %12 = vector.load %arg5[%c0_9, %c0_10] : memref<1x128xf32, #tpu.memory_space<vmem>>, vector<1x128xf32>
    %13 = vector.broadcast %12 : vector<1x128xf32> to vector<16x128xf32>
    %14 = arith.addf %11, %13 : vector<16x128xf32>
    %15 = arith.addf %0, %14 : vector<16x128xf32>
    %c0_11 = arith.constant 0 : index
    %c0_12 = arith.constant 0 : index
    %16 = vector.load %arg6[%c0_11, %c0_12] : memref<1x128xf32, #tpu.memory_space<vmem>>, vector<1x128xf32>
    %c0_13 = arith.constant 0 : index
    %c0_14 = arith.constant 0 : index
    %17 = vector.load %arg7[%c0_13, %c0_14] : memref<1x128xf32, #tpu.memory_space<vmem>>, vector<1x128xf32>
    %18 = tpu.iota {dimensions = array<i32: 1>} : vector<16x128xi32>
    %c32_i32 = arith.constant 32 : i32
    %19 = vector.broadcast %c32_i32 : i32 to vector<16x128xi32>
    %20 = arith.cmpi slt, %18, %19 : vector<16x128xi32>
    %21 = arith.extui %20 : vector<16x128xi1> to vector<16x128xi32>
    %22 = arith.sitofp %21 : vector<16x128xi32> to vector<16x128xf32>
    %cst_15 = arith.constant dense<0.000000e+00> : vector<16xf32>
    %23 = vector.multi_reduction <add>, %15, %cst_15 [1] : vector<16x128xf32> to vector<16xf32>
    %24 = vector.shape_cast %23 : vector<16xf32> to vector<16x1xf32>
    %cst_16 = arith.constant 3.125000e-02 : f32
    %25 = vector.broadcast %cst_16 : f32 to vector<16x1xf32>
    %26 = arith.mulf %24, %25 : vector<16x1xf32>
    %27 = vector.broadcast %26 : vector<16x1xf32> to vector<16x128xf32>
    %28 = arith.subf %15, %27 : vector<16x128xf32>
    %29 = arith.mulf %28, %22 : vector<16x128xf32>
    %30 = arith.mulf %29, %29 : vector<16x128xf32>
    %cst_17 = arith.constant dense<0.000000e+00> : vector<16xf32>
    %31 = vector.multi_reduction <add>, %30, %cst_17 [1] : vector<16x128xf32> to vector<16xf32>
    %32 = vector.shape_cast %31 : vector<16xf32> to vector<16x1xf32>
    %cst_18 = arith.constant 3.125000e-02 : f32
    %33 = vector.broadcast %cst_18 : f32 to vector<16x1xf32>
    %34 = arith.mulf %32, %33 : vector<16x1xf32>
    %cst_19 = arith.constant 9.99999974E-6 : f32
    %35 = vector.broadcast %cst_19 : f32 to vector<16x1xf32>
    %36 = arith.addf %34, %35 : vector<16x1xf32>
    %37 = math.rsqrt %36 : vector<16x1xf32>
    %38 = vector.broadcast %37 : vector<16x1xf32> to vector<16x128xf32>
    %39 = arith.mulf %29, %38 : vector<16x128xf32>
    %40 = vector.broadcast %16 : vector<1x128xf32> to vector<16x128xf32>
    %41 = arith.mulf %39, %40 : vector<16x128xf32>
    %42 = vector.broadcast %17 : vector<1x128xf32> to vector<16x128xf32>
    %43 = arith.addf %41, %42 : vector<16x128xf32>
    %c0_20 = arith.constant 0 : index
    %c0_21 = arith.constant 0 : index
    %44 = vector.load %arg8[%c0_20, %c0_21] : memref<16x128xf32, #tpu.memory_space<vmem>>, vector<16x128xf32>
    tpu.vector_store %arg8[%c0_20, %c0_21], %43 {strides = array<i32>} : memref<16x128xf32, #tpu.memory_space<vmem>>, vector<16x128xf32>,
    return
  }
  func.func @transform_0(%arg0: i32) -> (i32, i32) {
    %c0_i32 = arith.constant 0 : i32
    %c0_i32_0 = arith.constant 0 : i32
    %c0_i32_1 = arith.constant 0 : i32
    return %c0_i32, %c0_i32_0 : i32, i32
  }
  func.func @transform_1(%arg0: i32) -> (i32, i32) {
    %c0_i32 = arith.constant 0 : i32
    %c0_i32_0 = arith.constant 0 : i32
    %c0_i32_1 = arith.constant 0 : i32
    return %c0_i32, %c0_i32_0 : i32, i32
  }
  func.func @transform_2(%arg0: i32) -> (i32, i32) {
    %c0_i32 = arith.constant 0 : i32
    %c0_i32_0 = arith.constant 0 : i32
    %c0_i32_1 = arith.constant 0 : i32
    return %c0_i32, %c0_i32_0 : i32, i32
  }
  func.func @transform_3(%arg0: i32) -> (i32, i32) {
    %c0_i32 = arith.constant 0 : i32
    %c0_i32_0 = arith.constant 0 : i32
    %c0_i32_1 = arith.constant 0 : i32
    return %c0_i32, %c0_i32_0 : i32, i32
  }
  func.func @transform_4(%arg0: i32) -> (i32, i32) {
    %c0_i32 = arith.constant 0 : i32
    %c0_i32_0 = arith.constant 0 : i32
    %c0_i32_1 = arith.constant 0 : i32
    return %c0_i32, %c0_i32_0 : i32, i32
  }
  func.func @transform_5(%arg0: i32) -> (i32, i32) {
    %c0_i32 = arith.constant 0 : i32
    %c0_i32_0 = arith.constant 0 : i32
    %c0_i32_1 = arith.constant 0 : i32
    return %c0_i32, %c0_i32_0 : i32, i32
  }
  func.func @transform_6(%arg0: i32) -> (i32, i32) {
    %c0_i32 = arith.constant 0 : i32
    %c0_i32_0 = arith.constant 0 : i32
    %c0_i32_1 = arith.constant 0 : i32
    return %c0_i32, %c0_i32_0 : i32, i32
  }
  func.func @transform_7(%arg0: i32) -> (i32, i32) {
    %c0_i32 = arith.constant 0 : i32
    %c0_i32_0 = arith.constant 0 : i32
    %c0_i32_1 = arith.constant 0 : i32
    return %c0_i32, %c0_i32_0 : i32, i32
  }
}

module attributes {stable_mosaic.version = 11 : i64} {
  func.func @_mha_block_kernel(%arg0: i32, %arg1: memref<16x128xf32, #tpu.memory_space<vmem>>, %arg2: memref<16x128xf32, #tpu.memory_space<vmem>>, %arg3: memref<128x512xbf16, #tpu.memory_space<vmem>>, %arg4: memref<1x512xf32, #tpu.memory_space<vmem>>, %arg5: memref<128x1024xbf16, #tpu.memory_space<vmem>>, %arg6: memref<1x1024xf32, #tpu.memory_space<vmem>>, %arg7: memref<4x128x128xbf16, #tpu.memory_space<vmem>>, %arg8: memref<1x128xf32, #tpu.memory_space<vmem>>, %arg9: memref<2x1x8xf32, #tpu.memory_space<vmem>>, %arg10: memref<1x128xf32, #tpu.memory_space<vmem>>, %arg11: memref<1x128xf32, #tpu.memory_space<vmem>>, %arg12: memref<16x128xf32, #tpu.memory_space<vmem>>) attributes {dimension_semantics = [#tpu.dimension_semantics<arbitrary>], iteration_bounds = array<i64: 1>, scalar_prefetch = 0 : i64, scratch_operands = 0 : i64, tpu.core_type = #tpu.core_type<tc>, window_params = [{pipeline_mode = #tpu.pipeline_mode<synchronous>, transform_indices = @transform_0, window_bounds = array<i64: 16, 128>}, {pipeline_mode = #tpu.pipeline_mode<synchronous>, transform_indices = @transform_1, window_bounds = array<i64: 16, 128>}, {pipeline_mode = #tpu.pipeline_mode<synchronous>, transform_indices = @transform_2, window_bounds = array<i64: 128, 512>}, {pipeline_mode = #tpu.pipeline_mode<synchronous>, transform_indices = @transform_3, window_bounds = array<i64: 1, 512>}, {pipeline_mode = #tpu.pipeline_mode<synchronous>, transform_indices = @transform_4, window_bounds = array<i64: 128, 1024>}, {pipeline_mode = #tpu.pipeline_mode<synchronous>, transform_indices = @transform_5, window_bounds = array<i64: 1, 1024>}, {pipeline_mode = #tpu.pipeline_mode<synchronous>, transform_indices = @transform_6, window_bounds = array<i64: 4, 128, 128>}, {pipeline_mode = #tpu.pipeline_mode<synchronous>, transform_indices = @transform_7, window_bounds = array<i64: 1, 128>}, {pipeline_mode = #tpu.pipeline_mode<synchronous>, transform_indices = @transform_8, window_bounds = array<i64: 2, 1, 8>}, {pipeline_mode = #tpu.pipeline_mode<synchronous>, transform_indices = @transform_9, window_bounds = array<i64: 1, 128>}, {pipeline_mode = #tpu.pipeline_mode<synchronous>, transform_indices = @transform_10, window_bounds = array<i64: 1, 128>}, {pipeline_mode = #tpu.pipeline_mode<synchronous>, transform_indices = @transform_11, window_bounds = array<i64: 16, 128>}]} {
    %c0 = arith.constant 0 : index
    %c0_0 = arith.constant 0 : index
    %0 = vector.load %arg1[%c0, %c0_0] : memref<16x128xf32, #tpu.memory_space<vmem>>, vector<16x128xf32>
    %1 = arith.truncf %0 : vector<16x128xf32> to vector<16x128xbf16>
    %c0_1 = arith.constant 0 : index
    %c0_2 = arith.constant 0 : index
    %2 = vector.load %arg3[%c0_1, %c0_2] : memref<128x512xbf16, #tpu.memory_space<vmem>>, vector<128x512xbf16>
    %cst = arith.constant dense<0.000000e+00> : vector<16x512xf32>
    %3 = tpu.matmul %1, %2, %cst {dimension_numbers = #tpu.dot_dimension_numbers<[1], [0], [0], [1], [0, 0, 1, 1], [], []>} : vector<16x128xbf16>, vector<128x512xbf16>, vector<16x512xf32> -> vector<16x512xf32>
    %c0_3 = arith.constant 0 : index
    %c0_4 = arith.constant 0 : index
    %4 = vector.load %arg4[%c0_3, %c0_4] : memref<1x512xf32, #tpu.memory_space<vmem>>, vector<1x512xf32>
    %5 = vector.broadcast %4 : vector<1x512xf32> to vector<16x512xf32>
    %6 = arith.addf %3, %5 : vector<16x512xf32>
    %c0_5 = arith.constant 0 : index
    %c0_6 = arith.constant 0 : index
    %7 = vector.load %arg2[%c0_5, %c0_6] : memref<16x128xf32, #tpu.memory_space<vmem>>, vector<16x128xf32>
    %8 = arith.truncf %7 : vector<16x128xf32> to vector<16x128xbf16>
    %c0_7 = arith.constant 0 : index
    %c0_8 = arith.constant 0 : index
    %9 = vector.load %arg5[%c0_7, %c0_8] : memref<128x1024xbf16, #tpu.memory_space<vmem>>, vector<128x1024xbf16>
    %cst_9 = arith.constant dense<0.000000e+00> : vector<16x1024xf32>
    %10 = tpu.matmul %8, %9, %cst_9 {dimension_numbers = #tpu.dot_dimension_numbers<[1], [0], [0], [1], [0, 0, 1, 1], [], []>} : vector<16x128xbf16>, vector<128x1024xbf16>, vector<16x1024xf32> -> vector<16x1024xf32>
    %c0_10 = arith.constant 0 : index
    %c0_11 = arith.constant 0 : index
    %11 = vector.load %arg6[%c0_10, %c0_11] : memref<1x1024xf32, #tpu.memory_space<vmem>>, vector<1x1024xf32>
    %12 = vector.broadcast %11 : vector<1x1024xf32> to vector<16x1024xf32>
    %13 = arith.addf %10, %12 : vector<16x1024xf32>
    %c0_12 = arith.constant 0 : index
    %c0_13 = arith.constant 0 : index
    %14 = vector.load %arg8[%c0_12, %c0_13] : memref<1x128xf32, #tpu.memory_space<vmem>>, vector<1x128xf32>
    %c0_14 = arith.constant 0 : index
    %c0_15 = arith.constant 0 : index
    %15 = vector.load %arg10[%c0_14, %c0_15] : memref<1x128xf32, #tpu.memory_space<vmem>>, vector<1x128xf32>
    %c0_16 = arith.constant 0 : index
    %c0_17 = arith.constant 0 : index
    %16 = vector.load %arg11[%c0_16, %c0_17] : memref<1x128xf32, #tpu.memory_space<vmem>>, vector<1x128xf32>
    %c0_18 = arith.constant 0 : index
    %c0_19 = arith.constant 0 : index
    %c0_20 = arith.constant 0 : index
    %17 = vector.load %arg9[%c0_18, %c0_19, %c0_20] : memref<2x1x8xf32, #tpu.memory_space<vmem>>, vector<1x1x8xf32>
    %18 = vector.shape_cast %17 : vector<1x1x8xf32> to vector<1x8xf32>
    %cst_21 = arith.constant 0.000000e+00 : f32
    %19 = vector.broadcast %cst_21 : f32 to vector<8x128xf32>
    %20 = vector.extract_strided_slice %6 {offsets = [0, 0], sizes = [8, 128], strides = [1, 1]} : vector<16x512xf32> to vector<8x128xf32>
    %21 = vector.extract_strided_slice %13 {offsets = [0, 0], sizes = [8, 128], strides = [1, 1]} : vector<16x1024xf32> to vector<8x128xf32>
    %22 = vector.extract_strided_slice %13 {offsets = [0, 512], sizes = [8, 128], strides = [1, 1]} : vector<16x1024xf32> to vector<8x128xf32>
    %23 = arith.truncf %20 : vector<8x128xf32> to vector<8x128xbf16>
    %24 = arith.truncf %21 : vector<8x128xf32> to vector<8x128xbf16>
    %cst_22 = arith.constant dense<0.000000e+00> : vector<8x8xf32>
    %25 = tpu.matmul %23, %24, %cst_22 {dimension_numbers = #tpu.dot_dimension_numbers<[1], [1], [0], [0], [0, 0, 1, 0], [], []>} : vector<8x128xbf16>, vector<8x128xbf16>, vector<8x8xf32> -> vector<8x8xf32>
    %cst_23 = arith.constant 0.353553385 : f32
    %26 = vector.broadcast %cst_23 : f32 to vector<8x8xf32>
    %27 = arith.mulf %25, %26 : vector<8x8xf32>
    %28 = vector.broadcast %18 : vector<1x8xf32> to vector<8x8xf32>
    %29 = arith.addf %27, %28 : vector<8x8xf32>
    %cst_24 = arith.constant dense<0xFF800000> : vector<8xf32>
    %30 = vector.multi_reduction <maximumf>, %29, %cst_24 [1] : vector<8x8xf32> to vector<8xf32>
    %31 = vector.shape_cast %30 : vector<8xf32> to vector<8x1xf32>
    %32 = vector.broadcast %31 : vector<8x1xf32> to vector<8x8xf32>
    %33 = arith.subf %29, %32 : vector<8x8xf32>
    %34 = math.exp %33 : vector<8x8xf32>
    %cst_25 = arith.constant dense<0.000000e+00> : vector<8xf32>
    %35 = vector.multi_reduction <add>, %34, %cst_25 [1] : vector<8x8xf32> to vector<8xf32>
    %36 = vector.shape_cast %35 : vector<8xf32> to vector<8x1xf32>
    %37 = vector.broadcast %36 : vector<8x1xf32> to vector<8x8xf32>
    %38 = arith.divf %34, %37 : vector<8x8xf32>
    %39 = arith.truncf %38 : vector<8x8xf32> to vector<8x8xbf16>
    %40 = arith.truncf %22 : vector<8x128xf32> to vector<8x128xbf16>
    %cst_26 = arith.constant dense<0.000000e+00> : vector<8x128xf32>
    %41 = tpu.matmul %39, %40, %cst_26 {dimension_numbers = #tpu.dot_dimension_numbers<[1], [0], [0], [1], [0, 0, 1, 1], [], []>} : vector<8x8xbf16>, vector<8x128xbf16>, vector<8x128xf32> -> vector<8x128xf32>
    %42 = arith.truncf %41 : vector<8x128xf32> to vector<8x128xbf16>
    %c0_27 = arith.constant 0 : index
    %c0_28 = arith.constant 0 : index
    %c0_29 = arith.constant 0 : index
    %43 = vector.load %arg7[%c0_27, %c0_28, %c0_29] : memref<4x128x128xbf16, #tpu.memory_space<vmem>>, vector<1x128x128xbf16>
    %44 = vector.shape_cast %43 : vector<1x128x128xbf16> to vector<128x128xbf16>
    %cst_30 = arith.constant dense<0.000000e+00> : vector<8x128xf32>
    %45 = tpu.matmul %42, %44, %cst_30 {dimension_numbers = #tpu.dot_dimension_numbers<[1], [0], [0], [1], [0, 0, 1, 1], [], []>} : vector<8x128xbf16>, vector<128x128xbf16>, vector<8x128xf32> -> vector<8x128xf32>
    %46 = arith.addf %19, %45 : vector<8x128xf32>
    %47 = vector.extract_strided_slice %6 {offsets = [0, 128], sizes = [8, 128], strides = [1, 1]} : vector<16x512xf32> to vector<8x128xf32>
    %48 = vector.extract_strided_slice %13 {offsets = [0, 128], sizes = [8, 128], strides = [1, 1]} : vector<16x1024xf32> to vector<8x128xf32>
    %49 = vector.extract_strided_slice %13 {offsets = [0, 640], sizes = [8, 128], strides = [1, 1]} : vector<16x1024xf32> to vector<8x128xf32>
    %50 = arith.truncf %47 : vector<8x128xf32> to vector<8x128xbf16>
    %51 = arith.truncf %48 : vector<8x128xf32> to vector<8x128xbf16>
    %cst_31 = arith.constant dense<0.000000e+00> : vector<8x8xf32>
    %52 = tpu.matmul %50, %51, %cst_31 {dimension_numbers = #tpu.dot_dimension_numbers<[1], [1], [0], [0], [0, 0, 1, 0], [], []>} : vector<8x128xbf16>, vector<8x128xbf16>, vector<8x8xf32> -> vector<8x8xf32>
    %cst_32 = arith.constant 0.353553385 : f32
    %53 = vector.broadcast %cst_32 : f32 to vector<8x8xf32>
    %54 = arith.mulf %52, %53 : vector<8x8xf32>
    %55 = vector.broadcast %18 : vector<1x8xf32> to vector<8x8xf32>
    %56 = arith.addf %54, %55 : vector<8x8xf32>
    %cst_33 = arith.constant dense<0xFF800000> : vector<8xf32>
    %57 = vector.multi_reduction <maximumf>, %56, %cst_33 [1] : vector<8x8xf32> to vector<8xf32>
    %58 = vector.shape_cast %57 : vector<8xf32> to vector<8x1xf32>
    %59 = vector.broadcast %58 : vector<8x1xf32> to vector<8x8xf32>
    %60 = arith.subf %56, %59 : vector<8x8xf32>
    %61 = math.exp %60 : vector<8x8xf32>
    %cst_34 = arith.constant dense<0.000000e+00> : vector<8xf32>
    %62 = vector.multi_reduction <add>, %61, %cst_34 [1] : vector<8x8xf32> to vector<8xf32>
    %63 = vector.shape_cast %62 : vector<8xf32> to vector<8x1xf32>
    %64 = vector.broadcast %63 : vector<8x1xf32> to vector<8x8xf32>
    %65 = arith.divf %61, %64 : vector<8x8xf32>
    %66 = arith.truncf %65 : vector<8x8xf32> to vector<8x8xbf16>
    %67 = arith.truncf %49 : vector<8x128xf32> to vector<8x128xbf16>
    %cst_35 = arith.constant dense<0.000000e+00> : vector<8x128xf32>
    %68 = tpu.matmul %66, %67, %cst_35 {dimension_numbers = #tpu.dot_dimension_numbers<[1], [0], [0], [1], [0, 0, 1, 1], [], []>} : vector<8x8xbf16>, vector<8x128xbf16>, vector<8x128xf32> -> vector<8x128xf32>
    %69 = arith.truncf %68 : vector<8x128xf32> to vector<8x128xbf16>
    %c1 = arith.constant 1 : index
    %c0_36 = arith.constant 0 : index
    %c0_37 = arith.constant 0 : index
    %70 = vector.load %arg7[%c1, %c0_36, %c0_37] : memref<4x128x128xbf16, #tpu.memory_space<vmem>>, vector<1x128x128xbf16>
    %71 = vector.shape_cast %70 : vector<1x128x128xbf16> to vector<128x128xbf16>
    %cst_38 = arith.constant dense<0.000000e+00> : vector<8x128xf32>
    %72 = tpu.matmul %69, %71, %cst_38 {dimension_numbers = #tpu.dot_dimension_numbers<[1], [0], [0], [1], [0, 0, 1, 1], [], []>} : vector<8x128xbf16>, vector<128x128xbf16>, vector<8x128xf32> -> vector<8x128xf32>
    %73 = arith.addf %46, %72 : vector<8x128xf32>
    %74 = vector.extract_strided_slice %6 {offsets = [0, 256], sizes = [8, 128], strides = [1, 1]} : vector<16x512xf32> to vector<8x128xf32>
    %75 = vector.extract_strided_slice %13 {offsets = [0, 256], sizes = [8, 128], strides = [1, 1]} : vector<16x1024xf32> to vector<8x128xf32>
    %76 = vector.extract_strided_slice %13 {offsets = [0, 768], sizes = [8, 128], strides = [1, 1]} : vector<16x1024xf32> to vector<8x128xf32>
    %77 = arith.truncf %74 : vector<8x128xf32> to vector<8x128xbf16>
    %78 = arith.truncf %75 : vector<8x128xf32> to vector<8x128xbf16>
    %cst_39 = arith.constant dense<0.000000e+00> : vector<8x8xf32>
    %79 = tpu.matmul %77, %78, %cst_39 {dimension_numbers = #tpu.dot_dimension_numbers<[1], [1], [0], [0], [0, 0, 1, 0], [], []>} : vector<8x128xbf16>, vector<8x128xbf16>, vector<8x8xf32> -> vector<8x8xf32>
    %cst_40 = arith.constant 0.353553385 : f32
    %80 = vector.broadcast %cst_40 : f32 to vector<8x8xf32>
    %81 = arith.mulf %79, %80 : vector<8x8xf32>
    %82 = vector.broadcast %18 : vector<1x8xf32> to vector<8x8xf32>
    %83 = arith.addf %81, %82 : vector<8x8xf32>
    %cst_41 = arith.constant dense<0xFF800000> : vector<8xf32>
    %84 = vector.multi_reduction <maximumf>, %83, %cst_41 [1] : vector<8x8xf32> to vector<8xf32>
    %85 = vector.shape_cast %84 : vector<8xf32> to vector<8x1xf32>
    %86 = vector.broadcast %85 : vector<8x1xf32> to vector<8x8xf32>
    %87 = arith.subf %83, %86 : vector<8x8xf32>
    %88 = math.exp %87 : vector<8x8xf32>
    %cst_42 = arith.constant dense<0.000000e+00> : vector<8xf32>
    %89 = vector.multi_reduction <add>, %88, %cst_42 [1] : vector<8x8xf32> to vector<8xf32>
    %90 = vector.shape_cast %89 : vector<8xf32> to vector<8x1xf32>
    %91 = vector.broadcast %90 : vector<8x1xf32> to vector<8x8xf32>
    %92 = arith.divf %88, %91 : vector<8x8xf32>
    %93 = arith.truncf %92 : vector<8x8xf32> to vector<8x8xbf16>
    %94 = arith.truncf %76 : vector<8x128xf32> to vector<8x128xbf16>
    %cst_43 = arith.constant dense<0.000000e+00> : vector<8x128xf32>
    %95 = tpu.matmul %93, %94, %cst_43 {dimension_numbers = #tpu.dot_dimension_numbers<[1], [0], [0], [1], [0, 0, 1, 1], [], []>} : vector<8x8xbf16>, vector<8x128xbf16>, vector<8x128xf32> -> vector<8x128xf32>
    %96 = arith.truncf %95 : vector<8x128xf32> to vector<8x128xbf16>
    %c2 = arith.constant 2 : index
    %c0_44 = arith.constant 0 : index
    %c0_45 = arith.constant 0 : index
    %97 = vector.load %arg7[%c2, %c0_44, %c0_45] : memref<4x128x128xbf16, #tpu.memory_space<vmem>>, vector<1x128x128xbf16>
    %98 = vector.shape_cast %97 : vector<1x128x128xbf16> to vector<128x128xbf16>
    %cst_46 = arith.constant dense<0.000000e+00> : vector<8x128xf32>
    %99 = tpu.matmul %96, %98, %cst_46 {dimension_numbers = #tpu.dot_dimension_numbers<[1], [0], [0], [1], [0, 0, 1, 1], [], []>} : vector<8x128xbf16>, vector<128x128xbf16>, vector<8x128xf32> -> vector<8x128xf32>
    %100 = arith.addf %73, %99 : vector<8x128xf32>
    %101 = vector.extract_strided_slice %6 {offsets = [0, 384], sizes = [8, 128], strides = [1, 1]} : vector<16x512xf32> to vector<8x128xf32>
    %102 = vector.extract_strided_slice %13 {offsets = [0, 384], sizes = [8, 128], strides = [1, 1]} : vector<16x1024xf32> to vector<8x128xf32>
    %103 = vector.extract_strided_slice %13 {offsets = [0, 896], sizes = [8, 128], strides = [1, 1]} : vector<16x1024xf32> to vector<8x128xf32>
    %104 = arith.truncf %101 : vector<8x128xf32> to vector<8x128xbf16>
    %105 = arith.truncf %102 : vector<8x128xf32> to vector<8x128xbf16>
    %cst_47 = arith.constant dense<0.000000e+00> : vector<8x8xf32>
    %106 = tpu.matmul %104, %105, %cst_47 {dimension_numbers = #tpu.dot_dimension_numbers<[1], [1], [0], [0], [0, 0, 1, 0], [], []>} : vector<8x128xbf16>, vector<8x128xbf16>, vector<8x8xf32> -> vector<8x8xf32>
    %cst_48 = arith.constant 0.353553385 : f32
    %107 = vector.broadcast %cst_48 : f32 to vector<8x8xf32>
    %108 = arith.mulf %106, %107 : vector<8x8xf32>
    %109 = vector.broadcast %18 : vector<1x8xf32> to vector<8x8xf32>
    %110 = arith.addf %108, %109 : vector<8x8xf32>
    %cst_49 = arith.constant dense<0xFF800000> : vector<8xf32>
    %111 = vector.multi_reduction <maximumf>, %110, %cst_49 [1] : vector<8x8xf32> to vector<8xf32>
    %112 = vector.shape_cast %111 : vector<8xf32> to vector<8x1xf32>
    %113 = vector.broadcast %112 : vector<8x1xf32> to vector<8x8xf32>
    %114 = arith.subf %110, %113 : vector<8x8xf32>
    %115 = math.exp %114 : vector<8x8xf32>
    %cst_50 = arith.constant dense<0.000000e+00> : vector<8xf32>
    %116 = vector.multi_reduction <add>, %115, %cst_50 [1] : vector<8x8xf32> to vector<8xf32>
    %117 = vector.shape_cast %116 : vector<8xf32> to vector<8x1xf32>
    %118 = vector.broadcast %117 : vector<8x1xf32> to vector<8x8xf32>
    %119 = arith.divf %115, %118 : vector<8x8xf32>
    %120 = arith.truncf %119 : vector<8x8xf32> to vector<8x8xbf16>
    %121 = arith.truncf %103 : vector<8x128xf32> to vector<8x128xbf16>
    %cst_51 = arith.constant dense<0.000000e+00> : vector<8x128xf32>
    %122 = tpu.matmul %120, %121, %cst_51 {dimension_numbers = #tpu.dot_dimension_numbers<[1], [0], [0], [1], [0, 0, 1, 1], [], []>} : vector<8x8xbf16>, vector<8x128xbf16>, vector<8x128xf32> -> vector<8x128xf32>
    %123 = arith.truncf %122 : vector<8x128xf32> to vector<8x128xbf16>
    %c3 = arith.constant 3 : index
    %c0_52 = arith.constant 0 : index
    %c0_53 = arith.constant 0 : index
    %124 = vector.load %arg7[%c3, %c0_52, %c0_53] : memref<4x128x128xbf16, #tpu.memory_space<vmem>>, vector<1x128x128xbf16>
    %125 = vector.shape_cast %124 : vector<1x128x128xbf16> to vector<128x128xbf16>
    %cst_54 = arith.constant dense<0.000000e+00> : vector<8x128xf32>
    %126 = tpu.matmul %123, %125, %cst_54 {dimension_numbers = #tpu.dot_dimension_numbers<[1], [0], [0], [1], [0, 0, 1, 1], [], []>} : vector<8x128xbf16>, vector<128x128xbf16>, vector<8x128xf32> -> vector<8x128xf32>
    %127 = arith.addf %100, %126 : vector<8x128xf32>
    %128 = vector.extract_strided_slice %0 {offsets = [0, 0], sizes = [8, 128], strides = [1, 1]} : vector<16x128xf32> to vector<8x128xf32>
    %129 = arith.addf %128, %127 : vector<8x128xf32>
    %130 = vector.broadcast %14 : vector<1x128xf32> to vector<8x128xf32>
    %131 = arith.addf %129, %130 : vector<8x128xf32>
    %132 = tpu.iota {dimensions = array<i32: 1>} : vector<8x128xi32>
    %c32_i32 = arith.constant 32 : i32
    %133 = vector.broadcast %c32_i32 : i32 to vector<8x128xi32>
    %134 = arith.cmpi slt, %132, %133 : vector<8x128xi32>
    %135 = arith.extui %134 : vector<8x128xi1> to vector<8x128xi32>
    %136 = arith.sitofp %135 : vector<8x128xi32> to vector<8x128xf32>
    %cst_55 = arith.constant dense<0.000000e+00> : vector<8xf32>
    %137 = vector.multi_reduction <add>, %131, %cst_55 [1] : vector<8x128xf32> to vector<8xf32>
    %138 = vector.shape_cast %137 : vector<8xf32> to vector<8x1xf32>
    %cst_56 = arith.constant 3.125000e-02 : f32
    %139 = vector.broadcast %cst_56 : f32 to vector<8x1xf32>
    %140 = arith.mulf %138, %139 : vector<8x1xf32>
    %141 = vector.broadcast %140 : vector<8x1xf32> to vector<8x128xf32>
    %142 = arith.subf %131, %141 : vector<8x128xf32>
    %143 = arith.mulf %142, %136 : vector<8x128xf32>
    %144 = arith.mulf %143, %143 : vector<8x128xf32>
    %cst_57 = arith.constant dense<0.000000e+00> : vector<8xf32>
    %145 = vector.multi_reduction <add>, %144, %cst_57 [1] : vector<8x128xf32> to vector<8xf32>
    %146 = vector.shape_cast %145 : vector<8xf32> to vector<8x1xf32>
    %cst_58 = arith.constant 3.125000e-02 : f32
    %147 = vector.broadcast %cst_58 : f32 to vector<8x1xf32>
    %148 = arith.mulf %146, %147 : vector<8x1xf32>
    %cst_59 = arith.constant 9.99999974E-6 : f32
    %149 = vector.broadcast %cst_59 : f32 to vector<8x1xf32>
    %150 = arith.addf %148, %149 : vector<8x1xf32>
    %151 = math.rsqrt %150 : vector<8x1xf32>
    %152 = vector.broadcast %151 : vector<8x1xf32> to vector<8x128xf32>
    %153 = arith.mulf %143, %152 : vector<8x128xf32>
    %154 = vector.broadcast %15 : vector<1x128xf32> to vector<8x128xf32>
    %155 = arith.mulf %153, %154 : vector<8x128xf32>
    %156 = vector.broadcast %16 : vector<1x128xf32> to vector<8x128xf32>
    %157 = arith.addf %155, %156 : vector<8x128xf32>
    %c0_60 = arith.constant 0 : index
    %c0_61 = arith.constant 0 : index
    %158 = vector.load %arg12[%c0_60, %c0_61] : memref<16x128xf32, #tpu.memory_space<vmem>>, vector<8x128xf32>
    tpu.vector_store %arg12[%c0_60, %c0_61], %157 {strides = array<i32>} : memref<16x128xf32, #tpu.memory_space<vmem>>, vector<8x128xf32>,
    %c1_62 = arith.constant 1 : index
    %c0_63 = arith.constant 0 : index
    %c0_64 = arith.constant 0 : index
    %159 = vector.load %arg9[%c1_62, %c0_63, %c0_64] : memref<2x1x8xf32, #tpu.memory_space<vmem>>, vector<1x1x8xf32>
    %160 = vector.shape_cast %159 : vector<1x1x8xf32> to vector<1x8xf32>
    %cst_65 = arith.constant 0.000000e+00 : f32
    %161 = vector.broadcast %cst_65 : f32 to vector<8x128xf32>
    %162 = vector.extract_strided_slice %6 {offsets = [8, 0], sizes = [8, 128], strides = [1, 1]} : vector<16x512xf32> to vector<8x128xf32>
    %163 = vector.extract_strided_slice %13 {offsets = [8, 0], sizes = [8, 128], strides = [1, 1]} : vector<16x1024xf32> to vector<8x128xf32>
    %164 = vector.extract_strided_slice %13 {offsets = [8, 512], sizes = [8, 128], strides = [1, 1]} : vector<16x1024xf32> to vector<8x128xf32>
    %165 = arith.truncf %162 : vector<8x128xf32> to vector<8x128xbf16>
    %166 = arith.truncf %163 : vector<8x128xf32> to vector<8x128xbf16>
    %cst_66 = arith.constant dense<0.000000e+00> : vector<8x8xf32>
    %167 = tpu.matmul %165, %166, %cst_66 {dimension_numbers = #tpu.dot_dimension_numbers<[1], [1], [0], [0], [0, 0, 1, 0], [], []>} : vector<8x128xbf16>, vector<8x128xbf16>, vector<8x8xf32> -> vector<8x8xf32>
    %cst_67 = arith.constant 0.353553385 : f32
    %168 = vector.broadcast %cst_67 : f32 to vector<8x8xf32>
    %169 = arith.mulf %167, %168 : vector<8x8xf32>
    %170 = vector.broadcast %160 : vector<1x8xf32> to vector<8x8xf32>
    %171 = arith.addf %169, %170 : vector<8x8xf32>
    %cst_68 = arith.constant dense<0xFF800000> : vector<8xf32>
    %172 = vector.multi_reduction <maximumf>, %171, %cst_68 [1] : vector<8x8xf32> to vector<8xf32>
    %173 = vector.shape_cast %172 : vector<8xf32> to vector<8x1xf32>
    %174 = vector.broadcast %173 : vector<8x1xf32> to vector<8x8xf32>
    %175 = arith.subf %171, %174 : vector<8x8xf32>
    %176 = math.exp %175 : vector<8x8xf32>
    %cst_69 = arith.constant dense<0.000000e+00> : vector<8xf32>
    %177 = vector.multi_reduction <add>, %176, %cst_69 [1] : vector<8x8xf32> to vector<8xf32>
    %178 = vector.shape_cast %177 : vector<8xf32> to vector<8x1xf32>
    %179 = vector.broadcast %178 : vector<8x1xf32> to vector<8x8xf32>
    %180 = arith.divf %176, %179 : vector<8x8xf32>
    %181 = arith.truncf %180 : vector<8x8xf32> to vector<8x8xbf16>
    %182 = arith.truncf %164 : vector<8x128xf32> to vector<8x128xbf16>
    %cst_70 = arith.constant dense<0.000000e+00> : vector<8x128xf32>
    %183 = tpu.matmul %181, %182, %cst_70 {dimension_numbers = #tpu.dot_dimension_numbers<[1], [0], [0], [1], [0, 0, 1, 1], [], []>} : vector<8x8xbf16>, vector<8x128xbf16>, vector<8x128xf32> -> vector<8x128xf32>
    %184 = arith.truncf %183 : vector<8x128xf32> to vector<8x128xbf16>
    %c0_71 = arith.constant 0 : index
    %c0_72 = arith.constant 0 : index
    %c0_73 = arith.constant 0 : index
    %185 = vector.load %arg7[%c0_71, %c0_72, %c0_73] : memref<4x128x128xbf16, #tpu.memory_space<vmem>>, vector<1x128x128xbf16>
    %186 = vector.shape_cast %185 : vector<1x128x128xbf16> to vector<128x128xbf16>
    %cst_74 = arith.constant dense<0.000000e+00> : vector<8x128xf32>
    %187 = tpu.matmul %184, %186, %cst_74 {dimension_numbers = #tpu.dot_dimension_numbers<[1], [0], [0], [1], [0, 0, 1, 1], [], []>} : vector<8x128xbf16>, vector<128x128xbf16>, vector<8x128xf32> -> vector<8x128xf32>
    %188 = arith.addf %161, %187 : vector<8x128xf32>
    %189 = vector.extract_strided_slice %6 {offsets = [8, 128], sizes = [8, 128], strides = [1, 1]} : vector<16x512xf32> to vector<8x128xf32>
    %190 = vector.extract_strided_slice %13 {offsets = [8, 128], sizes = [8, 128], strides = [1, 1]} : vector<16x1024xf32> to vector<8x128xf32>
    %191 = vector.extract_strided_slice %13 {offsets = [8, 640], sizes = [8, 128], strides = [1, 1]} : vector<16x1024xf32> to vector<8x128xf32>
    %192 = arith.truncf %189 : vector<8x128xf32> to vector<8x128xbf16>
    %193 = arith.truncf %190 : vector<8x128xf32> to vector<8x128xbf16>
    %cst_75 = arith.constant dense<0.000000e+00> : vector<8x8xf32>
    %194 = tpu.matmul %192, %193, %cst_75 {dimension_numbers = #tpu.dot_dimension_numbers<[1], [1], [0], [0], [0, 0, 1, 0], [], []>} : vector<8x128xbf16>, vector<8x128xbf16>, vector<8x8xf32> -> vector<8x8xf32>
    %cst_76 = arith.constant 0.353553385 : f32
    %195 = vector.broadcast %cst_76 : f32 to vector<8x8xf32>
    %196 = arith.mulf %194, %195 : vector<8x8xf32>
    %197 = vector.broadcast %160 : vector<1x8xf32> to vector<8x8xf32>
    %198 = arith.addf %196, %197 : vector<8x8xf32>
    %cst_77 = arith.constant dense<0xFF800000> : vector<8xf32>
    %199 = vector.multi_reduction <maximumf>, %198, %cst_77 [1] : vector<8x8xf32> to vector<8xf32>
    %200 = vector.shape_cast %199 : vector<8xf32> to vector<8x1xf32>
    %201 = vector.broadcast %200 : vector<8x1xf32> to vector<8x8xf32>
    %202 = arith.subf %198, %201 : vector<8x8xf32>
    %203 = math.exp %202 : vector<8x8xf32>
    %cst_78 = arith.constant dense<0.000000e+00> : vector<8xf32>
    %204 = vector.multi_reduction <add>, %203, %cst_78 [1] : vector<8x8xf32> to vector<8xf32>
    %205 = vector.shape_cast %204 : vector<8xf32> to vector<8x1xf32>
    %206 = vector.broadcast %205 : vector<8x1xf32> to vector<8x8xf32>
    %207 = arith.divf %203, %206 : vector<8x8xf32>
    %208 = arith.truncf %207 : vector<8x8xf32> to vector<8x8xbf16>
    %209 = arith.truncf %191 : vector<8x128xf32> to vector<8x128xbf16>
    %cst_79 = arith.constant dense<0.000000e+00> : vector<8x128xf32>
    %210 = tpu.matmul %208, %209, %cst_79 {dimension_numbers = #tpu.dot_dimension_numbers<[1], [0], [0], [1], [0, 0, 1, 1], [], []>} : vector<8x8xbf16>, vector<8x128xbf16>, vector<8x128xf32> -> vector<8x128xf32>
    %211 = arith.truncf %210 : vector<8x128xf32> to vector<8x128xbf16>
    %c1_80 = arith.constant 1 : index
    %c0_81 = arith.constant 0 : index
    %c0_82 = arith.constant 0 : index
    %212 = vector.load %arg7[%c1_80, %c0_81, %c0_82] : memref<4x128x128xbf16, #tpu.memory_space<vmem>>, vector<1x128x128xbf16>
    %213 = vector.shape_cast %212 : vector<1x128x128xbf16> to vector<128x128xbf16>
    %cst_83 = arith.constant dense<0.000000e+00> : vector<8x128xf32>
    %214 = tpu.matmul %211, %213, %cst_83 {dimension_numbers = #tpu.dot_dimension_numbers<[1], [0], [0], [1], [0, 0, 1, 1], [], []>} : vector<8x128xbf16>, vector<128x128xbf16>, vector<8x128xf32> -> vector<8x128xf32>
    %215 = arith.addf %188, %214 : vector<8x128xf32>
    %216 = vector.extract_strided_slice %6 {offsets = [8, 256], sizes = [8, 128], strides = [1, 1]} : vector<16x512xf32> to vector<8x128xf32>
    %217 = vector.extract_strided_slice %13 {offsets = [8, 256], sizes = [8, 128], strides = [1, 1]} : vector<16x1024xf32> to vector<8x128xf32>
    %218 = vector.extract_strided_slice %13 {offsets = [8, 768], sizes = [8, 128], strides = [1, 1]} : vector<16x1024xf32> to vector<8x128xf32>
    %219 = arith.truncf %216 : vector<8x128xf32> to vector<8x128xbf16>
    %220 = arith.truncf %217 : vector<8x128xf32> to vector<8x128xbf16>
    %cst_84 = arith.constant dense<0.000000e+00> : vector<8x8xf32>
    %221 = tpu.matmul %219, %220, %cst_84 {dimension_numbers = #tpu.dot_dimension_numbers<[1], [1], [0], [0], [0, 0, 1, 0], [], []>} : vector<8x128xbf16>, vector<8x128xbf16>, vector<8x8xf32> -> vector<8x8xf32>
    %cst_85 = arith.constant 0.353553385 : f32
    %222 = vector.broadcast %cst_85 : f32 to vector<8x8xf32>
    %223 = arith.mulf %221, %222 : vector<8x8xf32>
    %224 = vector.broadcast %160 : vector<1x8xf32> to vector<8x8xf32>
    %225 = arith.addf %223, %224 : vector<8x8xf32>
    %cst_86 = arith.constant dense<0xFF800000> : vector<8xf32>
    %226 = vector.multi_reduction <maximumf>, %225, %cst_86 [1] : vector<8x8xf32> to vector<8xf32>
    %227 = vector.shape_cast %226 : vector<8xf32> to vector<8x1xf32>
    %228 = vector.broadcast %227 : vector<8x1xf32> to vector<8x8xf32>
    %229 = arith.subf %225, %228 : vector<8x8xf32>
    %230 = math.exp %229 : vector<8x8xf32>
    %cst_87 = arith.constant dense<0.000000e+00> : vector<8xf32>
    %231 = vector.multi_reduction <add>, %230, %cst_87 [1] : vector<8x8xf32> to vector<8xf32>
    %232 = vector.shape_cast %231 : vector<8xf32> to vector<8x1xf32>
    %233 = vector.broadcast %232 : vector<8x1xf32> to vector<8x8xf32>
    %234 = arith.divf %230, %233 : vector<8x8xf32>
    %235 = arith.truncf %234 : vector<8x8xf32> to vector<8x8xbf16>
    %236 = arith.truncf %218 : vector<8x128xf32> to vector<8x128xbf16>
    %cst_88 = arith.constant dense<0.000000e+00> : vector<8x128xf32>
    %237 = tpu.matmul %235, %236, %cst_88 {dimension_numbers = #tpu.dot_dimension_numbers<[1], [0], [0], [1], [0, 0, 1, 1], [], []>} : vector<8x8xbf16>, vector<8x128xbf16>, vector<8x128xf32> -> vector<8x128xf32>
    %238 = arith.truncf %237 : vector<8x128xf32> to vector<8x128xbf16>
    %c2_89 = arith.constant 2 : index
    %c0_90 = arith.constant 0 : index
    %c0_91 = arith.constant 0 : index
    %239 = vector.load %arg7[%c2_89, %c0_90, %c0_91] : memref<4x128x128xbf16, #tpu.memory_space<vmem>>, vector<1x128x128xbf16>
    %240 = vector.shape_cast %239 : vector<1x128x128xbf16> to vector<128x128xbf16>
    %cst_92 = arith.constant dense<0.000000e+00> : vector<8x128xf32>
    %241 = tpu.matmul %238, %240, %cst_92 {dimension_numbers = #tpu.dot_dimension_numbers<[1], [0], [0], [1], [0, 0, 1, 1], [], []>} : vector<8x128xbf16>, vector<128x128xbf16>, vector<8x128xf32> -> vector<8x128xf32>
    %242 = arith.addf %215, %241 : vector<8x128xf32>
    %243 = vector.extract_strided_slice %6 {offsets = [8, 384], sizes = [8, 128], strides = [1, 1]} : vector<16x512xf32> to vector<8x128xf32>
    %244 = vector.extract_strided_slice %13 {offsets = [8, 384], sizes = [8, 128], strides = [1, 1]} : vector<16x1024xf32> to vector<8x128xf32>
    %245 = vector.extract_strided_slice %13 {offsets = [8, 896], sizes = [8, 128], strides = [1, 1]} : vector<16x1024xf32> to vector<8x128xf32>
    %246 = arith.truncf %243 : vector<8x128xf32> to vector<8x128xbf16>
    %247 = arith.truncf %244 : vector<8x128xf32> to vector<8x128xbf16>
    %cst_93 = arith.constant dense<0.000000e+00> : vector<8x8xf32>
    %248 = tpu.matmul %246, %247, %cst_93 {dimension_numbers = #tpu.dot_dimension_numbers<[1], [1], [0], [0], [0, 0, 1, 0], [], []>} : vector<8x128xbf16>, vector<8x128xbf16>, vector<8x8xf32> -> vector<8x8xf32>
    %cst_94 = arith.constant 0.353553385 : f32
    %249 = vector.broadcast %cst_94 : f32 to vector<8x8xf32>
    %250 = arith.mulf %248, %249 : vector<8x8xf32>
    %251 = vector.broadcast %160 : vector<1x8xf32> to vector<8x8xf32>
    %252 = arith.addf %250, %251 : vector<8x8xf32>
    %cst_95 = arith.constant dense<0xFF800000> : vector<8xf32>
    %253 = vector.multi_reduction <maximumf>, %252, %cst_95 [1] : vector<8x8xf32> to vector<8xf32>
    %254 = vector.shape_cast %253 : vector<8xf32> to vector<8x1xf32>
    %255 = vector.broadcast %254 : vector<8x1xf32> to vector<8x8xf32>
    %256 = arith.subf %252, %255 : vector<8x8xf32>
    %257 = math.exp %256 : vector<8x8xf32>
    %cst_96 = arith.constant dense<0.000000e+00> : vector<8xf32>
    %258 = vector.multi_reduction <add>, %257, %cst_96 [1] : vector<8x8xf32> to vector<8xf32>
    %259 = vector.shape_cast %258 : vector<8xf32> to vector<8x1xf32>
    %260 = vector.broadcast %259 : vector<8x1xf32> to vector<8x8xf32>
    %261 = arith.divf %257, %260 : vector<8x8xf32>
    %262 = arith.truncf %261 : vector<8x8xf32> to vector<8x8xbf16>
    %263 = arith.truncf %245 : vector<8x128xf32> to vector<8x128xbf16>
    %cst_97 = arith.constant dense<0.000000e+00> : vector<8x128xf32>
    %264 = tpu.matmul %262, %263, %cst_97 {dimension_numbers = #tpu.dot_dimension_numbers<[1], [0], [0], [1], [0, 0, 1, 1], [], []>} : vector<8x8xbf16>, vector<8x128xbf16>, vector<8x128xf32> -> vector<8x128xf32>
    %265 = arith.truncf %264 : vector<8x128xf32> to vector<8x128xbf16>
    %c3_98 = arith.constant 3 : index
    %c0_99 = arith.constant 0 : index
    %c0_100 = arith.constant 0 : index
    %266 = vector.load %arg7[%c3_98, %c0_99, %c0_100] : memref<4x128x128xbf16, #tpu.memory_space<vmem>>, vector<1x128x128xbf16>
    %267 = vector.shape_cast %266 : vector<1x128x128xbf16> to vector<128x128xbf16>
    %cst_101 = arith.constant dense<0.000000e+00> : vector<8x128xf32>
    %268 = tpu.matmul %265, %267, %cst_101 {dimension_numbers = #tpu.dot_dimension_numbers<[1], [0], [0], [1], [0, 0, 1, 1], [], []>} : vector<8x128xbf16>, vector<128x128xbf16>, vector<8x128xf32> -> vector<8x128xf32>
    %269 = arith.addf %242, %268 : vector<8x128xf32>
    %270 = vector.extract_strided_slice %0 {offsets = [8, 0], sizes = [8, 128], strides = [1, 1]} : vector<16x128xf32> to vector<8x128xf32>
    %271 = arith.addf %270, %269 : vector<8x128xf32>
    %272 = vector.broadcast %14 : vector<1x128xf32> to vector<8x128xf32>
    %273 = arith.addf %271, %272 : vector<8x128xf32>
    %274 = tpu.iota {dimensions = array<i32: 1>} : vector<8x128xi32>
    %c32_i32_102 = arith.constant 32 : i32
    %275 = vector.broadcast %c32_i32_102 : i32 to vector<8x128xi32>
    %276 = arith.cmpi slt, %274, %275 : vector<8x128xi32>
    %277 = arith.extui %276 : vector<8x128xi1> to vector<8x128xi32>
    %278 = arith.sitofp %277 : vector<8x128xi32> to vector<8x128xf32>
    %cst_103 = arith.constant dense<0.000000e+00> : vector<8xf32>
    %279 = vector.multi_reduction <add>, %273, %cst_103 [1] : vector<8x128xf32> to vector<8xf32>
    %280 = vector.shape_cast %279 : vector<8xf32> to vector<8x1xf32>
    %cst_104 = arith.constant 3.125000e-02 : f32
    %281 = vector.broadcast %cst_104 : f32 to vector<8x1xf32>
    %282 = arith.mulf %280, %281 : vector<8x1xf32>
    %283 = vector.broadcast %282 : vector<8x1xf32> to vector<8x128xf32>
    %284 = arith.subf %273, %283 : vector<8x128xf32>
    %285 = arith.mulf %284, %278 : vector<8x128xf32>
    %286 = arith.mulf %285, %285 : vector<8x128xf32>
    %cst_105 = arith.constant dense<0.000000e+00> : vector<8xf32>
    %287 = vector.multi_reduction <add>, %286, %cst_105 [1] : vector<8x128xf32> to vector<8xf32>
    %288 = vector.shape_cast %287 : vector<8xf32> to vector<8x1xf32>
    %cst_106 = arith.constant 3.125000e-02 : f32
    %289 = vector.broadcast %cst_106 : f32 to vector<8x1xf32>
    %290 = arith.mulf %288, %289 : vector<8x1xf32>
    %cst_107 = arith.constant 9.99999974E-6 : f32
    %291 = vector.broadcast %cst_107 : f32 to vector<8x1xf32>
    %292 = arith.addf %290, %291 : vector<8x1xf32>
    %293 = math.rsqrt %292 : vector<8x1xf32>
    %294 = vector.broadcast %293 : vector<8x1xf32> to vector<8x128xf32>
    %295 = arith.mulf %285, %294 : vector<8x128xf32>
    %296 = vector.broadcast %15 : vector<1x128xf32> to vector<8x128xf32>
    %297 = arith.mulf %295, %296 : vector<8x128xf32>
    %298 = vector.broadcast %16 : vector<1x128xf32> to vector<8x128xf32>
    %299 = arith.addf %297, %298 : vector<8x128xf32>
    %c8 = arith.constant 8 : index
    %c0_108 = arith.constant 0 : index
    %300 = vector.load %arg12[%c8, %c0_108] : memref<16x128xf32, #tpu.memory_space<vmem>>, vector<8x128xf32>
    tpu.vector_store %arg12[%c8, %c0_108], %299 {strides = array<i32>} : memref<16x128xf32, #tpu.memory_space<vmem>>, vector<8x128xf32>,
    return
  }
  func.func @transform_0(%arg0: i32) -> (i32, i32) {
    %c0_i32 = arith.constant 0 : i32
    %c0_i32_0 = arith.constant 0 : i32
    %c0_i32_1 = arith.constant 0 : i32
    return %c0_i32, %c0_i32_0 : i32, i32
  }
  func.func @transform_1(%arg0: i32) -> (i32, i32) {
    %c0_i32 = arith.constant 0 : i32
    %c0_i32_0 = arith.constant 0 : i32
    %c0_i32_1 = arith.constant 0 : i32
    return %c0_i32, %c0_i32_0 : i32, i32
  }
  func.func @transform_2(%arg0: i32) -> (i32, i32) {
    %c0_i32 = arith.constant 0 : i32
    %c0_i32_0 = arith.constant 0 : i32
    %c0_i32_1 = arith.constant 0 : i32
    return %c0_i32, %c0_i32_0 : i32, i32
  }
  func.func @transform_3(%arg0: i32) -> (i32, i32) {
    %c0_i32 = arith.constant 0 : i32
    %c0_i32_0 = arith.constant 0 : i32
    %c0_i32_1 = arith.constant 0 : i32
    return %c0_i32, %c0_i32_0 : i32, i32
  }
  func.func @transform_4(%arg0: i32) -> (i32, i32) {
    %c0_i32 = arith.constant 0 : i32
    %c0_i32_0 = arith.constant 0 : i32
    %c0_i32_1 = arith.constant 0 : i32
    return %c0_i32, %c0_i32_0 : i32, i32
  }
  func.func @transform_5(%arg0: i32) -> (i32, i32) {
    %c0_i32 = arith.constant 0 : i32
    %c0_i32_0 = arith.constant 0 : i32
    %c0_i32_1 = arith.constant 0 : i32
    return %c0_i32, %c0_i32_0 : i32, i32
  }
  func.func @transform_6(%arg0: i32) -> (i32, i32, i32) {
    %c0_i32 = arith.constant 0 : i32
    %c0_i32_0 = arith.constant 0 : i32
    %c0_i32_1 = arith.constant 0 : i32
    %c0_i32_2 = arith.constant 0 : i32
    return %c0_i32, %c0_i32_0, %c0_i32_1 : i32, i32, i32
  }
  func.func @transform_7(%arg0: i32) -> (i32, i32) {
    %c0_i32 = arith.constant 0 : i32
    %c0_i32_0 = arith.constant 0 : i32
    %c0_i32_1 = arith.constant 0 : i32
    return %c0_i32, %c0_i32_0 : i32, i32
  }
  func.func @transform_8(%arg0: i32) -> (i32, i32, i32) {
    %c0_i32 = arith.constant 0 : i32
    %c0_i32_0 = arith.constant 0 : i32
    %c0_i32_1 = arith.constant 0 : i32
    %c0_i32_2 = arith.constant 0 : i32
    return %c0_i32, %c0_i32_0, %c0_i32_1 : i32, i32, i32
  }
  func.func @transform_9(%arg0: i32) -> (i32, i32) {
    %c0_i32 = arith.constant 0 : i32
    %c0_i32_0 = arith.constant 0 : i32
    %c0_i32_1 = arith.constant 0 : i32
    return %c0_i32, %c0_i32_0 : i32, i32
  }
  func.func @transform_10(%arg0: i32) -> (i32, i32) {
    %c0_i32 = arith.constant 0 : i32
    %c0_i32_0 = arith.constant 0 : i32
    %c0_i32_1 = arith.constant 0 : i32
    return %c0_i32, %c0_i32_0 : i32, i32
  }
  func.func @transform_11(%arg0: i32) -> (i32, i32) {
    %c0_i32 = arith.constant 0 : i32
    %c0_i32_0 = arith.constant 0 : i32
    %c0_i32_1 = arith.constant 0 : i32
    return %c0_i32, %c0_i32_0 : i32, i32
  }
}

module attributes {stable_mosaic.version = 11 : i64} {
  func.func @_mha_block_kernel(%arg0: i32, %arg1: memref<16x128xf32, #tpu.memory_space<vmem>>, %arg2: memref<16x128xf32, #tpu.memory_space<vmem>>, %arg3: memref<128x512xbf16, #tpu.memory_space<vmem>>, %arg4: memref<1x512xf32, #tpu.memory_space<vmem>>, %arg5: memref<128x1024xbf16, #tpu.memory_space<vmem>>, %arg6: memref<1x1024xf32, #tpu.memory_space<vmem>>, %arg7: memref<4x128x128xbf16, #tpu.memory_space<vmem>>, %arg8: memref<1x128xf32, #tpu.memory_space<vmem>>, %arg9: memref<2x1x8xf32, #tpu.memory_space<vmem>>, %arg10: memref<1x128xf32, #tpu.memory_space<vmem>>, %arg11: memref<1x128xf32, #tpu.memory_space<vmem>>, %arg12: memref<16x128xf32, #tpu.memory_space<vmem>>) attributes {dimension_semantics = [#tpu.dimension_semantics<arbitrary>], iteration_bounds = array<i64: 1>, scalar_prefetch = 0 : i64, scratch_operands = 0 : i64, tpu.core_type = #tpu.core_type<tc>, window_params = [{pipeline_mode = #tpu.pipeline_mode<synchronous>, transform_indices = @transform_0, window_bounds = array<i64: 16, 128>}, {pipeline_mode = #tpu.pipeline_mode<synchronous>, transform_indices = @transform_1, window_bounds = array<i64: 16, 128>}, {pipeline_mode = #tpu.pipeline_mode<synchronous>, transform_indices = @transform_2, window_bounds = array<i64: 128, 512>}, {pipeline_mode = #tpu.pipeline_mode<synchronous>, transform_indices = @transform_3, window_bounds = array<i64: 1, 512>}, {pipeline_mode = #tpu.pipeline_mode<synchronous>, transform_indices = @transform_4, window_bounds = array<i64: 128, 1024>}, {pipeline_mode = #tpu.pipeline_mode<synchronous>, transform_indices = @transform_5, window_bounds = array<i64: 1, 1024>}, {pipeline_mode = #tpu.pipeline_mode<synchronous>, transform_indices = @transform_6, window_bounds = array<i64: 4, 128, 128>}, {pipeline_mode = #tpu.pipeline_mode<synchronous>, transform_indices = @transform_7, window_bounds = array<i64: 1, 128>}, {pipeline_mode = #tpu.pipeline_mode<synchronous>, transform_indices = @transform_8, window_bounds = array<i64: 2, 1, 8>}, {pipeline_mode = #tpu.pipeline_mode<synchronous>, transform_indices = @transform_9, window_bounds = array<i64: 1, 128>}, {pipeline_mode = #tpu.pipeline_mode<synchronous>, transform_indices = @transform_10, window_bounds = array<i64: 1, 128>}, {pipeline_mode = #tpu.pipeline_mode<synchronous>, transform_indices = @transform_11, window_bounds = array<i64: 16, 128>}]} {
    %c0 = arith.constant 0 : index
    %c0_0 = arith.constant 0 : index
    %0 = vector.load %arg1[%c0, %c0_0] : memref<16x128xf32, #tpu.memory_space<vmem>>, vector<16x128xf32>
    %1 = arith.truncf %0 : vector<16x128xf32> to vector<16x128xbf16>
    %c0_1 = arith.constant 0 : index
    %c0_2 = arith.constant 0 : index
    %2 = vector.load %arg3[%c0_1, %c0_2] : memref<128x512xbf16, #tpu.memory_space<vmem>>, vector<128x512xbf16>
    %cst = arith.constant dense<0.000000e+00> : vector<16x512xf32>
    %3 = tpu.matmul %1, %2, %cst {dimension_numbers = #tpu.dot_dimension_numbers<[1], [0], [0], [1], [0, 0, 1, 1], [], []>} : vector<16x128xbf16>, vector<128x512xbf16>, vector<16x512xf32> -> vector<16x512xf32>
    %c0_3 = arith.constant 0 : index
    %c0_4 = arith.constant 0 : index
    %4 = vector.load %arg4[%c0_3, %c0_4] : memref<1x512xf32, #tpu.memory_space<vmem>>, vector<1x512xf32>
    %5 = vector.broadcast %4 : vector<1x512xf32> to vector<16x512xf32>
    %6 = arith.addf %3, %5 : vector<16x512xf32>
    %c0_5 = arith.constant 0 : index
    %c0_6 = arith.constant 0 : index
    %7 = vector.load %arg2[%c0_5, %c0_6] : memref<16x128xf32, #tpu.memory_space<vmem>>, vector<16x128xf32>
    %8 = arith.truncf %7 : vector<16x128xf32> to vector<16x128xbf16>
    %c0_7 = arith.constant 0 : index
    %c0_8 = arith.constant 0 : index
    %9 = vector.load %arg5[%c0_7, %c0_8] : memref<128x1024xbf16, #tpu.memory_space<vmem>>, vector<128x1024xbf16>
    %cst_9 = arith.constant dense<0.000000e+00> : vector<16x1024xf32>
    %10 = tpu.matmul %8, %9, %cst_9 {dimension_numbers = #tpu.dot_dimension_numbers<[1], [0], [0], [1], [0, 0, 1, 1], [], []>} : vector<16x128xbf16>, vector<128x1024xbf16>, vector<16x1024xf32> -> vector<16x1024xf32>
    %c0_10 = arith.constant 0 : index
    %c0_11 = arith.constant 0 : index
    %11 = vector.load %arg6[%c0_10, %c0_11] : memref<1x1024xf32, #tpu.memory_space<vmem>>, vector<1x1024xf32>
    %12 = vector.broadcast %11 : vector<1x1024xf32> to vector<16x1024xf32>
    %13 = arith.addf %10, %12 : vector<16x1024xf32>
    %c0_12 = arith.constant 0 : index
    %c0_13 = arith.constant 0 : index
    %14 = vector.load %arg8[%c0_12, %c0_13] : memref<1x128xf32, #tpu.memory_space<vmem>>, vector<1x128xf32>
    %c0_14 = arith.constant 0 : index
    %c0_15 = arith.constant 0 : index
    %15 = vector.load %arg10[%c0_14, %c0_15] : memref<1x128xf32, #tpu.memory_space<vmem>>, vector<1x128xf32>
    %c0_16 = arith.constant 0 : index
    %c0_17 = arith.constant 0 : index
    %16 = vector.load %arg11[%c0_16, %c0_17] : memref<1x128xf32, #tpu.memory_space<vmem>>, vector<1x128xf32>
    %17 = tpu.iota {dimensions = array<i32: 0>} : vector<8x8xi32>
    %18 = tpu.iota {dimensions = array<i32: 1>} : vector<8x8xi32>
    %19 = arith.cmpi sle, %18, %17 : vector<8x8xi32>
    %cst_18 = arith.constant 0.000000e+00 : f32
    %cst_19 = arith.constant -1.000000e+09 : f32
    %20 = vector.broadcast %cst_18 : f32 to vector<8x8xf32>
    %21 = vector.broadcast %cst_19 : f32 to vector<8x8xf32>
    %22 = arith.select %19, %20, %21 : vector<8x8xi1>, vector<8x8xf32>
    %c0_20 = arith.constant 0 : index
    %c0_21 = arith.constant 0 : index
    %c0_22 = arith.constant 0 : index
    %23 = vector.load %arg9[%c0_20, %c0_21, %c0_22] : memref<2x1x8xf32, #tpu.memory_space<vmem>>, vector<1x1x8xf32>
    %24 = vector.shape_cast %23 : vector<1x1x8xf32> to vector<1x8xf32>
    %cst_23 = arith.constant 0.000000e+00 : f32
    %25 = vector.broadcast %cst_23 : f32 to vector<8x128xf32>
    %26 = vector.extract_strided_slice %6 {offsets = [0, 0], sizes = [8, 128], strides = [1, 1]} : vector<16x512xf32> to vector<8x128xf32>
    %27 = vector.extract_strided_slice %13 {offsets = [0, 0], sizes = [8, 128], strides = [1, 1]} : vector<16x1024xf32> to vector<8x128xf32>
    %28 = vector.extract_strided_slice %13 {offsets = [0, 512], sizes = [8, 128], strides = [1, 1]} : vector<16x1024xf32> to vector<8x128xf32>
    %29 = arith.truncf %26 : vector<8x128xf32> to vector<8x128xbf16>
    %30 = arith.truncf %27 : vector<8x128xf32> to vector<8x128xbf16>
    %cst_24 = arith.constant dense<0.000000e+00> : vector<8x8xf32>
    %31 = tpu.matmul %29, %30, %cst_24 {dimension_numbers = #tpu.dot_dimension_numbers<[1], [1], [0], [0], [0, 0, 1, 0], [], []>} : vector<8x128xbf16>, vector<8x128xbf16>, vector<8x8xf32> -> vector<8x8xf32>
    %cst_25 = arith.constant 0.353553385 : f32
    %32 = vector.broadcast %cst_25 : f32 to vector<8x8xf32>
    %33 = arith.mulf %31, %32 : vector<8x8xf32>
    %34 = vector.broadcast %24 : vector<1x8xf32> to vector<8x8xf32>
    %35 = arith.addf %33, %34 : vector<8x8xf32>
    %36 = arith.addf %35, %22 : vector<8x8xf32>
    %cst_26 = arith.constant dense<0xFF800000> : vector<8xf32>
    %37 = vector.multi_reduction <maximumf>, %36, %cst_26 [1] : vector<8x8xf32> to vector<8xf32>
    %38 = vector.shape_cast %37 : vector<8xf32> to vector<8x1xf32>
    %39 = vector.broadcast %38 : vector<8x1xf32> to vector<8x8xf32>
    %40 = arith.subf %36, %39 : vector<8x8xf32>
    %41 = math.exp %40 : vector<8x8xf32>
    %cst_27 = arith.constant dense<0.000000e+00> : vector<8xf32>
    %42 = vector.multi_reduction <add>, %41, %cst_27 [1] : vector<8x8xf32> to vector<8xf32>
    %43 = vector.shape_cast %42 : vector<8xf32> to vector<8x1xf32>
    %44 = vector.broadcast %43 : vector<8x1xf32> to vector<8x8xf32>
    %45 = arith.divf %41, %44 : vector<8x8xf32>
    %46 = arith.truncf %45 : vector<8x8xf32> to vector<8x8xbf16>
    %47 = arith.truncf %28 : vector<8x128xf32> to vector<8x128xbf16>
    %cst_28 = arith.constant dense<0.000000e+00> : vector<8x128xf32>
    %48 = tpu.matmul %46, %47, %cst_28 {dimension_numbers = #tpu.dot_dimension_numbers<[1], [0], [0], [1], [0, 0, 1, 1], [], []>} : vector<8x8xbf16>, vector<8x128xbf16>, vector<8x128xf32> -> vector<8x128xf32>
    %49 = arith.truncf %48 : vector<8x128xf32> to vector<8x128xbf16>
    %c0_29 = arith.constant 0 : index
    %c0_30 = arith.constant 0 : index
    %c0_31 = arith.constant 0 : index
    %50 = vector.load %arg7[%c0_29, %c0_30, %c0_31] : memref<4x128x128xbf16, #tpu.memory_space<vmem>>, vector<1x128x128xbf16>
    %51 = vector.shape_cast %50 : vector<1x128x128xbf16> to vector<128x128xbf16>
    %cst_32 = arith.constant dense<0.000000e+00> : vector<8x128xf32>
    %52 = tpu.matmul %49, %51, %cst_32 {dimension_numbers = #tpu.dot_dimension_numbers<[1], [0], [0], [1], [0, 0, 1, 1], [], []>} : vector<8x128xbf16>, vector<128x128xbf16>, vector<8x128xf32> -> vector<8x128xf32>
    %53 = arith.addf %25, %52 : vector<8x128xf32>
    %54 = vector.extract_strided_slice %6 {offsets = [0, 128], sizes = [8, 128], strides = [1, 1]} : vector<16x512xf32> to vector<8x128xf32>
    %55 = vector.extract_strided_slice %13 {offsets = [0, 128], sizes = [8, 128], strides = [1, 1]} : vector<16x1024xf32> to vector<8x128xf32>
    %56 = vector.extract_strided_slice %13 {offsets = [0, 640], sizes = [8, 128], strides = [1, 1]} : vector<16x1024xf32> to vector<8x128xf32>
    %57 = arith.truncf %54 : vector<8x128xf32> to vector<8x128xbf16>
    %58 = arith.truncf %55 : vector<8x128xf32> to vector<8x128xbf16>
    %cst_33 = arith.constant dense<0.000000e+00> : vector<8x8xf32>
    %59 = tpu.matmul %57, %58, %cst_33 {dimension_numbers = #tpu.dot_dimension_numbers<[1], [1], [0], [0], [0, 0, 1, 0], [], []>} : vector<8x128xbf16>, vector<8x128xbf16>, vector<8x8xf32> -> vector<8x8xf32>
    %cst_34 = arith.constant 0.353553385 : f32
    %60 = vector.broadcast %cst_34 : f32 to vector<8x8xf32>
    %61 = arith.mulf %59, %60 : vector<8x8xf32>
    %62 = vector.broadcast %24 : vector<1x8xf32> to vector<8x8xf32>
    %63 = arith.addf %61, %62 : vector<8x8xf32>
    %64 = arith.addf %63, %22 : vector<8x8xf32>
    %cst_35 = arith.constant dense<0xFF800000> : vector<8xf32>
    %65 = vector.multi_reduction <maximumf>, %64, %cst_35 [1] : vector<8x8xf32> to vector<8xf32>
    %66 = vector.shape_cast %65 : vector<8xf32> to vector<8x1xf32>
    %67 = vector.broadcast %66 : vector<8x1xf32> to vector<8x8xf32>
    %68 = arith.subf %64, %67 : vector<8x8xf32>
    %69 = math.exp %68 : vector<8x8xf32>
    %cst_36 = arith.constant dense<0.000000e+00> : vector<8xf32>
    %70 = vector.multi_reduction <add>, %69, %cst_36 [1] : vector<8x8xf32> to vector<8xf32>
    %71 = vector.shape_cast %70 : vector<8xf32> to vector<8x1xf32>
    %72 = vector.broadcast %71 : vector<8x1xf32> to vector<8x8xf32>
    %73 = arith.divf %69, %72 : vector<8x8xf32>
    %74 = arith.truncf %73 : vector<8x8xf32> to vector<8x8xbf16>
    %75 = arith.truncf %56 : vector<8x128xf32> to vector<8x128xbf16>
    %cst_37 = arith.constant dense<0.000000e+00> : vector<8x128xf32>
    %76 = tpu.matmul %74, %75, %cst_37 {dimension_numbers = #tpu.dot_dimension_numbers<[1], [0], [0], [1], [0, 0, 1, 1], [], []>} : vector<8x8xbf16>, vector<8x128xbf16>, vector<8x128xf32> -> vector<8x128xf32>
    %77 = arith.truncf %76 : vector<8x128xf32> to vector<8x128xbf16>
    %c1 = arith.constant 1 : index
    %c0_38 = arith.constant 0 : index
    %c0_39 = arith.constant 0 : index
    %78 = vector.load %arg7[%c1, %c0_38, %c0_39] : memref<4x128x128xbf16, #tpu.memory_space<vmem>>, vector<1x128x128xbf16>
    %79 = vector.shape_cast %78 : vector<1x128x128xbf16> to vector<128x128xbf16>
    %cst_40 = arith.constant dense<0.000000e+00> : vector<8x128xf32>
    %80 = tpu.matmul %77, %79, %cst_40 {dimension_numbers = #tpu.dot_dimension_numbers<[1], [0], [0], [1], [0, 0, 1, 1], [], []>} : vector<8x128xbf16>, vector<128x128xbf16>, vector<8x128xf32> -> vector<8x128xf32>
    %81 = arith.addf %53, %80 : vector<8x128xf32>
    %82 = vector.extract_strided_slice %6 {offsets = [0, 256], sizes = [8, 128], strides = [1, 1]} : vector<16x512xf32> to vector<8x128xf32>
    %83 = vector.extract_strided_slice %13 {offsets = [0, 256], sizes = [8, 128], strides = [1, 1]} : vector<16x1024xf32> to vector<8x128xf32>
    %84 = vector.extract_strided_slice %13 {offsets = [0, 768], sizes = [8, 128], strides = [1, 1]} : vector<16x1024xf32> to vector<8x128xf32>
    %85 = arith.truncf %82 : vector<8x128xf32> to vector<8x128xbf16>
    %86 = arith.truncf %83 : vector<8x128xf32> to vector<8x128xbf16>
    %cst_41 = arith.constant dense<0.000000e+00> : vector<8x8xf32>
    %87 = tpu.matmul %85, %86, %cst_41 {dimension_numbers = #tpu.dot_dimension_numbers<[1], [1], [0], [0], [0, 0, 1, 0], [], []>} : vector<8x128xbf16>, vector<8x128xbf16>, vector<8x8xf32> -> vector<8x8xf32>
    %cst_42 = arith.constant 0.353553385 : f32
    %88 = vector.broadcast %cst_42 : f32 to vector<8x8xf32>
    %89 = arith.mulf %87, %88 : vector<8x8xf32>
    %90 = vector.broadcast %24 : vector<1x8xf32> to vector<8x8xf32>
    %91 = arith.addf %89, %90 : vector<8x8xf32>
    %92 = arith.addf %91, %22 : vector<8x8xf32>
    %cst_43 = arith.constant dense<0xFF800000> : vector<8xf32>
    %93 = vector.multi_reduction <maximumf>, %92, %cst_43 [1] : vector<8x8xf32> to vector<8xf32>
    %94 = vector.shape_cast %93 : vector<8xf32> to vector<8x1xf32>
    %95 = vector.broadcast %94 : vector<8x1xf32> to vector<8x8xf32>
    %96 = arith.subf %92, %95 : vector<8x8xf32>
    %97 = math.exp %96 : vector<8x8xf32>
    %cst_44 = arith.constant dense<0.000000e+00> : vector<8xf32>
    %98 = vector.multi_reduction <add>, %97, %cst_44 [1] : vector<8x8xf32> to vector<8xf32>
    %99 = vector.shape_cast %98 : vector<8xf32> to vector<8x1xf32>
    %100 = vector.broadcast %99 : vector<8x1xf32> to vector<8x8xf32>
    %101 = arith.divf %97, %100 : vector<8x8xf32>
    %102 = arith.truncf %101 : vector<8x8xf32> to vector<8x8xbf16>
    %103 = arith.truncf %84 : vector<8x128xf32> to vector<8x128xbf16>
    %cst_45 = arith.constant dense<0.000000e+00> : vector<8x128xf32>
    %104 = tpu.matmul %102, %103, %cst_45 {dimension_numbers = #tpu.dot_dimension_numbers<[1], [0], [0], [1], [0, 0, 1, 1], [], []>} : vector<8x8xbf16>, vector<8x128xbf16>, vector<8x128xf32> -> vector<8x128xf32>
    %105 = arith.truncf %104 : vector<8x128xf32> to vector<8x128xbf16>
    %c2 = arith.constant 2 : index
    %c0_46 = arith.constant 0 : index
    %c0_47 = arith.constant 0 : index
    %106 = vector.load %arg7[%c2, %c0_46, %c0_47] : memref<4x128x128xbf16, #tpu.memory_space<vmem>>, vector<1x128x128xbf16>
    %107 = vector.shape_cast %106 : vector<1x128x128xbf16> to vector<128x128xbf16>
    %cst_48 = arith.constant dense<0.000000e+00> : vector<8x128xf32>
    %108 = tpu.matmul %105, %107, %cst_48 {dimension_numbers = #tpu.dot_dimension_numbers<[1], [0], [0], [1], [0, 0, 1, 1], [], []>} : vector<8x128xbf16>, vector<128x128xbf16>, vector<8x128xf32> -> vector<8x128xf32>
    %109 = arith.addf %81, %108 : vector<8x128xf32>
    %110 = vector.extract_strided_slice %6 {offsets = [0, 384], sizes = [8, 128], strides = [1, 1]} : vector<16x512xf32> to vector<8x128xf32>
    %111 = vector.extract_strided_slice %13 {offsets = [0, 384], sizes = [8, 128], strides = [1, 1]} : vector<16x1024xf32> to vector<8x128xf32>
    %112 = vector.extract_strided_slice %13 {offsets = [0, 896], sizes = [8, 128], strides = [1, 1]} : vector<16x1024xf32> to vector<8x128xf32>
    %113 = arith.truncf %110 : vector<8x128xf32> to vector<8x128xbf16>
    %114 = arith.truncf %111 : vector<8x128xf32> to vector<8x128xbf16>
    %cst_49 = arith.constant dense<0.000000e+00> : vector<8x8xf32>
    %115 = tpu.matmul %113, %114, %cst_49 {dimension_numbers = #tpu.dot_dimension_numbers<[1], [1], [0], [0], [0, 0, 1, 0], [], []>} : vector<8x128xbf16>, vector<8x128xbf16>, vector<8x8xf32> -> vector<8x8xf32>
    %cst_50 = arith.constant 0.353553385 : f32
    %116 = vector.broadcast %cst_50 : f32 to vector<8x8xf32>
    %117 = arith.mulf %115, %116 : vector<8x8xf32>
    %118 = vector.broadcast %24 : vector<1x8xf32> to vector<8x8xf32>
    %119 = arith.addf %117, %118 : vector<8x8xf32>
    %120 = arith.addf %119, %22 : vector<8x8xf32>
    %cst_51 = arith.constant dense<0xFF800000> : vector<8xf32>
    %121 = vector.multi_reduction <maximumf>, %120, %cst_51 [1] : vector<8x8xf32> to vector<8xf32>
    %122 = vector.shape_cast %121 : vector<8xf32> to vector<8x1xf32>
    %123 = vector.broadcast %122 : vector<8x1xf32> to vector<8x8xf32>
    %124 = arith.subf %120, %123 : vector<8x8xf32>
    %125 = math.exp %124 : vector<8x8xf32>
    %cst_52 = arith.constant dense<0.000000e+00> : vector<8xf32>
    %126 = vector.multi_reduction <add>, %125, %cst_52 [1] : vector<8x8xf32> to vector<8xf32>
    %127 = vector.shape_cast %126 : vector<8xf32> to vector<8x1xf32>
    %128 = vector.broadcast %127 : vector<8x1xf32> to vector<8x8xf32>
    %129 = arith.divf %125, %128 : vector<8x8xf32>
    %130 = arith.truncf %129 : vector<8x8xf32> to vector<8x8xbf16>
    %131 = arith.truncf %112 : vector<8x128xf32> to vector<8x128xbf16>
    %cst_53 = arith.constant dense<0.000000e+00> : vector<8x128xf32>
    %132 = tpu.matmul %130, %131, %cst_53 {dimension_numbers = #tpu.dot_dimension_numbers<[1], [0], [0], [1], [0, 0, 1, 1], [], []>} : vector<8x8xbf16>, vector<8x128xbf16>, vector<8x128xf32> -> vector<8x128xf32>
    %133 = arith.truncf %132 : vector<8x128xf32> to vector<8x128xbf16>
    %c3 = arith.constant 3 : index
    %c0_54 = arith.constant 0 : index
    %c0_55 = arith.constant 0 : index
    %134 = vector.load %arg7[%c3, %c0_54, %c0_55] : memref<4x128x128xbf16, #tpu.memory_space<vmem>>, vector<1x128x128xbf16>
    %135 = vector.shape_cast %134 : vector<1x128x128xbf16> to vector<128x128xbf16>
    %cst_56 = arith.constant dense<0.000000e+00> : vector<8x128xf32>
    %136 = tpu.matmul %133, %135, %cst_56 {dimension_numbers = #tpu.dot_dimension_numbers<[1], [0], [0], [1], [0, 0, 1, 1], [], []>} : vector<8x128xbf16>, vector<128x128xbf16>, vector<8x128xf32> -> vector<8x128xf32>
    %137 = arith.addf %109, %136 : vector<8x128xf32>
    %138 = vector.extract_strided_slice %0 {offsets = [0, 0], sizes = [8, 128], strides = [1, 1]} : vector<16x128xf32> to vector<8x128xf32>
    %139 = arith.addf %138, %137 : vector<8x128xf32>
    %140 = vector.broadcast %14 : vector<1x128xf32> to vector<8x128xf32>
    %141 = arith.addf %139, %140 : vector<8x128xf32>
    %142 = tpu.iota {dimensions = array<i32: 1>} : vector<8x128xi32>
    %c32_i32 = arith.constant 32 : i32
    %143 = vector.broadcast %c32_i32 : i32 to vector<8x128xi32>
    %144 = arith.cmpi slt, %142, %143 : vector<8x128xi32>
    %145 = arith.extui %144 : vector<8x128xi1> to vector<8x128xi32>
    %146 = arith.sitofp %145 : vector<8x128xi32> to vector<8x128xf32>
    %cst_57 = arith.constant dense<0.000000e+00> : vector<8xf32>
    %147 = vector.multi_reduction <add>, %141, %cst_57 [1] : vector<8x128xf32> to vector<8xf32>
    %148 = vector.shape_cast %147 : vector<8xf32> to vector<8x1xf32>
    %cst_58 = arith.constant 3.125000e-02 : f32
    %149 = vector.broadcast %cst_58 : f32 to vector<8x1xf32>
    %150 = arith.mulf %148, %149 : vector<8x1xf32>
    %151 = vector.broadcast %150 : vector<8x1xf32> to vector<8x128xf32>
    %152 = arith.subf %141, %151 : vector<8x128xf32>
    %153 = arith.mulf %152, %146 : vector<8x128xf32>
    %154 = arith.mulf %153, %153 : vector<8x128xf32>
    %cst_59 = arith.constant dense<0.000000e+00> : vector<8xf32>
    %155 = vector.multi_reduction <add>, %154, %cst_59 [1] : vector<8x128xf32> to vector<8xf32>
    %156 = vector.shape_cast %155 : vector<8xf32> to vector<8x1xf32>
    %cst_60 = arith.constant 3.125000e-02 : f32
    %157 = vector.broadcast %cst_60 : f32 to vector<8x1xf32>
    %158 = arith.mulf %156, %157 : vector<8x1xf32>
    %cst_61 = arith.constant 9.99999974E-6 : f32
    %159 = vector.broadcast %cst_61 : f32 to vector<8x1xf32>
    %160 = arith.addf %158, %159 : vector<8x1xf32>
    %161 = math.rsqrt %160 : vector<8x1xf32>
    %162 = vector.broadcast %161 : vector<8x1xf32> to vector<8x128xf32>
    %163 = arith.mulf %153, %162 : vector<8x128xf32>
    %164 = vector.broadcast %15 : vector<1x128xf32> to vector<8x128xf32>
    %165 = arith.mulf %163, %164 : vector<8x128xf32>
    %166 = vector.broadcast %16 : vector<1x128xf32> to vector<8x128xf32>
    %167 = arith.addf %165, %166 : vector<8x128xf32>
    %c0_62 = arith.constant 0 : index
    %c0_63 = arith.constant 0 : index
    %168 = vector.load %arg12[%c0_62, %c0_63] : memref<16x128xf32, #tpu.memory_space<vmem>>, vector<8x128xf32>
    tpu.vector_store %arg12[%c0_62, %c0_63], %167 {strides = array<i32>} : memref<16x128xf32, #tpu.memory_space<vmem>>, vector<8x128xf32>,
    %c1_64 = arith.constant 1 : index
    %c0_65 = arith.constant 0 : index
    %c0_66 = arith.constant 0 : index
    %169 = vector.load %arg9[%c1_64, %c0_65, %c0_66] : memref<2x1x8xf32, #tpu.memory_space<vmem>>, vector<1x1x8xf32>
    %170 = vector.shape_cast %169 : vector<1x1x8xf32> to vector<1x8xf32>
    %cst_67 = arith.constant 0.000000e+00 : f32
    %171 = vector.broadcast %cst_67 : f32 to vector<8x128xf32>
    %172 = vector.extract_strided_slice %6 {offsets = [8, 0], sizes = [8, 128], strides = [1, 1]} : vector<16x512xf32> to vector<8x128xf32>
    %173 = vector.extract_strided_slice %13 {offsets = [8, 0], sizes = [8, 128], strides = [1, 1]} : vector<16x1024xf32> to vector<8x128xf32>
    %174 = vector.extract_strided_slice %13 {offsets = [8, 512], sizes = [8, 128], strides = [1, 1]} : vector<16x1024xf32> to vector<8x128xf32>
    %175 = arith.truncf %172 : vector<8x128xf32> to vector<8x128xbf16>
    %176 = arith.truncf %173 : vector<8x128xf32> to vector<8x128xbf16>
    %cst_68 = arith.constant dense<0.000000e+00> : vector<8x8xf32>
    %177 = tpu.matmul %175, %176, %cst_68 {dimension_numbers = #tpu.dot_dimension_numbers<[1], [1], [0], [0], [0, 0, 1, 0], [], []>} : vector<8x128xbf16>, vector<8x128xbf16>, vector<8x8xf32> -> vector<8x8xf32>
    %cst_69 = arith.constant 0.353553385 : f32
    %178 = vector.broadcast %cst_69 : f32 to vector<8x8xf32>
    %179 = arith.mulf %177, %178 : vector<8x8xf32>
    %180 = vector.broadcast %170 : vector<1x8xf32> to vector<8x8xf32>
    %181 = arith.addf %179, %180 : vector<8x8xf32>
    %182 = arith.addf %181, %22 : vector<8x8xf32>
    %cst_70 = arith.constant dense<0xFF800000> : vector<8xf32>
    %183 = vector.multi_reduction <maximumf>, %182, %cst_70 [1] : vector<8x8xf32> to vector<8xf32>
    %184 = vector.shape_cast %183 : vector<8xf32> to vector<8x1xf32>
    %185 = vector.broadcast %184 : vector<8x1xf32> to vector<8x8xf32>
    %186 = arith.subf %182, %185 : vector<8x8xf32>
    %187 = math.exp %186 : vector<8x8xf32>
    %cst_71 = arith.constant dense<0.000000e+00> : vector<8xf32>
    %188 = vector.multi_reduction <add>, %187, %cst_71 [1] : vector<8x8xf32> to vector<8xf32>
    %189 = vector.shape_cast %188 : vector<8xf32> to vector<8x1xf32>
    %190 = vector.broadcast %189 : vector<8x1xf32> to vector<8x8xf32>
    %191 = arith.divf %187, %190 : vector<8x8xf32>
    %192 = arith.truncf %191 : vector<8x8xf32> to vector<8x8xbf16>
    %193 = arith.truncf %174 : vector<8x128xf32> to vector<8x128xbf16>
    %cst_72 = arith.constant dense<0.000000e+00> : vector<8x128xf32>
    %194 = tpu.matmul %192, %193, %cst_72 {dimension_numbers = #tpu.dot_dimension_numbers<[1], [0], [0], [1], [0, 0, 1, 1], [], []>} : vector<8x8xbf16>, vector<8x128xbf16>, vector<8x128xf32> -> vector<8x128xf32>
    %195 = arith.truncf %194 : vector<8x128xf32> to vector<8x128xbf16>
    %c0_73 = arith.constant 0 : index
    %c0_74 = arith.constant 0 : index
    %c0_75 = arith.constant 0 : index
    %196 = vector.load %arg7[%c0_73, %c0_74, %c0_75] : memref<4x128x128xbf16, #tpu.memory_space<vmem>>, vector<1x128x128xbf16>
    %197 = vector.shape_cast %196 : vector<1x128x128xbf16> to vector<128x128xbf16>
    %cst_76 = arith.constant dense<0.000000e+00> : vector<8x128xf32>
    %198 = tpu.matmul %195, %197, %cst_76 {dimension_numbers = #tpu.dot_dimension_numbers<[1], [0], [0], [1], [0, 0, 1, 1], [], []>} : vector<8x128xbf16>, vector<128x128xbf16>, vector<8x128xf32> -> vector<8x128xf32>
    %199 = arith.addf %171, %198 : vector<8x128xf32>
    %200 = vector.extract_strided_slice %6 {offsets = [8, 128], sizes = [8, 128], strides = [1, 1]} : vector<16x512xf32> to vector<8x128xf32>
    %201 = vector.extract_strided_slice %13 {offsets = [8, 128], sizes = [8, 128], strides = [1, 1]} : vector<16x1024xf32> to vector<8x128xf32>
    %202 = vector.extract_strided_slice %13 {offsets = [8, 640], sizes = [8, 128], strides = [1, 1]} : vector<16x1024xf32> to vector<8x128xf32>
    %203 = arith.truncf %200 : vector<8x128xf32> to vector<8x128xbf16>
    %204 = arith.truncf %201 : vector<8x128xf32> to vector<8x128xbf16>
    %cst_77 = arith.constant dense<0.000000e+00> : vector<8x8xf32>
    %205 = tpu.matmul %203, %204, %cst_77 {dimension_numbers = #tpu.dot_dimension_numbers<[1], [1], [0], [0], [0, 0, 1, 0], [], []>} : vector<8x128xbf16>, vector<8x128xbf16>, vector<8x8xf32> -> vector<8x8xf32>
    %cst_78 = arith.constant 0.353553385 : f32
    %206 = vector.broadcast %cst_78 : f32 to vector<8x8xf32>
    %207 = arith.mulf %205, %206 : vector<8x8xf32>
    %208 = vector.broadcast %170 : vector<1x8xf32> to vector<8x8xf32>
    %209 = arith.addf %207, %208 : vector<8x8xf32>
    %210 = arith.addf %209, %22 : vector<8x8xf32>
    %cst_79 = arith.constant dense<0xFF800000> : vector<8xf32>
    %211 = vector.multi_reduction <maximumf>, %210, %cst_79 [1] : vector<8x8xf32> to vector<8xf32>
    %212 = vector.shape_cast %211 : vector<8xf32> to vector<8x1xf32>
    %213 = vector.broadcast %212 : vector<8x1xf32> to vector<8x8xf32>
    %214 = arith.subf %210, %213 : vector<8x8xf32>
    %215 = math.exp %214 : vector<8x8xf32>
    %cst_80 = arith.constant dense<0.000000e+00> : vector<8xf32>
    %216 = vector.multi_reduction <add>, %215, %cst_80 [1] : vector<8x8xf32> to vector<8xf32>
    %217 = vector.shape_cast %216 : vector<8xf32> to vector<8x1xf32>
    %218 = vector.broadcast %217 : vector<8x1xf32> to vector<8x8xf32>
    %219 = arith.divf %215, %218 : vector<8x8xf32>
    %220 = arith.truncf %219 : vector<8x8xf32> to vector<8x8xbf16>
    %221 = arith.truncf %202 : vector<8x128xf32> to vector<8x128xbf16>
    %cst_81 = arith.constant dense<0.000000e+00> : vector<8x128xf32>
    %222 = tpu.matmul %220, %221, %cst_81 {dimension_numbers = #tpu.dot_dimension_numbers<[1], [0], [0], [1], [0, 0, 1, 1], [], []>} : vector<8x8xbf16>, vector<8x128xbf16>, vector<8x128xf32> -> vector<8x128xf32>
    %223 = arith.truncf %222 : vector<8x128xf32> to vector<8x128xbf16>
    %c1_82 = arith.constant 1 : index
    %c0_83 = arith.constant 0 : index
    %c0_84 = arith.constant 0 : index
    %224 = vector.load %arg7[%c1_82, %c0_83, %c0_84] : memref<4x128x128xbf16, #tpu.memory_space<vmem>>, vector<1x128x128xbf16>
    %225 = vector.shape_cast %224 : vector<1x128x128xbf16> to vector<128x128xbf16>
    %cst_85 = arith.constant dense<0.000000e+00> : vector<8x128xf32>
    %226 = tpu.matmul %223, %225, %cst_85 {dimension_numbers = #tpu.dot_dimension_numbers<[1], [0], [0], [1], [0, 0, 1, 1], [], []>} : vector<8x128xbf16>, vector<128x128xbf16>, vector<8x128xf32> -> vector<8x128xf32>
    %227 = arith.addf %199, %226 : vector<8x128xf32>
    %228 = vector.extract_strided_slice %6 {offsets = [8, 256], sizes = [8, 128], strides = [1, 1]} : vector<16x512xf32> to vector<8x128xf32>
    %229 = vector.extract_strided_slice %13 {offsets = [8, 256], sizes = [8, 128], strides = [1, 1]} : vector<16x1024xf32> to vector<8x128xf32>
    %230 = vector.extract_strided_slice %13 {offsets = [8, 768], sizes = [8, 128], strides = [1, 1]} : vector<16x1024xf32> to vector<8x128xf32>
    %231 = arith.truncf %228 : vector<8x128xf32> to vector<8x128xbf16>
    %232 = arith.truncf %229 : vector<8x128xf32> to vector<8x128xbf16>
    %cst_86 = arith.constant dense<0.000000e+00> : vector<8x8xf32>
    %233 = tpu.matmul %231, %232, %cst_86 {dimension_numbers = #tpu.dot_dimension_numbers<[1], [1], [0], [0], [0, 0, 1, 0], [], []>} : vector<8x128xbf16>, vector<8x128xbf16>, vector<8x8xf32> -> vector<8x8xf32>
    %cst_87 = arith.constant 0.353553385 : f32
    %234 = vector.broadcast %cst_87 : f32 to vector<8x8xf32>
    %235 = arith.mulf %233, %234 : vector<8x8xf32>
    %236 = vector.broadcast %170 : vector<1x8xf32> to vector<8x8xf32>
    %237 = arith.addf %235, %236 : vector<8x8xf32>
    %238 = arith.addf %237, %22 : vector<8x8xf32>
    %cst_88 = arith.constant dense<0xFF800000> : vector<8xf32>
    %239 = vector.multi_reduction <maximumf>, %238, %cst_88 [1] : vector<8x8xf32> to vector<8xf32>
    %240 = vector.shape_cast %239 : vector<8xf32> to vector<8x1xf32>
    %241 = vector.broadcast %240 : vector<8x1xf32> to vector<8x8xf32>
    %242 = arith.subf %238, %241 : vector<8x8xf32>
    %243 = math.exp %242 : vector<8x8xf32>
    %cst_89 = arith.constant dense<0.000000e+00> : vector<8xf32>
    %244 = vector.multi_reduction <add>, %243, %cst_89 [1] : vector<8x8xf32> to vector<8xf32>
    %245 = vector.shape_cast %244 : vector<8xf32> to vector<8x1xf32>
    %246 = vector.broadcast %245 : vector<8x1xf32> to vector<8x8xf32>
    %247 = arith.divf %243, %246 : vector<8x8xf32>
    %248 = arith.truncf %247 : vector<8x8xf32> to vector<8x8xbf16>
    %249 = arith.truncf %230 : vector<8x128xf32> to vector<8x128xbf16>
    %cst_90 = arith.constant dense<0.000000e+00> : vector<8x128xf32>
    %250 = tpu.matmul %248, %249, %cst_90 {dimension_numbers = #tpu.dot_dimension_numbers<[1], [0], [0], [1], [0, 0, 1, 1], [], []>} : vector<8x8xbf16>, vector<8x128xbf16>, vector<8x128xf32> -> vector<8x128xf32>
    %251 = arith.truncf %250 : vector<8x128xf32> to vector<8x128xbf16>
    %c2_91 = arith.constant 2 : index
    %c0_92 = arith.constant 0 : index
    %c0_93 = arith.constant 0 : index
    %252 = vector.load %arg7[%c2_91, %c0_92, %c0_93] : memref<4x128x128xbf16, #tpu.memory_space<vmem>>, vector<1x128x128xbf16>
    %253 = vector.shape_cast %252 : vector<1x128x128xbf16> to vector<128x128xbf16>
    %cst_94 = arith.constant dense<0.000000e+00> : vector<8x128xf32>
    %254 = tpu.matmul %251, %253, %cst_94 {dimension_numbers = #tpu.dot_dimension_numbers<[1], [0], [0], [1], [0, 0, 1, 1], [], []>} : vector<8x128xbf16>, vector<128x128xbf16>, vector<8x128xf32> -> vector<8x128xf32>
    %255 = arith.addf %227, %254 : vector<8x128xf32>
    %256 = vector.extract_strided_slice %6 {offsets = [8, 384], sizes = [8, 128], strides = [1, 1]} : vector<16x512xf32> to vector<8x128xf32>
    %257 = vector.extract_strided_slice %13 {offsets = [8, 384], sizes = [8, 128], strides = [1, 1]} : vector<16x1024xf32> to vector<8x128xf32>
    %258 = vector.extract_strided_slice %13 {offsets = [8, 896], sizes = [8, 128], strides = [1, 1]} : vector<16x1024xf32> to vector<8x128xf32>
    %259 = arith.truncf %256 : vector<8x128xf32> to vector<8x128xbf16>
    %260 = arith.truncf %257 : vector<8x128xf32> to vector<8x128xbf16>
    %cst_95 = arith.constant dense<0.000000e+00> : vector<8x8xf32>
    %261 = tpu.matmul %259, %260, %cst_95 {dimension_numbers = #tpu.dot_dimension_numbers<[1], [1], [0], [0], [0, 0, 1, 0], [], []>} : vector<8x128xbf16>, vector<8x128xbf16>, vector<8x8xf32> -> vector<8x8xf32>
    %cst_96 = arith.constant 0.353553385 : f32
    %262 = vector.broadcast %cst_96 : f32 to vector<8x8xf32>
    %263 = arith.mulf %261, %262 : vector<8x8xf32>
    %264 = vector.broadcast %170 : vector<1x8xf32> to vector<8x8xf32>
    %265 = arith.addf %263, %264 : vector<8x8xf32>
    %266 = arith.addf %265, %22 : vector<8x8xf32>
    %cst_97 = arith.constant dense<0xFF800000> : vector<8xf32>
    %267 = vector.multi_reduction <maximumf>, %266, %cst_97 [1] : vector<8x8xf32> to vector<8xf32>
    %268 = vector.shape_cast %267 : vector<8xf32> to vector<8x1xf32>
    %269 = vector.broadcast %268 : vector<8x1xf32> to vector<8x8xf32>
    %270 = arith.subf %266, %269 : vector<8x8xf32>
    %271 = math.exp %270 : vector<8x8xf32>
    %cst_98 = arith.constant dense<0.000000e+00> : vector<8xf32>
    %272 = vector.multi_reduction <add>, %271, %cst_98 [1] : vector<8x8xf32> to vector<8xf32>
    %273 = vector.shape_cast %272 : vector<8xf32> to vector<8x1xf32>
    %274 = vector.broadcast %273 : vector<8x1xf32> to vector<8x8xf32>
    %275 = arith.divf %271, %274 : vector<8x8xf32>
    %276 = arith.truncf %275 : vector<8x8xf32> to vector<8x8xbf16>
    %277 = arith.truncf %258 : vector<8x128xf32> to vector<8x128xbf16>
    %cst_99 = arith.constant dense<0.000000e+00> : vector<8x128xf32>
    %278 = tpu.matmul %276, %277, %cst_99 {dimension_numbers = #tpu.dot_dimension_numbers<[1], [0], [0], [1], [0, 0, 1, 1], [], []>} : vector<8x8xbf16>, vector<8x128xbf16>, vector<8x128xf32> -> vector<8x128xf32>
    %279 = arith.truncf %278 : vector<8x128xf32> to vector<8x128xbf16>
    %c3_100 = arith.constant 3 : index
    %c0_101 = arith.constant 0 : index
    %c0_102 = arith.constant 0 : index
    %280 = vector.load %arg7[%c3_100, %c0_101, %c0_102] : memref<4x128x128xbf16, #tpu.memory_space<vmem>>, vector<1x128x128xbf16>
    %281 = vector.shape_cast %280 : vector<1x128x128xbf16> to vector<128x128xbf16>
    %cst_103 = arith.constant dense<0.000000e+00> : vector<8x128xf32>
    %282 = tpu.matmul %279, %281, %cst_103 {dimension_numbers = #tpu.dot_dimension_numbers<[1], [0], [0], [1], [0, 0, 1, 1], [], []>} : vector<8x128xbf16>, vector<128x128xbf16>, vector<8x128xf32> -> vector<8x128xf32>
    %283 = arith.addf %255, %282 : vector<8x128xf32>
    %284 = vector.extract_strided_slice %0 {offsets = [8, 0], sizes = [8, 128], strides = [1, 1]} : vector<16x128xf32> to vector<8x128xf32>
    %285 = arith.addf %284, %283 : vector<8x128xf32>
    %286 = vector.broadcast %14 : vector<1x128xf32> to vector<8x128xf32>
    %287 = arith.addf %285, %286 : vector<8x128xf32>
    %288 = tpu.iota {dimensions = array<i32: 1>} : vector<8x128xi32>
    %c32_i32_104 = arith.constant 32 : i32
    %289 = vector.broadcast %c32_i32_104 : i32 to vector<8x128xi32>
    %290 = arith.cmpi slt, %288, %289 : vector<8x128xi32>
    %291 = arith.extui %290 : vector<8x128xi1> to vector<8x128xi32>
    %292 = arith.sitofp %291 : vector<8x128xi32> to vector<8x128xf32>
    %cst_105 = arith.constant dense<0.000000e+00> : vector<8xf32>
    %293 = vector.multi_reduction <add>, %287, %cst_105 [1] : vector<8x128xf32> to vector<8xf32>
    %294 = vector.shape_cast %293 : vector<8xf32> to vector<8x1xf32>
    %cst_106 = arith.constant 3.125000e-02 : f32
    %295 = vector.broadcast %cst_106 : f32 to vector<8x1xf32>
    %296 = arith.mulf %294, %295 : vector<8x1xf32>
    %297 = vector.broadcast %296 : vector<8x1xf32> to vector<8x128xf32>
    %298 = arith.subf %287, %297 : vector<8x128xf32>
    %299 = arith.mulf %298, %292 : vector<8x128xf32>
    %300 = arith.mulf %299, %299 : vector<8x128xf32>
    %cst_107 = arith.constant dense<0.000000e+00> : vector<8xf32>
    %301 = vector.multi_reduction <add>, %300, %cst_107 [1] : vector<8x128xf32> to vector<8xf32>
    %302 = vector.shape_cast %301 : vector<8xf32> to vector<8x1xf32>
    %cst_108 = arith.constant 3.125000e-02 : f32
    %303 = vector.broadcast %cst_108 : f32 to vector<8x1xf32>
    %304 = arith.mulf %302, %303 : vector<8x1xf32>
    %cst_109 = arith.constant 9.99999974E-6 : f32
    %305 = vector.broadcast %cst_109 : f32 to vector<8x1xf32>
    %306 = arith.addf %304, %305 : vector<8x1xf32>
    %307 = math.rsqrt %306 : vector<8x1xf32>
    %308 = vector.broadcast %307 : vector<8x1xf32> to vector<8x128xf32>
    %309 = arith.mulf %299, %308 : vector<8x128xf32>
    %310 = vector.broadcast %15 : vector<1x128xf32> to vector<8x128xf32>
    %311 = arith.mulf %309, %310 : vector<8x128xf32>
    %312 = vector.broadcast %16 : vector<1x128xf32> to vector<8x128xf32>
    %313 = arith.addf %311, %312 : vector<8x128xf32>
    %c8 = arith.constant 8 : index
    %c0_110 = arith.constant 0 : index
    %314 = vector.load %arg12[%c8, %c0_110] : memref<16x128xf32, #tpu.memory_space<vmem>>, vector<8x128xf32>
    tpu.vector_store %arg12[%c8, %c0_110], %313 {strides = array<i32>} : memref<16x128xf32, #tpu.memory_space<vmem>>, vector<8x128xf32>,
    return
  }
  func.func @transform_0(%arg0: i32) -> (i32, i32) {
    %c0_i32 = arith.constant 0 : i32
    %c0_i32_0 = arith.constant 0 : i32
    %c0_i32_1 = arith.constant 0 : i32
    return %c0_i32, %c0_i32_0 : i32, i32
  }
  func.func @transform_1(%arg0: i32) -> (i32, i32) {
    %c0_i32 = arith.constant 0 : i32
    %c0_i32_0 = arith.constant 0 : i32
    %c0_i32_1 = arith.constant 0 : i32
    return %c0_i32, %c0_i32_0 : i32, i32
  }
  func.func @transform_2(%arg0: i32) -> (i32, i32) {
    %c0_i32 = arith.constant 0 : i32
    %c0_i32_0 = arith.constant 0 : i32
    %c0_i32_1 = arith.constant 0 : i32
    return %c0_i32, %c0_i32_0 : i32, i32
  }
  func.func @transform_3(%arg0: i32) -> (i32, i32) {
    %c0_i32 = arith.constant 0 : i32
    %c0_i32_0 = arith.constant 0 : i32
    %c0_i32_1 = arith.constant 0 : i32
    return %c0_i32, %c0_i32_0 : i32, i32
  }
  func.func @transform_4(%arg0: i32) -> (i32, i32) {
    %c0_i32 = arith.constant 0 : i32
    %c0_i32_0 = arith.constant 0 : i32
    %c0_i32_1 = arith.constant 0 : i32
    return %c0_i32, %c0_i32_0 : i32, i32
  }
  func.func @transform_5(%arg0: i32) -> (i32, i32) {
    %c0_i32 = arith.constant 0 : i32
    %c0_i32_0 = arith.constant 0 : i32
    %c0_i32_1 = arith.constant 0 : i32
    return %c0_i32, %c0_i32_0 : i32, i32
  }
  func.func @transform_6(%arg0: i32) -> (i32, i32, i32) {
    %c0_i32 = arith.constant 0 : i32
    %c0_i32_0 = arith.constant 0 : i32
    %c0_i32_1 = arith.constant 0 : i32
    %c0_i32_2 = arith.constant 0 : i32
    return %c0_i32, %c0_i32_0, %c0_i32_1 : i32, i32, i32
  }
  func.func @transform_7(%arg0: i32) -> (i32, i32) {
    %c0_i32 = arith.constant 0 : i32
    %c0_i32_0 = arith.constant 0 : i32
    %c0_i32_1 = arith.constant 0 : i32
    return %c0_i32, %c0_i32_0 : i32, i32
  }
  func.func @transform_8(%arg0: i32) -> (i32, i32, i32) {
    %c0_i32 = arith.constant 0 : i32
    %c0_i32_0 = arith.constant 0 : i32
    %c0_i32_1 = arith.constant 0 : i32
    %c0_i32_2 = arith.constant 0 : i32
    return %c0_i32, %c0_i32_0, %c0_i32_1 : i32, i32, i32
  }
  func.func @transform_9(%arg0: i32) -> (i32, i32) {
    %c0_i32 = arith.constant 0 : i32
    %c0_i32_0 = arith.constant 0 : i32
    %c0_i32_1 = arith.constant 0 : i32
    return %c0_i32, %c0_i32_0 : i32, i32
  }
  func.func @transform_10(%arg0: i32) -> (i32, i32) {
    %c0_i32 = arith.constant 0 : i32
    %c0_i32_0 = arith.constant 0 : i32
    %c0_i32_1 = arith.constant 0 : i32
    return %c0_i32, %c0_i32_0 : i32, i32
  }
  func.func @transform_11(%arg0: i32) -> (i32, i32) {
    %c0_i32 = arith.constant 0 : i32
    %c0_i32_0 = arith.constant 0 : i32
    %c0_i32_1 = arith.constant 0 : i32
    return %c0_i32, %c0_i32_0 : i32, i32
  }
}

module attributes {stable_mosaic.version = 11 : i64} {
  func.func @_ffn_block_kernel(%arg0: i32, %arg1: memref<16x128xf32, #tpu.memory_space<vmem>>, %arg2: memref<128x128xbf16, #tpu.memory_space<vmem>>, %arg3: memref<1x128xf32, #tpu.memory_space<vmem>>, %arg4: memref<128x128xbf16, #tpu.memory_space<vmem>>, %arg5: memref<1x128xf32, #tpu.memory_space<vmem>>, %arg6: memref<1x128xf32, #tpu.memory_space<vmem>>, %arg7: memref<1x128xf32, #tpu.memory_space<vmem>>, %arg8: memref<16x128xf32, #tpu.memory_space<vmem>>) attributes {dimension_semantics = [#tpu.dimension_semantics<arbitrary>], iteration_bounds = array<i64: 1>, scalar_prefetch = 0 : i64, scratch_operands = 0 : i64, tpu.core_type = #tpu.core_type<tc>, window_params = [{pipeline_mode = #tpu.pipeline_mode<synchronous>, transform_indices = @transform_0, window_bounds = array<i64: 16, 128>}, {pipeline_mode = #tpu.pipeline_mode<synchronous>, transform_indices = @transform_1, window_bounds = array<i64: 128, 128>}, {pipeline_mode = #tpu.pipeline_mode<synchronous>, transform_indices = @transform_2, window_bounds = array<i64: 1, 128>}, {pipeline_mode = #tpu.pipeline_mode<synchronous>, transform_indices = @transform_3, window_bounds = array<i64: 128, 128>}, {pipeline_mode = #tpu.pipeline_mode<synchronous>, transform_indices = @transform_4, window_bounds = array<i64: 1, 128>}, {pipeline_mode = #tpu.pipeline_mode<synchronous>, transform_indices = @transform_5, window_bounds = array<i64: 1, 128>}, {pipeline_mode = #tpu.pipeline_mode<synchronous>, transform_indices = @transform_6, window_bounds = array<i64: 1, 128>}, {pipeline_mode = #tpu.pipeline_mode<synchronous>, transform_indices = @transform_7, window_bounds = array<i64: 16, 128>}]} {
    %c0 = arith.constant 0 : index
    %c0_0 = arith.constant 0 : index
    %0 = vector.load %arg1[%c0, %c0_0] : memref<16x128xf32, #tpu.memory_space<vmem>>, vector<16x128xf32>
    %1 = arith.truncf %0 : vector<16x128xf32> to vector<16x128xbf16>
    %c0_1 = arith.constant 0 : index
    %c0_2 = arith.constant 0 : index
    %2 = vector.load %arg2[%c0_1, %c0_2] : memref<128x128xbf16, #tpu.memory_space<vmem>>, vector<128x128xbf16>
    %cst = arith.constant dense<0.000000e+00> : vector<16x128xf32>
    %3 = tpu.matmul %1, %2, %cst {dimension_numbers = #tpu.dot_dimension_numbers<[1], [0], [0], [1], [0, 0, 1, 1], [], []>} : vector<16x128xbf16>, vector<128x128xbf16>, vector<16x128xf32> -> vector<16x128xf32>
    %c0_3 = arith.constant 0 : index
    %c0_4 = arith.constant 0 : index
    %4 = vector.load %arg3[%c0_3, %c0_4] : memref<1x128xf32, #tpu.memory_space<vmem>>, vector<1x128xf32>
    %5 = vector.broadcast %4 : vector<1x128xf32> to vector<16x128xf32>
    %6 = arith.addf %3, %5 : vector<16x128xf32>
    %cst_5 = arith.constant 0.000000e+00 : f32
    %7 = vector.broadcast %cst_5 : f32 to vector<16x128xf32>
    %8 = arith.maximumf %6, %7 : vector<16x128xf32>
    %9 = arith.truncf %8 : vector<16x128xf32> to vector<16x128xbf16>
    %c0_6 = arith.constant 0 : index
    %c0_7 = arith.constant 0 : index
    %10 = vector.load %arg4[%c0_6, %c0_7] : memref<128x128xbf16, #tpu.memory_space<vmem>>, vector<128x128xbf16>
    %cst_8 = arith.constant dense<0.000000e+00> : vector<16x128xf32>
    %11 = tpu.matmul %9, %10, %cst_8 {dimension_numbers = #tpu.dot_dimension_numbers<[1], [0], [0], [1], [0, 0, 1, 1], [], []>} : vector<16x128xbf16>, vector<128x128xbf16>, vector<16x128xf32> -> vector<16x128xf32>
    %c0_9 = arith.constant 0 : index
    %c0_10 = arith.constant 0 : index
    %12 = vector.load %arg5[%c0_9, %c0_10] : memref<1x128xf32, #tpu.memory_space<vmem>>, vector<1x128xf32>
    %13 = vector.broadcast %12 : vector<1x128xf32> to vector<16x128xf32>
    %14 = arith.addf %11, %13 : vector<16x128xf32>
    %15 = arith.addf %0, %14 : vector<16x128xf32>
    %c0_11 = arith.constant 0 : index
    %c0_12 = arith.constant 0 : index
    %16 = vector.load %arg6[%c0_11, %c0_12] : memref<1x128xf32, #tpu.memory_space<vmem>>, vector<1x128xf32>
    %c0_13 = arith.constant 0 : index
    %c0_14 = arith.constant 0 : index
    %17 = vector.load %arg7[%c0_13, %c0_14] : memref<1x128xf32, #tpu.memory_space<vmem>>, vector<1x128xf32>
    %18 = tpu.iota {dimensions = array<i32: 1>} : vector<16x128xi32>
    %c32_i32 = arith.constant 32 : i32
    %19 = vector.broadcast %c32_i32 : i32 to vector<16x128xi32>
    %20 = arith.cmpi slt, %18, %19 : vector<16x128xi32>
    %21 = arith.extui %20 : vector<16x128xi1> to vector<16x128xi32>
    %22 = arith.sitofp %21 : vector<16x128xi32> to vector<16x128xf32>
    %cst_15 = arith.constant dense<0.000000e+00> : vector<16xf32>
    %23 = vector.multi_reduction <add>, %15, %cst_15 [1] : vector<16x128xf32> to vector<16xf32>
    %24 = vector.shape_cast %23 : vector<16xf32> to vector<16x1xf32>
    %cst_16 = arith.constant 3.125000e-02 : f32
    %25 = vector.broadcast %cst_16 : f32 to vector<16x1xf32>
    %26 = arith.mulf %24, %25 : vector<16x1xf32>
    %27 = vector.broadcast %26 : vector<16x1xf32> to vector<16x128xf32>
    %28 = arith.subf %15, %27 : vector<16x128xf32>
    %29 = arith.mulf %28, %22 : vector<16x128xf32>
    %30 = arith.mulf %29, %29 : vector<16x128xf32>
    %cst_17 = arith.constant dense<0.000000e+00> : vector<16xf32>
    %31 = vector.multi_reduction <add>, %30, %cst_17 [1] : vector<16x128xf32> to vector<16xf32>
    %32 = vector.shape_cast %31 : vector<16xf32> to vector<16x1xf32>
    %cst_18 = arith.constant 3.125000e-02 : f32
    %33 = vector.broadcast %cst_18 : f32 to vector<16x1xf32>
    %34 = arith.mulf %32, %33 : vector<16x1xf32>
    %cst_19 = arith.constant 9.99999974E-6 : f32
    %35 = vector.broadcast %cst_19 : f32 to vector<16x1xf32>
    %36 = arith.addf %34, %35 : vector<16x1xf32>
    %37 = math.rsqrt %36 : vector<16x1xf32>
    %38 = vector.broadcast %37 : vector<16x1xf32> to vector<16x128xf32>
    %39 = arith.mulf %29, %38 : vector<16x128xf32>
    %40 = vector.broadcast %16 : vector<1x128xf32> to vector<16x128xf32>
    %41 = arith.mulf %39, %40 : vector<16x128xf32>
    %42 = vector.broadcast %17 : vector<1x128xf32> to vector<16x128xf32>
    %43 = arith.addf %41, %42 : vector<16x128xf32>
    %c0_20 = arith.constant 0 : index
    %c0_21 = arith.constant 0 : index
    %44 = vector.load %arg8[%c0_20, %c0_21] : memref<16x128xf32, #tpu.memory_space<vmem>>, vector<16x128xf32>
    tpu.vector_store %arg8[%c0_20, %c0_21], %43 {strides = array<i32>} : memref<16x128xf32, #tpu.memory_space<vmem>>, vector<16x128xf32>,
    return
  }
  func.func @transform_0(%arg0: i32) -> (i32, i32) {
    %c0_i32 = arith.constant 0 : i32
    %c0_i32_0 = arith.constant 0 : i32
    %c0_i32_1 = arith.constant 0 : i32
    return %c0_i32, %c0_i32_0 : i32, i32
  }
  func.func @transform_1(%arg0: i32) -> (i32, i32) {
    %c0_i32 = arith.constant 0 : i32
    %c0_i32_0 = arith.constant 0 : i32
    %c0_i32_1 = arith.constant 0 : i32
    return %c0_i32, %c0_i32_0 : i32, i32
  }
  func.func @transform_2(%arg0: i32) -> (i32, i32) {
    %c0_i32 = arith.constant 0 : i32
    %c0_i32_0 = arith.constant 0 : i32
    %c0_i32_1 = arith.constant 0 : i32
    return %c0_i32, %c0_i32_0 : i32, i32
  }
  func.func @transform_3(%arg0: i32) -> (i32, i32) {
    %c0_i32 = arith.constant 0 : i32
    %c0_i32_0 = arith.constant 0 : i32
    %c0_i32_1 = arith.constant 0 : i32
    return %c0_i32, %c0_i32_0 : i32, i32
  }
  func.func @transform_4(%arg0: i32) -> (i32, i32) {
    %c0_i32 = arith.constant 0 : i32
    %c0_i32_0 = arith.constant 0 : i32
    %c0_i32_1 = arith.constant 0 : i32
    return %c0_i32, %c0_i32_0 : i32, i32
  }
  func.func @transform_5(%arg0: i32) -> (i32, i32) {
    %c0_i32 = arith.constant 0 : i32
    %c0_i32_0 = arith.constant 0 : i32
    %c0_i32_1 = arith.constant 0 : i32
    return %c0_i32, %c0_i32_0 : i32, i32
  }
  func.func @transform_6(%arg0: i32) -> (i32, i32) {
    %c0_i32 = arith.constant 0 : i32
    %c0_i32_0 = arith.constant 0 : i32
    %c0_i32_1 = arith.constant 0 : i32
    return %c0_i32, %c0_i32_0 : i32, i32
  }
  func.func @transform_7(%arg0: i32) -> (i32, i32) {
    %c0_i32 = arith.constant 0 : i32
    %c0_i32_0 = arith.constant 0 : i32
    %c0_i32_1 = arith.constant 0 : i32
    return %c0_i32, %c0_i32_0 : i32, i32
  }
}

</mosaic_0001>

<llo_original>
// kernel: transformer_forward.8
$region0: #{transformer_forward.8}
  #allocation0 [shape = 'u32[]', space=smem, size = 0x4, offset = 0x4, fixed_abs, tag = 'smem constant byte address 0x4 - core index']
  #allocation1 [shape = 'u32[144,128]{1,0:T(1,128)}', space=vmem, size = 0x12000, scoped, tag = 'internal scratch']
  %s0 = inlined_call_operand.vmem [shape: f32[16,128], index: 0, kind: input, shape index: {}]
  %s1 = inlined_call_operand.vmem [shape: bf16[128,128], index: 1, kind: input, shape index: {}]
  %s2 = inlined_call_operand.hbm [shape: f32[1,128], index: 2, kind: input, shape index: {}]
  %s3 = inlined_call_operand.vmem [shape: bf16[128,128], index: 3, kind: input, shape index: {}]
  %s4 = inlined_call_operand.hbm [shape: f32[1,128], index: 4, kind: input, shape index: {}]
  %s5 = inlined_call_operand.hbm [shape: f32[1,128], index: 5, kind: input, shape index: {}]
  %s6 = inlined_call_operand.hbm [shape: f32[1,128], index: 6, kind: input, shape index: {}]
  %s7 = inlined_call_operand.vmem [shape: f32[16,128], index: 7, kind: output, shape index: {}]
  %s8 = sld [smem:[#allocation0]]
  $region54: #{transformer_forward.8} parent=0
    _
  %s10 = ssub.s32 1, %s8
  %s11 = scalar_select 0, %s10, %s8
  $region1: #{transformer_forward.8} parent=0
    #allocation2 [shape = 'u8[512]{0}', space=vmem, size = 0x400, scoped, tag = 'input window, operand 2, single buffered']
    #allocation3 [shape = 's32[1]{0}', space=sflag, size = 0x4, scoped, tag = 'scoped memory for transformer_forward.8']
    #allocation4 [shape = 'u8[512]{0}', space=vmem, size = 0x400, scoped, tag = 'input window, operand 4, single buffered']
    #allocation5 [shape = 's32[1]{0}', space=sflag, size = 0x4, scoped, tag = 'scoped memory for transformer_forward.8']
    #allocation6 [shape = 'u8[512]{0}', space=vmem, size = 0x400, scoped, tag = 'input window, operand 5, single buffered']
    #allocation7 [shape = 'u8[512]{0}', space=vmem, size = 0x400, scoped, tag = 'input window, operand 6, single buffered']
    #allocation8 [shape = 's32[1]{0}', space=sflag, size = 0x4, scoped, tag = 'scoped memory for transformer_forward.8']
    %12 = vsyncpa [#allocation3], 0
    %13 = vsyncpa [#allocation5], 0
    %14 = vsyncpa [#allocation8], 0
    // Predicated region
    $region2: #{transformer_forward.8} parent=1 // pred_check
      _
    $region3: #{transformer_forward.8} parent=1 // pred_check_branch
      %16 = sbr.rel (0) target = $region5
    $region4: #{transformer_forward.8} parent=1 // pred_region
      _
    $region5: #{transformer_forward.8} parent=1 // pred_fallthru
      _
    // Predicated region
    $region6: #{transformer_forward.8} parent=1 // pred_check
      _
    $region7: #{transformer_forward.8} parent=1 // pred_check_branch
      %18 = sbr.rel (0) target = $region9
    $region8: #{transformer_forward.8} parent=1 // pred_region
      _
    $region9: #{transformer_forward.8} parent=1 // pred_fallthru
      _
    // Predicated region
    $region10: #{transformer_forward.8} parent=1 // pred_check
      _
    $region11: #{transformer_forward.8} parent=1 // pred_check_branch
      %20 = sbr.rel (0) target = $region13
    $region12: #{transformer_forward.8} parent=1 // pred_region
      %s22 = ssub.s32 16, 16
      %23 = vsyncadd [#allocation3], %s22
      %s25 = sshll.u32 [#allocation2], 4
      %s26 = int_to_ptr.vmem [resolvable:$true] %s25
      %28 = dma.hbm_to_vmem [thread:$0]  %s2, 16, %s26, [#allocation3]
    $region13: #{transformer_forward.8} parent=1 // pred_fallthru
      _
    // Predicated region
    $region14: #{transformer_forward.8} parent=1 // pred_check
      _
    $region15: #{transformer_forward.8} parent=1 // pred_check_branch
      %30 = sbr.rel (0) target = $region17
    $region16: #{transformer_forward.8} parent=1 // pred_region
      _
    $region17: #{transformer_forward.8} parent=1 // pred_fallthru
      _
    // Predicated region
    $region18: #{transformer_forward.8} parent=1 // pred_check
      _
    $region19: #{transformer_forward.8} parent=1 // pred_check_branch
      %32 = sbr.rel (0) target = $region21
    $region20: #{transformer_forward.8} parent=1 // pred_region
      %s34 = ssub.s32 16, 16
      %35 = vsyncadd [#allocation5], %s34
      %s37 = sshll.u32 [#allocation4], 4
      %s38 = int_to_ptr.vmem [resolvable:$true] %s37
      %40 = dma.hbm_to_vmem [thread:$0]  %s4, 16, %s38, [#allocation5]
    $region21: #{transformer_forward.8} parent=1 // pred_fallthru
      _
    // Predicated region
    $region22: #{transformer_forward.8} parent=1 // pred_check
      _
    $region23: #{transformer_forward.8} parent=1 // pred_check_branch
      %42 = sbr.rel (0) target = $region25
    $region24: #{transformer_forward.8} parent=1 // pred_region
      %s44 = ssub.s32 16, 16
      %45 = vsyncadd [#allocation5], %s44
      %s47 = sshll.u32 [#allocation6], 4
      %s48 = int_to_ptr.vmem [resolvable:$true] %s47
      %50 = dma.hbm_to_vmem [thread:$0]  %s5, 16, %s48, [#allocation5]
    $region25: #{transformer_forward.8} parent=1 // pred_fallthru
      _
    // Predicated region
    $region26: #{transformer_forward.8} parent=1 // pred_check
      _
    $region27: #{transformer_forward.8} parent=1 // pred_check_branch
      %52 = sbr.rel (0) target = $region29
    $region28: #{transformer_forward.8} parent=1 // pred_region
      %s54 = ssub.s32 16, 16
      %55 = vsyncadd [#allocation8], %s54
      %s57 = sshll.u32 [#allocation7], 4
      %s58 = int_to_ptr.vmem [resolvable:$true] %s57
      %60 = dma.hbm_to_vmem [thread:$0]  %s6, 16, %s58, [#allocation8]
    $region29: #{transformer_forward.8} parent=1 // pred_fallthru
      _
    // Predicated region
    $region30: #{transformer_forward.8} parent=1 // pred_check
      _
    $region31: #{transformer_forward.8} parent=1 // pred_check_branch
      %62 = sbr.rel (0) target = $region33
    $region32: #{transformer_forward.8} parent=1 // pred_region
      %63 = dma.done [#allocation3], 16
    $region33: #{transformer_forward.8} parent=1 // pred_fallthru
      _
    // Predicated region
    $region34: #{transformer_forward.8} parent=1 // pred_check
      _
    $region35: #{transformer_forward.8} parent=1 // pred_check_branch
      %65 = sbr.rel (0) target = $region37
    $region36: #{transformer_forward.8} parent=1 // pred_region
      %66 = dma.done [#allocation5], 16
    $region37: #{transformer_forward.8} parent=1 // pred_fallthru
      _
    // Predicated region
    $region38: #{transformer_forward.8} parent=1 // pred_check
      _
    $region39: #{transformer_forward.8} parent=1 // pred_check_branch
      %68 = sbr.rel (0) target = $region41
    $region40: #{transformer_forward.8} parent=1 // pred_region
      %69 = dma.done [#allocation5], 16
    $region41: #{transformer_forward.8} parent=1 // pred_fallthru
      _
    // Predicated region
    $region42: #{transformer_forward.8} parent=1 // pred_check
      _
    $region43: #{transformer_forward.8} parent=1 // pred_check_branch
      %71 = sbr.rel (0) target = $region45
    $region44: #{transformer_forward.8} parent=1 // pred_region
      %72 = dma.done [#allocation8], 16
    $region45: #{transformer_forward.8} parent=1 // pred_fallthru
      _
    %v74 = vld [vmem:[%s0] sm:$0xff]
    %v75 = vld [vmem:[%s0 + $0x8] sm:$0xff]
    %v76 = vpack.c.bf16 %v75, %v74
    %v77 = vld [vmem:[%s1] sm:$0xf]
    %v78 = vld [vmem:[%s1 + $0x4] sm:$0xf]
    %v79 = vld [vmem:[%s1 + $0x8] sm:$0xf]
    %v80 = vld [vmem:[%s1 + $0xc] sm:$0xf]
    %v81 = vld [vmem:[%s1 + $0x10] sm:$0xf]
    %v82 = vld [vmem:[%s1 + $0x14] sm:$0xf]
    %v83 = vld [vmem:[%s1 + $0x18] sm:$0xf]
    %v84 = vld [vmem:[%s1 + $0x1c] sm:$0xf]
    %v85 = vld [vmem:[%s1 + $0x20] sm:$0xf]
    %v86 = vld [vmem:[%s1 + $0x24] sm:$0xf]
    %v87 = vld [vmem:[%s1 + $0x28] sm:$0xf]
    %v88 = vld [vmem:[%s1 + $0x2c] sm:$0xf]
    %v89 = vld [vmem:[%s1 + $0x30] sm:$0xf]
    %v90 = vld [vmem:[%s1 + $0x34] sm:$0xf]
    %v91 = vld [vmem:[%s1 + $0x38] sm:$0xf]
    %v92 = vld [vmem:[%s1 + $0x3c] sm:$0xf]
    %v93 = vld [vmem:[#allocation2] sm:$0x1]
    %v95 = vlaneseq
    %v96 = vshrl.u32 %v95, 7
    %v97 = vsub.s32 0, %v96
    %v98 = vrot.slane %v93, %v97
    %v116 = vunpack.c.l.b16 %v77
    %v117 = vunpack.c.l.b16 %v78
    %v118 = vunpack.c.l.b16 %v79
    %v119 = vunpack.c.l.b16 %v80
    %v120 = vunpack.c.l.b16 %v81
    %v121 = vunpack.c.l.b16 %v82
    %v122 = vunpack.c.l.b16 %v83
    %v123 = vunpack.c.l.b16 %v84
    %v124 = vunpack.c.l.b16 %v85
    %v125 = vunpack.c.l.b16 %v86
    %v126 = vunpack.c.l.b16 %v87
    %v127 = vunpack.c.l.b16 %v88
    %v128 = vunpack.c.l.b16 %v89
    %v129 = vunpack.c.l.b16 %v90
    %v130 = vunpack.c.l.b16 %v91
    %v131 = vunpack.c.l.b16 %v92
    %v132 = vpack.c.b16 %v117, %v116
    %v133 = vpack.c.b16 %v119, %v118
    %v134 = vpack.c.b16 %v121, %v120
    %v135 = vpack.c.b16 %v123, %v122
    %v136 = vpack.c.b16 %v125, %v124
    %v137 = vpack.c.b16 %v127, %v126
    %v138 = vpack.c.b16 %v129, %v128
    %v139 = vpack.c.b16 %v131, %v130
    %148 = vmatprep.subr.bf16.mxu0 0
    %149 = vmatpush1.bf16.msra.mxu0 %v132
    %150 = vmatprep.subr.bf16.mxu0 0
    %151 = vmatpush1.bf16.msra.mxu0 %v133
    %152 = vmatprep.subr.bf16.mxu0 0
    %153 = vmatpush1.bf16.msra.mxu0 %v134
    %154 = vmatprep.subr.bf16.mxu0 0
    %155 = vmatpush1.bf16.msra.mxu0 %v135
    %156 = vmatprep.subr.bf16.mxu0 0
    %157 = vmatpush1.bf16.msra.mxu0 %v136
    %158 = vmatprep.subr.bf16.mxu0 0
    %159 = vmatpush1.bf16.msra.mxu0 %v137
    %160 = vmatprep.subr.bf16.mxu0 0
    %161 = vmatpush1.bf16.msra.mxu0 %v138
    %162 = vmatprep.subr.bf16.mxu0 0
    %163 = vmatpush1.bf16.msra.mxu0 %v139
    %164 = vmatprep.subr.bf16.mxu0 0
    %165 = vmatpush1.bf16.msra.mxu0 0
    %166 = vmatprep.subr.bf16.mxu0 0
    %167 = vmatpush1.bf16.msra.mxu0 0
    %168 = vmatprep.subr.bf16.mxu0 0
    %169 = vmatpush1.bf16.msra.mxu0 0
    %170 = vmatprep.subr.bf16.mxu0 0
    %171 = vmatpush1.bf16.msra.mxu0 0
    %172 = vmatprep.subr.bf16.mxu0 0
    %173 = vmatpush1.bf16.msra.mxu0 0
    %174 = vmatprep.subr.bf16.mxu0 0
    %175 = vmatpush1.bf16.msra.mxu0 0
    %176 = vmatprep.subr.bf16.mxu0 0
    %177 = vmatpush1.bf16.msra.mxu0 0
    %178 = vmatprep.subr.bf16.mxu0 0
    %179 = vmatpush1.bf16.msra.mxu0 0
    %180 = vmatprep.mubr.bf16.mxu0 0
    %181 = vmatmul.mubr.bf16.gmra.mrb[0].mxu0 %v76
    %v182 = vpop.f32.mrb[0].mxu0
    %v183 = vadd.f32 %v98, %v182
    %v184 = vpop.f32.mrb[0].mxu0
    %v185 = vpop.f32.mrb[0].mxu0
    %v186 = vadd.f32 %v98, %v185
    %v187 = vpop.f32.mrb[0].mxu0
    %188 = vdwg.mxu0
    %v189 = vmax.f32 %v183, 0.0
    %v190 = vmax.f32 %v186, 0.0
    %v191 = vpack.c.bf16 %v190, %v189
    %v192 = vld [vmem:[%s3] sm:$0xf]
    %v193 = vld [vmem:[%s3 + $0x4] sm:$0xf]
    %v194 = vld [vmem:[%s3 + $0x8] sm:$0xf]
    %v195 = vld [vmem:[%s3 + $0xc] sm:$0xf]
    %v196 = vld [vmem:[%s3 + $0x10] sm:$0xf]
    %v197 = vld [vmem:[%s3 + $0x14] sm:$0xf]
    %v198 = vld [vmem:[%s3 + $0x18] sm:$0xf]
    %v199 = vld [vmem:[%s3 + $0x1c] sm:$0xf]
    %v200 = vld [vmem:[%s3 + $0x20] sm:$0xf]
    %v201 = vld [vmem:[%s3 + $0x24] sm:$0xf]
    %v202 = vld [vmem:[%s3 + $0x28] sm:$0xf]
    %v203 = vld [vmem:[%s3 + $0x2c] sm:$0xf]
    %v204 = vld [vmem:[%s3 + $0x30] sm:$0xf]
    %v205 = vld [vmem:[%s3 + $0x34] sm:$0xf]
    %v206 = vld [vmem:[%s3 + $0x38] sm:$0xf]
    %v207 = vld [vmem:[%s3 + $0x3c] sm:$0xf]
    %v208 = vld [vmem:[#allocation4] sm:$0x1]
    %v210 = vlaneseq
    %v211 = vshrl.u32 %v210, 7
    %v212 = vsub.s32 0, %v211
    %v213 = vrot.slane %v208, %v212
    %v231 = vunpack.c.l.b16 %v192
    %v232 = vunpack.c.l.b16 %v193
    %v233 = vunpack.c.l.b16 %v194
    %v234 = vunpack.c.l.b16 %v195
    %v235 = vunpack.c.l.b16 %v196
    %v236 = vunpack.c.l.b16 %v197
    %v237 = vunpack.c.l.b16 %v198
    %v238 = vunpack.c.l.b16 %v199
    %v239 = vunpack.c.l.b16 %v200
    %v240 = vunpack.c.l.b16 %v201
    %v241 = vunpack.c.l.b16 %v202
    %v242 = vunpack.c.l.b16 %v203
    %v243 = vunpack.c.l.b16 %v204
    %v244 = vunpack.c.l.b16 %v205
    %v245 = vunpack.c.l.b16 %v206
    %v246 = vunpack.c.l.b16 %v207
    %v247 = vpack.c.b16 %v232, %v231
    %v248 = vpack.c.b16 %v234, %v233
    %v249 = vpack.c.b16 %v236, %v235
    %v250 = vpack.c.b16 %v238, %v237
    %v251 = vpack.c.b16 %v240, %v239
    %v252 = vpack.c.b16 %v242, %v241
    %v253 = vpack.c.b16 %v244, %v243
    %v254 = vpack.c.b16 %v246, %v245
    %263 = vmatprep.subr.bf16.mxu0 0
    %264 = vmatpush1.bf16.msra.mxu0 %v247
    %265 = vmatprep.subr.bf16.mxu0 0
    %266 = vmatpush1.bf16.msra.mxu0 %v248
    %267 = vmatprep.subr.bf16.mxu0 0
    %268 = vmatpush1.bf16.msra.mxu0 %v249
    %269 = vmatprep.subr.bf16.mxu0 0
    %270 = vmatpush1.bf16.msra.mxu0 %v250
    %271 = vmatprep.subr.bf16.mxu0 0
    %272 = vmatpush1.bf16.msra.mxu0 %v251
    %273 = vmatprep.subr.bf16.mxu0 0
    %274 = vmatpush1.bf16.msra.mxu0 %v252
    %275 = vmatprep.subr.bf16.mxu0 0
    %276 = vmatpush1.bf16.msra.mxu0 %v253
    %277 = vmatprep.subr.bf16.mxu0 0
    %278 = vmatpush1.bf16.msra.mxu0 %v254
    %279 = vmatprep.subr.bf16.mxu0 0
    %280 = vmatpush1.bf16.msra.mxu0 0
    %281 = vmatprep.subr.bf16.mxu0 0
    %282 = vmatpush1.bf16.msra.mxu0 0
    %283 = vmatprep.subr.bf16.mxu0 0
    %284 = vmatpush1.bf16.msra.mxu0 0
    %285 = vmatprep.subr.bf16.mxu0 0
    %286 = vmatpush1.bf16.msra.mxu0 0
    %287 = vmatprep.subr.bf16.mxu0 0
    %288 = vmatpush1.bf16.msra.mxu0 0
    %289 = vmatprep.subr.bf16.mxu0 0
    %290 = vmatpush1.bf16.msra.mxu0 0
    %291 = vmatprep.subr.bf16.mxu0 0
    %292 = vmatpush1.bf16.msra.mxu0 0
    %293 = vmatprep.subr.bf16.mxu0 0
    %294 = vmatpush1.bf16.msra.mxu0 0
    %295 = vmatprep.mubr.bf16.mxu0 0
    %296 = vmatmul.mubr.bf16.gmra.mrb[0].mxu0 %v191
    %v297 = vpop.f32.mrb[0].mxu0
    %v298 = vadd.f32 %v213, %v297
    %v299 = vpop.f32.mrb[0].mxu0
    %v300 = vpop.f32.mrb[0].mxu0
    %v301 = vadd.f32 %v213, %v300
    %v302 = vpop.f32.mrb[0].mxu0
    %303 = vdwg.mxu0
    %v304 = vadd.f32 %v74, %v298
    %v305 = vadd.f32 %v75, %v301
    %v306 = vld [vmem:[#allocation6] sm:$0x1]
    %v307 = vld [vmem:[#allocation7] sm:$0x1]
    %v308 = vlaneseq
    %v309 = vand.u32 %v308, 127
    %vm310 = vcmp.lt.s32.totalorder %v309, 32
    %v311 = vsel %vm310, 1, 0
    %v312 = vcvt.s32.f32 %v311
    %313 = vadd.xlane.f32.xlu0 %v304
    %v314 = vpop.xlane.xlu0 %313
    %315 = vadd.xlane.f32.xlu0 %v305
    %v316 = vpop.xlane.xlu0 %315
    %v317 = vmul.f32 %v314, 0.03125
    %v318 = vmul.f32 %v316, 0.03125
    %v319 = vsub.f32 %v304, %v317
    %v320 = vsub.f32 %v305, %v318
    %v321 = vmul.f32 %v319, %v312
    %v322 = vmul.f32 %v320, %v312
    %v323 = vmul.f32 %v321, %v321
    %v324 = vmul.f32 %v322, %v322
    %325 = vadd.xlane.f32.xlu0 %v323
    %v326 = vpop.xlane.xlu0 %325
    %327 = vadd.xlane.f32.xlu0 %v324
    %v328 = vpop.xlane.xlu0 %327
    %v329 = vmul.f32 %v326, 0.03125
    %v330 = vmul.f32 %v328, 0.03125
    %v331 = vadd.f32 %v329, 1e-05
    %v332 = vadd.f32 %v330, 1e-05
    %v333 = vrsqrt.pop %v331
    %v334 = vrsqrt.pop %v332
    %v335 = vmul.f32 %v321, %v333
    %v336 = vmul.f32 %v322, %v334
    %v338 = vlaneseq
    %v339 = vshrl.u32 %v338, 7
    %v340 = vsub.s32 0, %v339
    %v341 = vrot.slane %v306, %v340
    %v343 = vmul.f32 %v335, %v341
    %v344 = vmul.f32 %v336, %v341
    %v346 = vlaneseq
    %v347 = vshrl.u32 %v346, 7
    %v348 = vsub.s32 0, %v347
    %v349 = vrot.slane %v307, %v348
    %v351 = vadd.f32 %v343, %v349
    %v352 = vadd.f32 %v344, %v349
    %353 = vst [vmem:[%s7] sm:$0xff] %v351
    %354 = vst [vmem:[%s7 + $0x8] sm:$0xff] %v352
    // Predicated region
    $region46: #{transformer_forward.8} parent=1 // pred_check
      _
    $region47: #{transformer_forward.8} parent=1 // pred_check_branch
      %356 = sbr.rel (0) target = $region49
    $region48: #{transformer_forward.8} parent=1 // pred_region
      _
    $region49: #{transformer_forward.8} parent=1 // pred_fallthru
      _
    // Predicated region
    $region50: #{transformer_forward.8} parent=1 // pred_check
      _
    $region51: #{transformer_forward.8} parent=1 // pred_check_branch
      %358 = sbr.rel (0) target = $region53
    $region52: #{transformer_forward.8} parent=1 // pred_region
      _
    $region53: #{transformer_forward.8} parent=1 // pred_fallthru
      _
    %359 = vsyncpa [#allocation3], 1
    %360 = vsyncpa [#allocation5], 1
    %361 = vsyncpa [#allocation8], 1

// kernel: transformer_forward.10
$region0: #{transformer_forward.10}
  #allocation0 [shape = 'u32[]', space=smem, size = 0x4, offset = 0x4, fixed_abs, tag = 'smem constant byte address 0x4 - core index']
  #allocation1 [shape = 'u32[144,128]{1,0:T(1,128)}', space=vmem, size = 0x12000, scoped, tag = 'internal scratch']
  %s0 = inlined_call_operand.vmem [shape: f32[16,128], index: 0, kind: input, shape index: {}]
  %s1 = inlined_call_operand.vmem [shape: bf16[128,128], index: 1, kind: input, shape index: {}]
  %s2 = inlined_call_operand.vmem [shape: f32[1,128], index: 2, kind: input, shape index: {}]
  %s3 = inlined_call_operand.vmem [shape: bf16[128,128], index: 3, kind: input, shape index: {}]
  %s4 = inlined_call_operand.vmem [shape: f32[1,128], index: 4, kind: input, shape index: {}]
  %s5 = inlined_call_operand.vmem [shape: f32[1,128], index: 5, kind: input, shape index: {}]
  %s6 = inlined_call_operand.vmem [shape: f32[1,128], index: 6, kind: input, shape index: {}]
  %s7 = inlined_call_operand.vmem [shape: f32[16,128], index: 7, kind: output, shape index: {}]
  %s8 = sld [smem:[#allocation0]]
  $region38: #{transformer_forward.10} parent=0
    _
  %s10 = ssub.s32 1, %s8
  %s11 = scalar_select 0, %s10, %s8
  // Predicated region
  $region2: #{transformer_forward.10} parent=0 // pred_check
    _
  $region3: #{transformer_forward.10} parent=0 // pred_check_branch
    %13 = sbr.rel (0) target = $region5
  $region4: #{transformer_forward.10} parent=0 // pred_region
    _
  $region5: #{transformer_forward.10} parent=0 // pred_fallthru
    _
  // Predicated region
  $region6: #{transformer_forward.10} parent=0 // pred_check
    _
  $region7: #{transformer_forward.10} parent=0 // pred_check_branch
    %15 = sbr.rel (0) target = $region9
  $region8: #{transformer_forward.10} parent=0 // pred_region
    _
  $region9: #{transformer_forward.10} parent=0 // pred_fallthru
    _
  // Predicated region
  $region10: #{transformer_forward.10} parent=0 // pred_check
    _
  $region11: #{transformer_forward.10} parent=0 // pred_check_branch
    %17 = sbr.rel (0) target = $region13
  $region12: #{transformer_forward.10} parent=0 // pred_region
    _
  $region13: #{transformer_forward.10} parent=0 // pred_fallthru
    _
  // Predicated region
  $region14: #{transformer_forward.10} parent=0 // pred_check
    _
  $region15: #{transformer_forward.10} parent=0 // pred_check_branch
    %19 = sbr.rel (0) target = $region17
  $region16: #{transformer_forward.10} parent=0 // pred_region
    _
  $region17: #{transformer_forward.10} parent=0 // pred_fallthru
    _
  // Predicated region
  $region18: #{transformer_forward.10} parent=0 // pred_check
    _
  $region19: #{transformer_forward.10} parent=0 // pred_check_branch
    %21 = sbr.rel (0) target = $region21
  $region20: #{transformer_forward.10} parent=0 // pred_region
    _
  $region21: #{transformer_forward.10} parent=0 // pred_fallthru
    _
  // Predicated region
  $region22: #{transformer_forward.10} parent=0 // pred_check
    _
  $region23: #{transformer_forward.10} parent=0 // pred_check_branch
    %23 = sbr.rel (0) target = $region25
  $region24: #{transformer_forward.10} parent=0 // pred_region
    _
  $region25: #{transformer_forward.10} parent=0 // pred_fallthru
    _
  // Predicated region
  $region26: #{transformer_forward.10} parent=0 // pred_check
    _
  $region27: #{transformer_forward.10} parent=0 // pred_check_branch
    %25 = sbr.rel (0) target = $region29
  $region28: #{transformer_forward.10} parent=0 // pred_region
    _
  $region29: #{transformer_forward.10} parent=0 // pred_fallthru
    _
  %v27 = vld [vmem:[%s0] sm:$0xff]
  %v28 = vld [vmem:[%s0 + $0x8] sm:$0xff]
  %v29 = vpack.c.bf16 %v28, %v27
  %v30 = vld [vmem:[%s1] sm:$0xf]
  %v31 = vld [vmem:[%s1 + $0x4] sm:$0xf]
  %v32 = vld [vmem:[%s1 + $0x8] sm:$0xf]
  %v33 = vld [vmem:[%s1 + $0xc] sm:$0xf]
  %v34 = vld [vmem:[%s1 + $0x10] sm:$0xf]
  %v35 = vld [vmem:[%s1 + $0x14] sm:$0xf]
  %v36 = vld [vmem:[%s1 + $0x18] sm:$0xf]
  %v37 = vld [vmem:[%s1 + $0x1c] sm:$0xf]
  %v38 = vld [vmem:[%s1 + $0x20] sm:$0xf]
  %v39 = vld [vmem:[%s1 + $0x24] sm:$0xf]
  %v40 = vld [vmem:[%s1 + $0x28] sm:$0xf]
  %v41 = vld [vmem:[%s1 + $0x2c] sm:$0xf]
  %v42 = vld [vmem:[%s1 + $0x30] sm:$0xf]
  %v43 = vld [vmem:[%s1 + $0x34] sm:$0xf]
  %v44 = vld [vmem:[%s1 + $0x38] sm:$0xf]
  %v45 = vld [vmem:[%s1 + $0x3c] sm:$0xf]
  %v46 = vld [vmem:[%s2] sm:$0x1]
  %v48 = vlaneseq
  %v49 = vshrl.u32 %v48, 7
  %v50 = vsub.s32 0, %v49
  %v51 = vrot.slane %v46, %v50
  %v69 = vunpack.c.l.b16 %v30
  %v70 = vunpack.c.l.b16 %v31
  %v71 = vunpack.c.l.b16 %v32
  %v72 = vunpack.c.l.b16 %v33
  %v73 = vunpack.c.l.b16 %v34
  %v74 = vunpack.c.l.b16 %v35
  %v75 = vunpack.c.l.b16 %v36
  %v76 = vunpack.c.l.b16 %v37
  %v77 = vunpack.c.l.b16 %v38
  %v78 = vunpack.c.l.b16 %v39
  %v79 = vunpack.c.l.b16 %v40
  %v80 = vunpack.c.l.b16 %v41
  %v81 = vunpack.c.l.b16 %v42
  %v82 = vunpack.c.l.b16 %v43
  %v83 = vunpack.c.l.b16 %v44
  %v84 = vunpack.c.l.b16 %v45
  %v85 = vpack.c.b16 %v70, %v69
  %v86 = vpack.c.b16 %v72, %v71
  %v87 = vpack.c.b16 %v74, %v73
  %v88 = vpack.c.b16 %v76, %v75
  %v89 = vpack.c.b16 %v78, %v77
  %v90 = vpack.c.b16 %v80, %v79
  %v91 = vpack.c.b16 %v82, %v81
  %v92 = vpack.c.b16 %v84, %v83
  %101 = vmatprep.subr.bf16.mxu0 0
  %102 = vmatpush1.bf16.msra.mxu0 %v85
  %103 = vmatprep.subr.bf16.mxu0 0
  %104 = vmatpush1.bf16.msra.mxu0 %v86
  %105 = vmatprep.subr.bf16.mxu0 0
  %106 = vmatpush1.bf16.msra.mxu0 %v87
  %107 = vmatprep.subr.bf16.mxu0 0
  %108 = vmatpush1.bf16.msra.mxu0 %v88
  %109 = vmatprep.subr.bf16.mxu0 0
  %110 = vmatpush1.bf16.msra.mxu0 %v89
  %111 = vmatprep.subr.bf16.mxu0 0
  %112 = vmatpush1.bf16.msra.mxu0 %v90
  %113 = vmatprep.subr.bf16.mxu0 0
  %114 = vmatpush1.bf16.msra.mxu0 %v91
  %115 = vmatprep.subr.bf16.mxu0 0
  %116 = vmatpush1.bf16.msra.mxu0 %v92
  %117 = vmatprep.subr.bf16.mxu0 0
  %118 = vmatpush1.bf16.msra.mxu0 0
  %119 = vmatprep.subr.bf16.mxu0 0
  %120 = vmatpush1.bf16.msra.mxu0 0
  %121 = vmatprep.subr.bf16.mxu0 0
  %122 = vmatpush1.bf16.msra.mxu0 0
  %123 = vmatprep.subr.bf16.mxu0 0
  %124 = vmatpush1.bf16.msra.mxu0 0
  %125 = vmatprep.subr.bf16.mxu0 0
  %126 = vmatpush1.bf16.msra.mxu0 0
  %127 = vmatprep.subr.bf16.mxu0 0
  %128 = vmatpush1.bf16.msra.mxu0 0
  %129 = vmatprep.subr.bf16.mxu0 0
  %130 = vmatpush1.bf16.msra.mxu0 0
  %131 = vmatprep.subr.bf16.mxu0 0
  %132 = vmatpush1.bf16.msra.mxu0 0
  %133 = vmatprep.mubr.bf16.mxu0 0
  %134 = vmatmul.mubr.bf16.gmra.mrb[0].mxu0 %v29
  %v135 = vpop.f32.mrb[0].mxu0
  %v136 = vadd.f32 %v51, %v135
  %v137 = vpop.f32.mrb[0].mxu0
  %v138 = vpop.f32.mrb[0].mxu0
  %v139 = vadd.f32 %v51, %v138
  %v140 = vpop.f32.mrb[0].mxu0
  %141 = vdwg.mxu0
  %v142 = vmax.f32 %v136, 0.0
  %v143 = vmax.f32 %v139, 0.0
  %v144 = vpack.c.bf16 %v143, %v142
  %v145 = vld [vmem:[%s3] sm:$0xf]
  %v146 = vld [vmem:[%s3 + $0x4] sm:$0xf]
  %v147 = vld [vmem:[%s3 + $0x8] sm:$0xf]
  %v148 = vld [vmem:[%s3 + $0xc] sm:$0xf]
  %v149 = vld [vmem:[%s3 + $0x10] sm:$0xf]
  %v150 = vld [vmem:[%s3 + $0x14] sm:$0xf]
  %v151 = vld [vmem:[%s3 + $0x18] sm:$0xf]
  %v152 = vld [vmem:[%s3 + $0x1c] sm:$0xf]
  %v153 = vld [vmem:[%s3 + $0x20] sm:$0xf]
  %v154 = vld [vmem:[%s3 + $0x24] sm:$0xf]
  %v155 = vld [vmem:[%s3 + $0x28] sm:$0xf]
  %v156 = vld [vmem:[%s3 + $0x2c] sm:$0xf]
  %v157 = vld [vmem:[%s3 + $0x30] sm:$0xf]
  %v158 = vld [vmem:[%s3 + $0x34] sm:$0xf]
  %v159 = vld [vmem:[%s3 + $0x38] sm:$0xf]
  %v160 = vld [vmem:[%s3 + $0x3c] sm:$0xf]
  %v161 = vld [vmem:[%s4] sm:$0x1]
  %v163 = vlaneseq
  %v164 = vshrl.u32 %v163, 7
  %v165 = vsub.s32 0, %v164
  %v166 = vrot.slane %v161, %v165
  %v184 = vunpack.c.l.b16 %v145
  %v185 = vunpack.c.l.b16 %v146
  %v186 = vunpack.c.l.b16 %v147
  %v187 = vunpack.c.l.b16 %v148
  %v188 = vunpack.c.l.b16 %v149
  %v189 = vunpack.c.l.b16 %v150
  %v190 = vunpack.c.l.b16 %v151
  %v191 = vunpack.c.l.b16 %v152
  %v192 = vunpack.c.l.b16 %v153
  %v193 = vunpack.c.l.b16 %v154
  %v194 = vunpack.c.l.b16 %v155
  %v195 = vunpack.c.l.b16 %v156
  %v196 = vunpack.c.l.b16 %v157
  %v197 = vunpack.c.l.b16 %v158
  %v198 = vunpack.c.l.b16 %v159
  %v199 = vunpack.c.l.b16 %v160
  %v200 = vpack.c.b16 %v185, %v184
  %v201 = vpack.c.b16 %v187, %v186
  %v202 = vpack.c.b16 %v189, %v188
  %v203 = vpack.c.b16 %v191, %v190
  %v204 = vpack.c.b16 %v193, %v192
  %v205 = vpack.c.b16 %v195, %v194
  %v206 = vpack.c.b16 %v197, %v196
  %v207 = vpack.c.b16 %v199, %v198
  %216 = vmatprep.subr.bf16.mxu0 0
  %217 = vmatpush1.bf16.msra.mxu0 %v200
  %218 = vmatprep.subr.bf16.mxu0 0
  %219 = vmatpush1.bf16.msra.mxu0 %v201
  %220 = vmatprep.subr.bf16.mxu0 0
  %221 = vmatpush1.bf16.msra.mxu0 %v202
  %222 = vmatprep.subr.bf16.mxu0 0
  %223 = vmatpush1.bf16.msra.mxu0 %v203
  %224 = vmatprep.subr.bf16.mxu0 0
  %225 = vmatpush1.bf16.msra.mxu0 %v204
  %226 = vmatprep.subr.bf16.mxu0 0
  %227 = vmatpush1.bf16.msra.mxu0 %v205
  %228 = vmatprep.subr.bf16.mxu0 0
  %229 = vmatpush1.bf16.msra.mxu0 %v206
  %230 = vmatprep.subr.bf16.mxu0 0
  %231 = vmatpush1.bf16.msra.mxu0 %v207
  %232 = vmatprep.subr.bf16.mxu0 0
  %233 = vmatpush1.bf16.msra.mxu0 0
  %234 = vmatprep.subr.bf16.mxu0 0
  %235 = vmatpush1.bf16.msra.mxu0 0
  %236 = vmatprep.subr.bf16.mxu0 0
  %237 = vmatpush1.bf16.msra.mxu0 0
  %238 = vmatprep.subr.bf16.mxu0 0
  %239 = vmatpush1.bf16.msra.mxu0 0
  %240 = vmatprep.subr.bf16.mxu0 0
  %241 = vmatpush1.bf16.msra.mxu0 0
  %242 = vmatprep.subr.bf16.mxu0 0
  %243 = vmatpush1.bf16.msra.mxu0 0
  %244 = vmatprep.subr.bf16.mxu0 0
  %245 = vmatpush1.bf16.msra.mxu0 0
  %246 = vmatprep.subr.bf16.mxu0 0
  %247 = vmatpush1.bf16.msra.mxu0 0
  %248 = vmatprep.mubr.bf16.mxu0 0
  %249 = vmatmul.mubr.bf16.gmra.mrb[0].mxu0 %v144
  %v250 = vpop.f32.mrb[0].mxu0
  %v251 = vadd.f32 %v166, %v250
  %v252 = vpop.f32.mrb[0].mxu0
  %v253 = vpop.f32.mrb[0].mxu0
  %v254 = vadd.f32 %v166, %v253
  %v255 = vpop.f32.mrb[0].mxu0
  %256 = vdwg.mxu0
  %v257 = vadd.f32 %v27, %v251
  %v258 = vadd.f32 %v28, %v254
  %v259 = vld [vmem:[%s5] sm:$0x1]
  %v260 = vld [vmem:[%s6] sm:$0x1]
  %v261 = vlaneseq
  %v262 = vand.u32 %v261, 127
  %vm263 = vcmp.lt.s32.totalorder %v262, 32
  %v264 = vsel %vm263, 1, 0
  %v265 = vcvt.s32.f32 %v264
  %266 = vadd.xlane.f32.xlu0 %v257
  %v267 = vpop.xlane.xlu0 %266
  %268 = vadd.xlane.f32.xlu0 %v258
  %v269 = vpop.xlane.xlu0 %268
  %v270 = vmul.f32 %v267, 0.03125
  %v271 = vmul.f32 %v269, 0.03125
  %v272 = vsub.f32 %v257, %v270
  %v273 = vsub.f32 %v258, %v271
  %v274 = vmul.f32 %v272, %v265
  %v275 = vmul.f32 %v273, %v265
  %v276 = vmul.f32 %v274, %v274
  %v277 = vmul.f32 %v275, %v275
  %278 = vadd.xlane.f32.xlu0 %v276
  %v279 = vpop.xlane.xlu0 %278
  %280 = vadd.xlane.f32.xlu0 %v277
  %v281 = vpop.xlane.xlu0 %280
  %v282 = vmul.f32 %v279, 0.03125
  %v283 = vmul.f32 %v281, 0.03125
  %v284 = vadd.f32 %v282, 1e-05
  %v285 = vadd.f32 %v283, 1e-05
  %v286 = vrsqrt.pop %v284
  %v287 = vrsqrt.pop %v285
  %v288 = vmul.f32 %v274, %v286
  %v289 = vmul.f32 %v275, %v287
  %v291 = vlaneseq
  %v292 = vshrl.u32 %v291, 7
  %v293 = vsub.s32 0, %v292
  %v294 = vrot.slane %v259, %v293
  %v296 = vmul.f32 %v288, %v294
  %v297 = vmul.f32 %v289, %v294
  %v299 = vlaneseq
  %v300 = vshrl.u32 %v299, 7
  %v301 = vsub.s32 0, %v300
  %v302 = vrot.slane %v260, %v301
  %v304 = vadd.f32 %v296, %v302
  %v305 = vadd.f32 %v297, %v302
  %306 = vst [vmem:[%s7] sm:$0xff] %v304
  %307 = vst [vmem:[%s7 + $0x8] sm:$0xff] %v305
  // Predicated region
  $region30: #{transformer_forward.10} parent=0 // pred_check
    _
  $region31: #{transformer_forward.10} parent=0 // pred_check_branch
    %309 = sbr.rel (0) target = $region33
  $region32: #{transformer_forward.10} parent=0 // pred_region
    _
  $region33: #{transformer_forward.10} parent=0 // pred_fallthru
    _
  // Predicated region
  $region34: #{transformer_forward.10} parent=0 // pred_check
    _
  $region35: #{transformer_forward.10} parent=0 // pred_check_branch
    %311 = sbr.rel (0) target = $region37
  $region36: #{transformer_forward.10} parent=0 // pred_region
    _
  $region37: #{transformer_forward.10} parent=0 // pred_fallthru
    _

// kernel: transformer_forward.9
$region0: #{transformer_forward.9}
  #allocation0 [shape = 'u32[]', space=smem, size = 0x4, offset = 0x4, fixed_abs, tag = 'smem constant byte address 0x4 - core index']
  #allocation1 [shape = 'u32[144,128]{1,0:T(1,128)}', space=vmem, size = 0x12000, scoped, tag = 'internal scratch']
  %s0 = inlined_call_operand.vmem [shape: f32[16,128], index: 0, kind: input, shape index: {}, may-alias: {0,1}]
  %s1 = inlined_call_operand.vmem [shape: f32[16,128], index: 1, kind: input, shape index: {}, may-alias: {0,1}]
  %s2 = inlined_call_operand.vmem [shape: bf16[128,512], index: 2, kind: input, shape index: {}]
  %s3 = inlined_call_operand.vmem [shape: f32[1,512], index: 3, kind: input, shape index: {}]
  %s4 = inlined_call_operand.vmem [shape: bf16[128,1024], index: 4, kind: input, shape index: {}]
  %s5 = inlined_call_operand.vmem [shape: f32[1,1024], index: 5, kind: input, shape index: {}]
  %s6 = inlined_call_operand.vmem [shape: bf16[4,128,128], index: 6, kind: input, shape index: {}]
  %s7 = inlined_call_operand.vmem [shape: f32[1,128], index: 7, kind: input, shape index: {}]
  %s8 = inlined_call_operand.vmem [shape: f32[2,1,8], index: 8, kind: input, shape index: {}]
  %s9 = inlined_call_operand.vmem [shape: f32[1,128], index: 9, kind: input, shape index: {}]
  %s10 = inlined_call_operand.vmem [shape: f32[1,128], index: 10, kind: input, shape index: {}]
  %s11 = inlined_call_operand.vmem [shape: f32[16,128], index: 11, kind: output, shape index: {}]
  %s12 = sld [smem:[#allocation0]]
  $region54: #{transformer_forward.9} parent=0
    _
  %s14 = ssub.s32 1, %s12
  %s15 = scalar_select 0, %s14, %s12
  // Predicated region
  $region2: #{transformer_forward.9} parent=0 // pred_check
    _
  $region3: #{transformer_forward.9} parent=0 // pred_check_branch
    %17 = sbr.rel (0) target = $region5
  $region4: #{transformer_forward.9} parent=0 // pred_region
    _
  $region5: #{transformer_forward.9} parent=0 // pred_fallthru
    _
  // Predicated region
  $region6: #{transformer_forward.9} parent=0 // pred_check
    _
  $region7: #{transformer_forward.9} parent=0 // pred_check_branch
    %19 = sbr.rel (0) target = $region9
  $region8: #{transformer_forward.9} parent=0 // pred_region
    _
  $region9: #{transformer_forward.9} parent=0 // pred_fallthru
    _
  // Predicated region
  $region10: #{transformer_forward.9} parent=0 // pred_check
    _
  $region11: #{transformer_forward.9} parent=0 // pred_check_branch
    %21 = sbr.rel (0) target = $region13
  $region12: #{transformer_forward.9} parent=0 // pred_region
    _
  $region13: #{transformer_forward.9} parent=0 // pred_fallthru
    _
  // Predicated region
  $region14: #{transformer_forward.9} parent=0 // pred_check
    _
  $region15: #{transformer_forward.9} parent=0 // pred_check_branch
    %23 = sbr.rel (0) target = $region17
  $region16: #{transformer_forward.9} parent=0 // pred_region
    _
  $region17: #{transformer_forward.9} parent=0 // pred_fallthru
    _
  // Predicated region
  $region18: #{transformer_forward.9} parent=0 // pred_check
    _
  $region19: #{transformer_forward.9} parent=0 // pred_check_branch
    %25 = sbr.rel (0) target = $region21
  $region20: #{transformer_forward.9} parent=0 // pred_region
    _
  $region21: #{transformer_forward.9} parent=0 // pred_fallthru
    _
  // Predicated region
  $region22: #{transformer_forward.9} parent=0 // pred_check
    _
  $region23: #{transformer_forward.9} parent=0 // pred_check_branch
    %27 = sbr.rel (0) target = $region25
  $region24: #{transformer_forward.9} parent=0 // pred_region
    _
  $region25: #{transformer_forward.9} parent=0 // pred_fallthru
    _
  // Predicated region
  $region26: #{transformer_forward.9} parent=0 // pred_check
    _
  $region27: #{transformer_forward.9} parent=0 // pred_check_branch
    %29 = sbr.rel (0) target = $region29
  $region28: #{transformer_forward.9} parent=0 // pred_region
    _
  $region29: #{transformer_forward.9} parent=0 // pred_fallthru
    _
  // Predicated region
  $region30: #{transformer_forward.9} parent=0 // pred_check
    _
  $region31: #{transformer_forward.9} parent=0 // pred_check_branch
    %31 = sbr.rel (0) target = $region33
  $region32: #{transformer_forward.9} parent=0 // pred_region
    _
  $region33: #{transformer_forward.9} parent=0 // pred_fallthru
    _
  // Predicated region
  $region34: #{transformer_forward.9} parent=0 // pred_check
    _
  $region35: #{transformer_forward.9} parent=0 // pred_check_branch
    %33 = sbr.rel (0) target = $region37
  $region36: #{transformer_forward.9} parent=0 // pred_region
    _
  $region37: #{transformer_forward.9} parent=0 // pred_fallthru
    _
  // Predicated region
  $region38: #{transformer_forward.9} parent=0 // pred_check
    _
  $region39: #{transformer_forward.9} parent=0 // pred_check_branch
    %35 = sbr.rel (0) target = $region41
  $region40: #{transformer_forward.9} parent=0 // pred_region
    _
  $region41: #{transformer_forward.9} parent=0 // pred_fallthru
    _
  // Predicated region
  $region42: #{transformer_forward.9} parent=0 // pred_check
    _
  $region43: #{transformer_forward.9} parent=0 // pred_check_branch
    %37 = sbr.rel (0) target = $region45
  $region44: #{transformer_forward.9} parent=0 // pred_region
    _
  $region45: #{transformer_forward.9} parent=0 // pred_fallthru
    _
  %v39 = vld [vmem:[%s0] sm:$0xff]
  %v40 = vld [vmem:[%s0 + $0x8] sm:$0xff]
  %v41 = vpack.c.bf16 %v40, %v39
  %v42 = vld [vmem:[%s2] sm:$0xff]
  %v43 = vld [vmem:[%s2 + $0x8] sm:$0xff]
  %v44 = vld [vmem:[%s2 + $0x10] sm:$0xff]
  %v45 = vld [vmem:[%s2 + $0x18] sm:$0xff]
  %v46 = vld [vmem:[%s2 + $0x20] sm:$0xff]
  %v47 = vld [vmem:[%s2 + $0x28] sm:$0xff]
  %v48 = vld [vmem:[%s2 + $0x30] sm:$0xff]
  %v49 = vld [vmem:[%s2 + $0x38] sm:$0xff]
  %v50 = vld [vmem:[%s2 + $0x40] sm:$0xff]
  %v51 = vld [vmem:[%s2 + $0x48] sm:$0xff]
  %v52 = vld [vmem:[%s2 + $0x50] sm:$0xff]
  %v53 = vld [vmem:[%s2 + $0x58] sm:$0xff]
  %v54 = vld [vmem:[%s2 + $0x60] sm:$0xff]
  %v55 = vld [vmem:[%s2 + $0x68] sm:$0xff]
  %v56 = vld [vmem:[%s2 + $0x70] sm:$0xff]
  %v57 = vld [vmem:[%s2 + $0x78] sm:$0xff]
  %v58 = vld [vmem:[%s2 + $0x80] sm:$0xff]
  %v59 = vld [vmem:[%s2 + $0x88] sm:$0xff]
  %v60 = vld [vmem:[%s2 + $0x90] sm:$0xff]
  %v61 = vld [vmem:[%s2 + $0x98] sm:$0xff]
  %v62 = vld [vmem:[%s2 + $0xa0] sm:$0xff]
  %v63 = vld [vmem:[%s2 + $0xa8] sm:$0xff]
  %v64 = vld [vmem:[%s2 + $0xb0] sm:$0xff]
  %v65 = vld [vmem:[%s2 + $0xb8] sm:$0xff]
  %v66 = vld [vmem:[%s2 + $0xc0] sm:$0xff]
  %v67 = vld [vmem:[%s2 + $0xc8] sm:$0xff]
  %v68 = vld [vmem:[%s2 + $0xd0] sm:$0xff]
  %v69 = vld [vmem:[%s2 + $0xd8] sm:$0xff]
  %v70 = vld [vmem:[%s2 + $0xe0] sm:$0xff]
  %v71 = vld [vmem:[%s2 + $0xe8] sm:$0xff]
  %v72 = vld [vmem:[%s2 + $0xf0] sm:$0xff]
  %v73 = vld [vmem:[%s2 + $0xf8] sm:$0xff]
  %v74 = vld [vmem:[%s3] sm:$0xf]
  %v76 = vlaneseq
  %v77 = vshrl.u32 %v76, 7
  %v78 = vsub.s32 0, %v77
  %v79 = vrot.slane %v74, %v78
  %v80 = vlaneseq
  %v81 = vshrl.u32 %v80, 7
  %v82 = vsub.s32 1, %v81
  %v83 = vrot.slane %v74, %v82
  %v84 = vlaneseq
  %v85 = vshrl.u32 %v84, 7
  %v86 = vsub.s32 2, %v85
  %v87 = vrot.slane %v74, %v86
  %v88 = vlaneseq
  %v89 = vshrl.u32 %v88, 7
  %v90 = vsub.s32 3, %v89
  %v91 = vrot.slane %v74, %v90
  %v128 = vunpack.c.l.b16 %v42
  %v129 = vunpack.c.h.b16 %v42
  %v130 = vunpack.c.l.b16 %v43
  %v131 = vunpack.c.h.b16 %v43
  %v132 = vunpack.c.l.b16 %v44
  %v133 = vunpack.c.h.b16 %v44
  %v134 = vunpack.c.l.b16 %v45
  %v135 = vunpack.c.h.b16 %v45
  %v136 = vunpack.c.l.b16 %v46
  %v137 = vunpack.c.h.b16 %v46
  %v138 = vunpack.c.l.b16 %v47
  %v139 = vunpack.c.h.b16 %v47
  %v140 = vunpack.c.l.b16 %v48
  %v141 = vunpack.c.h.b16 %v48
  %v142 = vunpack.c.l.b16 %v49
  %v143 = vunpack.c.h.b16 %v49
  %v144 = vunpack.c.l.b16 %v50
  %v145 = vunpack.c.h.b16 %v50
  %v146 = vunpack.c.l.b16 %v51
  %v147 = vunpack.c.h.b16 %v51
  %v148 = vunpack.c.l.b16 %v52
  %v149 = vunpack.c.h.b16 %v52
  %v150 = vunpack.c.l.b16 %v53
  %v151 = vunpack.c.h.b16 %v53
  %v152 = vunpack.c.l.b16 %v54
  %v153 = vunpack.c.h.b16 %v54
  %v154 = vunpack.c.l.b16 %v55
  %v155 = vunpack.c.h.b16 %v55
  %v156 = vunpack.c.l.b16 %v56
  %v157 = vunpack.c.h.b16 %v56
  %v158 = vunpack.c.l.b16 %v57
  %v159 = vunpack.c.h.b16 %v57
  %v160 = vunpack.c.l.b16 %v58
  %v161 = vunpack.c.h.b16 %v58
  %v162 = vunpack.c.l.b16 %v59
  %v163 = vunpack.c.h.b16 %v59
  %v164 = vunpack.c.l.b16 %v60
  %v165 = vunpack.c.h.b16 %v60
  %v166 = vunpack.c.l.b16 %v61
  %v167 = vunpack.c.h.b16 %v61
  %v168 = vunpack.c.l.b16 %v62
  %v169 = vunpack.c.h.b16 %v62
  %v170 = vunpack.c.l.b16 %v63
  %v171 = vunpack.c.h.b16 %v63
  %v172 = vunpack.c.l.b16 %v64
  %v173 = vunpack.c.h.b16 %v64
  %v174 = vunpack.c.l.b16 %v65
  %v175 = vunpack.c.h.b16 %v65
  %v176 = vunpack.c.l.b16 %v66
  %v177 = vunpack.c.h.b16 %v66
  %v178 = vunpack.c.l.b16 %v67
  %v179 = vunpack.c.h.b16 %v67
  %v180 = vunpack.c.l.b16 %v68
  %v181 = vunpack.c.h.b16 %v68
  %v182 = vunpack.c.l.b16 %v69
  %v183 = vunpack.c.h.b16 %v69
  %v184 = vunpack.c.l.b16 %v70
  %v185 = vunpack.c.h.b16 %v70
  %v186 = vunpack.c.l.b16 %v71
  %v187 = vunpack.c.h.b16 %v71
  %v188 = vunpack.c.l.b16 %v72
  %v189 = vunpack.c.h.b16 %v72
  %v190 = vunpack.c.l.b16 %v73
  %v191 = vunpack.c.h.b16 %v73
  %v192 = vpack.c.b16 %v132, %v128
  %v193 = vpack.c.b16 %v133, %v129
  %v194 = vpack.c.b16 %v134, %v130
  %v195 = vpack.c.b16 %v135, %v131
  %v196 = vpack.c.b16 %v140, %v136
  %v197 = vpack.c.b16 %v141, %v137
  %v198 = vpack.c.b16 %v142, %v138
  %v199 = vpack.c.b16 %v143, %v139
  %v200 = vpack.c.b16 %v148, %v144
  %v201 = vpack.c.b16 %v149, %v145
  %v202 = vpack.c.b16 %v150, %v146
  %v203 = vpack.c.b16 %v151, %v147
  %v204 = vpack.c.b16 %v156, %v152
  %v205 = vpack.c.b16 %v157, %v153
  %v206 = vpack.c.b16 %v158, %v154
  %v207 = vpack.c.b16 %v159, %v155
  %v208 = vpack.c.b16 %v164, %v160
  %v209 = vpack.c.b16 %v165, %v161
  %v210 = vpack.c.b16 %v166, %v162
  %v211 = vpack.c.b16 %v167, %v163
  %v212 = vpack.c.b16 %v172, %v168
  %v213 = vpack.c.b16 %v173, %v169
  %v214 = vpack.c.b16 %v174, %v170
  %v215 = vpack.c.b16 %v175, %v171
  %v216 = vpack.c.b16 %v180, %v176
  %v217 = vpack.c.b16 %v181, %v177
  %v218 = vpack.c.b16 %v182, %v178
  %v219 = vpack.c.b16 %v183, %v179
  %v220 = vpack.c.b16 %v188, %v184
  %v221 = vpack.c.b16 %v189, %v185
  %v222 = vpack.c.b16 %v190, %v186
  %v223 = vpack.c.b16 %v191, %v187
  %256 = vmatprep.subr.bf16.mxu0 %v193
  %257 = vmatpush1.bf16.msra.mxu0 %v192
  %258 = vmatprep.subr.bf16.mxu0 %v197
  %259 = vmatpush1.bf16.msra.mxu0 %v196
  %260 = vmatprep.subr.bf16.mxu0 %v201
  %261 = vmatpush1.bf16.msra.mxu0 %v200
  %262 = vmatprep.subr.bf16.mxu0 %v205
  %263 = vmatpush1.bf16.msra.mxu0 %v204
  %264 = vmatprep.subr.bf16.mxu0 %v209
  %265 = vmatpush1.bf16.msra.mxu0 %v208
  %266 = vmatprep.subr.bf16.mxu0 %v213
  %267 = vmatpush1.bf16.msra.mxu0 %v212
  %268 = vmatprep.subr.bf16.mxu0 %v217
  %269 = vmatpush1.bf16.msra.mxu0 %v216
  %270 = vmatprep.subr.bf16.mxu0 %v221
  %271 = vmatpush1.bf16.msra.mxu0 %v220
  %272 = vmatprep.subr.bf16.mxu0 0
  %273 = vmatpush1.bf16.msra.mxu0 0
  %274 = vmatprep.subr.bf16.mxu0 0
  %275 = vmatpush1.bf16.msra.mxu0 0
  %276 = vmatprep.subr.bf16.mxu0 0
  %277 = vmatpush1.bf16.msra.mxu0 0
  %278 = vmatprep.subr.bf16.mxu0 0
  %279 = vmatpush1.bf16.msra.mxu0 0
  %280 = vmatprep.subr.bf16.mxu0 0
  %281 = vmatpush1.bf16.msra.mxu0 0
  %282 = vmatprep.subr.bf16.mxu0 0
  %283 = vmatpush1.bf16.msra.mxu0 0
  %284 = vmatprep.subr.bf16.mxu0 0
  %285 = vmatpush1.bf16.msra.mxu0 0
  %286 = vmatprep.subr.bf16.mxu0 0
  %287 = vmatpush1.bf16.msra.mxu0 0
  %288 = vmatprep.mubr.bf16.mxu0 0
  %289 = vmatmul.mubr.bf16.gmra.mrb[0].mxu0 %v41
  %v290 = vpop.f32.mrb[0].mxu0
  %v291 = vadd.f32 %v79, %v290
  %v292 = vpop.f32.mrb[0].mxu0
  %v293 = vadd.f32 %v83, %v292
  %v294 = vpop.f32.mrb[0].mxu0
  %v295 = vadd.f32 %v79, %v294
  %v296 = vpop.f32.mrb[0].mxu0
  %v297 = vadd.f32 %v83, %v296
  %298 = vdwg.mxu0
  %299 = vmatprep.subr.bf16.mxu0 %v195
  %300 = vmatpush1.bf16.msra.mxu0 %v194
  %301 = vmatprep.subr.bf16.mxu0 %v199
  %302 = vmatpush1.bf16.msra.mxu0 %v198
  %303 = vmatprep.subr.bf16.mxu0 %v203
  %304 = vmatpush1.bf16.msra.mxu0 %v202
  %305 = vmatprep.subr.bf16.mxu0 %v207
  %306 = vmatpush1.bf16.msra.mxu0 %v206
  %307 = vmatprep.subr.bf16.mxu0 %v211
  %308 = vmatpush1.bf16.msra.mxu0 %v210
  %309 = vmatprep.subr.bf16.mxu0 %v215
  %310 = vmatpush1.bf16.msra.mxu0 %v214
  %311 = vmatprep.subr.bf16.mxu0 %v219
  %312 = vmatpush1.bf16.msra.mxu0 %v218
  %313 = vmatprep.subr.bf16.mxu0 %v223
  %314 = vmatpush1.bf16.msra.mxu0 %v222
  %315 = vmatprep.subr.bf16.mxu0 0
  %316 = vmatpush1.bf16.msra.mxu0 0
  %317 = vmatprep.subr.bf16.mxu0 0
  %318 = vmatpush1.bf16.msra.mxu0 0
  %319 = vmatprep.subr.bf16.mxu0 0
  %320 = vmatpush1.bf16.msra.mxu0 0
  %321 = vmatprep.subr.bf16.mxu0 0
  %322 = vmatpush1.bf16.msra.mxu0 0
  %323 = vmatprep.subr.bf16.mxu0 0
  %324 = vmatpush1.bf16.msra.mxu0 0
  %325 = vmatprep.subr.bf16.mxu0 0
  %326 = vmatpush1.bf16.msra.mxu0 0
  %327 = vmatprep.subr.bf16.mxu0 0
  %328 = vmatpush1.bf16.msra.mxu0 0
  %329 = vmatprep.subr.bf16.mxu0 0
  %330 = vmatpush1.bf16.msra.mxu0 0
  %331 = vmatprep.mubr.bf16.mxu0 0
  %332 = vmatmul.mubr.bf16.gmra.mrb[0].mxu0 %v41
  %v333 = vpop.f32.mrb[0].mxu0
  %v334 = vadd.f32 %v87, %v333
  %v335 = vpop.f32.mrb[0].mxu0
  %v336 = vadd.f32 %v91, %v335
  %v337 = vpop.f32.mrb[0].mxu0
  %v338 = vadd.f32 %v87, %v337
  %v339 = vpop.f32.mrb[0].mxu0
  %v340 = vadd.f32 %v91, %v339
  %341 = vdwg.mxu0
  %v342 = vld [vmem:[%s1] sm:$0xff]
  %v343 = vld [vmem:[%s1 + $0x8] sm:$0xff]
  %v344 = vpack.c.bf16 %v343, %v342
  %v345 = vld [vmem:[%s4] sm:$0xff]
  %v346 = vld [vmem:[%s4 + $0x8] sm:$0xff]
  %v347 = vld [vmem:[%s4 + $0x10] sm:$0xff]
  %v348 = vld [vmem:[%s4 + $0x18] sm:$0xff]
  %v349 = vld [vmem:[%s4 + $0x20] sm:$0xff]
  %v350 = vld [vmem:[%s4 + $0x28] sm:$0xff]
  %v351 = vld [vmem:[%s4 + $0x30] sm:$0xff]
  %v352 = vld [vmem:[%s4 + $0x38] sm:$0xff]
  %v353 = vld [vmem:[%s4 + $0x40] sm:$0xff]
  %v354 = vld [vmem:[%s4 + $0x48] sm:$0xff]
  %v355 = vld [vmem:[%s4 + $0x50] sm:$0xff]
  %v356 = vld [vmem:[%s4 + $0x58] sm:$0xff]
  %v357 = vld [vmem:[%s4 + $0x60] sm:$0xff]
  %v358 = vld [vmem:[%s4 + $0x68] sm:$0xff]
  %v359 = vld [vmem:[%s4 + $0x70] sm:$0xff]
  %v360 = vld [vmem:[%s4 + $0x78] sm:$0xff]
  %v361 = vld [vmem:[%s4 + $0x80] sm:$0xff]
  %v362 = vld [vmem:[%s4 + $0x88] sm:$0xff]
  %v363 = vld [vmem:[%s4 + $0x90] sm:$0xff]
  %v364 = vld [vmem:[%s4 + $0x98] sm:$0xff]
  %v365 = vld [vmem:[%s4 + $0xa0] sm:$0xff]
  %v366 = vld [vmem:[%s4 + $0xa8] sm:$0xff]
  %v367 = vld [vmem:[%s4 + $0xb0] sm:$0xff]
  %v368 = vld [vmem:[%s4 + $0xb8] sm:$0xff]
  %v369 = vld [vmem:[%s4 + $0xc0] sm:$0xff]
  %v370 = vld [vmem:[%s4 + $0xc8] sm:$0xff]
  %v371 = vld [vmem:[%s4 + $0xd0] sm:$0xff]
  %v372 = vld [vmem:[%s4 + $0xd8] sm:$0xff]
  %v373 = vld [vmem:[%s4 + $0xe0] sm:$0xff]
  %v374 = vld [vmem:[%s4 + $0xe8] sm:$0xff]
  %v375 = vld [vmem:[%s4 + $0xf0] sm:$0xff]
  %v376 = vld [vmem:[%s4 + $0xf8] sm:$0xff]
  %v377 = vld [vmem:[%s4 + $0x100] sm:$0xff]
  %v378 = vld [vmem:[%s4 + $0x108] sm:$0xff]
  %v379 = vld [vmem:[%s4 + $0x110] sm:$0xff]
  %v380 = vld [vmem:[%s4 + $0x118] sm:$0xff]
  %v381 = vld [vmem:[%s4 + $0x120] sm:$0xff]
  %v382 = vld [vmem:[%s4 + $0x128] sm:$0xff]
  %v383 = vld [vmem:[%s4 + $0x130] sm:$0xff]
  %v384 = vld [vmem:[%s4 + $0x138] sm:$0xff]
  %v385 = vld [vmem:[%s4 + $0x140] sm:$0xff]
  %v386 = vld [vmem:[%s4 + $0x148] sm:$0xff]
  %v387 = vld [vmem:[%s4 + $0x150] sm:$0xff]
  %v388 = vld [vmem:[%s4 + $0x158] sm:$0xff]
  %v389 = vld [vmem:[%s4 + $0x160] sm:$0xff]
  %v390 = vld [vmem:[%s4 + $0x168] sm:$0xff]
  %v391 = vld [vmem:[%s4 + $0x170] sm:$0xff]
  %v392 = vld [vmem:[%s4 + $0x178] sm:$0xff]
  %v393 = vld [vmem:[%s4 + $0x180] sm:$0xff]
  %v394 = vld [vmem:[%s4 + $0x188] sm:$0xff]
  %v395 = vld [vmem:[%s4 + $0x190] sm:$0xff]
  %v396 = vld [vmem:[%s4 + $0x198] sm:$0xff]
  %v397 = vld [vmem:[%s4 + $0x1a0] sm:$0xff]
  %v398 = vld [vmem:[%s4 + $0x1a8] sm:$0xff]
  %v399 = vld [vmem:[%s4 + $0x1b0] sm:$0xff]
  %v400 = vld [vmem:[%s4 + $0x1b8] sm:$0xff]
  %v401 = vld [vmem:[%s4 + $0x1c0] sm:$0xff]
  %v402 = vld [vmem:[%s4 + $0x1c8] sm:$0xff]
  %v403 = vld [vmem:[%s4 + $0x1d0] sm:$0xff]
  %v404 = vld [vmem:[%s4 + $0x1d8] sm:$0xff]
  %v405 = vld [vmem:[%s4 + $0x1e0] sm:$0xff]
  %v406 = vld [vmem:[%s4 + $0x1e8] sm:$0xff]
  %v407 = vld [vmem:[%s4 + $0x1f0] sm:$0xff]
  %v408 = vld [vmem:[%s4 + $0x1f8] sm:$0xff]
  %v409 = vld [vmem:[%s5] sm:$0xff]
  %v411 = vlaneseq
  %v412 = vshrl.u32 %v411, 7
  %v413 = vsub.s32 0, %v412
  %v414 = vrot.slane %v409, %v413
  %v415 = vlaneseq
  %v416 = vshrl.u32 %v415, 7
  %v417 = vsub.s32 1, %v416
  %v418 = vrot.slane %v409, %v417
  %v419 = vlaneseq
  %v420 = vshrl.u32 %v419, 7
  %v421 = vsub.s32 2, %v420
  %v422 = vrot.slane %v409, %v421
  %v423 = vlaneseq
  %v424 = vshrl.u32 %v423, 7
  %v425 = vsub.s32 3, %v424
  %v426 = vrot.slane %v409, %v425
  %v427 = vlaneseq
  %v428 = vshrl.u32 %v427, 7
  %v429 = vsub.s32 4, %v428
  %v430 = vrot.slane %v409, %v429
  %v431 = vlaneseq
  %v432 = vshrl.u32 %v431, 7
  %v433 = vsub.s32 5, %v432
  %v434 = vrot.slane %v409, %v433
  %v435 = vlaneseq
  %v436 = vshrl.u32 %v435, 7
  %v437 = vsub.s32 6, %v436
  %v438 = vrot.slane %v409, %v437
  %v439 = vlaneseq
  %v440 = vshrl.u32 %v439, 7
  %v441 = vsub.s32 7, %v440
  %v442 = vrot.slane %v409, %v441
  %v515 = vunpack.c.l.b16 %v345
  %v516 = vunpack.c.h.b16 %v345
  %v517 = vunpack.c.l.b16 %v346
  %v518 = vunpack.c.h.b16 %v346
  %v519 = vunpack.c.l.b16 %v347
  %v520 = vunpack.c.h.b16 %v347
  %v521 = vunpack.c.l.b16 %v348
  %v522 = vunpack.c.h.b16 %v348
  %v523 = vunpack.c.l.b16 %v349
  %v524 = vunpack.c.h.b16 %v349
  %v525 = vunpack.c.l.b16 %v350
  %v526 = vunpack.c.h.b16 %v350
  %v527 = vunpack.c.l.b16 %v351
  %v528 = vunpack.c.h.b16 %v351
  %v529 = vunpack.c.l.b16 %v352
  %v530 = vunpack.c.h.b16 %v352
  %v531 = vunpack.c.l.b16 %v353
  %v532 = vunpack.c.h.b16 %v353
  %v533 = vunpack.c.l.b16 %v354
  %v534 = vunpack.c.h.b16 %v354
  %v535 = vunpack.c.l.b16 %v355
  %v536 = vunpack.c.h.b16 %v355
  %v537 = vunpack.c.l.b16 %v356
  %v538 = vunpack.c.h.b16 %v356
  %v539 = vunpack.c.l.b16 %v357
  %v540 = vunpack.c.h.b16 %v357
  %v541 = vunpack.c.l.b16 %v358
  %v542 = vunpack.c.h.b16 %v358
  %v543 = vunpack.c.l.b16 %v359
  %v544 = vunpack.c.h.b16 %v359
  %v545 = vunpack.c.l.b16 %v360
  %v546 = vunpack.c.h.b16 %v360
  %v547 = vunpack.c.l.b16 %v361
  %v548 = vunpack.c.h.b16 %v361
  %v549 = vunpack.c.l.b16 %v362
  %v550 = vunpack.c.h.b16 %v362
  %v551 = vunpack.c.l.b16 %v363
  %v552 = vunpack.c.h.b16 %v363
  %v553 = vunpack.c.l.b16 %v364
  %v554 = vunpack.c.h.b16 %v364
  %v555 = vunpack.c.l.b16 %v365
  %v556 = vunpack.c.h.b16 %v365
  %v557 = vunpack.c.l.b16 %v366
  %v558 = vunpack.c.h.b16 %v366
  %v559 = vunpack.c.l.b16 %v367
  %v560 = vunpack.c.h.b16 %v367
  %v561 = vunpack.c.l.b16 %v368
  %v562 = vunpack.c.h.b16 %v368
  %v563 = vunpack.c.l.b16 %v369
  %v564 = vunpack.c.h.b16 %v369
  %v565 = vunpack.c.l.b16 %v370
  %v566 = vunpack.c.h.b16 %v370
  %v567 = vunpack.c.l.b16 %v371
  %v568 = vunpack.c.h.b16 %v371
  %v569 = vunpack.c.l.b16 %v372
  %v570 = vunpack.c.h.b16 %v372
  %v571 = vunpack.c.l.b16 %v373
  %v572 = vunpack.c.h.b16 %v373
  %v573 = vunpack.c.l.b16 %v374
  %v574 = vunpack.c.h.b16 %v374
  %v575 = vunpack.c.l.b16 %v375
  %v576 = vunpack.c.h.b16 %v375
  %v577 = vunpack.c.l.b16 %v376
  %v578 = vunpack.c.h.b16 %v376
  %v579 = vunpack.c.l.b16 %v377
  %v580 = vunpack.c.h.b16 %v377
  %v581 = vunpack.c.l.b16 %v378
  %v582 = vunpack.c.h.b16 %v378
  %v583 = vunpack.c.l.b16 %v379
  %v584 = vunpack.c.h.b16 %v379
  %v585 = vunpack.c.l.b16 %v380
  %v586 = vunpack.c.h.b16 %v380
  %v587 = vunpack.c.l.b16 %v381
  %v588 = vunpack.c.h.b16 %v381
  %v589 = vunpack.c.l.b16 %v382
  %v590 = vunpack.c.h.b16 %v382
  %v591 = vunpack.c.l.b16 %v383
  %v592 = vunpack.c.h.b16 %v383
  %v593 = vunpack.c.l.b16 %v384
  %v594 = vunpack.c.h.b16 %v384
  %v595 = vunpack.c.l.b16 %v385
  %v596 = vunpack.c.h.b16 %v385
  %v597 = vunpack.c.l.b16 %v386
  %v598 = vunpack.c.h.b16 %v386
  %v599 = vunpack.c.l.b16 %v387
  %v600 = vunpack.c.h.b16 %v387
  %v601 = vunpack.c.l.b16 %v388
  %v602 = vunpack.c.h.b16 %v388
  %v603 = vunpack.c.l.b16 %v389
  %v604 = vunpack.c.h.b16 %v389
  %v605 = vunpack.c.l.b16 %v390
  %v606 = vunpack.c.h.b16 %v390
  %v607 = vunpack.c.l.b16 %v391
  %v608 = vunpack.c.h.b16 %v391
  %v609 = vunpack.c.l.b16 %v392
  %v610 = vunpack.c.h.b16 %v392
  %v611 = vunpack.c.l.b16 %v393
  %v612 = vunpack.c.h.b16 %v393
  %v613 = vunpack.c.l.b16 %v394
  %v614 = vunpack.c.h.b16 %v394
  %v615 = vunpack.c.l.b16 %v395
  %v616 = vunpack.c.h.b16 %v395
  %v617 = vunpack.c.l.b16 %v396
  %v618 = vunpack.c.h.b16 %v396
  %v619 = vunpack.c.l.b16 %v397
  %v620 = vunpack.c.h.b16 %v397
  %v621 = vunpack.c.l.b16 %v398
  %v622 = vunpack.c.h.b16 %v398
  %v623 = vunpack.c.l.b16 %v399
  %v624 = vunpack.c.h.b16 %v399
  %v625 = vunpack.c.l.b16 %v400
  %v626 = vunpack.c.h.b16 %v400
  %v627 = vunpack.c.l.b16 %v401
  %v628 = vunpack.c.h.b16 %v401
  %v629 = vunpack.c.l.b16 %v402
  %v630 = vunpack.c.h.b16 %v402
  %v631 = vunpack.c.l.b16 %v403
  %v632 = vunpack.c.h.b16 %v403
  %v633 = vunpack.c.l.b16 %v404
  %v634 = vunpack.c.h.b16 %v404
  %v635 = vunpack.c.l.b16 %v405
  %v636 = vunpack.c.h.b16 %v405
  %v637 = vunpack.c.l.b16 %v406
  %v638 = vunpack.c.h.b16 %v406
  %v639 = vunpack.c.l.b16 %v407
  %v640 = vunpack.c.h.b16 %v407
  %v641 = vunpack.c.l.b16 %v408
  %v642 = vunpack.c.h.b16 %v408
  %v643 = vpack.c.b16 %v523, %v515
  %v644 = vpack.c.b16 %v524, %v516
  %v645 = vpack.c.b16 %v525, %v517
  %v646 = vpack.c.b16 %v526, %v518
  %v647 = vpack.c.b16 %v527, %v519
  %v648 = vpack.c.b16 %v528, %v520
  %v649 = vpack.c.b16 %v529, %v521
  %v650 = vpack.c.b16 %v530, %v522
  %v651 = vpack.c.b16 %v539, %v531
  %v652 = vpack.c.b16 %v540, %v532
  %v653 = vpack.c.b16 %v541, %v533
  %v654 = vpack.c.b16 %v542, %v534
  %v655 = vpack.c.b16 %v543, %v535
  %v656 = vpack.c.b16 %v544, %v536
  %v657 = vpack.c.b16 %v545, %v537
  %v658 = vpack.c.b16 %v546, %v538
  %v659 = vpack.c.b16 %v555, %v547
  %v660 = vpack.c.b16 %v556, %v548
  %v661 = vpack.c.b16 %v557, %v549
  %v662 = vpack.c.b16 %v558, %v550
  %v663 = vpack.c.b16 %v559, %v551
  %v664 = vpack.c.b16 %v560, %v552
  %v665 = vpack.c.b16 %v561, %v553
  %v666 = vpack.c.b16 %v562, %v554
  %v667 = vpack.c.b16 %v571, %v563
  %v668 = vpack.c.b16 %v572, %v564
  %v669 = vpack.c.b16 %v573, %v565
  %v670 = vpack.c.b16 %v574, %v566
  %v671 = vpack.c.b16 %v575, %v567
  %v672 = vpack.c.b16 %v576, %v568
  %v673 = vpack.c.b16 %v577, %v569
  %v674 = vpack.c.b16 %v578, %v570
  %v675 = vpack.c.b16 %v587, %v579
  %v676 = vpack.c.b16 %v588, %v580
  %v677 = vpack.c.b16 %v589, %v581
  %v678 = vpack.c.b16 %v590, %v582
  %v679 = vpack.c.b16 %v591, %v583
  %v680 = vpack.c.b16 %v592, %v584
  %v681 = vpack.c.b16 %v593, %v585
  %v682 = vpack.c.b16 %v594, %v586
  %v683 = vpack.c.b16 %v603, %v595
  %v684 = vpack.c.b16 %v604, %v596
  %v685 = vpack.c.b16 %v605, %v597
  %v686 = vpack.c.b16 %v606, %v598
  %v687 = vpack.c.b16 %v607, %v599
  %v688 = vpack.c.b16 %v608, %v600
  %v689 = vpack.c.b16 %v609, %v601
  %v690 = vpack.c.b16 %v610, %v602
  %v691 = vpack.c.b16 %v619, %v611
  %v692 = vpack.c.b16 %v620, %v612
  %v693 = vpack.c.b16 %v621, %v613
  %v694 = vpack.c.b16 %v622, %v614
  %v695 = vpack.c.b16 %v623, %v615
  %v696 = vpack.c.b16 %v624, %v616
  %v697 = vpack.c.b16 %v625, %v617
  %v698 = vpack.c.b16 %v626, %v618
  %v699 = vpack.c.b16 %v635, %v627
  %v700 = vpack.c.b16 %v636, %v628
  %v701 = vpack.c.b16 %v637, %v629
  %v702 = vpack.c.b16 %v638, %v630
  %v703 = vpack.c.b16 %v639, %v631
  %v704 = vpack.c.b16 %v640, %v632
  %v705 = vpack.c.b16 %v641, %v633
  %v706 = vpack.c.b16 %v642, %v634
  %771 = vmatprep.subr.bf16.mxu0 %v644
  %772 = vmatpush1.bf16.msra.mxu0 %v643
  %773 = vmatprep.subr.bf16.mxu0 %v652
  %774 = vmatpush1.bf16.msra.mxu0 %v651
  %775 = vmatprep.subr.bf16.mxu0 %v660
  %776 = vmatpush1.bf16.msra.mxu0 %v659
  %777 = vmatprep.subr.bf16.mxu0 %v668
  %778 = vmatpush1.bf16.msra.mxu0 %v667
  %779 = vmatprep.subr.bf16.mxu0 %v676
  %780 = vmatpush1.bf16.msra.mxu0 %v675
  %781 = vmatprep.subr.bf16.mxu0 %v684
  %782 = vmatpush1.bf16.msra.mxu0 %v683
  %783 = vmatprep.subr.bf16.mxu0 %v692
  %784 = vmatpush1.bf16.msra.mxu0 %v691
  %785 = vmatprep.subr.bf16.mxu0 %v700
  %786 = vmatpush1.bf16.msra.mxu0 %v699
  %787 = vmatprep.subr.bf16.mxu0 0
  %788 = vmatpush1.bf16.msra.mxu0 0
  %789 = vmatprep.subr.bf16.mxu0 0
  %790 = vmatpush1.bf16.msra.mxu0 0
  %791 = vmatprep.subr.bf16.mxu0 0
  %792 = vmatpush1.bf16.msra.mxu0 0
  %793 = vmatprep.subr.bf16.mxu0 0
  %794 = vmatpush1.bf16.msra.mxu0 0
  %795 = vmatprep.subr.bf16.mxu0 0
  %796 = vmatpush1.bf16.msra.mxu0 0
  %797 = vmatprep.subr.bf16.mxu0 0
  %798 = vmatpush1.bf16.msra.mxu0 0
  %799 = vmatprep.subr.bf16.mxu0 0
  %800 = vmatpush1.bf16.msra.mxu0 0
  %801 = vmatprep.subr.bf16.mxu0 0
  %802 = vmatpush1.bf16.msra.mxu0 0
  %803 = vmatprep.mubr.bf16.mxu0 0
  %804 = vmatmul.mubr.bf16.gmra.mrb[0].mxu0 %v344
  %v805 = vpop.f32.mrb[0].mxu0
  %v806 = vadd.f32 %v414, %v805
  %v807 = vpop.f32.mrb[0].mxu0
  %v808 = vadd.f32 %v418, %v807
  %v809 = vpop.f32.mrb[0].mxu0
  %v810 = vadd.f32 %v414, %v809
  %v811 = vpop.f32.mrb[0].mxu0
  %v812 = vadd.f32 %v418, %v811
  %813 = vdwg.mxu0
  %814 = vmatprep.subr.bf16.mxu0 %v646
  %815 = vmatpush1.bf16.msra.mxu0 %v645
  %816 = vmatprep.subr.bf16.mxu0 %v654
  %817 = vmatpush1.bf16.msra.mxu0 %v653
  %818 = vmatprep.subr.bf16.mxu0 %v662
  %819 = vmatpush1.bf16.msra.mxu0 %v661
  %820 = vmatprep.subr.bf16.mxu0 %v670
  %821 = vmatpush1.bf16.msra.mxu0 %v669
  %822 = vmatprep.subr.bf16.mxu0 %v678
  %823 = vmatpush1.bf16.msra.mxu0 %v677
  %824 = vmatprep.subr.bf16.mxu0 %v686
  %825 = vmatpush1.bf16.msra.mxu0 %v685
  %826 = vmatprep.subr.bf16.mxu0 %v694
  %827 = vmatpush1.bf16.msra.mxu0 %v693
  %828 = vmatprep.subr.bf16.mxu0 %v702
  %829 = vmatpush1.bf16.msra.mxu0 %v701
  %830 = vmatprep.subr.bf16.mxu0 0
  %831 = vmatpush1.bf16.msra.mxu0 0
  %832 = vmatprep.subr.bf16.mxu0 0
  %833 = vmatpush1.bf16.msra.mxu0 0
  %834 = vmatprep.subr.bf16.mxu0 0
  %835 = vmatpush1.bf16.msra.mxu0 0
  %836 = vmatprep.subr.bf16.mxu0 0
  %837 = vmatpush1.bf16.msra.mxu0 0
  %838 = vmatprep.subr.bf16.mxu0 0
  %839 = vmatpush1.bf16.msra.mxu0 0
  %840 = vmatprep.subr.bf16.mxu0 0
  %841 = vmatpush1.bf16.msra.mxu0 0
  %842 = vmatprep.subr.bf16.mxu0 0
  %843 = vmatpush1.bf16.msra.mxu0 0
  %844 = vmatprep.subr.bf16.mxu0 0
  %845 = vmatpush1.bf16.msra.mxu0 0
  %846 = vmatprep.mubr.bf16.mxu0 0
  %847 = vmatmul.mubr.bf16.gmra.mrb[0].mxu0 %v344
  %v848 = vpop.f32.mrb[0].mxu0
  %v849 = vadd.f32 %v422, %v848
  %v850 = vpop.f32.mrb[0].mxu0
  %v851 = vadd.f32 %v426, %v850
  %v852 = vpop.f32.mrb[0].mxu0
  %v853 = vadd.f32 %v422, %v852
  %v854 = vpop.f32.mrb[0].mxu0
  %v855 = vadd.f32 %v426, %v854
  %856 = vdwg.mxu0
  %857 = vmatprep.subr.bf16.mxu0 %v648
  %858 = vmatpush1.bf16.msra.mxu0 %v647
  %859 = vmatprep.subr.bf16.mxu0 %v656
  %860 = vmatpush1.bf16.msra.mxu0 %v655
  %861 = vmatprep.subr.bf16.mxu0 %v664
  %862 = vmatpush1.bf16.msra.mxu0 %v663
  %863 = vmatprep.subr.bf16.mxu0 %v672
  %864 = vmatpush1.bf16.msra.mxu0 %v671
  %865 = vmatprep.subr.bf16.mxu0 %v680
  %866 = vmatpush1.bf16.msra.mxu0 %v679
  %867 = vmatprep.subr.bf16.mxu0 %v688
  %868 = vmatpush1.bf16.msra.mxu0 %v687
  %869 = vmatprep.subr.bf16.mxu0 %v696
  %870 = vmatpush1.bf16.msra.mxu0 %v695
  %871 = vmatprep.subr.bf16.mxu0 %v704
  %872 = vmatpush1.bf16.msra.mxu0 %v703
  %873 = vmatprep.subr.bf16.mxu0 0
  %874 = vmatpush1.bf16.msra.mxu0 0
  %875 = vmatprep.subr.bf16.mxu0 0
  %876 = vmatpush1.bf16.msra.mxu0 0
  %877 = vmatprep.subr.bf16.mxu0 0
  %878 = vmatpush1.bf16.msra.mxu0 0
  %879 = vmatprep.subr.bf16.mxu0 0
  %880 = vmatpush1.bf16.msra.mxu0 0
  %881 = vmatprep.subr.bf16.mxu0 0
  %882 = vmatpush1.bf16.msra.mxu0 0
  %883 = vmatprep.subr.bf16.mxu0 0
  %884 = vmatpush1.bf16.msra.mxu0 0
  %885 = vmatprep.subr.bf16.mxu0 0
  %886 = vmatpush1.bf16.msra.mxu0 0
  %887 = vmatprep.subr.bf16.mxu0 0
  %888 = vmatpush1.bf16.msra.mxu0 0
  %889 = vmatprep.mubr.bf16.mxu0 0
  %890 = vmatmul.mubr.bf16.gmra.mrb[0].mxu0 %v344
  %v891 = vpop.f32.mrb[0].mxu0
  %v892 = vadd.f32 %v430, %v891
  %v893 = vpop.f32.mrb[0].mxu0
  %v894 = vadd.f32 %v434, %v893
  %v895 = vpop.f32.mrb[0].mxu0
  %v896 = vadd.f32 %v430, %v895
  %v897 = vpop.f32.mrb[0].mxu0
  %v898 = vadd.f32 %v434, %v897
  %899 = vdwg.mxu0
  %900 = vmatprep.subr.bf16.mxu0 %v650
  %901 = vmatpush1.bf16.msra.mxu0 %v649
  %902 = vmatprep.subr.bf16.mxu0 %v658
  %903 = vmatpush1.bf16.msra.mxu0 %v657
  %904 = vmatprep.subr.bf16.mxu0 %v666
  %905 = vmatpush1.bf16.msra.mxu0 %v665
  %906 = vmatprep.subr.bf16.mxu0 %v674
  %907 = vmatpush1.bf16.msra.mxu0 %v673
  %908 = vmatprep.subr.bf16.mxu0 %v682
  %909 = vmatpush1.bf16.msra.mxu0 %v681
  %910 = vmatprep.subr.bf16.mxu0 %v690
  %911 = vmatpush1.bf16.msra.mxu0 %v689
  %912 = vmatprep.subr.bf16.mxu0 %v698
  %913 = vmatpush1.bf16.msra.mxu0 %v697
  %914 = vmatprep.subr.bf16.mxu0 %v706
  %915 = vmatpush1.bf16.msra.mxu0 %v705
  %916 = vmatprep.subr.bf16.mxu0 0
  %917 = vmatpush1.bf16.msra.mxu0 0
  %918 = vmatprep.subr.bf16.mxu0 0
  %919 = vmatpush1.bf16.msra.mxu0 0
  %920 = vmatprep.subr.bf16.mxu0 0
  %921 = vmatpush1.bf16.msra.mxu0 0
  %922 = vmatprep.subr.bf16.mxu0 0
  %923 = vmatpush1.bf16.msra.mxu0 0
  %924 = vmatprep.subr.bf16.mxu0 0
  %925 = vmatpush1.bf16.msra.mxu0 0
  %926 = vmatprep.subr.bf16.mxu0 0
  %927 = vmatpush1.bf16.msra.mxu0 0
  %928 = vmatprep.subr.bf16.mxu0 0
  %929 = vmatpush1.bf16.msra.mxu0 0
  %930 = vmatprep.subr.bf16.mxu0 0
  %931 = vmatpush1.bf16.msra.mxu0 0
  %932 = vmatprep.mubr.bf16.mxu0 0
  %933 = vmatmul.mubr.bf16.gmra.mrb[0].mxu0 %v344
  %v934 = vpop.f32.mrb[0].mxu0
  %v935 = vadd.f32 %v438, %v934
  %v936 = vpop.f32.mrb[0].mxu0
  %v937 = vadd.f32 %v442, %v936
  %v938 = vpop.f32.mrb[0].mxu0
  %v939 = vadd.f32 %v438, %v938
  %v940 = vpop.f32.mrb[0].mxu0
  %v941 = vadd.f32 %v442, %v940
  %942 = vdwg.mxu0
  %v943 = vld [vmem:[%s7] sm:$0x1]
  %v944 = vld [vmem:[%s9] sm:$0x1]
  %v945 = vld [vmem:[%s10] sm:$0x1]
  %v946 = vld [vmem:[%s8] sm:$0x1]
  %v947 = vpack.c.bf16 %v291, %v291
  %v948 = vpack.c.bf16 %v806, %v806
  %949 = vmatprep.subr.bf16.mxu0 0
  %950 = vmatpush1.bf16.xpose.msra.mxu0 %v948
  %951 = vmatprep.subr.bf16.mxu0 0
  %952 = vmatpush1.bf16.xpose.msra.mxu0 0
  %953 = vmatprep.subr.bf16.mxu0 0
  %954 = vmatpush1.bf16.xpose.msra.mxu0 0
  %955 = vmatprep.subr.bf16.mxu0 0
  %956 = vmatpush1.bf16.xpose.msra.mxu0 0
  %957 = vmatprep.subr.bf16.mxu0 0
  %958 = vmatpush1.bf16.xpose.msra.mxu0 0
  %959 = vmatprep.subr.bf16.mxu0 0
  %960 = vmatpush1.bf16.xpose.msra.mxu0 0
  %961 = vmatprep.subr.bf16.mxu0 0
  %962 = vmatpush1.bf16.xpose.msra.mxu0 0
  %963 = vmatprep.subr.bf16.mxu0 0
  %964 = vmatpush1.bf16.xpose.msra.mxu0 0
  %965 = vmatprep.subr.bf16.mxu0 0
  %966 = vmatpush1.bf16.xpose.msra.mxu0 0
  %967 = vmatprep.subr.bf16.mxu0 0
  %968 = vmatpush1.bf16.xpose.msra.mxu0 0
  %969 = vmatprep.subr.bf16.mxu0 0
  %970 = vmatpush1.bf16.xpose.msra.mxu0 0
  %971 = vmatprep.subr.bf16.mxu0 0
  %972 = vmatpush1.bf16.xpose.msra.mxu0 0
  %973 = vmatprep.subr.bf16.mxu0 0
  %974 = vmatpush1.bf16.xpose.msra.mxu0 0
  %975 = vmatprep.subr.bf16.mxu0 0
  %976 = vmatpush1.bf16.xpose.msra.mxu0 0
  %977 = vmatprep.subr.bf16.mxu0 0
  %978 = vmatpush1.bf16.xpose.msra.mxu0 0
  %979 = vmatprep.subr.bf16.mxu0 0
  %980 = vmatpush1.bf16.xpose.msra.mxu0 0
  %981 = vmatprep.mubr.bf16.mxu0 0
  %982 = vmatmul.mubr.bf16.gmra.mrb[0].mxu0 %v947
  %v983 = vpop.f32.mrb[0].mxu0
  %v984 = vadd.f32 0.0, %v983
  %v985 = vpop.f32.mrb[0].mxu0
  %v986 = vpop.f32.mrb[0].mxu0
  %v987 = vpop.f32.mrb[0].mxu0
  %988 = vdwg.mxu0
  %v989 = vmul.f32 %v984, 0.35355338
  %v991 = vlaneseq
  %v992 = vshrl.u32 %v991, 7
  %v993 = vsub.s32 0, %v992
  %v994 = vrot.slane %v946, %v993
  %v996 = vadd.f32 %v989, %v994
  %vm997 = vcmask 64512
  %v998 = vsel %vm997, %v996, -inf
  %999 = vmax.xlane.f32.xlu0 %v998
  %v1000 = vpop.xlane.xlu0 %999
  %v1001 = vsub.f32 %v996, %v1000
  %v1002 = vmul.f32 %v1001, 1.442695
  %v1003 = vpow.pop %v1002
  %v1004 = vsel %vm997, %v1003, 0.0
  %1005 = vadd.xlane.f32.xlu0 %v1004
  %v1006 = vpop.xlane.xlu0 %1005
  %v1007 = vrcp.pop %v1006
  %v1008 = vmul.f32 %v1003, %v1007
  %v1009 = vpack.c.bf16 %v1008, %v1008
  %v1010 = vpack.c.bf16 %v892, %v892
  %v1012 = vsel %vm997, %v1009, 0
  %vm1014 = vcmask 1043456
  %v1016 = vsel %vm1014, %v1010, 0
  %1018 = vmatprep.subr.bf16.mxu0 0
  %1019 = vmatpush1.bf16.msra.mxu0 %v1016
  %1020 = vmatprep.subr.bf16.mxu0 0
  %1021 = vmatpush1.bf16.msra.mxu0 0
  %1022 = vmatprep.subr.bf16.mxu0 0
  %1023 = vmatpush1.bf16.msra.mxu0 0
  %1024 = vmatprep.subr.bf16.mxu0 0
  %1025 = vmatpush1.bf16.msra.mxu0 0
  %1026 = vmatprep.subr.bf16.mxu0 0
  %1027 = vmatpush1.bf16.msra.mxu0 0
  %1028 = vmatprep.subr.bf16.mxu0 0
  %1029 = vmatpush1.bf16.msra.mxu0 0
  %1030 = vmatprep.subr.bf16.mxu0 0
  %1031 = vmatpush1.bf16.msra.mxu0 0
  %1032 = vmatprep.subr.bf16.mxu0 0
  %1033 = vmatpush1.bf16.msra.mxu0 0
  %1034 = vmatprep.subr.bf16.mxu0 0
  %1035 = vmatpush1.bf16.msra.mxu0 0
  %1036 = vmatprep.subr.bf16.mxu0 0
  %1037 = vmatpush1.bf16.msra.mxu0 0
  %1038 = vmatprep.subr.bf16.mxu0 0
  %1039 = vmatpush1.bf16.msra.mxu0 0
  %1040 = vmatprep.subr.bf16.mxu0 0
  %1041 = vmatpush1.bf16.msra.mxu0 0
  %1042 = vmatprep.subr.bf16.mxu0 0
  %1043 = vmatpush1.bf16.msra.mxu0 0
  %1044 = vmatprep.subr.bf16.mxu0 0
  %1045 = vmatpush1.bf16.msra.mxu0 0
  %1046 = vmatprep.subr.bf16.mxu0 0
  %1047 = vmatpush1.bf16.msra.mxu0 0
  %1048 = vmatprep.subr.bf16.mxu0 0
  %1049 = vmatpush1.bf16.msra.mxu0 0
  %1050 = vmatprep.mubr.bf16.mxu0 0
  %1051 = vmatmul.mubr.bf16.gmra.mrb[0].mxu0 %v1012
  %v1052 = vpop.f32.mrb[0].mxu0
  %v1053 = vadd.f32 0.0, %v1052
  %v1054 = vpop.f32.mrb[0].mxu0
  %v1055 = vpop.f32.mrb[0].mxu0
  %v1056 = vpop.f32.mrb[0].mxu0
  %1057 = vdwg.mxu0
  %v1058 = vpack.c.bf16 %v1053, %v1053
  %v1059 = vld [vmem:[%s6] sm:$0xf]
  %v1060 = vld [vmem:[%s6 + $0x4] sm:$0xf]
  %v1061 = vld [vmem:[%s6 + $0x8] sm:$0xf]
  %v1062 = vld [vmem:[%s6 + $0xc] sm:$0xf]
  %v1063 = vld [vmem:[%s6 + $0x10] sm:$0xf]
  %v1064 = vld [vmem:[%s6 + $0x14] sm:$0xf]
  %v1065 = vld [vmem:[%s6 + $0x18] sm:$0xf]
  %v1066 = vld [vmem:[%s6 + $0x1c] sm:$0xf]
  %v1067 = vld [vmem:[%s6 + $0x20] sm:$0xf]
  %v1068 = vld [vmem:[%s6 + $0x24] sm:$0xf]
  %v1069 = vld [vmem:[%s6 + $0x28] sm:$0xf]
  %v1070 = vld [vmem:[%s6 + $0x2c] sm:$0xf]
  %v1071 = vld [vmem:[%s6 + $0x30] sm:$0xf]
  %v1072 = vld [vmem:[%s6 + $0x34] sm:$0xf]
  %v1073 = vld [vmem:[%s6 + $0x38] sm:$0xf]
  %v1074 = vld [vmem:[%s6 + $0x3c] sm:$0xf]
  %v1075 = vpack.c.bf16 %v293, %v293
  %v1076 = vpack.c.bf16 %v808, %v808
  %1077 = vmatprep.subr.bf16.mxu0 0
  %1078 = vmatpush1.bf16.xpose.msra.mxu0 %v1076
  %1079 = vmatprep.subr.bf16.mxu0 0
  %1080 = vmatpush1.bf16.xpose.msra.mxu0 0
  %1081 = vmatprep.subr.bf16.mxu0 0
  %1082 = vmatpush1.bf16.xpose.msra.mxu0 0
  %1083 = vmatprep.subr.bf16.mxu0 0
  %1084 = vmatpush1.bf16.xpose.msra.mxu0 0
  %1085 = vmatprep.subr.bf16.mxu0 0
  %1086 = vmatpush1.bf16.xpose.msra.mxu0 0
  %1087 = vmatprep.subr.bf16.mxu0 0
  %1088 = vmatpush1.bf16.xpose.msra.mxu0 0
  %1089 = vmatprep.subr.bf16.mxu0 0
  %1090 = vmatpush1.bf16.xpose.msra.mxu0 0
  %1091 = vmatprep.subr.bf16.mxu0 0
  %1092 = vmatpush1.bf16.xpose.msra.mxu0 0
  %1093 = vmatprep.subr.bf16.mxu0 0
  %1094 = vmatpush1.bf16.xpose.msra.mxu0 0
  %1095 = vmatprep.subr.bf16.mxu0 0
  %1096 = vmatpush1.bf16.xpose.msra.mxu0 0
  %1097 = vmatprep.subr.bf16.mxu0 0
  %1098 = vmatpush1.bf16.xpose.msra.mxu0 0
  %1099 = vmatprep.subr.bf16.mxu0 0
  %1100 = vmatpush1.bf16.xpose.msra.mxu0 0
  %1101 = vmatprep.subr.bf16.mxu0 0
  %1102 = vmatpush1.bf16.xpose.msra.mxu0 0
  %1103 = vmatprep.subr.bf16.mxu0 0
  %1104 = vmatpush1.bf16.xpose.msra.mxu0 0
  %1105 = vmatprep.subr.bf16.mxu0 0
  %1106 = vmatpush1.bf16.xpose.msra.mxu0 0
  %1107 = vmatprep.subr.bf16.mxu0 0
  %1108 = vmatpush1.bf16.xpose.msra.mxu0 0
  %1109 = vmatprep.mubr.bf16.mxu0 0
  %1110 = vmatmul.mubr.bf16.gmra.mrb[0].mxu0 %v1075
  %v1111 = vpop.f32.mrb[0].mxu0
  %v1112 = vadd.f32 0.0, %v1111
  %v1113 = vpop.f32.mrb[0].mxu0
  %v1114 = vpop.f32.mrb[0].mxu0
  %v1115 = vpop.f32.mrb[0].mxu0
  %1116 = vdwg.mxu0
  %v1117 = vmul.f32 %v1112, 0.35355338
  %v1118 = vadd.f32 %v1117, %v994
  %v1119 = vsel %vm997, %v1118, -inf
  %1120 = vmax.xlane.f32.xlu0 %v1119
  %v1121 = vpop.xlane.xlu0 %1120
  %v1122 = vsub.f32 %v1118, %v1121
  %v1123 = vmul.f32 %v1122, 1.442695
  %v1124 = vpow.pop %v1123
  %v1125 = vsel %vm997, %v1124, 0.0
  %1126 = vadd.xlane.f32.xlu0 %v1125
  %v1127 = vpop.xlane.xlu0 %1126
  %v1128 = vrcp.pop %v1127
  %v1129 = vmul.f32 %v1124, %v1128
  %v1130 = vpack.c.bf16 %v1129, %v1129
  %v1131 = vpack.c.bf16 %v894, %v894
  %v1133 = vsel %vm997, %v1130, 0
  %v1136 = vsel %vm1014, %v1131, 0
  %1138 = vmatprep.subr.bf16.mxu0 0
  %1139 = vmatpush1.bf16.msra.mxu0 %v1136
  %1140 = vmatprep.subr.bf16.mxu0 0
  %1141 = vmatpush1.bf16.msra.mxu0 0
  %1142 = vmatprep.subr.bf16.mxu0 0
  %1143 = vmatpush1.bf16.msra.mxu0 0
  %1144 = vmatprep.subr.bf16.mxu0 0
  %1145 = vmatpush1.bf16.msra.mxu0 0
  %1146 = vmatprep.subr.bf16.mxu0 0
  %1147 = vmatpush1.bf16.msra.mxu0 0
  %1148 = vmatprep.subr.bf16.mxu0 0
  %1149 = vmatpush1.bf16.msra.mxu0 0
  %1150 = vmatprep.subr.bf16.mxu0 0
  %1151 = vmatpush1.bf16.msra.mxu0 0
  %1152 = vmatprep.subr.bf16.mxu0 0
  %1153 = vmatpush1.bf16.msra.mxu0 0
  %1154 = vmatprep.subr.bf16.mxu0 0
  %1155 = vmatpush1.bf16.msra.mxu0 0
  %1156 = vmatprep.subr.bf16.mxu0 0
  %1157 = vmatpush1.bf16.msra.mxu0 0
  %1158 = vmatprep.subr.bf16.mxu0 0
  %1159 = vmatpush1.bf16.msra.mxu0 0
  %1160 = vmatprep.subr.bf16.mxu0 0
  %1161 = vmatpush1.bf16.msra.mxu0 0
  %1162 = vmatprep.subr.bf16.mxu0 0
  %1163 = vmatpush1.bf16.msra.mxu0 0
  %1164 = vmatprep.subr.bf16.mxu0 0
  %1165 = vmatpush1.bf16.msra.mxu0 0
  %1166 = vmatprep.subr.bf16.mxu0 0
  %1167 = vmatpush1.bf16.msra.mxu0 0
  %1168 = vmatprep.subr.bf16.mxu0 0
  %1169 = vmatpush1.bf16.msra.mxu0 0
  %1170 = vmatprep.mubr.bf16.mxu0 0
  %1171 = vmatmul.mubr.bf16.gmra.mrb[0].mxu0 %v1133
  %v1172 = vpop.f32.mrb[0].mxu0
  %v1173 = vadd.f32 0.0, %v1172
  %v1174 = vpop.f32.mrb[0].mxu0
  %v1175 = vpop.f32.mrb[0].mxu0
  %v1176 = vpop.f32.mrb[0].mxu0
  %1177 = vdwg.mxu0
  %v1178 = vpack.c.bf16 %v1173, %v1173
  %s1179 = scalar_lea.vmem %s6, 64
  %v1180 = vld [vmem:[%s1179] sm:$0xf]
  %v1181 = vld [vmem:[%s1179 + $0x4] sm:$0xf]
  %v1182 = vld [vmem:[%s1179 + $0x8] sm:$0xf]
  %v1183 = vld [vmem:[%s1179 + $0xc] sm:$0xf]
  %v1184 = vld [vmem:[%s1179 + $0x10] sm:$0xf]
  %v1185 = vld [vmem:[%s1179 + $0x14] sm:$0xf]
  %v1186 = vld [vmem:[%s1179 + $0x18] sm:$0xf]
  %v1187 = vld [vmem:[%s1179 + $0x1c] sm:$0xf]
  %v1188 = vld [vmem:[%s1179 + $0x20] sm:$0xf]
  %v1189 = vld [vmem:[%s1179 + $0x24] sm:$0xf]
  %v1190 = vld [vmem:[%s1179 + $0x28] sm:$0xf]
  %v1191 = vld [vmem:[%s1179 + $0x2c] sm:$0xf]
  %v1192 = vld [vmem:[%s1179 + $0x30] sm:$0xf]
  %v1193 = vld [vmem:[%s1179 + $0x34] sm:$0xf]
  %v1194 = vld [vmem:[%s1179 + $0x38] sm:$0xf]
  %v1195 = vld [vmem:[%s1179 + $0x3c] sm:$0xf]
  %v1212 = vunpack.c.l.b16 %v1180
  %v1213 = vunpack.c.l.b16 %v1181
  %v1214 = vunpack.c.l.b16 %v1182
  %v1215 = vunpack.c.l.b16 %v1183
  %v1216 = vunpack.c.l.b16 %v1184
  %v1217 = vunpack.c.l.b16 %v1185
  %v1218 = vunpack.c.l.b16 %v1186
  %v1219 = vunpack.c.l.b16 %v1187
  %v1220 = vunpack.c.l.b16 %v1188
  %v1221 = vunpack.c.l.b16 %v1189
  %v1222 = vunpack.c.l.b16 %v1190
  %v1223 = vunpack.c.l.b16 %v1191
  %v1224 = vunpack.c.l.b16 %v1192
  %v1225 = vunpack.c.l.b16 %v1193
  %v1226 = vunpack.c.l.b16 %v1194
  %v1227 = vunpack.c.l.b16 %v1195
  %v1228 = vpack.c.b16 %v1213, %v1212
  %v1229 = vpack.c.b16 %v1215, %v1214
  %v1230 = vpack.c.b16 %v1217, %v1216
  %v1231 = vpack.c.b16 %v1219, %v1218
  %v1232 = vpack.c.b16 %v1221, %v1220
  %v1233 = vpack.c.b16 %v1223, %v1222
  %v1234 = vpack.c.b16 %v1225, %v1224
  %v1235 = vpack.c.b16 %v1227, %v1226
  %1244 = vmatprep.subr.bf16.mxu0 0
  %1245 = vmatpush1.bf16.msra.mxu0 %v1228
  %1246 = vmatprep.subr.bf16.mxu0 0
  %1247 = vmatpush1.bf16.msra.mxu0 %v1229
  %1248 = vmatprep.subr.bf16.mxu0 0
  %1249 = vmatpush1.bf16.msra.mxu0 %v1230
  %1250 = vmatprep.subr.bf16.mxu0 0
  %1251 = vmatpush1.bf16.msra.mxu0 %v1231
  %1252 = vmatprep.subr.bf16.mxu0 0
  %1253 = vmatpush1.bf16.msra.mxu0 %v1232
  %1254 = vmatprep.subr.bf16.mxu0 0
  %1255 = vmatpush1.bf16.msra.mxu0 %v1233
  %1256 = vmatprep.subr.bf16.mxu0 0
  %1257 = vmatpush1.bf16.msra.mxu0 %v1234
  %1258 = vmatprep.subr.bf16.mxu0 0
  %1259 = vmatpush1.bf16.msra.mxu0 %v1235
  %1260 = vmatprep.subr.bf16.mxu0 0
  %1261 = vmatpush1.bf16.msra.mxu0 0
  %1262 = vmatprep.subr.bf16.mxu0 0
  %1263 = vmatpush1.bf16.msra.mxu0 0
  %1264 = vmatprep.subr.bf16.mxu0 0
  %1265 = vmatpush1.bf16.msra.mxu0 0
  %1266 = vmatprep.subr.bf16.mxu0 0
  %1267 = vmatpush1.bf16.msra.mxu0 0
  %1268 = vmatprep.subr.bf16.mxu0 0
  %1269 = vmatpush1.bf16.msra.mxu0 0
  %1270 = vmatprep.subr.bf16.mxu0 0
  %1271 = vmatpush1.bf16.msra.mxu0 0
  %1272 = vmatprep.subr.bf16.mxu0 0
  %1273 = vmatpush1.bf16.msra.mxu0 0
  %1274 = vmatprep.subr.bf16.mxu0 0
  %1275 = vmatpush1.bf16.msra.mxu0 0
  %1276 = vmatprep.mubr.bf16.mxu0 0
  %1277 = vmatmul.mubr.bf16.gmra.mrb[0].mxu0 %v1178
  %v1278 = vpop.f32.mrb[0].mxu0
  %v1279 = vadd.f32 0.0, %v1278
  %v1280 = vpop.f32.mrb[0].mxu0
  %v1281 = vpop.f32.mrb[0].mxu0
  %v1282 = vpop.f32.mrb[0].mxu0
  %1283 = vdwg.mxu0
  %v1300 = vunpack.c.l.b16 %v1059
  %v1301 = vunpack.c.l.b16 %v1060
  %v1302 = vunpack.c.l.b16 %v1061
  %v1303 = vunpack.c.l.b16 %v1062
  %v1304 = vunpack.c.l.b16 %v1063
  %v1305 = vunpack.c.l.b16 %v1064
  %v1306 = vunpack.c.l.b16 %v1065
  %v1307 = vunpack.c.l.b16 %v1066
  %v1308 = vunpack.c.l.b16 %v1067
  %v1309 = vunpack.c.l.b16 %v1068
  %v1310 = vunpack.c.l.b16 %v1069
  %v1311 = vunpack.c.l.b16 %v1070
  %v1312 = vunpack.c.l.b16 %v1071
  %v1313 = vunpack.c.l.b16 %v1072
  %v1314 = vunpack.c.l.b16 %v1073
  %v1315 = vunpack.c.l.b16 %v1074
  %v1316 = vpack.c.b16 %v1301, %v1300
  %v1317 = vpack.c.b16 %v1303, %v1302
  %v1318 = vpack.c.b16 %v1305, %v1304
  %v1319 = vpack.c.b16 %v1307, %v1306
  %v1320 = vpack.c.b16 %v1309, %v1308
  %v1321 = vpack.c.b16 %v1311, %v1310
  %v1322 = vpack.c.b16 %v1313, %v1312
  %v1323 = vpack.c.b16 %v1315, %v1314
  %1332 = vmatprep.subr.bf16.mxu0 0
  %1333 = vmatpush1.bf16.msra.mxu0 %v1316
  %1334 = vmatprep.subr.bf16.mxu0 0
  %1335 = vmatpush1.bf16.msra.mxu0 %v1317
  %1336 = vmatprep.subr.bf16.mxu0 0
  %1337 = vmatpush1.bf16.msra.mxu0 %v1318
  %1338 = vmatprep.subr.bf16.mxu0 0
  %1339 = vmatpush1.bf16.msra.mxu0 %v1319
  %1340 = vmatprep.subr.bf16.mxu0 0
  %1341 = vmatpush1.bf16.msra.mxu0 %v1320
  %1342 = vmatprep.subr.bf16.mxu0 0
  %1343 = vmatpush1.bf16.msra.mxu0 %v1321
  %1344 = vmatprep.subr.bf16.mxu0 0
  %1345 = vmatpush1.bf16.msra.mxu0 %v1322
  %1346 = vmatprep.subr.bf16.mxu0 0
  %1347 = vmatpush1.bf16.msra.mxu0 %v1323
  %1348 = vmatprep.subr.bf16.mxu0 0
  %1349 = vmatpush1.bf16.msra.mxu0 0
  %1350 = vmatprep.subr.bf16.mxu0 0
  %1351 = vmatpush1.bf16.msra.mxu0 0
  %1352 = vmatprep.subr.bf16.mxu0 0
  %1353 = vmatpush1.bf16.msra.mxu0 0
  %1354 = vmatprep.subr.bf16.mxu0 0
  %1355 = vmatpush1.bf16.msra.mxu0 0
  %1356 = vmatprep.subr.bf16.mxu0 0
  %1357 = vmatpush1.bf16.msra.mxu0 0
  %1358 = vmatprep.subr.bf16.mxu0 0
  %1359 = vmatpush1.bf16.msra.mxu0 0
  %1360 = vmatprep.subr.bf16.mxu0 0
  %1361 = vmatpush1.bf16.msra.mxu0 0
  %1362 = vmatprep.subr.bf16.mxu0 0
  %1363 = vmatpush1.bf16.msra.mxu0 0
  %1364 = vmatprep.mubr.bf16.mxu0 0
  %1365 = vmatmul.mubr.bf16.gmra.mrb[0].mxu0 %v1058
  %v1366 = vpop.f32.mrb[0].mxu0
  %v1367 = vadd.f32 %v1279, %v1366
  %v1368 = vpop.f32.mrb[0].mxu0
  %v1369 = vpop.f32.mrb[0].mxu0
  %v1370 = vpop.f32.mrb[0].mxu0
  %1371 = vdwg.mxu0
  %v1372 = vpack.c.bf16 %v334, %v334
  %v1373 = vpack.c.bf16 %v849, %v849
  %1374 = vmatprep.subr.bf16.mxu0 0
  %1375 = vmatpush1.bf16.xpose.msra.mxu0 %v1373
  %1376 = vmatprep.subr.bf16.mxu0 0
  %1377 = vmatpush1.bf16.xpose.msra.mxu0 0
  %1378 = vmatprep.subr.bf16.mxu0 0
  %1379 = vmatpush1.bf16.xpose.msra.mxu0 0
  %1380 = vmatprep.subr.bf16.mxu0 0
  %1381 = vmatpush1.bf16.xpose.msra.mxu0 0
  %1382 = vmatprep.subr.bf16.mxu0 0
  %1383 = vmatpush1.bf16.xpose.msra.mxu0 0
  %1384 = vmatprep.subr.bf16.mxu0 0
  %1385 = vmatpush1.bf16.xpose.msra.mxu0 0
  %1386 = vmatprep.subr.bf16.mxu0 0
  %1387 = vmatpush1.bf16.xpose.msra.mxu0 0
  %1388 = vmatprep.subr.bf16.mxu0 0
  %1389 = vmatpush1.bf16.xpose.msra.mxu0 0
  %1390 = vmatprep.subr.bf16.mxu0 0
  %1391 = vmatpush1.bf16.xpose.msra.mxu0 0
  %1392 = vmatprep.subr.bf16.mxu0 0
  %1393 = vmatpush1.bf16.xpose.msra.mxu0 0
  %1394 = vmatprep.subr.bf16.mxu0 0
  %1395 = vmatpush1.bf16.xpose.msra.mxu0 0
  %1396 = vmatprep.subr.bf16.mxu0 0
  %1397 = vmatpush1.bf16.xpose.msra.mxu0 0
  %1398 = vmatprep.subr.bf16.mxu0 0
  %1399 = vmatpush1.bf16.xpose.msra.mxu0 0
  %1400 = vmatprep.subr.bf16.mxu0 0
  %1401 = vmatpush1.bf16.xpose.msra.mxu0 0
  %1402 = vmatprep.subr.bf16.mxu0 0
  %1403 = vmatpush1.bf16.xpose.msra.mxu0 0
  %1404 = vmatprep.subr.bf16.mxu0 0
  %1405 = vmatpush1.bf16.xpose.msra.mxu0 0
  %1406 = vmatprep.mubr.bf16.mxu0 0
  %1407 = vmatmul.mubr.bf16.gmra.mrb[0].mxu0 %v1372
  %v1408 = vpop.f32.mrb[0].mxu0
  %v1409 = vadd.f32 0.0, %v1408
  %v1410 = vpop.f32.mrb[0].mxu0
  %v1411 = vpop.f32.mrb[0].mxu0
  %v1412 = vpop.f32.mrb[0].mxu0
  %1413 = vdwg.mxu0
  %v1414 = vmul.f32 %v1409, 0.35355338
  %v1415 = vadd.f32 %v1414, %v994
  %v1416 = vsel %vm997, %v1415, -inf
  %1417 = vmax.xlane.f32.xlu0 %v1416
  %v1418 = vpop.xlane.xlu0 %1417
  %v1419 = vsub.f32 %v1415, %v1418
  %v1420 = vmul.f32 %v1419, 1.442695
  %v1421 = vpow.pop %v1420
  %v1422 = vsel %vm997, %v1421, 0.0
  %1423 = vadd.xlane.f32.xlu0 %v1422
  %v1424 = vpop.xlane.xlu0 %1423
  %v1425 = vrcp.pop %v1424
  %v1426 = vmul.f32 %v1421, %v1425
  %v1427 = vpack.c.bf16 %v1426, %v1426
  %v1428 = vpack.c.bf16 %v935, %v935
  %v1430 = vsel %vm997, %v1427, 0
  %v1433 = vsel %vm1014, %v1428, 0
  %1435 = vmatprep.subr.bf16.mxu0 0
  %1436 = vmatpush1.bf16.msra.mxu0 %v1433
  %1437 = vmatprep.subr.bf16.mxu0 0
  %1438 = vmatpush1.bf16.msra.mxu0 0
  %1439 = vmatprep.subr.bf16.mxu0 0
  %1440 = vmatpush1.bf16.msra.mxu0 0
  %1441 = vmatprep.subr.bf16.mxu0 0
  %1442 = vmatpush1.bf16.msra.mxu0 0
  %1443 = vmatprep.subr.bf16.mxu0 0
  %1444 = vmatpush1.bf16.msra.mxu0 0
  %1445 = vmatprep.subr.bf16.mxu0 0
  %1446 = vmatpush1.bf16.msra.mxu0 0
  %1447 = vmatprep.subr.bf16.mxu0 0
  %1448 = vmatpush1.bf16.msra.mxu0 0
  %1449 = vmatprep.subr.bf16.mxu0 0
  %1450 = vmatpush1.bf16.msra.mxu0 0
  %1451 = vmatprep.subr.bf16.mxu0 0
  %1452 = vmatpush1.bf16.msra.mxu0 0
  %1453 = vmatprep.subr.bf16.mxu0 0
  %1454 = vmatpush1.bf16.msra.mxu0 0
  %1455 = vmatprep.subr.bf16.mxu0 0
  %1456 = vmatpush1.bf16.msra.mxu0 0
  %1457 = vmatprep.subr.bf16.mxu0 0
  %1458 = vmatpush1.bf16.msra.mxu0 0
  %1459 = vmatprep.subr.bf16.mxu0 0
  %1460 = vmatpush1.bf16.msra.mxu0 0
  %1461 = vmatprep.subr.bf16.mxu0 0
  %1462 = vmatpush1.bf16.msra.mxu0 0
  %1463 = vmatprep.subr.bf16.mxu0 0
  %1464 = vmatpush1.bf16.msra.mxu0 0
  %1465 = vmatprep.subr.bf16.mxu0 0
  %1466 = vmatpush1.bf16.msra.mxu0 0
  %1467 = vmatprep.mubr.bf16.mxu0 0
  %1468 = vmatmul.mubr.bf16.gmra.mrb[0].mxu0 %v1430
  %v1469 = vpop.f32.mrb[0].mxu0
  %v1470 = vadd.f32 0.0, %v1469
  %v1471 = vpop.f32.mrb[0].mxu0
  %v1472 = vpop.f32.mrb[0].mxu0
  %v1473 = vpop.f32.mrb[0].mxu0
  %1474 = vdwg.mxu0
  %v1475 = vpack.c.bf16 %v1470, %v1470
  %s1476 = scalar_lea.vmem %s6, 128
  %v1477 = vld [vmem:[%s1476] sm:$0xf]
  %v1478 = vld [vmem:[%s1476 + $0x4] sm:$0xf]
  %v1479 = vld [vmem:[%s1476 + $0x8] sm:$0xf]
  %v1480 = vld [vmem:[%s1476 + $0xc] sm:$0xf]
  %v1481 = vld [vmem:[%s1476 + $0x10] sm:$0xf]
  %v1482 = vld [vmem:[%s1476 + $0x14] sm:$0xf]
  %v1483 = vld [vmem:[%s1476 + $0x18] sm:$0xf]
  %v1484 = vld [vmem:[%s1476 + $0x1c] sm:$0xf]
  %v1485 = vld [vmem:[%s1476 + $0x20] sm:$0xf]
  %v1486 = vld [vmem:[%s1476 + $0x24] sm:$0xf]
  %v1487 = vld [vmem:[%s1476 + $0x28] sm:$0xf]
  %v1488 = vld [vmem:[%s1476 + $0x2c] sm:$0xf]
  %v1489 = vld [vmem:[%s1476 + $0x30] sm:$0xf]
  %v1490 = vld [vmem:[%s1476 + $0x34] sm:$0xf]
  %v1491 = vld [vmem:[%s1476 + $0x38] sm:$0xf]
  %v1492 = vld [vmem:[%s1476 + $0x3c] sm:$0xf]
  %v1509 = vunpack.c.l.b16 %v1477
  %v1510 = vunpack.c.l.b16 %v1478
  %v1511 = vunpack.c.l.b16 %v1479
  %v1512 = vunpack.c.l.b16 %v1480
  %v1513 = vunpack.c.l.b16 %v1481
  %v1514 = vunpack.c.l.b16 %v1482
  %v1515 = vunpack.c.l.b16 %v1483
  %v1516 = vunpack.c.l.b16 %v1484
  %v1517 = vunpack.c.l.b16 %v1485
  %v1518 = vunpack.c.l.b16 %v1486
  %v1519 = vunpack.c.l.b16 %v1487
  %v1520 = vunpack.c.l.b16 %v1488
  %v1521 = vunpack.c.l.b16 %v1489
  %v1522 = vunpack.c.l.b16 %v1490
  %v1523 = vunpack.c.l.b16 %v1491
  %v1524 = vunpack.c.l.b16 %v1492
  %v1525 = vpack.c.b16 %v1510, %v1509
  %v1526 = vpack.c.b16 %v1512, %v1511
  %v1527 = vpack.c.b16 %v1514, %v1513
  %v1528 = vpack.c.b16 %v1516, %v1515
  %v1529 = vpack.c.b16 %v1518, %v1517
  %v1530 = vpack.c.b16 %v1520, %v1519
  %v1531 = vpack.c.b16 %v1522, %v1521
  %v1532 = vpack.c.b16 %v1524, %v1523
  %1541 = vmatprep.subr.bf16.mxu0 0
  %1542 = vmatpush1.bf16.msra.mxu0 %v1525
  %1543 = vmatprep.subr.bf16.mxu0 0
  %1544 = vmatpush1.bf16.msra.mxu0 %v1526
  %1545 = vmatprep.subr.bf16.mxu0 0
  %1546 = vmatpush1.bf16.msra.mxu0 %v1527
  %1547 = vmatprep.subr.bf16.mxu0 0
  %1548 = vmatpush1.bf16.msra.mxu0 %v1528
  %1549 = vmatprep.subr.bf16.mxu0 0
  %1550 = vmatpush1.bf16.msra.mxu0 %v1529
  %1551 = vmatprep.subr.bf16.mxu0 0
  %1552 = vmatpush1.bf16.msra.mxu0 %v1530
  %1553 = vmatprep.subr.bf16.mxu0 0
  %1554 = vmatpush1.bf16.msra.mxu0 %v1531
  %1555 = vmatprep.subr.bf16.mxu0 0
  %1556 = vmatpush1.bf16.msra.mxu0 %v1532
  %1557 = vmatprep.subr.bf16.mxu0 0
  %1558 = vmatpush1.bf16.msra.mxu0 0
  %1559 = vmatprep.subr.bf16.mxu0 0
  %1560 = vmatpush1.bf16.msra.mxu0 0
  %1561 = vmatprep.subr.bf16.mxu0 0
  %1562 = vmatpush1.bf16.msra.mxu0 0
  %1563 = vmatprep.subr.bf16.mxu0 0
  %1564 = vmatpush1.bf16.msra.mxu0 0
  %1565 = vmatprep.subr.bf16.mxu0 0
  %1566 = vmatpush1.bf16.msra.mxu0 0
  %1567 = vmatprep.subr.bf16.mxu0 0
  %1568 = vmatpush1.bf16.msra.mxu0 0
  %1569 = vmatprep.subr.bf16.mxu0 0
  %1570 = vmatpush1.bf16.msra.mxu0 0
  %1571 = vmatprep.subr.bf16.mxu0 0
  %1572 = vmatpush1.bf16.msra.mxu0 0
  %1573 = vmatprep.mubr.bf16.mxu0 0
  %1574 = vmatmul.mubr.bf16.gmra.mrb[0].mxu0 %v1475
  %v1575 = vpop.f32.mrb[0].mxu0
  %v1576 = vadd.f32 0.0, %v1575
  %v1577 = vpop.f32.mrb[0].mxu0
  %v1578 = vpop.f32.mrb[0].mxu0
  %v1579 = vpop.f32.mrb[0].mxu0
  %1580 = vdwg.mxu0
  %v1581 = vadd.f32 %v1367, %v1576
  %v1582 = vpack.c.bf16 %v336, %v336
  %v1583 = vpack.c.bf16 %v851, %v851
  %1584 = vmatprep.subr.bf16.mxu0 0
  %1585 = vmatpush1.bf16.xpose.msra.mxu0 %v1583
  %1586 = vmatprep.subr.bf16.mxu0 0
  %1587 = vmatpush1.bf16.xpose.msra.mxu0 0
  %1588 = vmatprep.subr.bf16.mxu0 0
  %1589 = vmatpush1.bf16.xpose.msra.mxu0 0
  %1590 = vmatprep.subr.bf16.mxu0 0
  %1591 = vmatpush1.bf16.xpose.msra.mxu0 0
  %1592 = vmatprep.subr.bf16.mxu0 0
  %1593 = vmatpush1.bf16.xpose.msra.mxu0 0
  %1594 = vmatprep.subr.bf16.mxu0 0
  %1595 = vmatpush1.bf16.xpose.msra.mxu0 0
  %1596 = vmatprep.subr.bf16.mxu0 0
  %1597 = vmatpush1.bf16.xpose.msra.mxu0 0
  %1598 = vmatprep.subr.bf16.mxu0 0
  %1599 = vmatpush1.bf16.xpose.msra.mxu0 0
  %1600 = vmatprep.subr.bf16.mxu0 0
  %1601 = vmatpush1.bf16.xpose.msra.mxu0 0
  %1602 = vmatprep.subr.bf16.mxu0 0
  %1603 = vmatpush1.bf16.xpose.msra.mxu0 0
  %1604 = vmatprep.subr.bf16.mxu0 0
  %1605 = vmatpush1.bf16.xpose.msra.mxu0 0
  %1606 = vmatprep.subr.bf16.mxu0 0
  %1607 = vmatpush1.bf16.xpose.msra.mxu0 0
  %1608 = vmatprep.subr.bf16.mxu0 0
  %1609 = vmatpush1.bf16.xpose.msra.mxu0 0
  %1610 = vmatprep.subr.bf16.mxu0 0
  %1611 = vmatpush1.bf16.xpose.msra.mxu0 0
  %1612 = vmatprep.subr.bf16.mxu0 0
  %1613 = vmatpush1.bf16.xpose.msra.mxu0 0
  %1614 = vmatprep.subr.bf16.mxu0 0
  %1615 = vmatpush1.bf16.xpose.msra.mxu0 0
  %1616 = vmatprep.mubr.bf16.mxu0 0
  %1617 = vmatmul.mubr.bf16.gmra.mrb[0].mxu0 %v1582
  %v1618 = vpop.f32.mrb[0].mxu0
  %v1619 = vadd.f32 0.0, %v1618
  %v1620 = vpop.f32.mrb[0].mxu0
  %v1621 = vpop.f32.mrb[0].mxu0
  %v1622 = vpop.f32.mrb[0].mxu0
  %1623 = vdwg.mxu0
  %v1624 = vmul.f32 %v1619, 0.35355338
  %v1625 = vadd.f32 %v1624, %v994
  %v1626 = vsel %vm997, %v1625, -inf
  %1627 = vmax.xlane.f32.xlu0 %v1626
  %v1628 = vpop.xlane.xlu0 %1627
  %v1629 = vsub.f32 %v1625, %v1628
  %v1630 = vmul.f32 %v1629, 1.442695
  %v1631 = vpow.pop %v1630
  %v1632 = vsel %vm997, %v1631, 0.0
  %1633 = vadd.xlane.f32.xlu0 %v1632
  %v1634 = vpop.xlane.xlu0 %1633
  %v1635 = vrcp.pop %v1634
  %v1636 = vmul.f32 %v1631, %v1635
  %v1637 = vpack.c.bf16 %v1636, %v1636
  %v1638 = vpack.c.bf16 %v937, %v937
  %v1640 = vsel %vm997, %v1637, 0
  %v1643 = vsel %vm1014, %v1638, 0
  %1645 = vmatprep.subr.bf16.mxu0 0
  %1646 = vmatpush1.bf16.msra.mxu0 %v1643
  %1647 = vmatprep.subr.bf16.mxu0 0
  %1648 = vmatpush1.bf16.msra.mxu0 0
  %1649 = vmatprep.subr.bf16.mxu0 0
  %1650 = vmatpush1.bf16.msra.mxu0 0
  %1651 = vmatprep.subr.bf16.mxu0 0
  %1652 = vmatpush1.bf16.msra.mxu0 0
  %1653 = vmatprep.subr.bf16.mxu0 0
  %1654 = vmatpush1.bf16.msra.mxu0 0
  %1655 = vmatprep.subr.bf16.mxu0 0
  %1656 = vmatpush1.bf16.msra.mxu0 0
  %1657 = vmatprep.subr.bf16.mxu0 0
  %1658 = vmatpush1.bf16.msra.mxu0 0
  %1659 = vmatprep.subr.bf16.mxu0 0
  %1660 = vmatpush1.bf16.msra.mxu0 0
  %1661 = vmatprep.subr.bf16.mxu0 0
  %1662 = vmatpush1.bf16.msra.mxu0 0
  %1663 = vmatprep.subr.bf16.mxu0 0
  %1664 = vmatpush1.bf16.msra.mxu0 0
  %1665 = vmatprep.subr.bf16.mxu0 0
  %1666 = vmatpush1.bf16.msra.mxu0 0
  %1667 = vmatprep.subr.bf16.mxu0 0
  %1668 = vmatpush1.bf16.msra.mxu0 0
  %1669 = vmatprep.subr.bf16.mxu0 0
  %1670 = vmatpush1.bf16.msra.mxu0 0
  %1671 = vmatprep.subr.bf16.mxu0 0
  %1672 = vmatpush1.bf16.msra.mxu0 0
  %1673 = vmatprep.subr.bf16.mxu0 0
  %1674 = vmatpush1.bf16.msra.mxu0 0
  %1675 = vmatprep.subr.bf16.mxu0 0
  %1676 = vmatpush1.bf16.msra.mxu0 0
  %1677 = vmatprep.mubr.bf16.mxu0 0
  %1678 = vmatmul.mubr.bf16.gmra.mrb[0].mxu0 %v1640
  %v1679 = vpop.f32.mrb[0].mxu0
  %v1680 = vadd.f32 0.0, %v1679
  %v1681 = vpop.f32.mrb[0].mxu0
  %v1682 = vpop.f32.mrb[0].mxu0
  %v1683 = vpop.f32.mrb[0].mxu0
  %1684 = vdwg.mxu0
  %v1685 = vpack.c.bf16 %v1680, %v1680
  %s1686 = scalar_lea.vmem %s6, 192
  %v1687 = vld [vmem:[%s1686] sm:$0xf]
  %v1688 = vld [vmem:[%s1686 + $0x4] sm:$0xf]
  %v1689 = vld [vmem:[%s1686 + $0x8] sm:$0xf]
  %v1690 = vld [vmem:[%s1686 + $0xc] sm:$0xf]
  %v1691 = vld [vmem:[%s1686 + $0x10] sm:$0xf]
  %v1692 = vld [vmem:[%s1686 + $0x14] sm:$0xf]
  %v1693 = vld [vmem:[%s1686 + $0x18] sm:$0xf]
  %v1694 = vld [vmem:[%s1686 + $0x1c] sm:$0xf]
  %v1695 = vld [vmem:[%s1686 + $0x20] sm:$0xf]
  %v1696 = vld [vmem:[%s1686 + $0x24] sm:$0xf]
  %v1697 = vld [vmem:[%s1686 + $0x28] sm:$0xf]
  %v1698 = vld [vmem:[%s1686 + $0x2c] sm:$0xf]
  %v1699 = vld [vmem:[%s1686 + $0x30] sm:$0xf]
  %v1700 = vld [vmem:[%s1686 + $0x34] sm:$0xf]
  %v1701 = vld [vmem:[%s1686 + $0x38] sm:$0xf]
  %v1702 = vld [vmem:[%s1686 + $0x3c] sm:$0xf]
  %v1719 = vunpack.c.l.b16 %v1687
  %v1720 = vunpack.c.l.b16 %v1688
  %v1721 = vunpack.c.l.b16 %v1689
  %v1722 = vunpack.c.l.b16 %v1690
  %v1723 = vunpack.c.l.b16 %v1691
  %v1724 = vunpack.c.l.b16 %v1692
  %v1725 = vunpack.c.l.b16 %v1693
  %v1726 = vunpack.c.l.b16 %v1694
  %v1727 = vunpack.c.l.b16 %v1695
  %v1728 = vunpack.c.l.b16 %v1696
  %v1729 = vunpack.c.l.b16 %v1697
  %v1730 = vunpack.c.l.b16 %v1698
  %v1731 = vunpack.c.l.b16 %v1699
  %v1732 = vunpack.c.l.b16 %v1700
  %v1733 = vunpack.c.l.b16 %v1701
  %v1734 = vunpack.c.l.b16 %v1702
  %v1735 = vpack.c.b16 %v1720, %v1719
  %v1736 = vpack.c.b16 %v1722, %v1721
  %v1737 = vpack.c.b16 %v1724, %v1723
  %v1738 = vpack.c.b16 %v1726, %v1725
  %v1739 = vpack.c.b16 %v1728, %v1727
  %v1740 = vpack.c.b16 %v1730, %v1729
  %v1741 = vpack.c.b16 %v1732, %v1731
  %v1742 = vpack.c.b16 %v1734, %v1733
  %1751 = vmatprep.subr.bf16.mxu0 0
  %1752 = vmatpush1.bf16.msra.mxu0 %v1735
  %1753 = vmatprep.subr.bf16.mxu0 0
  %1754 = vmatpush1.bf16.msra.mxu0 %v1736
  %1755 = vmatprep.subr.bf16.mxu0 0
  %1756 = vmatpush1.bf16.msra.mxu0 %v1737
  %1757 = vmatprep.subr.bf16.mxu0 0
  %1758 = vmatpush1.bf16.msra.mxu0 %v1738
  %1759 = vmatprep.subr.bf16.mxu0 0
  %1760 = vmatpush1.bf16.msra.mxu0 %v1739
  %1761 = vmatprep.subr.bf16.mxu0 0
  %1762 = vmatpush1.bf16.msra.mxu0 %v1740
  %1763 = vmatprep.subr.bf16.mxu0 0
  %1764 = vmatpush1.bf16.msra.mxu0 %v1741
  %1765 = vmatprep.subr.bf16.mxu0 0
  %1766 = vmatpush1.bf16.msra.mxu0 %v1742
  %1767 = vmatprep.subr.bf16.mxu0 0
  %1768 = vmatpush1.bf16.msra.mxu0 0
  %1769 = vmatprep.subr.bf16.mxu0 0
  %1770 = vmatpush1.bf16.msra.mxu0 0
  %1771 = vmatprep.subr.bf16.mxu0 0
  %1772 = vmatpush1.bf16.msra.mxu0 0
  %1773 = vmatprep.subr.bf16.mxu0 0
  %1774 = vmatpush1.bf16.msra.mxu0 0
  %1775 = vmatprep.subr.bf16.mxu0 0
  %1776 = vmatpush1.bf16.msra.mxu0 0
  %1777 = vmatprep.subr.bf16.mxu0 0
  %1778 = vmatpush1.bf16.msra.mxu0 0
  %1779 = vmatprep.subr.bf16.mxu0 0
  %1780 = vmatpush1.bf16.msra.mxu0 0
  %1781 = vmatprep.subr.bf16.mxu0 0
  %1782 = vmatpush1.bf16.msra.mxu0 0
  %1783 = vmatprep.mubr.bf16.mxu0 0
  %1784 = vmatmul.mubr.bf16.gmra.mrb[0].mxu0 %v1685
  %v1785 = vpop.f32.mrb[0].mxu0
  %v1786 = vadd.f32 0.0, %v1785
  %v1787 = vpop.f32.mrb[0].mxu0
  %v1788 = vpop.f32.mrb[0].mxu0
  %v1789 = vpop.f32.mrb[0].mxu0
  %1790 = vdwg.mxu0
  %v1791 = vadd.f32 %v1581, %v1786
  %v1792 = vadd.f32 %v39, %v1791
  %v1794 = vlaneseq
  %v1795 = vshrl.u32 %v1794, 7
  %v1796 = vsub.s32 0, %v1795
  %v1797 = vrot.slane %v943, %v1796
  %v1799 = vadd.f32 %v1792, %v1797
  %v1800 = vlaneseq
  %v1801 = vand.u32 %v1800, 127
  %vm1802 = vcmp.lt.s32.totalorder %v1801, 32
  %v1803 = vsel %vm1802, 1, 0
  %v1804 = vcvt.s32.f32 %v1803
  %1805 = vadd.xlane.f32.xlu0 %v1799
  %v1806 = vpop.xlane.xlu0 %1805
  %v1807 = vmul.f32 %v1806, 0.03125
  %v1808 = vsub.f32 %v1799, %v1807
  %v1809 = vmul.f32 %v1808, %v1804
  %v1810 = vmul.f32 %v1809, %v1809
  %1811 = vadd.xlane.f32.xlu0 %v1810
  %v1812 = vpop.xlane.xlu0 %1811
  %v1813 = vmul.f32 %v1812, 0.03125
  %v1814 = vadd.f32 %v1813, 1e-05
  %v1815 = vrsqrt.pop %v1814
  %v1816 = vmul.f32 %v1809, %v1815
  %v1818 = vlaneseq
  %v1819 = vshrl.u32 %v1818, 7
  %v1820 = vsub.s32 0, %v1819
  %v1821 = vrot.slane %v944, %v1820
  %v1823 = vmul.f32 %v1816, %v1821
  %v1825 = vlaneseq
  %v1826 = vshrl.u32 %v1825, 7
  %v1827 = vsub.s32 0, %v1826
  %v1828 = vrot.slane %v945, %v1827
  %v1830 = vadd.f32 %v1823, %v1828
  %1831 = vst [vmem:[%s11] sm:$0xff] %v1830
  %s1832 = scalar_lea.vmem %s8, 1
  %v1833 = vld [vmem:[%s1832] sm:$0x1]
  %v1834 = vpack.c.bf16 %v295, %v295
  %v1835 = vpack.c.bf16 %v810, %v810
  %1836 = vmatprep.subr.bf16.mxu0 0
  %1837 = vmatpush1.bf16.xpose.msra.mxu0 %v1835
  %1838 = vmatprep.subr.bf16.mxu0 0
  %1839 = vmatpush1.bf16.xpose.msra.mxu0 0
  %1840 = vmatprep.subr.bf16.mxu0 0
  %1841 = vmatpush1.bf16.xpose.msra.mxu0 0
  %1842 = vmatprep.subr.bf16.mxu0 0
  %1843 = vmatpush1.bf16.xpose.msra.mxu0 0
  %1844 = vmatprep.subr.bf16.mxu0 0
  %1845 = vmatpush1.bf16.xpose.msra.mxu0 0
  %1846 = vmatprep.subr.bf16.mxu0 0
  %1847 = vmatpush1.bf16.xpose.msra.mxu0 0
  %1848 = vmatprep.subr.bf16.mxu0 0
  %1849 = vmatpush1.bf16.xpose.msra.mxu0 0
  %1850 = vmatprep.subr.bf16.mxu0 0
  %1851 = vmatpush1.bf16.xpose.msra.mxu0 0
  %1852 = vmatprep.subr.bf16.mxu0 0
  %1853 = vmatpush1.bf16.xpose.msra.mxu0 0
  %1854 = vmatprep.subr.bf16.mxu0 0
  %1855 = vmatpush1.bf16.xpose.msra.mxu0 0
  %1856 = vmatprep.subr.bf16.mxu0 0
  %1857 = vmatpush1.bf16.xpose.msra.mxu0 0
  %1858 = vmatprep.subr.bf16.mxu0 0
  %1859 = vmatpush1.bf16.xpose.msra.mxu0 0
  %1860 = vmatprep.subr.bf16.mxu0 0
  %1861 = vmatpush1.bf16.xpose.msra.mxu0 0
  %1862 = vmatprep.subr.bf16.mxu0 0
  %1863 = vmatpush1.bf16.xpose.msra.mxu0 0
  %1864 = vmatprep.subr.bf16.mxu0 0
  %1865 = vmatpush1.bf16.xpose.msra.mxu0 0
  %1866 = vmatprep.subr.bf16.mxu0 0
  %1867 = vmatpush1.bf16.xpose.msra.mxu0 0
  %1868 = vmatprep.mubr.bf16.mxu0 0
  %1869 = vmatmul.mubr.bf16.gmra.mrb[0].mxu0 %v1834
  %v1870 = vpop.f32.mrb[0].mxu0
  %v1871 = vadd.f32 0.0, %v1870
  %v1872 = vpop.f32.mrb[0].mxu0
  %v1873 = vpop.f32.mrb[0].mxu0
  %v1874 = vpop.f32.mrb[0].mxu0
  %1875 = vdwg.mxu0
  %v1876 = vmul.f32 %v1871, 0.35355338
  %v1878 = vlaneseq
  %v1879 = vshrl.u32 %v1878, 7
  %v1880 = vsub.s32 0, %v1879
  %v1881 = vrot.slane %v1833, %v1880
  %v1883 = vadd.f32 %v1876, %v1881
  %v1884 = vsel %vm997, %v1883, -inf
  %1885 = vmax.xlane.f32.xlu0 %v1884
  %v1886 = vpop.xlane.xlu0 %1885
  %v1887 = vsub.f32 %v1883, %v1886
  %v1888 = vmul.f32 %v1887, 1.442695
  %v1889 = vpow.pop %v1888
  %v1890 = vsel %vm997, %v1889, 0.0
  %1891 = vadd.xlane.f32.xlu0 %v1890
  %v1892 = vpop.xlane.xlu0 %1891
  %v1893 = vrcp.pop %v1892
  %v1894 = vmul.f32 %v1889, %v1893
  %v1895 = vpack.c.bf16 %v1894, %v1894
  %v1896 = vpack.c.bf16 %v896, %v896
  %v1898 = vsel %vm997, %v1895, 0
  %v1901 = vsel %vm1014, %v1896, 0
  %1903 = vmatprep.subr.bf16.mxu0 0
  %1904 = vmatpush1.bf16.msra.mxu0 %v1901
  %1905 = vmatprep.subr.bf16.mxu0 0
  %1906 = vmatpush1.bf16.msra.mxu0 0
  %1907 = vmatprep.subr.bf16.mxu0 0
  %1908 = vmatpush1.bf16.msra.mxu0 0
  %1909 = vmatprep.subr.bf16.mxu0 0
  %1910 = vmatpush1.bf16.msra.mxu0 0
  %1911 = vmatprep.subr.bf16.mxu0 0
  %1912 = vmatpush1.bf16.msra.mxu0 0
  %1913 = vmatprep.subr.bf16.mxu0 0
  %1914 = vmatpush1.bf16.msra.mxu0 0
  %1915 = vmatprep.subr.bf16.mxu0 0
  %1916 = vmatpush1.bf16.msra.mxu0 0
  %1917 = vmatprep.subr.bf16.mxu0 0
  %1918 = vmatpush1.bf16.msra.mxu0 0
  %1919 = vmatprep.subr.bf16.mxu0 0
  %1920 = vmatpush1.bf16.msra.mxu0 0
  %1921 = vmatprep.subr.bf16.mxu0 0
  %1922 = vmatpush1.bf16.msra.mxu0 0
  %1923 = vmatprep.subr.bf16.mxu0 0
  %1924 = vmatpush1.bf16.msra.mxu0 0
  %1925 = vmatprep.subr.bf16.mxu0 0
  %1926 = vmatpush1.bf16.msra.mxu0 0
  %1927 = vmatprep.subr.bf16.mxu0 0
  %1928 = vmatpush1.bf16.msra.mxu0 0
  %1929 = vmatprep.subr.bf16.mxu0 0
  %1930 = vmatpush1.bf16.msra.mxu0 0
  %1931 = vmatprep.subr.bf16.mxu0 0
  %1932 = vmatpush1.bf16.msra.mxu0 0
  %1933 = vmatprep.subr.bf16.mxu0 0
  %1934 = vmatpush1.bf16.msra.mxu0 0
  %1935 = vmatprep.mubr.bf16.mxu0 0
  %1936 = vmatmul.mubr.bf16.gmra.mrb[0].mxu0 %v1898
  %v1937 = vpop.f32.mrb[0].mxu0
  %v1938 = vadd.f32 0.0, %v1937
  %v1939 = vpop.f32.mrb[0].mxu0
  %v1940 = vpop.f32.mrb[0].mxu0
  %v1941 = vpop.f32.mrb[0].mxu0
  %1942 = vdwg.mxu0
  %v1943 = vpack.c.bf16 %v1938, %v1938
  %v1944 = vld [vmem:[%s6] sm:$0xf]
  %v1945 = vld [vmem:[%s6 + $0x4] sm:$0xf]
  %v1946 = vld [vmem:[%s6 + $0x8] sm:$0xf]
  %v1947 = vld [vmem:[%s6 + $0xc] sm:$0xf]
  %v1948 = vld [vmem:[%s6 + $0x10] sm:$0xf]
  %v1949 = vld [vmem:[%s6 + $0x14] sm:$0xf]
  %v1950 = vld [vmem:[%s6 + $0x18] sm:$0xf]
  %v1951 = vld [vmem:[%s6 + $0x1c] sm:$0xf]
  %v1952 = vld [vmem:[%s6 + $0x20] sm:$0xf]
  %v1953 = vld [vmem:[%s6 + $0x24] sm:$0xf]
  %v1954 = vld [vmem:[%s6 + $0x28] sm:$0xf]
  %v1955 = vld [vmem:[%s6 + $0x2c] sm:$0xf]
  %v1956 = vld [vmem:[%s6 + $0x30] sm:$0xf]
  %v1957 = vld [vmem:[%s6 + $0x34] sm:$0xf]
  %v1958 = vld [vmem:[%s6 + $0x38] sm:$0xf]
  %v1959 = vld [vmem:[%s6 + $0x3c] sm:$0xf]
  %v1960 = vpack.c.bf16 %v297, %v297
  %v1961 = vpack.c.bf16 %v812, %v812
  %1962 = vmatprep.subr.bf16.mxu0 0
  %1963 = vmatpush1.bf16.xpose.msra.mxu0 %v1961
  %1964 = vmatprep.subr.bf16.mxu0 0
  %1965 = vmatpush1.bf16.xpose.msra.mxu0 0
  %1966 = vmatprep.subr.bf16.mxu0 0
  %1967 = vmatpush1.bf16.xpose.msra.mxu0 0
  %1968 = vmatprep.subr.bf16.mxu0 0
  %1969 = vmatpush1.bf16.xpose.msra.mxu0 0
  %1970 = vmatprep.subr.bf16.mxu0 0
  %1971 = vmatpush1.bf16.xpose.msra.mxu0 0
  %1972 = vmatprep.subr.bf16.mxu0 0
  %1973 = vmatpush1.bf16.xpose.msra.mxu0 0
  %1974 = vmatprep.subr.bf16.mxu0 0
  %1975 = vmatpush1.bf16.xpose.msra.mxu0 0
  %1976 = vmatprep.subr.bf16.mxu0 0
  %1977 = vmatpush1.bf16.xpose.msra.mxu0 0
  %1978 = vmatprep.subr.bf16.mxu0 0
  %1979 = vmatpush1.bf16.xpose.msra.mxu0 0
  %1980 = vmatprep.subr.bf16.mxu0 0
  %1981 = vmatpush1.bf16.xpose.msra.mxu0 0
  %1982 = vmatprep.subr.bf16.mxu0 0
  %1983 = vmatpush1.bf16.xpose.msra.mxu0 0
  %1984 = vmatprep.subr.bf16.mxu0 0
  %1985 = vmatpush1.bf16.xpose.msra.mxu0 0
  %1986 = vmatprep.subr.bf16.mxu0 0
  %1987 = vmatpush1.bf16.xpose.msra.mxu0 0
  %1988 = vmatprep.subr.bf16.mxu0 0
  %1989 = vmatpush1.bf16.xpose.msra.mxu0 0
  %1990 = vmatprep.subr.bf16.mxu0 0
  %1991 = vmatpush1.bf16.xpose.msra.mxu0 0
  %1992 = vmatprep.subr.bf16.mxu0 0
  %1993 = vmatpush1.bf16.xpose.msra.mxu0 0
  %1994 = vmatprep.mubr.bf16.mxu0 0
  %1995 = vmatmul.mubr.bf16.gmra.mrb[0].mxu0 %v1960
  %v1996 = vpop.f32.mrb[0].mxu0
  %v1997 = vadd.f32 0.0, %v1996
  %v1998 = vpop.f32.mrb[0].mxu0
  %v1999 = vpop.f32.mrb[0].mxu0
  %v2000 = vpop.f32.mrb[0].mxu0
  %2001 = vdwg.mxu0
  %v2002 = vmul.f32 %v1997, 0.35355338
  %v2003 = vadd.f32 %v2002, %v1881
  %v2004 = vsel %vm997, %v2003, -inf
  %2005 = vmax.xlane.f32.xlu0 %v2004
  %v2006 = vpop.xlane.xlu0 %2005
  %v2007 = vsub.f32 %v2003, %v2006
  %v2008 = vmul.f32 %v2007, 1.442695
  %v2009 = vpow.pop %v2008
  %v2010 = vsel %vm997, %v2009, 0.0
  %2011 = vadd.xlane.f32.xlu0 %v2010
  %v2012 = vpop.xlane.xlu0 %2011
  %v2013 = vrcp.pop %v2012
  %v2014 = vmul.f32 %v2009, %v2013
  %v2015 = vpack.c.bf16 %v2014, %v2014
  %v2016 = vpack.c.bf16 %v898, %v898
  %v2018 = vsel %vm997, %v2015, 0
  %v2021 = vsel %vm1014, %v2016, 0
  %2023 = vmatprep.subr.bf16.mxu0 0
  %2024 = vmatpush1.bf16.msra.mxu0 %v2021
  %2025 = vmatprep.subr.bf16.mxu0 0
  %2026 = vmatpush1.bf16.msra.mxu0 0
  %2027 = vmatprep.subr.bf16.mxu0 0
  %2028 = vmatpush1.bf16.msra.mxu0 0
  %2029 = vmatprep.subr.bf16.mxu0 0
  %2030 = vmatpush1.bf16.msra.mxu0 0
  %2031 = vmatprep.subr.bf16.mxu0 0
  %2032 = vmatpush1.bf16.msra.mxu0 0
  %2033 = vmatprep.subr.bf16.mxu0 0
  %2034 = vmatpush1.bf16.msra.mxu0 0
  %2035 = vmatprep.subr.bf16.mxu0 0
  %2036 = vmatpush1.bf16.msra.mxu0 0
  %2037 = vmatprep.subr.bf16.mxu0 0
  %2038 = vmatpush1.bf16.msra.mxu0 0
  %2039 = vmatprep.subr.bf16.mxu0 0
  %2040 = vmatpush1.bf16.msra.mxu0 0
  %2041 = vmatprep.subr.bf16.mxu0 0
  %2042 = vmatpush1.bf16.msra.mxu0 0
  %2043 = vmatprep.subr.bf16.mxu0 0
  %2044 = vmatpush1.bf16.msra.mxu0 0
  %2045 = vmatprep.subr.bf16.mxu0 0
  %2046 = vmatpush1.bf16.msra.mxu0 0
  %2047 = vmatprep.subr.bf16.mxu0 0
  %2048 = vmatpush1.bf16.msra.mxu0 0
  %2049 = vmatprep.subr.bf16.mxu0 0
  %2050 = vmatpush1.bf16.msra.mxu0 0
  %2051 = vmatprep.subr.bf16.mxu0 0
  %2052 = vmatpush1.bf16.msra.mxu0 0
  %2053 = vmatprep.subr.bf16.mxu0 0
  %2054 = vmatpush1.bf16.msra.mxu0 0
  %2055 = vmatprep.mubr.bf16.mxu0 0
  %2056 = vmatmul.mubr.bf16.gmra.mrb[0].mxu0 %v2018
  %v2057 = vpop.f32.mrb[0].mxu0
  %v2058 = vadd.f32 0.0, %v2057
  %v2059 = vpop.f32.mrb[0].mxu0
  %v2060 = vpop.f32.mrb[0].mxu0
  %v2061 = vpop.f32.mrb[0].mxu0
  %2062 = vdwg.mxu0
  %v2063 = vpack.c.bf16 %v2058, %v2058
  %v2064 = vld [vmem:[%s1179] sm:$0xf]
  %v2065 = vld [vmem:[%s1179 + $0x4] sm:$0xf]
  %v2066 = vld [vmem:[%s1179 + $0x8] sm:$0xf]
  %v2067 = vld [vmem:[%s1179 + $0xc] sm:$0xf]
  %v2068 = vld [vmem:[%s1179 + $0x10] sm:$0xf]
  %v2069 = vld [vmem:[%s1179 + $0x14] sm:$0xf]
  %v2070 = vld [vmem:[%s1179 + $0x18] sm:$0xf]
  %v2071 = vld [vmem:[%s1179 + $0x1c] sm:$0xf]
  %v2072 = vld [vmem:[%s1179 + $0x20] sm:$0xf]
  %v2073 = vld [vmem:[%s1179 + $0x24] sm:$0xf]
  %v2074 = vld [vmem:[%s1179 + $0x28] sm:$0xf]
  %v2075 = vld [vmem:[%s1179 + $0x2c] sm:$0xf]
  %v2076 = vld [vmem:[%s1179 + $0x30] sm:$0xf]
  %v2077 = vld [vmem:[%s1179 + $0x34] sm:$0xf]
  %v2078 = vld [vmem:[%s1179 + $0x38] sm:$0xf]
  %v2079 = vld [vmem:[%s1179 + $0x3c] sm:$0xf]
  %v2096 = vunpack.c.l.b16 %v2064
  %v2097 = vunpack.c.l.b16 %v2065
  %v2098 = vunpack.c.l.b16 %v2066
  %v2099 = vunpack.c.l.b16 %v2067
  %v2100 = vunpack.c.l.b16 %v2068
  %v2101 = vunpack.c.l.b16 %v2069
  %v2102 = vunpack.c.l.b16 %v2070
  %v2103 = vunpack.c.l.b16 %v2071
  %v2104 = vunpack.c.l.b16 %v2072
  %v2105 = vunpack.c.l.b16 %v2073
  %v2106 = vunpack.c.l.b16 %v2074
  %v2107 = vunpack.c.l.b16 %v2075
  %v2108 = vunpack.c.l.b16 %v2076
  %v2109 = vunpack.c.l.b16 %v2077
  %v2110 = vunpack.c.l.b16 %v2078
  %v2111 = vunpack.c.l.b16 %v2079
  %v2112 = vpack.c.b16 %v2097, %v2096
  %v2113 = vpack.c.b16 %v2099, %v2098
  %v2114 = vpack.c.b16 %v2101, %v2100
  %v2115 = vpack.c.b16 %v2103, %v2102
  %v2116 = vpack.c.b16 %v2105, %v2104
  %v2117 = vpack.c.b16 %v2107, %v2106
  %v2118 = vpack.c.b16 %v2109, %v2108
  %v2119 = vpack.c.b16 %v2111, %v2110
  %2128 = vmatprep.subr.bf16.mxu0 0
  %2129 = vmatpush1.bf16.msra.mxu0 %v2112
  %2130 = vmatprep.subr.bf16.mxu0 0
  %2131 = vmatpush1.bf16.msra.mxu0 %v2113
  %2132 = vmatprep.subr.bf16.mxu0 0
  %2133 = vmatpush1.bf16.msra.mxu0 %v2114
  %2134 = vmatprep.subr.bf16.mxu0 0
  %2135 = vmatpush1.bf16.msra.mxu0 %v2115
  %2136 = vmatprep.subr.bf16.mxu0 0
  %2137 = vmatpush1.bf16.msra.mxu0 %v2116
  %2138 = vmatprep.subr.bf16.mxu0 0
  %2139 = vmatpush1.bf16.msra.mxu0 %v2117
  %2140 = vmatprep.subr.bf16.mxu0 0
  %2141 = vmatpush1.bf16.msra.mxu0 %v2118
  %2142 = vmatprep.subr.bf16.mxu0 0
  %2143 = vmatpush1.bf16.msra.mxu0 %v2119
  %2144 = vmatprep.subr.bf16.mxu0 0
  %2145 = vmatpush1.bf16.msra.mxu0 0
  %2146 = vmatprep.subr.bf16.mxu0 0
  %2147 = vmatpush1.bf16.msra.mxu0 0
  %2148 = vmatprep.subr.bf16.mxu0 0
  %2149 = vmatpush1.bf16.msra.mxu0 0
  %2150 = vmatprep.subr.bf16.mxu0 0
  %2151 = vmatpush1.bf16.msra.mxu0 0
  %2152 = vmatprep.subr.bf16.mxu0 0
  %2153 = vmatpush1.bf16.msra.mxu0 0
  %2154 = vmatprep.subr.bf16.mxu0 0
  %2155 = vmatpush1.bf16.msra.mxu0 0
  %2156 = vmatprep.subr.bf16.mxu0 0
  %2157 = vmatpush1.bf16.msra.mxu0 0
  %2158 = vmatprep.subr.bf16.mxu0 0
  %2159 = vmatpush1.bf16.msra.mxu0 0
  %2160 = vmatprep.mubr.bf16.mxu0 0
  %2161 = vmatmul.mubr.bf16.gmra.mrb[0].mxu0 %v2063
  %v2162 = vpop.f32.mrb[0].mxu0
  %v2163 = vadd.f32 0.0, %v2162
  %v2164 = vpop.f32.mrb[0].mxu0
  %v2165 = vpop.f32.mrb[0].mxu0
  %v2166 = vpop.f32.mrb[0].mxu0
  %2167 = vdwg.mxu0
  %v2184 = vunpack.c.l.b16 %v1944
  %v2185 = vunpack.c.l.b16 %v1945
  %v2186 = vunpack.c.l.b16 %v1946
  %v2187 = vunpack.c.l.b16 %v1947
  %v2188 = vunpack.c.l.b16 %v1948
  %v2189 = vunpack.c.l.b16 %v1949
  %v2190 = vunpack.c.l.b16 %v1950
  %v2191 = vunpack.c.l.b16 %v1951
  %v2192 = vunpack.c.l.b16 %v1952
  %v2193 = vunpack.c.l.b16 %v1953
  %v2194 = vunpack.c.l.b16 %v1954
  %v2195 = vunpack.c.l.b16 %v1955
  %v2196 = vunpack.c.l.b16 %v1956
  %v2197 = vunpack.c.l.b16 %v1957
  %v2198 = vunpack.c.l.b16 %v1958
  %v2199 = vunpack.c.l.b16 %v1959
  %v2200 = vpack.c.b16 %v2185, %v2184
  %v2201 = vpack.c.b16 %v2187, %v2186
  %v2202 = vpack.c.b16 %v2189, %v2188
  %v2203 = vpack.c.b16 %v2191, %v2190
  %v2204 = vpack.c.b16 %v2193, %v2192
  %v2205 = vpack.c.b16 %v2195, %v2194
  %v2206 = vpack.c.b16 %v2197, %v2196
  %v2207 = vpack.c.b16 %v2199, %v2198
  %2216 = vmatprep.subr.bf16.mxu0 0
  %2217 = vmatpush1.bf16.msra.mxu0 %v2200
  %2218 = vmatprep.subr.bf16.mxu0 0
  %2219 = vmatpush1.bf16.msra.mxu0 %v2201
  %2220 = vmatprep.subr.bf16.mxu0 0
  %2221 = vmatpush1.bf16.msra.mxu0 %v2202
  %2222 = vmatprep.subr.bf16.mxu0 0
  %2223 = vmatpush1.bf16.msra.mxu0 %v2203
  %2224 = vmatprep.subr.bf16.mxu0 0
  %2225 = vmatpush1.bf16.msra.mxu0 %v2204
  %2226 = vmatprep.subr.bf16.mxu0 0
  %2227 = vmatpush1.bf16.msra.mxu0 %v2205
  %2228 = vmatprep.subr.bf16.mxu0 0
  %2229 = vmatpush1.bf16.msra.mxu0 %v2206
  %2230 = vmatprep.subr.bf16.mxu0 0
  %2231 = vmatpush1.bf16.msra.mxu0 %v2207
  %2232 = vmatprep.subr.bf16.mxu0 0
  %2233 = vmatpush1.bf16.msra.mxu0 0
  %2234 = vmatprep.subr.bf16.mxu0 0
  %2235 = vmatpush1.bf16.msra.mxu0 0
  %2236 = vmatprep.subr.bf16.mxu0 0
  %2237 = vmatpush1.bf16.msra.mxu0 0
  %2238 = vmatprep.subr.bf16.mxu0 0
  %2239 = vmatpush1.bf16.msra.mxu0 0
  %2240 = vmatprep.subr.bf16.mxu0 0
  %2241 = vmatpush1.bf16.msra.mxu0 0
  %2242 = vmatprep.subr.bf16.mxu0 0
  %2243 = vmatpush1.bf16.msra.mxu0 0
  %2244 = vmatprep.subr.bf16.mxu0 0
  %2245 = vmatpush1.bf16.msra.mxu0 0
  %2246 = vmatprep.subr.bf16.mxu0 0
  %2247 = vmatpush1.bf16.msra.mxu0 0
  %2248 = vmatprep.mubr.bf16.mxu0 0
  %2249 = vmatmul.mubr.bf16.gmra.mrb[0].mxu0 %v1943
  %v2250 = vpop.f32.mrb[0].mxu0
  %v2251 = vadd.f32 %v2163, %v2250
  %v2252 = vpop.f32.mrb[0].mxu0
  %v2253 = vpop.f32.mrb[0].mxu0
  %v2254 = vpop.f32.mrb[0].mxu0
  %2255 = vdwg.mxu0
  %v2256 = vpack.c.bf16 %v338, %v338
  %v2257 = vpack.c.bf16 %v853, %v853
  %2258 = vmatprep.subr.bf16.mxu0 0
  %2259 = vmatpush1.bf16.xpose.msra.mxu0 %v2257
  %2260 = vmatprep.subr.bf16.mxu0 0
  %2261 = vmatpush1.bf16.xpose.msra.mxu0 0
  %2262 = vmatprep.subr.bf16.mxu0 0
  %2263 = vmatpush1.bf16.xpose.msra.mxu0 0
  %2264 = vmatprep.subr.bf16.mxu0 0
  %2265 = vmatpush1.bf16.xpose.msra.mxu0 0
  %2266 = vmatprep.subr.bf16.mxu0 0
  %2267 = vmatpush1.bf16.xpose.msra.mxu0 0
  %2268 = vmatprep.subr.bf16.mxu0 0
  %2269 = vmatpush1.bf16.xpose.msra.mxu0 0
  %2270 = vmatprep.subr.bf16.mxu0 0
  %2271 = vmatpush1.bf16.xpose.msra.mxu0 0
  %2272 = vmatprep.subr.bf16.mxu0 0
  %2273 = vmatpush1.bf16.xpose.msra.mxu0 0
  %2274 = vmatprep.subr.bf16.mxu0 0
  %2275 = vmatpush1.bf16.xpose.msra.mxu0 0
  %2276 = vmatprep.subr.bf16.mxu0 0
  %2277 = vmatpush1.bf16.xpose.msra.mxu0 0
  %2278 = vmatprep.subr.bf16.mxu0 0
  %2279 = vmatpush1.bf16.xpose.msra.mxu0 0
  %2280 = vmatprep.subr.bf16.mxu0 0
  %2281 = vmatpush1.bf16.xpose.msra.mxu0 0
  %2282 = vmatprep.subr.bf16.mxu0 0
  %2283 = vmatpush1.bf16.xpose.msra.mxu0 0
  %2284 = vmatprep.subr.bf16.mxu0 0
  %2285 = vmatpush1.bf16.xpose.msra.mxu0 0
  %2286 = vmatprep.subr.bf16.mxu0 0
  %2287 = vmatpush1.bf16.xpose.msra.mxu0 0
  %2288 = vmatprep.subr.bf16.mxu0 0
  %2289 = vmatpush1.bf16.xpose.msra.mxu0 0
  %2290 = vmatprep.mubr.bf16.mxu0 0
  %2291 = vmatmul.mubr.bf16.gmra.mrb[0].mxu0 %v2256
  %v2292 = vpop.f32.mrb[0].mxu0
  %v2293 = vadd.f32 0.0, %v2292
  %v2294 = vpop.f32.mrb[0].mxu0
  %v2295 = vpop.f32.mrb[0].mxu0
  %v2296 = vpop.f32.mrb[0].mxu0
  %2297 = vdwg.mxu0
  %v2298 = vmul.f32 %v2293, 0.35355338
  %v2299 = vadd.f32 %v2298, %v1881
  %v2300 = vsel %vm997, %v2299, -inf
  %2301 = vmax.xlane.f32.xlu0 %v2300
  %v2302 = vpop.xlane.xlu0 %2301
  %v2303 = vsub.f32 %v2299, %v2302
  %v2304 = vmul.f32 %v2303, 1.442695
  %v2305 = vpow.pop %v2304
  %v2306 = vsel %vm997, %v2305, 0.0
  %2307 = vadd.xlane.f32.xlu0 %v2306
  %v2308 = vpop.xlane.xlu0 %2307
  %v2309 = vrcp.pop %v2308
  %v2310 = vmul.f32 %v2305, %v2309
  %v2311 = vpack.c.bf16 %v2310, %v2310
  %v2312 = vpack.c.bf16 %v939, %v939
  %v2314 = vsel %vm997, %v2311, 0
  %v2317 = vsel %vm1014, %v2312, 0
  %2319 = vmatprep.subr.bf16.mxu0 0
  %2320 = vmatpush1.bf16.msra.mxu0 %v2317
  %2321 = vmatprep.subr.bf16.mxu0 0
  %2322 = vmatpush1.bf16.msra.mxu0 0
  %2323 = vmatprep.subr.bf16.mxu0 0
  %2324 = vmatpush1.bf16.msra.mxu0 0
  %2325 = vmatprep.subr.bf16.mxu0 0
  %2326 = vmatpush1.bf16.msra.mxu0 0
  %2327 = vmatprep.subr.bf16.mxu0 0
  %2328 = vmatpush1.bf16.msra.mxu0 0
  %2329 = vmatprep.subr.bf16.mxu0 0
  %2330 = vmatpush1.bf16.msra.mxu0 0
  %2331 = vmatprep.subr.bf16.mxu0 0
  %2332 = vmatpush1.bf16.msra.mxu0 0
  %2333 = vmatprep.subr.bf16.mxu0 0
  %2334 = vmatpush1.bf16.msra.mxu0 0
  %2335 = vmatprep.subr.bf16.mxu0 0
  %2336 = vmatpush1.bf16.msra.mxu0 0
  %2337 = vmatprep.subr.bf16.mxu0 0
  %2338 = vmatpush1.bf16.msra.mxu0 0
  %2339 = vmatprep.subr.bf16.mxu0 0
  %2340 = vmatpush1.bf16.msra.mxu0 0
  %2341 = vmatprep.subr.bf16.mxu0 0
  %2342 = vmatpush1.bf16.msra.mxu0 0
  %2343 = vmatprep.subr.bf16.mxu0 0
  %2344 = vmatpush1.bf16.msra.mxu0 0
  %2345 = vmatprep.subr.bf16.mxu0 0
  %2346 = vmatpush1.bf16.msra.mxu0 0
  %2347 = vmatprep.subr.bf16.mxu0 0
  %2348 = vmatpush1.bf16.msra.mxu0 0
  %2349 = vmatprep.subr.bf16.mxu0 0
  %2350 = vmatpush1.bf16.msra.mxu0 0
  %2351 = vmatprep.mubr.bf16.mxu0 0
  %2352 = vmatmul.mubr.bf16.gmra.mrb[0].mxu0 %v2314
  %v2353 = vpop.f32.mrb[0].mxu0
  %v2354 = vadd.f32 0.0, %v2353
  %v2355 = vpop.f32.mrb[0].mxu0
  %v2356 = vpop.f32.mrb[0].mxu0
  %v2357 = vpop.f32.mrb[0].mxu0
  %2358 = vdwg.mxu0
  %v2359 = vpack.c.bf16 %v2354, %v2354
  %v2360 = vld [vmem:[%s1476] sm:$0xf]
  %v2361 = vld [vmem:[%s1476 + $0x4] sm:$0xf]
  %v2362 = vld [vmem:[%s1476 + $0x8] sm:$0xf]
  %v2363 = vld [vmem:[%s1476 + $0xc] sm:$0xf]
  %v2364 = vld [vmem:[%s1476 + $0x10] sm:$0xf]
  %v2365 = vld [vmem:[%s1476 + $0x14] sm:$0xf]
  %v2366 = vld [vmem:[%s1476 + $0x18] sm:$0xf]
  %v2367 = vld [vmem:[%s1476 + $0x1c] sm:$0xf]
  %v2368 = vld [vmem:[%s1476 + $0x20] sm:$0xf]
  %v2369 = vld [vmem:[%s1476 + $0x24] sm:$0xf]
  %v2370 = vld [vmem:[%s1476 + $0x28] sm:$0xf]
  %v2371 = vld [vmem:[%s1476 + $0x2c] sm:$0xf]
  %v2372 = vld [vmem:[%s1476 + $0x30] sm:$0xf]
  %v2373 = vld [vmem:[%s1476 + $0x34] sm:$0xf]
  %v2374 = vld [vmem:[%s1476 + $0x38] sm:$0xf]
  %v2375 = vld [vmem:[%s1476 + $0x3c] sm:$0xf]
  %v2392 = vunpack.c.l.b16 %v2360
  %v2393 = vunpack.c.l.b16 %v2361
  %v2394 = vunpack.c.l.b16 %v2362
  %v2395 = vunpack.c.l.b16 %v2363
  %v2396 = vunpack.c.l.b16 %v2364
  %v2397 = vunpack.c.l.b16 %v2365
  %v2398 = vunpack.c.l.b16 %v2366
  %v2399 = vunpack.c.l.b16 %v2367
  %v2400 = vunpack.c.l.b16 %v2368
  %v2401 = vunpack.c.l.b16 %v2369
  %v2402 = vunpack.c.l.b16 %v2370
  %v2403 = vunpack.c.l.b16 %v2371
  %v2404 = vunpack.c.l.b16 %v2372
  %v2405 = vunpack.c.l.b16 %v2373
  %v2406 = vunpack.c.l.b16 %v2374
  %v2407 = vunpack.c.l.b16 %v2375
  %v2408 = vpack.c.b16 %v2393, %v2392
  %v2409 = vpack.c.b16 %v2395, %v2394
  %v2410 = vpack.c.b16 %v2397, %v2396
  %v2411 = vpack.c.b16 %v2399, %v2398
  %v2412 = vpack.c.b16 %v2401, %v2400
  %v2413 = vpack.c.b16 %v2403, %v2402
  %v2414 = vpack.c.b16 %v2405, %v2404
  %v2415 = vpack.c.b16 %v2407, %v2406
  %2424 = vmatprep.subr.bf16.mxu0 0
  %2425 = vmatpush1.bf16.msra.mxu0 %v2408
  %2426 = vmatprep.subr.bf16.mxu0 0
  %2427 = vmatpush1.bf16.msra.mxu0 %v2409
  %2428 = vmatprep.subr.bf16.mxu0 0
  %2429 = vmatpush1.bf16.msra.mxu0 %v2410
  %2430 = vmatprep.subr.bf16.mxu0 0
  %2431 = vmatpush1.bf16.msra.mxu0 %v2411
  %2432 = vmatprep.subr.bf16.mxu0 0
  %2433 = vmatpush1.bf16.msra.mxu0 %v2412
  %2434 = vmatprep.subr.bf16.mxu0 0
  %2435 = vmatpush1.bf16.msra.mxu0 %v2413
  %2436 = vmatprep.subr.bf16.mxu0 0
  %2437 = vmatpush1.bf16.msra.mxu0 %v2414
  %2438 = vmatprep.subr.bf16.mxu0 0
  %2439 = vmatpush1.bf16.msra.mxu0 %v2415
  %2440 = vmatprep.subr.bf16.mxu0 0
  %2441 = vmatpush1.bf16.msra.mxu0 0
  %2442 = vmatprep.subr.bf16.mxu0 0
  %2443 = vmatpush1.bf16.msra.mxu0 0
  %2444 = vmatprep.subr.bf16.mxu0 0
  %2445 = vmatpush1.bf16.msra.mxu0 0
  %2446 = vmatprep.subr.bf16.mxu0 0
  %2447 = vmatpush1.bf16.msra.mxu0 0
  %2448 = vmatprep.subr.bf16.mxu0 0
  %2449 = vmatpush1.bf16.msra.mxu0 0
  %2450 = vmatprep.subr.bf16.mxu0 0
  %2451 = vmatpush1.bf16.msra.mxu0 0
  %2452 = vmatprep.subr.bf16.mxu0 0
  %2453 = vmatpush1.bf16.msra.mxu0 0
  %2454 = vmatprep.subr.bf16.mxu0 0
  %2455 = vmatpush1.bf16.msra.mxu0 0
  %2456 = vmatprep.mubr.bf16.mxu0 0
  %2457 = vmatmul.mubr.bf16.gmra.mrb[0].mxu0 %v2359
  %v2458 = vpop.f32.mrb[0].mxu0
  %v2459 = vadd.f32 0.0, %v2458
  %v2460 = vpop.f32.mrb[0].mxu0
  %v2461 = vpop.f32.mrb[0].mxu0
  %v2462 = vpop.f32.mrb[0].mxu0
  %2463 = vdwg.mxu0
  %v2464 = vadd.f32 %v2251, %v2459
  %v2465 = vpack.c.bf16 %v340, %v340
  %v2466 = vpack.c.bf16 %v855, %v855
  %2467 = vmatprep.subr.bf16.mxu0 0
  %2468 = vmatpush1.bf16.xpose.msra.mxu0 %v2466
  %2469 = vmatprep.subr.bf16.mxu0 0
  %2470 = vmatpush1.bf16.xpose.msra.mxu0 0
  %2471 = vmatprep.subr.bf16.mxu0 0
  %2472 = vmatpush1.bf16.xpose.msra.mxu0 0
  %2473 = vmatprep.subr.bf16.mxu0 0
  %2474 = vmatpush1.bf16.xpose.msra.mxu0 0
  %2475 = vmatprep.subr.bf16.mxu0 0
  %2476 = vmatpush1.bf16.xpose.msra.mxu0 0
  %2477 = vmatprep.subr.bf16.mxu0 0
  %2478 = vmatpush1.bf16.xpose.msra.mxu0 0
  %2479 = vmatprep.subr.bf16.mxu0 0
  %2480 = vmatpush1.bf16.xpose.msra.mxu0 0
  %2481 = vmatprep.subr.bf16.mxu0 0
  %2482 = vmatpush1.bf16.xpose.msra.mxu0 0
  %2483 = vmatprep.subr.bf16.mxu0 0
  %2484 = vmatpush1.bf16.xpose.msra.mxu0 0
  %2485 = vmatprep.subr.bf16.mxu0 0
  %2486 = vmatpush1.bf16.xpose.msra.mxu0 0
  %2487 = vmatprep.subr.bf16.mxu0 0
  %2488 = vmatpush1.bf16.xpose.msra.mxu0 0
  %2489 = vmatprep.subr.bf16.mxu0 0
  %2490 = vmatpush1.bf16.xpose.msra.mxu0 0
  %2491 = vmatprep.subr.bf16.mxu0 0
  %2492 = vmatpush1.bf16.xpose.msra.mxu0 0
  %2493 = vmatprep.subr.bf16.mxu0 0
  %2494 = vmatpush1.bf16.xpose.msra.mxu0 0
  %2495 = vmatprep.subr.bf16.mxu0 0
  %2496 = vmatpush1.bf16.xpose.msra.mxu0 0
  %2497 = vmatprep.subr.bf16.mxu0 0
  %2498 = vmatpush1.bf16.xpose.msra.mxu0 0
  %2499 = vmatprep.mubr.bf16.mxu0 0
  %2500 = vmatmul.mubr.bf16.gmra.mrb[0].mxu0 %v2465
  %v2501 = vpop.f32.mrb[0].mxu0
  %v2502 = vadd.f32 0.0, %v2501
  %v2503 = vpop.f32.mrb[0].mxu0
  %v2504 = vpop.f32.mrb[0].mxu0
  %v2505 = vpop.f32.mrb[0].mxu0
  %2506 = vdwg.mxu0
  %v2507 = vmul.f32 %v2502, 0.35355338
  %v2508 = vadd.f32 %v2507, %v1881
  %v2509 = vsel %vm997, %v2508, -inf
  %2510 = vmax.xlane.f32.xlu0 %v2509
  %v2511 = vpop.xlane.xlu0 %2510
  %v2512 = vsub.f32 %v2508, %v2511
  %v2513 = vmul.f32 %v2512, 1.442695
  %v2514 = vpow.pop %v2513
  %v2515 = vsel %vm997, %v2514, 0.0
  %2516 = vadd.xlane.f32.xlu0 %v2515
  %v2517 = vpop.xlane.xlu0 %2516
  %v2518 = vrcp.pop %v2517
  %v2519 = vmul.f32 %v2514, %v2518
  %v2520 = vpack.c.bf16 %v2519, %v2519
  %v2521 = vpack.c.bf16 %v941, %v941
  %v2523 = vsel %vm997, %v2520, 0
  %v2526 = vsel %vm1014, %v2521, 0
  %2528 = vmatprep.subr.bf16.mxu0 0
  %2529 = vmatpush1.bf16.msra.mxu0 %v2526
  %2530 = vmatprep.subr.bf16.mxu0 0
  %2531 = vmatpush1.bf16.msra.mxu0 0
  %2532 = vmatprep.subr.bf16.mxu0 0
  %2533 = vmatpush1.bf16.msra.mxu0 0
  %2534 = vmatprep.subr.bf16.mxu0 0
  %2535 = vmatpush1.bf16.msra.mxu0 0
  %2536 = vmatprep.subr.bf16.mxu0 0
  %2537 = vmatpush1.bf16.msra.mxu0 0
  %2538 = vmatprep.subr.bf16.mxu0 0
  %2539 = vmatpush1.bf16.msra.mxu0 0
  %2540 = vmatprep.subr.bf16.mxu0 0
  %2541 = vmatpush1.bf16.msra.mxu0 0
  %2542 = vmatprep.subr.bf16.mxu0 0
  %2543 = vmatpush1.bf16.msra.mxu0 0
  %2544 = vmatprep.subr.bf16.mxu0 0
  %2545 = vmatpush1.bf16.msra.mxu0 0
  %2546 = vmatprep.subr.bf16.mxu0 0
  %2547 = vmatpush1.bf16.msra.mxu0 0
  %2548 = vmatprep.subr.bf16.mxu0 0
  %2549 = vmatpush1.bf16.msra.mxu0 0
  %2550 = vmatprep.subr.bf16.mxu0 0
  %2551 = vmatpush1.bf16.msra.mxu0 0
  %2552 = vmatprep.subr.bf16.mxu0 0
  %2553 = vmatpush1.bf16.msra.mxu0 0
  %2554 = vmatprep.subr.bf16.mxu0 0
  %2555 = vmatpush1.bf16.msra.mxu0 0
  %2556 = vmatprep.subr.bf16.mxu0 0
  %2557 = vmatpush1.bf16.msra.mxu0 0
  %2558 = vmatprep.subr.bf16.mxu0 0
  %2559 = vmatpush1.bf16.msra.mxu0 0
  %2560 = vmatprep.mubr.bf16.mxu0 0
  %2561 = vmatmul.mubr.bf16.gmra.mrb[0].mxu0 %v2523
  %v2562 = vpop.f32.mrb[0].mxu0
  %v2563 = vadd.f32 0.0, %v2562
  %v2564 = vpop.f32.mrb[0].mxu0
  %v2565 = vpop.f32.mrb[0].mxu0
  %v2566 = vpop.f32.mrb[0].mxu0
  %2567 = vdwg.mxu0
  %v2568 = vpack.c.bf16 %v2563, %v2563
  %v2569 = vld [vmem:[%s1686] sm:$0xf]
  %v2570 = vld [vmem:[%s1686 + $0x4] sm:$0xf]
  %v2571 = vld [vmem:[%s1686 + $0x8] sm:$0xf]
  %v2572 = vld [vmem:[%s1686 + $0xc] sm:$0xf]
  %v2573 = vld [vmem:[%s1686 + $0x10] sm:$0xf]
  %v2574 = vld [vmem:[%s1686 + $0x14] sm:$0xf]
  %v2575 = vld [vmem:[%s1686 + $0x18] sm:$0xf]
  %v2576 = vld [vmem:[%s1686 + $0x1c] sm:$0xf]
  %v2577 = vld [vmem:[%s1686 + $0x20] sm:$0xf]
  %v2578 = vld [vmem:[%s1686 + $0x24] sm:$0xf]
  %v2579 = vld [vmem:[%s1686 + $0x28] sm:$0xf]
  %v2580 = vld [vmem:[%s1686 + $0x2c] sm:$0xf]
  %v2581 = vld [vmem:[%s1686 + $0x30] sm:$0xf]
  %v2582 = vld [vmem:[%s1686 + $0x34] sm:$0xf]
  %v2583 = vld [vmem:[%s1686 + $0x38] sm:$0xf]
  %v2584 = vld [vmem:[%s1686 + $0x3c] sm:$0xf]
  %v2601 = vunpack.c.l.b16 %v2569
  %v2602 = vunpack.c.l.b16 %v2570
  %v2603 = vunpack.c.l.b16 %v2571
  %v2604 = vunpack.c.l.b16 %v2572
  %v2605 = vunpack.c.l.b16 %v2573
  %v2606 = vunpack.c.l.b16 %v2574
  %v2607 = vunpack.c.l.b16 %v2575
  %v2608 = vunpack.c.l.b16 %v2576
  %v2609 = vunpack.c.l.b16 %v2577
  %v2610 = vunpack.c.l.b16 %v2578
  %v2611 = vunpack.c.l.b16 %v2579
  %v2612 = vunpack.c.l.b16 %v2580
  %v2613 = vunpack.c.l.b16 %v2581
  %v2614 = vunpack.c.l.b16 %v2582
  %v2615 = vunpack.c.l.b16 %v2583
  %v2616 = vunpack.c.l.b16 %v2584
  %v2617 = vpack.c.b16 %v2602, %v2601
  %v2618 = vpack.c.b16 %v2604, %v2603
  %v2619 = vpack.c.b16 %v2606, %v2605
  %v2620 = vpack.c.b16 %v2608, %v2607
  %v2621 = vpack.c.b16 %v2610, %v2609
  %v2622 = vpack.c.b16 %v2612, %v2611
  %v2623 = vpack.c.b16 %v2614, %v2613
  %v2624 = vpack.c.b16 %v2616, %v2615
  %2633 = vmatprep.subr.bf16.mxu0 0
  %2634 = vmatpush1.bf16.msra.mxu0 %v2617
  %2635 = vmatprep.subr.bf16.mxu0 0
  %2636 = vmatpush1.bf16.msra.mxu0 %v2618
  %2637 = vmatprep.subr.bf16.mxu0 0
  %2638 = vmatpush1.bf16.msra.mxu0 %v2619
  %2639 = vmatprep.subr.bf16.mxu0 0
  %2640 = vmatpush1.bf16.msra.mxu0 %v2620
  %2641 = vmatprep.subr.bf16.mxu0 0
  %2642 = vmatpush1.bf16.msra.mxu0 %v2621
  %2643 = vmatprep.subr.bf16.mxu0 0
  %2644 = vmatpush1.bf16.msra.mxu0 %v2622
  %2645 = vmatprep.subr.bf16.mxu0 0
  %2646 = vmatpush1.bf16.msra.mxu0 %v2623
  %2647 = vmatprep.subr.bf16.mxu0 0
  %2648 = vmatpush1.bf16.msra.mxu0 %v2624
  %2649 = vmatprep.subr.bf16.mxu0 0
  %2650 = vmatpush1.bf16.msra.mxu0 0
  %2651 = vmatprep.subr.bf16.mxu0 0
  %2652 = vmatpush1.bf16.msra.mxu0 0
  %2653 = vmatprep.subr.bf16.mxu0 0
  %2654 = vmatpush1.bf16.msra.mxu0 0
  %2655 = vmatprep.subr.bf16.mxu0 0
  %2656 = vmatpush1.bf16.msra.mxu0 0
  %2657 = vmatprep.subr.bf16.mxu0 0
  %2658 = vmatpush1.bf16.msra.mxu0 0
  %2659 = vmatprep.subr.bf16.mxu0 0
  %2660 = vmatpush1.bf16.msra.mxu0 0
  %2661 = vmatprep.subr.bf16.mxu0 0
  %2662 = vmatpush1.bf16.msra.mxu0 0
  %2663 = vmatprep.subr.bf16.mxu0 0
  %2664 = vmatpush1.bf16.msra.mxu0 0
  %2665 = vmatprep.mubr.bf16.mxu0 0
  %2666 = vmatmul.mubr.bf16.gmra.mrb[0].mxu0 %v2568
  %v2667 = vpop.f32.mrb[0].mxu0
  %v2668 = vadd.f32 0.0, %v2667
  %v2669 = vpop.f32.mrb[0].mxu0
  %v2670 = vpop.f32.mrb[0].mxu0
  %v2671 = vpop.f32.mrb[0].mxu0
  %2672 = vdwg.mxu0
  %v2673 = vadd.f32 %v2464, %v2668
  %v2674 = vadd.f32 %v40, %v2673
  %v2675 = vadd.f32 %v2674, %v1797
  %2676 = vadd.xlane.f32.xlu0 %v2675
  %v2677 = vpop.xlane.xlu0 %2676
  %v2678 = vmul.f32 %v2677, 0.03125
  %v2679 = vsub.f32 %v2675, %v2678
  %v2680 = vmul.f32 %v2679, %v1804
  %v2681 = vmul.f32 %v2680, %v2680
  %2682 = vadd.xlane.f32.xlu0 %v2681
  %v2683 = vpop.xlane.xlu0 %2682
  %v2684 = vmul.f32 %v2683, 0.03125
  %v2685 = vadd.f32 %v2684, 1e-05
  %v2686 = vrsqrt.pop %v2685
  %v2687 = vmul.f32 %v2680, %v2686
  %v2688 = vmul.f32 %v2687, %v1821
  %v2689 = vadd.f32 %v2688, %v1828
  %2690 = vst [vmem:[%s11 + $0x8] sm:$0xff] %v2689
  // Predicated region
  $region46: #{transformer_forward.9} parent=0 // pred_check
    _
  $region47: #{transformer_forward.9} parent=0 // pred_check_branch
    %2692 = sbr.rel (0) target = $region49
  $region48: #{transformer_forward.9} parent=0 // pred_region
    _
  $region49: #{transformer_forward.9} parent=0 // pred_fallthru
    _
  // Predicated region
  $region50: #{transformer_forward.9} parent=0 // pred_check
    _
  $region51: #{transformer_forward.9} parent=0 // pred_check_branch
    %2694 = sbr.rel (0) target = $region53
  $region52: #{transformer_forward.9} parent=0 // pred_region
    _
  $region53: #{transformer_forward.9} parent=0 // pred_fallthru
    _

// kernel: transformer_forward.7
$region0: #{transformer_forward.7}
  #allocation0 [shape = 'u32[]', space=smem, size = 0x4, offset = 0x4, fixed_abs, tag = 'smem constant byte address 0x4 - core index']
  #allocation1 [shape = 'u32[144,128]{1,0:T(1,128)}', space=vmem, size = 0x12000, scoped, tag = 'internal scratch']
  %s0 = inlined_call_operand.vmem [shape: f32[16,128], index: 0, kind: input, shape index: {}, may-alias: {0,1}]
  %s1 = inlined_call_operand.vmem [shape: f32[16,128], index: 1, kind: input, shape index: {}, may-alias: {0,1}]
  %s2 = inlined_call_operand.vmem [shape: bf16[128,512], index: 2, kind: input, shape index: {}]
  %s3 = inlined_call_operand.hbm [shape: f32[1,512], index: 3, kind: input, shape index: {}]
  %s4 = inlined_call_operand.hbm [shape: bf16[128,1024], index: 4, kind: input, shape index: {}]
  %s5 = inlined_call_operand.hbm [shape: f32[1,1024], index: 5, kind: input, shape index: {}]
  %s6 = inlined_call_operand.hbm [shape: bf16[4,128,128], index: 6, kind: input, shape index: {}]
  %s7 = inlined_call_operand.hbm [shape: f32[1,128], index: 7, kind: input, shape index: {}]
  %s8 = inlined_call_operand.vmem [shape: f32[2,1,8], index: 8, kind: input, shape index: {}]
  %s9 = inlined_call_operand.hbm [shape: f32[1,128], index: 9, kind: input, shape index: {}]
  %s10 = inlined_call_operand.hbm [shape: f32[1,128], index: 10, kind: input, shape index: {}]
  %s11 = inlined_call_operand.vmem [shape: f32[16,128], index: 11, kind: output, shape index: {}]
  %s12 = sld [smem:[#allocation0]]
  $region82: #{transformer_forward.7} parent=0
    _
  %s14 = ssub.s32 1, %s12
  %s15 = scalar_select 0, %s14, %s12
  $region1: #{transformer_forward.7} parent=0
    #allocation2 [shape = 'u8[2048]{0}', space=vmem, size = 0x800, scoped, tag = 'input window, operand 3, single buffered']
    #allocation3 [shape = 's32[1]{0}', space=sflag, size = 0x4, scoped, tag = 'scoped memory for transformer_forward.7']
    #allocation4 [shape = 'u8[262144]{0}', space=vmem, size = 0x40000, scoped, tag = 'input window, operand 4, single buffered']
    #allocation5 [shape = 's32[1]{0}', space=sflag, size = 0x4, scoped, tag = 'scoped memory for transformer_forward.7']
    #allocation6 [shape = 'u8[4096]{0}', space=vmem, size = 0x1000, scoped, tag = 'input window, operand 5, single buffered']
    #allocation7 [shape = 'u8[131072]{0}', space=vmem, size = 0x20000, scoped, tag = 'input window, operand 6, single buffered']
    #allocation8 [shape = 's32[1]{0}', space=sflag, size = 0x4, scoped, tag = 'scoped memory for transformer_forward.7']
    #allocation9 [shape = 'u8[512]{0}', space=vmem, size = 0x400, scoped, tag = 'input window, operand 7, single buffered']
    #allocation10 [shape = 'u8[512]{0}', space=vmem, size = 0x400, scoped, tag = 'input window, operand 9, single buffered']
    #allocation11 [shape = 's32[1]{0}', space=sflag, size = 0x4, scoped, tag = 'scoped memory for transformer_forward.7']
    #allocation12 [shape = 'u8[512]{0}', space=vmem, size = 0x400, scoped, tag = 'input window, operand 10, single buffered']
    %16 = vsyncpa [#allocation3], 0
    %17 = vsyncpa [#allocation5], 0
    %18 = vsyncpa [#allocation8], 0
    %19 = vsyncpa [#allocation11], 0
    // Predicated region
    $region2: #{transformer_forward.7} parent=1 // pred_check
      _
    $region3: #{transformer_forward.7} parent=1 // pred_check_branch
      %21 = sbr.rel (0) target = $region5
    $region4: #{transformer_forward.7} parent=1 // pred_region
      _
    $region5: #{transformer_forward.7} parent=1 // pred_fallthru
      _
    // Predicated region
    $region6: #{transformer_forward.7} parent=1 // pred_check
      _
    $region7: #{transformer_forward.7} parent=1 // pred_check_branch
      %23 = sbr.rel (0) target = $region9
    $region8: #{transformer_forward.7} parent=1 // pred_region
      _
    $region9: #{transformer_forward.7} parent=1 // pred_fallthru
      _
    // Predicated region
    $region10: #{transformer_forward.7} parent=1 // pred_check
      _
    $region11: #{transformer_forward.7} parent=1 // pred_check_branch
      %25 = sbr.rel (0) target = $region13
    $region12: #{transformer_forward.7} parent=1 // pred_region
      _
    $region13: #{transformer_forward.7} parent=1 // pred_fallthru
      _
    // Predicated region
    $region14: #{transformer_forward.7} parent=1 // pred_check
      _
    $region15: #{transformer_forward.7} parent=1 // pred_check_branch
      %27 = sbr.rel (0) target = $region17
    $region16: #{transformer_forward.7} parent=1 // pred_region
      %s29 = ssub.s32 64, 64
      %30 = vsyncadd [#allocation3], %s29
      %s32 = sshll.u32 [#allocation2], 4
      %s33 = int_to_ptr.vmem [resolvable:$true] %s32
      %35 = dma.hbm_to_vmem [thread:$0]  %s3, 64, %s33, [#allocation3]
    $region17: #{transformer_forward.7} parent=1 // pred_fallthru
      _
    // Predicated region
    $region18: #{transformer_forward.7} parent=1 // pred_check
      _
    $region19: #{transformer_forward.7} parent=1 // pred_check_branch
      %37 = sbr.rel (0) target = $region21
    $region20: #{transformer_forward.7} parent=1 // pred_region
      %s39 = ssub.s32 8192, 8192
      %40 = vsyncadd [#allocation5], %s39
      %s41 = sshll.u32 [#allocation4], 4
      %s42 = int_to_ptr.vmem [resolvable:$true] %s41
      %47 = dma.hbm_to_vmem [thread:$0]  %s4, 8192, %s42, [#allocation5], 512, 512, 32
    $region21: #{transformer_forward.7} parent=1 // pred_fallthru
      _
    // Predicated region
    $region22: #{transformer_forward.7} parent=1 // pred_check
      _
    $region23: #{transformer_forward.7} parent=1 // pred_check_branch
      %49 = sbr.rel (0) target = $region25
    $region24: #{transformer_forward.7} parent=1 // pred_region
      %s51 = ssub.s32 128, 128
      %52 = vsyncadd [#allocation5], %s51
      %s54 = sshll.u32 [#allocation6], 4
      %s55 = int_to_ptr.vmem [resolvable:$true] %s54
      %57 = dma.hbm_to_vmem [thread:$0]  %s5, 128, %s55, [#allocation5]
    $region25: #{transformer_forward.7} parent=1 // pred_fallthru
      _
    // Predicated region
    $region26: #{transformer_forward.7} parent=1 // pred_check
      _
    $region27: #{transformer_forward.7} parent=1 // pred_check_branch
      %59 = sbr.rel (0) target = $region29
    $region28: #{transformer_forward.7} parent=1 // pred_region
      %s61 = ssub.s32 4096, 4096
      %62 = vsyncadd [#allocation8], %s61
      %s63 = sshll.u32 [#allocation7], 4
      %s64 = int_to_ptr.vmem [resolvable:$true] %s63
      %69 = dma.hbm_to_vmem [thread:$0]  %s6, 4096, %s64, [#allocation8], 64, 64, 4
    $region29: #{transformer_forward.7} parent=1 // pred_fallthru
      _
    // Predicated region
    $region30: #{transformer_forward.7} parent=1 // pred_check
      _
    $region31: #{transformer_forward.7} parent=1 // pred_check_branch
      %71 = sbr.rel (0) target = $region33
    $region32: #{transformer_forward.7} parent=1 // pred_region
      %s73 = ssub.s32 16, 16
      %74 = vsyncadd [#allocation8], %s73
      %s76 = sshll.u32 [#allocation9], 4
      %s77 = int_to_ptr.vmem [resolvable:$true] %s76
      %79 = dma.hbm_to_vmem [thread:$0]  %s7, 16, %s77, [#allocation8]
    $region33: #{transformer_forward.7} parent=1 // pred_fallthru
      _
    // Predicated region
    $region34: #{transformer_forward.7} parent=1 // pred_check
      _
    $region35: #{transformer_forward.7} parent=1 // pred_check_branch
      %81 = sbr.rel (0) target = $region37
    $region36: #{transformer_forward.7} parent=1 // pred_region
      _
    $region37: #{transformer_forward.7} parent=1 // pred_fallthru
      _
    // Predicated region
    $region38: #{transformer_forward.7} parent=1 // pred_check
      _
    $region39: #{transformer_forward.7} parent=1 // pred_check_branch
      %83 = sbr.rel (0) target = $region41
    $region40: #{transformer_forward.7} parent=1 // pred_region
      %s85 = ssub.s32 16, 16
      %86 = vsyncadd [#allocation11], %s85
      %s88 = sshll.u32 [#allocation10], 4
      %s89 = int_to_ptr.vmem [resolvable:$true] %s88
      %91 = dma.hbm_to_vmem [thread:$0]  %s9, 16, %s89, [#allocation11]
    $region41: #{transformer_forward.7} parent=1 // pred_fallthru
      _
    // Predicated region
    $region42: #{transformer_forward.7} parent=1 // pred_check
      _
    $region43: #{transformer_forward.7} parent=1 // pred_check_branch
      %93 = sbr.rel (0) target = $region45
    $region44: #{transformer_forward.7} parent=1 // pred_region
      %s95 = ssub.s32 16, 16
      %96 = vsyncadd [#allocation11], %s95
      %s98 = sshll.u32 [#allocation12], 4
      %s99 = int_to_ptr.vmem [resolvable:$true] %s98
      %101 = dma.hbm_to_vmem [thread:$0]  %s10, 16, %s99, [#allocation11]
    $region45: #{transformer_forward.7} parent=1 // pred_fallthru
      _
    // Predicated region
    $region46: #{transformer_forward.7} parent=1 // pred_check
      _
    $region47: #{transformer_forward.7} parent=1 // pred_check_branch
      %103 = sbr.rel (0) target = $region49
    $region48: #{transformer_forward.7} parent=1 // pred_region
      %104 = dma.done [#allocation3], 64
    $region49: #{transformer_forward.7} parent=1 // pred_fallthru
      _
    // Predicated region
    $region50: #{transformer_forward.7} parent=1 // pred_check
      _
    $region51: #{transformer_forward.7} parent=1 // pred_check_branch
      %106 = sbr.rel (0) target = $region53
    $region52: #{transformer_forward.7} parent=1 // pred_region
      %107 = dma.done [#allocation5], 8192
    $region53: #{transformer_forward.7} parent=1 // pred_fallthru
      _
    // Predicated region
    $region54: #{transformer_forward.7} parent=1 // pred_check
      _
    $region55: #{transformer_forward.7} parent=1 // pred_check_branch
      %109 = sbr.rel (0) target = $region57
    $region56: #{transformer_forward.7} parent=1 // pred_region
      %110 = dma.done [#allocation5], 128
    $region57: #{transformer_forward.7} parent=1 // pred_fallthru
      _
    // Predicated region
    $region58: #{transformer_forward.7} parent=1 // pred_check
      _
    $region59: #{transformer_forward.7} parent=1 // pred_check_branch
      %112 = sbr.rel (0) target = $region61
    $region60: #{transformer_forward.7} parent=1 // pred_region
      %113 = dma.done [#allocation8], 4096
    $region61: #{transformer_forward.7} parent=1 // pred_fallthru
      _
    // Predicated region
    $region62: #{transformer_forward.7} parent=1 // pred_check
      _
    $region63: #{transformer_forward.7} parent=1 // pred_check_branch
      %115 = sbr.rel (0) target = $region65
    $region64: #{transformer_forward.7} parent=1 // pred_region
      %116 = dma.done [#allocation8], 16
    $region65: #{transformer_forward.7} parent=1 // pred_fallthru
      _
    // Predicated region
    $region66: #{transformer_forward.7} parent=1 // pred_check
      _
    $region67: #{transformer_forward.7} parent=1 // pred_check_branch
      %118 = sbr.rel (0) target = $region69
    $region68: #{transformer_forward.7} parent=1 // pred_region
      %119 = dma.done [#allocation11], 16
    $region69: #{transformer_forward.7} parent=1 // pred_fallthru
      _
    // Predicated region
    $region70: #{transformer_forward.7} parent=1 // pred_check
      _
    $region71: #{transformer_forward.7} parent=1 // pred_check_branch
      %121 = sbr.rel (0) target = $region73
    $region72: #{transformer_forward.7} parent=1 // pred_region
      %122 = dma.done [#allocation11], 16
    $region73: #{transformer_forward.7} parent=1 // pred_fallthru
      _
    %v124 = vld [vmem:[%s0] sm:$0xff]
    %v125 = vld [vmem:[%s0 + $0x8] sm:$0xff]
    %v126 = vpack.c.bf16 %v125, %v124
    %v127 = vld [vmem:[%s2] sm:$0xff]
    %v128 = vld [vmem:[%s2 + $0x8] sm:$0xff]
    %v129 = vld [vmem:[%s2 + $0x10] sm:$0xff]
    %v130 = vld [vmem:[%s2 + $0x18] sm:$0xff]
    %v131 = vld [vmem:[%s2 + $0x20] sm:$0xff]
    %v132 = vld [vmem:[%s2 + $0x28] sm:$0xff]
    %v133 = vld [vmem:[%s2 + $0x30] sm:$0xff]
    %v134 = vld [vmem:[%s2 + $0x38] sm:$0xff]
    %v135 = vld [vmem:[%s2 + $0x40] sm:$0xff]
    %v136 = vld [vmem:[%s2 + $0x48] sm:$0xff]
    %v137 = vld [vmem:[%s2 + $0x50] sm:$0xff]
    %v138 = vld [vmem:[%s2 + $0x58] sm:$0xff]
    %v139 = vld [vmem:[%s2 + $0x60] sm:$0xff]
    %v140 = vld [vmem:[%s2 + $0x68] sm:$0xff]
    %v141 = vld [vmem:[%s2 + $0x70] sm:$0xff]
    %v142 = vld [vmem:[%s2 + $0x78] sm:$0xff]
    %v143 = vld [vmem:[%s2 + $0x80] sm:$0xff]
    %v144 = vld [vmem:[%s2 + $0x88] sm:$0xff]
    %v145 = vld [vmem:[%s2 + $0x90] sm:$0xff]
    %v146 = vld [vmem:[%s2 + $0x98] sm:$0xff]
    %v147 = vld [vmem:[%s2 + $0xa0] sm:$0xff]
    %v148 = vld [vmem:[%s2 + $0xa8] sm:$0xff]
    %v149 = vld [vmem:[%s2 + $0xb0] sm:$0xff]
    %v150 = vld [vmem:[%s2 + $0xb8] sm:$0xff]
    %v151 = vld [vmem:[%s2 + $0xc0] sm:$0xff]
    %v152 = vld [vmem:[%s2 + $0xc8] sm:$0xff]
    %v153 = vld [vmem:[%s2 + $0xd0] sm:$0xff]
    %v154 = vld [vmem:[%s2 + $0xd8] sm:$0xff]
    %v155 = vld [vmem:[%s2 + $0xe0] sm:$0xff]
    %v156 = vld [vmem:[%s2 + $0xe8] sm:$0xff]
    %v157 = vld [vmem:[%s2 + $0xf0] sm:$0xff]
    %v158 = vld [vmem:[%s2 + $0xf8] sm:$0xff]
    %v159 = vld [vmem:[#allocation2] sm:$0xf]
    %v161 = vlaneseq
    %v162 = vshrl.u32 %v161, 7
    %v163 = vsub.s32 0, %v162
    %v164 = vrot.slane %v159, %v163
    %v165 = vlaneseq
    %v166 = vshrl.u32 %v165, 7
    %v167 = vsub.s32 1, %v166
    %v168 = vrot.slane %v159, %v167
    %v169 = vlaneseq
    %v170 = vshrl.u32 %v169, 7
    %v171 = vsub.s32 2, %v170
    %v172 = vrot.slane %v159, %v171
    %v173 = vlaneseq
    %v174 = vshrl.u32 %v173, 7
    %v175 = vsub.s32 3, %v174
    %v176 = vrot.slane %v159, %v175
    %v213 = vunpack.c.l.b16 %v127
    %v214 = vunpack.c.h.b16 %v127
    %v215 = vunpack.c.l.b16 %v128
    %v216 = vunpack.c.h.b16 %v128
    %v217 = vunpack.c.l.b16 %v129
    %v218 = vunpack.c.h.b16 %v129
    %v219 = vunpack.c.l.b16 %v130
    %v220 = vunpack.c.h.b16 %v130
    %v221 = vunpack.c.l.b16 %v131
    %v222 = vunpack.c.h.b16 %v131
    %v223 = vunpack.c.l.b16 %v132
    %v224 = vunpack.c.h.b16 %v132
    %v225 = vunpack.c.l.b16 %v133
    %v226 = vunpack.c.h.b16 %v133
    %v227 = vunpack.c.l.b16 %v134
    %v228 = vunpack.c.h.b16 %v134
    %v229 = vunpack.c.l.b16 %v135
    %v230 = vunpack.c.h.b16 %v135
    %v231 = vunpack.c.l.b16 %v136
    %v232 = vunpack.c.h.b16 %v136
    %v233 = vunpack.c.l.b16 %v137
    %v234 = vunpack.c.h.b16 %v137
    %v235 = vunpack.c.l.b16 %v138
    %v236 = vunpack.c.h.b16 %v138
    %v237 = vunpack.c.l.b16 %v139
    %v238 = vunpack.c.h.b16 %v139
    %v239 = vunpack.c.l.b16 %v140
    %v240 = vunpack.c.h.b16 %v140
    %v241 = vunpack.c.l.b16 %v141
    %v242 = vunpack.c.h.b16 %v141
    %v243 = vunpack.c.l.b16 %v142
    %v244 = vunpack.c.h.b16 %v142
    %v245 = vunpack.c.l.b16 %v143
    %v246 = vunpack.c.h.b16 %v143
    %v247 = vunpack.c.l.b16 %v144
    %v248 = vunpack.c.h.b16 %v144
    %v249 = vunpack.c.l.b16 %v145
    %v250 = vunpack.c.h.b16 %v145
    %v251 = vunpack.c.l.b16 %v146
    %v252 = vunpack.c.h.b16 %v146
    %v253 = vunpack.c.l.b16 %v147
    %v254 = vunpack.c.h.b16 %v147
    %v255 = vunpack.c.l.b16 %v148
    %v256 = vunpack.c.h.b16 %v148
    %v257 = vunpack.c.l.b16 %v149
    %v258 = vunpack.c.h.b16 %v149
    %v259 = vunpack.c.l.b16 %v150
    %v260 = vunpack.c.h.b16 %v150
    %v261 = vunpack.c.l.b16 %v151
    %v262 = vunpack.c.h.b16 %v151
    %v263 = vunpack.c.l.b16 %v152
    %v264 = vunpack.c.h.b16 %v152
    %v265 = vunpack.c.l.b16 %v153
    %v266 = vunpack.c.h.b16 %v153
    %v267 = vunpack.c.l.b16 %v154
    %v268 = vunpack.c.h.b16 %v154
    %v269 = vunpack.c.l.b16 %v155
    %v270 = vunpack.c.h.b16 %v155
    %v271 = vunpack.c.l.b16 %v156
    %v272 = vunpack.c.h.b16 %v156
    %v273 = vunpack.c.l.b16 %v157
    %v274 = vunpack.c.h.b16 %v157
    %v275 = vunpack.c.l.b16 %v158
    %v276 = vunpack.c.h.b16 %v158
    %v277 = vpack.c.b16 %v217, %v213
    %v278 = vpack.c.b16 %v218, %v214
    %v279 = vpack.c.b16 %v219, %v215
    %v280 = vpack.c.b16 %v220, %v216
    %v281 = vpack.c.b16 %v225, %v221
    %v282 = vpack.c.b16 %v226, %v222
    %v283 = vpack.c.b16 %v227, %v223
    %v284 = vpack.c.b16 %v228, %v224
    %v285 = vpack.c.b16 %v233, %v229
    %v286 = vpack.c.b16 %v234, %v230
    %v287 = vpack.c.b16 %v235, %v231
    %v288 = vpack.c.b16 %v236, %v232
    %v289 = vpack.c.b16 %v241, %v237
    %v290 = vpack.c.b16 %v242, %v238
    %v291 = vpack.c.b16 %v243, %v239
    %v292 = vpack.c.b16 %v244, %v240
    %v293 = vpack.c.b16 %v249, %v245
    %v294 = vpack.c.b16 %v250, %v246
    %v295 = vpack.c.b16 %v251, %v247
    %v296 = vpack.c.b16 %v252, %v248
    %v297 = vpack.c.b16 %v257, %v253
    %v298 = vpack.c.b16 %v258, %v254
    %v299 = vpack.c.b16 %v259, %v255
    %v300 = vpack.c.b16 %v260, %v256
    %v301 = vpack.c.b16 %v265, %v261
    %v302 = vpack.c.b16 %v266, %v262
    %v303 = vpack.c.b16 %v267, %v263
    %v304 = vpack.c.b16 %v268, %v264
    %v305 = vpack.c.b16 %v273, %v269
    %v306 = vpack.c.b16 %v274, %v270
    %v307 = vpack.c.b16 %v275, %v271
    %v308 = vpack.c.b16 %v276, %v272
    %341 = vmatprep.subr.bf16.mxu0 %v278
    %342 = vmatpush1.bf16.msra.mxu0 %v277
    %343 = vmatprep.subr.bf16.mxu0 %v282
    %344 = vmatpush1.bf16.msra.mxu0 %v281
    %345 = vmatprep.subr.bf16.mxu0 %v286
    %346 = vmatpush1.bf16.msra.mxu0 %v285
    %347 = vmatprep.subr.bf16.mxu0 %v290
    %348 = vmatpush1.bf16.msra.mxu0 %v289
    %349 = vmatprep.subr.bf16.mxu0 %v294
    %350 = vmatpush1.bf16.msra.mxu0 %v293
    %351 = vmatprep.subr.bf16.mxu0 %v298
    %352 = vmatpush1.bf16.msra.mxu0 %v297
    %353 = vmatprep.subr.bf16.mxu0 %v302
    %354 = vmatpush1.bf16.msra.mxu0 %v301
    %355 = vmatprep.subr.bf16.mxu0 %v306
    %356 = vmatpush1.bf16.msra.mxu0 %v305
    %357 = vmatprep.subr.bf16.mxu0 0
    %358 = vmatpush1.bf16.msra.mxu0 0
    %359 = vmatprep.subr.bf16.mxu0 0
    %360 = vmatpush1.bf16.msra.mxu0 0
    %361 = vmatprep.subr.bf16.mxu0 0
    %362 = vmatpush1.bf16.msra.mxu0 0
    %363 = vmatprep.subr.bf16.mxu0 0
    %364 = vmatpush1.bf16.msra.mxu0 0
    %365 = vmatprep.subr.bf16.mxu0 0
    %366 = vmatpush1.bf16.msra.mxu0 0
    %367 = vmatprep.subr.bf16.mxu0 0
    %368 = vmatpush1.bf16.msra.mxu0 0
    %369 = vmatprep.subr.bf16.mxu0 0
    %370 = vmatpush1.bf16.msra.mxu0 0
    %371 = vmatprep.subr.bf16.mxu0 0
    %372 = vmatpush1.bf16.msra.mxu0 0
    %373 = vmatprep.mubr.bf16.mxu0 0
    %374 = vmatmul.mubr.bf16.gmra.mrb[0].mxu0 %v126
    %v375 = vpop.f32.mrb[0].mxu0
    %v376 = vadd.f32 %v164, %v375
    %v377 = vpop.f32.mrb[0].mxu0
    %v378 = vadd.f32 %v168, %v377
    %v379 = vpop.f32.mrb[0].mxu0
    %v380 = vadd.f32 %v164, %v379
    %v381 = vpop.f32.mrb[0].mxu0
    %v382 = vadd.f32 %v168, %v381
    %383 = vdwg.mxu0
    %384 = vmatprep.subr.bf16.mxu0 %v280
    %385 = vmatpush1.bf16.msra.mxu0 %v279
    %386 = vmatprep.subr.bf16.mxu0 %v284
    %387 = vmatpush1.bf16.msra.mxu0 %v283
    %388 = vmatprep.subr.bf16.mxu0 %v288
    %389 = vmatpush1.bf16.msra.mxu0 %v287
    %390 = vmatprep.subr.bf16.mxu0 %v292
    %391 = vmatpush1.bf16.msra.mxu0 %v291
    %392 = vmatprep.subr.bf16.mxu0 %v296
    %393 = vmatpush1.bf16.msra.mxu0 %v295
    %394 = vmatprep.subr.bf16.mxu0 %v300
    %395 = vmatpush1.bf16.msra.mxu0 %v299
    %396 = vmatprep.subr.bf16.mxu0 %v304
    %397 = vmatpush1.bf16.msra.mxu0 %v303
    %398 = vmatprep.subr.bf16.mxu0 %v308
    %399 = vmatpush1.bf16.msra.mxu0 %v307
    %400 = vmatprep.subr.bf16.mxu0 0
    %401 = vmatpush1.bf16.msra.mxu0 0
    %402 = vmatprep.subr.bf16.mxu0 0
    %403 = vmatpush1.bf16.msra.mxu0 0
    %404 = vmatprep.subr.bf16.mxu0 0
    %405 = vmatpush1.bf16.msra.mxu0 0
    %406 = vmatprep.subr.bf16.mxu0 0
    %407 = vmatpush1.bf16.msra.mxu0 0
    %408 = vmatprep.subr.bf16.mxu0 0
    %409 = vmatpush1.bf16.msra.mxu0 0
    %410 = vmatprep.subr.bf16.mxu0 0
    %411 = vmatpush1.bf16.msra.mxu0 0
    %412 = vmatprep.subr.bf16.mxu0 0
    %413 = vmatpush1.bf16.msra.mxu0 0
    %414 = vmatprep.subr.bf16.mxu0 0
    %415 = vmatpush1.bf16.msra.mxu0 0
    %416 = vmatprep.mubr.bf16.mxu0 0
    %417 = vmatmul.mubr.bf16.gmra.mrb[0].mxu0 %v126
    %v418 = vpop.f32.mrb[0].mxu0
    %v419 = vadd.f32 %v172, %v418
    %v420 = vpop.f32.mrb[0].mxu0
    %v421 = vadd.f32 %v176, %v420
    %v422 = vpop.f32.mrb[0].mxu0
    %v423 = vadd.f32 %v172, %v422
    %v424 = vpop.f32.mrb[0].mxu0
    %v425 = vadd.f32 %v176, %v424
    %426 = vdwg.mxu0
    %v427 = vld [vmem:[%s1] sm:$0xff]
    %v428 = vld [vmem:[%s1 + $0x8] sm:$0xff]
    %v429 = vpack.c.bf16 %v428, %v427
    %v430 = vld [vmem:[#allocation4] sm:$0xff]
    %v431 = vld [vmem:[#allocation4 + $0x8] sm:$0xff]
    %v432 = vld [vmem:[#allocation4 + $0x10] sm:$0xff]
    %v433 = vld [vmem:[#allocation4 + $0x18] sm:$0xff]
    %v434 = vld [vmem:[#allocation4 + $0x20] sm:$0xff]
    %v435 = vld [vmem:[#allocation4 + $0x28] sm:$0xff]
    %v436 = vld [vmem:[#allocation4 + $0x30] sm:$0xff]
    %v437 = vld [vmem:[#allocation4 + $0x38] sm:$0xff]
    %v438 = vld [vmem:[#allocation4 + $0x40] sm:$0xff]
    %v439 = vld [vmem:[#allocation4 + $0x48] sm:$0xff]
    %v440 = vld [vmem:[#allocation4 + $0x50] sm:$0xff]
    %v441 = vld [vmem:[#allocation4 + $0x58] sm:$0xff]
    %v442 = vld [vmem:[#allocation4 + $0x60] sm:$0xff]
    %v443 = vld [vmem:[#allocation4 + $0x68] sm:$0xff]
    %v444 = vld [vmem:[#allocation4 + $0x70] sm:$0xff]
    %v445 = vld [vmem:[#allocation4 + $0x78] sm:$0xff]
    %v446 = vld [vmem:[#allocation4 + $0x80] sm:$0xff]
    %v447 = vld [vmem:[#allocation4 + $0x88] sm:$0xff]
    %v448 = vld [vmem:[#allocation4 + $0x90] sm:$0xff]
    %v449 = vld [vmem:[#allocation4 + $0x98] sm:$0xff]
    %v450 = vld [vmem:[#allocation4 + $0xa0] sm:$0xff]
    %v451 = vld [vmem:[#allocation4 + $0xa8] sm:$0xff]
    %v452 = vld [vmem:[#allocation4 + $0xb0] sm:$0xff]
    %v453 = vld [vmem:[#allocation4 + $0xb8] sm:$0xff]
    %v454 = vld [vmem:[#allocation4 + $0xc0] sm:$0xff]
    %v455 = vld [vmem:[#allocation4 + $0xc8] sm:$0xff]
    %v456 = vld [vmem:[#allocation4 + $0xd0] sm:$0xff]
    %v457 = vld [vmem:[#allocation4 + $0xd8] sm:$0xff]
    %v458 = vld [vmem:[#allocation4 + $0xe0] sm:$0xff]
    %v459 = vld [vmem:[#allocation4 + $0xe8] sm:$0xff]
    %v460 = vld [vmem:[#allocation4 + $0xf0] sm:$0xff]
    %v461 = vld [vmem:[#allocation4 + $0xf8] sm:$0xff]
    %v462 = vld [vmem:[#allocation4 + $0x100] sm:$0xff]
    %v463 = vld [vmem:[#allocation4 + $0x108] sm:$0xff]
    %v464 = vld [vmem:[#allocation4 + $0x110] sm:$0xff]
    %v465 = vld [vmem:[#allocation4 + $0x118] sm:$0xff]
    %v466 = vld [vmem:[#allocation4 + $0x120] sm:$0xff]
    %v467 = vld [vmem:[#allocation4 + $0x128] sm:$0xff]
    %v468 = vld [vmem:[#allocation4 + $0x130] sm:$0xff]
    %v469 = vld [vmem:[#allocation4 + $0x138] sm:$0xff]
    %v470 = vld [vmem:[#allocation4 + $0x140] sm:$0xff]
    %v471 = vld [vmem:[#allocation4 + $0x148] sm:$0xff]
    %v472 = vld [vmem:[#allocation4 + $0x150] sm:$0xff]
    %v473 = vld [vmem:[#allocation4 + $0x158] sm:$0xff]
    %v474 = vld [vmem:[#allocation4 + $0x160] sm:$0xff]
    %v475 = vld [vmem:[#allocation4 + $0x168] sm:$0xff]
    %v476 = vld [vmem:[#allocation4 + $0x170] sm:$0xff]
    %v477 = vld [vmem:[#allocation4 + $0x178] sm:$0xff]
    %v478 = vld [vmem:[#allocation4 + $0x180] sm:$0xff]
    %v479 = vld [vmem:[#allocation4 + $0x188] sm:$0xff]
    %v480 = vld [vmem:[#allocation4 + $0x190] sm:$0xff]
    %v481 = vld [vmem:[#allocation4 + $0x198] sm:$0xff]
    %v482 = vld [vmem:[#allocation4 + $0x1a0] sm:$0xff]
    %v483 = vld [vmem:[#allocation4 + $0x1a8] sm:$0xff]
    %v484 = vld [vmem:[#allocation4 + $0x1b0] sm:$0xff]
    %v485 = vld [vmem:[#allocation4 + $0x1b8] sm:$0xff]
    %v486 = vld [vmem:[#allocation4 + $0x1c0] sm:$0xff]
    %v487 = vld [vmem:[#allocation4 + $0x1c8] sm:$0xff]
    %v488 = vld [vmem:[#allocation4 + $0x1d0] sm:$0xff]
    %v489 = vld [vmem:[#allocation4 + $0x1d8] sm:$0xff]
    %v490 = vld [vmem:[#allocation4 + $0x1e0] sm:$0xff]
    %v491 = vld [vmem:[#allocation4 + $0x1e8] sm:$0xff]
    %v492 = vld [vmem:[#allocation4 + $0x1f0] sm:$0xff]
    %v493 = vld [vmem:[#allocation4 + $0x1f8] sm:$0xff]
    %v494 = vld [vmem:[#allocation6] sm:$0xff]
    %v496 = vlaneseq
    %v497 = vshrl.u32 %v496, 7
    %v498 = vsub.s32 0, %v497
    %v499 = vrot.slane %v494, %v498
    %v500 = vlaneseq
    %v501 = vshrl.u32 %v500, 7
    %v502 = vsub.s32 1, %v501
    %v503 = vrot.slane %v494, %v502
    %v504 = vlaneseq
    %v505 = vshrl.u32 %v504, 7
    %v506 = vsub.s32 2, %v505
    %v507 = vrot.slane %v494, %v506
    %v508 = vlaneseq
    %v509 = vshrl.u32 %v508, 7
    %v510 = vsub.s32 3, %v509
    %v511 = vrot.slane %v494, %v510
    %v512 = vlaneseq
    %v513 = vshrl.u32 %v512, 7
    %v514 = vsub.s32 4, %v513
    %v515 = vrot.slane %v494, %v514
    %v516 = vlaneseq
    %v517 = vshrl.u32 %v516, 7
    %v518 = vsub.s32 5, %v517
    %v519 = vrot.slane %v494, %v518
    %v520 = vlaneseq
    %v521 = vshrl.u32 %v520, 7
    %v522 = vsub.s32 6, %v521
    %v523 = vrot.slane %v494, %v522
    %v524 = vlaneseq
    %v525 = vshrl.u32 %v524, 7
    %v526 = vsub.s32 7, %v525
    %v527 = vrot.slane %v494, %v526
    %v600 = vunpack.c.l.b16 %v430
    %v601 = vunpack.c.h.b16 %v430
    %v602 = vunpack.c.l.b16 %v431
    %v603 = vunpack.c.h.b16 %v431
    %v604 = vunpack.c.l.b16 %v432
    %v605 = vunpack.c.h.b16 %v432
    %v606 = vunpack.c.l.b16 %v433
    %v607 = vunpack.c.h.b16 %v433
    %v608 = vunpack.c.l.b16 %v434
    %v609 = vunpack.c.h.b16 %v434
    %v610 = vunpack.c.l.b16 %v435
    %v611 = vunpack.c.h.b16 %v435
    %v612 = vunpack.c.l.b16 %v436
    %v613 = vunpack.c.h.b16 %v436
    %v614 = vunpack.c.l.b16 %v437
    %v615 = vunpack.c.h.b16 %v437
    %v616 = vunpack.c.l.b16 %v438
    %v617 = vunpack.c.h.b16 %v438
    %v618 = vunpack.c.l.b16 %v439
    %v619 = vunpack.c.h.b16 %v439
    %v620 = vunpack.c.l.b16 %v440
    %v621 = vunpack.c.h.b16 %v440
    %v622 = vunpack.c.l.b16 %v441
    %v623 = vunpack.c.h.b16 %v441
    %v624 = vunpack.c.l.b16 %v442
    %v625 = vunpack.c.h.b16 %v442
    %v626 = vunpack.c.l.b16 %v443
    %v627 = vunpack.c.h.b16 %v443
    %v628 = vunpack.c.l.b16 %v444
    %v629 = vunpack.c.h.b16 %v444
    %v630 = vunpack.c.l.b16 %v445
    %v631 = vunpack.c.h.b16 %v445
    %v632 = vunpack.c.l.b16 %v446
    %v633 = vunpack.c.h.b16 %v446
    %v634 = vunpack.c.l.b16 %v447
    %v635 = vunpack.c.h.b16 %v447
    %v636 = vunpack.c.l.b16 %v448
    %v637 = vunpack.c.h.b16 %v448
    %v638 = vunpack.c.l.b16 %v449
    %v639 = vunpack.c.h.b16 %v449
    %v640 = vunpack.c.l.b16 %v450
    %v641 = vunpack.c.h.b16 %v450
    %v642 = vunpack.c.l.b16 %v451
    %v643 = vunpack.c.h.b16 %v451
    %v644 = vunpack.c.l.b16 %v452
    %v645 = vunpack.c.h.b16 %v452
    %v646 = vunpack.c.l.b16 %v453
    %v647 = vunpack.c.h.b16 %v453
    %v648 = vunpack.c.l.b16 %v454
    %v649 = vunpack.c.h.b16 %v454
    %v650 = vunpack.c.l.b16 %v455
    %v651 = vunpack.c.h.b16 %v455
    %v652 = vunpack.c.l.b16 %v456
    %v653 = vunpack.c.h.b16 %v456
    %v654 = vunpack.c.l.b16 %v457
    %v655 = vunpack.c.h.b16 %v457
    %v656 = vunpack.c.l.b16 %v458
    %v657 = vunpack.c.h.b16 %v458
    %v658 = vunpack.c.l.b16 %v459
    %v659 = vunpack.c.h.b16 %v459
    %v660 = vunpack.c.l.b16 %v460
    %v661 = vunpack.c.h.b16 %v460
    %v662 = vunpack.c.l.b16 %v461
    %v663 = vunpack.c.h.b16 %v461
    %v664 = vunpack.c.l.b16 %v462
    %v665 = vunpack.c.h.b16 %v462
    %v666 = vunpack.c.l.b16 %v463
    %v667 = vunpack.c.h.b16 %v463
    %v668 = vunpack.c.l.b16 %v464
    %v669 = vunpack.c.h.b16 %v464
    %v670 = vunpack.c.l.b16 %v465
    %v671 = vunpack.c.h.b16 %v465
    %v672 = vunpack.c.l.b16 %v466
    %v673 = vunpack.c.h.b16 %v466
    %v674 = vunpack.c.l.b16 %v467
    %v675 = vunpack.c.h.b16 %v467
    %v676 = vunpack.c.l.b16 %v468
    %v677 = vunpack.c.h.b16 %v468
    %v678 = vunpack.c.l.b16 %v469
    %v679 = vunpack.c.h.b16 %v469
    %v680 = vunpack.c.l.b16 %v470
    %v681 = vunpack.c.h.b16 %v470
    %v682 = vunpack.c.l.b16 %v471
    %v683 = vunpack.c.h.b16 %v471
    %v684 = vunpack.c.l.b16 %v472
    %v685 = vunpack.c.h.b16 %v472
    %v686 = vunpack.c.l.b16 %v473
    %v687 = vunpack.c.h.b16 %v473
    %v688 = vunpack.c.l.b16 %v474
    %v689 = vunpack.c.h.b16 %v474
    %v690 = vunpack.c.l.b16 %v475
    %v691 = vunpack.c.h.b16 %v475
    %v692 = vunpack.c.l.b16 %v476
    %v693 = vunpack.c.h.b16 %v476
    %v694 = vunpack.c.l.b16 %v477
    %v695 = vunpack.c.h.b16 %v477
    %v696 = vunpack.c.l.b16 %v478
    %v697 = vunpack.c.h.b16 %v478
    %v698 = vunpack.c.l.b16 %v479
    %v699 = vunpack.c.h.b16 %v479
    %v700 = vunpack.c.l.b16 %v480
    %v701 = vunpack.c.h.b16 %v480
    %v702 = vunpack.c.l.b16 %v481
    %v703 = vunpack.c.h.b16 %v481
    %v704 = vunpack.c.l.b16 %v482
    %v705 = vunpack.c.h.b16 %v482
    %v706 = vunpack.c.l.b16 %v483
    %v707 = vunpack.c.h.b16 %v483
    %v708 = vunpack.c.l.b16 %v484
    %v709 = vunpack.c.h.b16 %v484
    %v710 = vunpack.c.l.b16 %v485
    %v711 = vunpack.c.h.b16 %v485
    %v712 = vunpack.c.l.b16 %v486
    %v713 = vunpack.c.h.b16 %v486
    %v714 = vunpack.c.l.b16 %v487
    %v715 = vunpack.c.h.b16 %v487
    %v716 = vunpack.c.l.b16 %v488
    %v717 = vunpack.c.h.b16 %v488
    %v718 = vunpack.c.l.b16 %v489
    %v719 = vunpack.c.h.b16 %v489
    %v720 = vunpack.c.l.b16 %v490
    %v721 = vunpack.c.h.b16 %v490
    %v722 = vunpack.c.l.b16 %v491
    %v723 = vunpack.c.h.b16 %v491
    %v724 = vunpack.c.l.b16 %v492
    %v725 = vunpack.c.h.b16 %v492
    %v726 = vunpack.c.l.b16 %v493
    %v727 = vunpack.c.h.b16 %v493
    %v728 = vpack.c.b16 %v608, %v600
    %v729 = vpack.c.b16 %v609, %v601
    %v730 = vpack.c.b16 %v610, %v602
    %v731 = vpack.c.b16 %v611, %v603
    %v732 = vpack.c.b16 %v612, %v604
    %v733 = vpack.c.b16 %v613, %v605
    %v734 = vpack.c.b16 %v614, %v606
    %v735 = vpack.c.b16 %v615, %v607
    %v736 = vpack.c.b16 %v624, %v616
    %v737 = vpack.c.b16 %v625, %v617
    %v738 = vpack.c.b16 %v626, %v618
    %v739 = vpack.c.b16 %v627, %v619
    %v740 = vpack.c.b16 %v628, %v620
    %v741 = vpack.c.b16 %v629, %v621
    %v742 = vpack.c.b16 %v630, %v622
    %v743 = vpack.c.b16 %v631, %v623
    %v744 = vpack.c.b16 %v640, %v632
    %v745 = vpack.c.b16 %v641, %v633
    %v746 = vpack.c.b16 %v642, %v634
    %v747 = vpack.c.b16 %v643, %v635
    %v748 = vpack.c.b16 %v644, %v636
    %v749 = vpack.c.b16 %v645, %v637
    %v750 = vpack.c.b16 %v646, %v638
    %v751 = vpack.c.b16 %v647, %v639
    %v752 = vpack.c.b16 %v656, %v648
    %v753 = vpack.c.b16 %v657, %v649
    %v754 = vpack.c.b16 %v658, %v650
    %v755 = vpack.c.b16 %v659, %v651
    %v756 = vpack.c.b16 %v660, %v652
    %v757 = vpack.c.b16 %v661, %v653
    %v758 = vpack.c.b16 %v662, %v654
    %v759 = vpack.c.b16 %v663, %v655
    %v760 = vpack.c.b16 %v672, %v664
    %v761 = vpack.c.b16 %v673, %v665
    %v762 = vpack.c.b16 %v674, %v666
    %v763 = vpack.c.b16 %v675, %v667
    %v764 = vpack.c.b16 %v676, %v668
    %v765 = vpack.c.b16 %v677, %v669
    %v766 = vpack.c.b16 %v678, %v670
    %v767 = vpack.c.b16 %v679, %v671
    %v768 = vpack.c.b16 %v688, %v680
    %v769 = vpack.c.b16 %v689, %v681
    %v770 = vpack.c.b16 %v690, %v682
    %v771 = vpack.c.b16 %v691, %v683
    %v772 = vpack.c.b16 %v692, %v684
    %v773 = vpack.c.b16 %v693, %v685
    %v774 = vpack.c.b16 %v694, %v686
    %v775 = vpack.c.b16 %v695, %v687
    %v776 = vpack.c.b16 %v704, %v696
    %v777 = vpack.c.b16 %v705, %v697
    %v778 = vpack.c.b16 %v706, %v698
    %v779 = vpack.c.b16 %v707, %v699
    %v780 = vpack.c.b16 %v708, %v700
    %v781 = vpack.c.b16 %v709, %v701
    %v782 = vpack.c.b16 %v710, %v702
    %v783 = vpack.c.b16 %v711, %v703
    %v784 = vpack.c.b16 %v720, %v712
    %v785 = vpack.c.b16 %v721, %v713
    %v786 = vpack.c.b16 %v722, %v714
    %v787 = vpack.c.b16 %v723, %v715
    %v788 = vpack.c.b16 %v724, %v716
    %v789 = vpack.c.b16 %v725, %v717
    %v790 = vpack.c.b16 %v726, %v718
    %v791 = vpack.c.b16 %v727, %v719
    %856 = vmatprep.subr.bf16.mxu0 %v729
    %857 = vmatpush1.bf16.msra.mxu0 %v728
    %858 = vmatprep.subr.bf16.mxu0 %v737
    %859 = vmatpush1.bf16.msra.mxu0 %v736
    %860 = vmatprep.subr.bf16.mxu0 %v745
    %861 = vmatpush1.bf16.msra.mxu0 %v744
    %862 = vmatprep.subr.bf16.mxu0 %v753
    %863 = vmatpush1.bf16.msra.mxu0 %v752
    %864 = vmatprep.subr.bf16.mxu0 %v761
    %865 = vmatpush1.bf16.msra.mxu0 %v760
    %866 = vmatprep.subr.bf16.mxu0 %v769
    %867 = vmatpush1.bf16.msra.mxu0 %v768
    %868 = vmatprep.subr.bf16.mxu0 %v777
    %869 = vmatpush1.bf16.msra.mxu0 %v776
    %870 = vmatprep.subr.bf16.mxu0 %v785
    %871 = vmatpush1.bf16.msra.mxu0 %v784
    %872 = vmatprep.subr.bf16.mxu0 0
    %873 = vmatpush1.bf16.msra.mxu0 0
    %874 = vmatprep.subr.bf16.mxu0 0
    %875 = vmatpush1.bf16.msra.mxu0 0
    %876 = vmatprep.subr.bf16.mxu0 0
    %877 = vmatpush1.bf16.msra.mxu0 0
    %878 = vmatprep.subr.bf16.mxu0 0
    %879 = vmatpush1.bf16.msra.mxu0 0
    %880 = vmatprep.subr.bf16.mxu0 0
    %881 = vmatpush1.bf16.msra.mxu0 0
    %882 = vmatprep.subr.bf16.mxu0 0
    %883 = vmatpush1.bf16.msra.mxu0 0
    %884 = vmatprep.subr.bf16.mxu0 0
    %885 = vmatpush1.bf16.msra.mxu0 0
    %886 = vmatprep.subr.bf16.mxu0 0
    %887 = vmatpush1.bf16.msra.mxu0 0
    %888 = vmatprep.mubr.bf16.mxu0 0
    %889 = vmatmul.mubr.bf16.gmra.mrb[0].mxu0 %v429
    %v890 = vpop.f32.mrb[0].mxu0
    %v891 = vadd.f32 %v499, %v890
    %v892 = vpop.f32.mrb[0].mxu0
    %v893 = vadd.f32 %v503, %v892
    %v894 = vpop.f32.mrb[0].mxu0
    %v895 = vadd.f32 %v499, %v894
    %v896 = vpop.f32.mrb[0].mxu0
    %v897 = vadd.f32 %v503, %v896
    %898 = vdwg.mxu0
    %899 = vmatprep.subr.bf16.mxu0 %v731
    %900 = vmatpush1.bf16.msra.mxu0 %v730
    %901 = vmatprep.subr.bf16.mxu0 %v739
    %902 = vmatpush1.bf16.msra.mxu0 %v738
    %903 = vmatprep.subr.bf16.mxu0 %v747
    %904 = vmatpush1.bf16.msra.mxu0 %v746
    %905 = vmatprep.subr.bf16.mxu0 %v755
    %906 = vmatpush1.bf16.msra.mxu0 %v754
    %907 = vmatprep.subr.bf16.mxu0 %v763
    %908 = vmatpush1.bf16.msra.mxu0 %v762
    %909 = vmatprep.subr.bf16.mxu0 %v771
    %910 = vmatpush1.bf16.msra.mxu0 %v770
    %911 = vmatprep.subr.bf16.mxu0 %v779
    %912 = vmatpush1.bf16.msra.mxu0 %v778
    %913 = vmatprep.subr.bf16.mxu0 %v787
    %914 = vmatpush1.bf16.msra.mxu0 %v786
    %915 = vmatprep.subr.bf16.mxu0 0
    %916 = vmatpush1.bf16.msra.mxu0 0
    %917 = vmatprep.subr.bf16.mxu0 0
    %918 = vmatpush1.bf16.msra.mxu0 0
    %919 = vmatprep.subr.bf16.mxu0 0
    %920 = vmatpush1.bf16.msra.mxu0 0
    %921 = vmatprep.subr.bf16.mxu0 0
    %922 = vmatpush1.bf16.msra.mxu0 0
    %923 = vmatprep.subr.bf16.mxu0 0
    %924 = vmatpush1.bf16.msra.mxu0 0
    %925 = vmatprep.subr.bf16.mxu0 0
    %926 = vmatpush1.bf16.msra.mxu0 0
    %927 = vmatprep.subr.bf16.mxu0 0
    %928 = vmatpush1.bf16.msra.mxu0 0
    %929 = vmatprep.subr.bf16.mxu0 0
    %930 = vmatpush1.bf16.msra.mxu0 0
    %931 = vmatprep.mubr.bf16.mxu0 0
    %932 = vmatmul.mubr.bf16.gmra.mrb[0].mxu0 %v429
    %v933 = vpop.f32.mrb[0].mxu0
    %v934 = vadd.f32 %v507, %v933
    %v935 = vpop.f32.mrb[0].mxu0
    %v936 = vadd.f32 %v511, %v935
    %v937 = vpop.f32.mrb[0].mxu0
    %v938 = vadd.f32 %v507, %v937
    %v939 = vpop.f32.mrb[0].mxu0
    %v940 = vadd.f32 %v511, %v939
    %941 = vdwg.mxu0
    %942 = vmatprep.subr.bf16.mxu0 %v733
    %943 = vmatpush1.bf16.msra.mxu0 %v732
    %944 = vmatprep.subr.bf16.mxu0 %v741
    %945 = vmatpush1.bf16.msra.mxu0 %v740
    %946 = vmatprep.subr.bf16.mxu0 %v749
    %947 = vmatpush1.bf16.msra.mxu0 %v748
    %948 = vmatprep.subr.bf16.mxu0 %v757
    %949 = vmatpush1.bf16.msra.mxu0 %v756
    %950 = vmatprep.subr.bf16.mxu0 %v765
    %951 = vmatpush1.bf16.msra.mxu0 %v764
    %952 = vmatprep.subr.bf16.mxu0 %v773
    %953 = vmatpush1.bf16.msra.mxu0 %v772
    %954 = vmatprep.subr.bf16.mxu0 %v781
    %955 = vmatpush1.bf16.msra.mxu0 %v780
    %956 = vmatprep.subr.bf16.mxu0 %v789
    %957 = vmatpush1.bf16.msra.mxu0 %v788
    %958 = vmatprep.subr.bf16.mxu0 0
    %959 = vmatpush1.bf16.msra.mxu0 0
    %960 = vmatprep.subr.bf16.mxu0 0
    %961 = vmatpush1.bf16.msra.mxu0 0
    %962 = vmatprep.subr.bf16.mxu0 0
    %963 = vmatpush1.bf16.msra.mxu0 0
    %964 = vmatprep.subr.bf16.mxu0 0
    %965 = vmatpush1.bf16.msra.mxu0 0
    %966 = vmatprep.subr.bf16.mxu0 0
    %967 = vmatpush1.bf16.msra.mxu0 0
    %968 = vmatprep.subr.bf16.mxu0 0
    %969 = vmatpush1.bf16.msra.mxu0 0
    %970 = vmatprep.subr.bf16.mxu0 0
    %971 = vmatpush1.bf16.msra.mxu0 0
    %972 = vmatprep.subr.bf16.mxu0 0
    %973 = vmatpush1.bf16.msra.mxu0 0
    %974 = vmatprep.mubr.bf16.mxu0 0
    %975 = vmatmul.mubr.bf16.gmra.mrb[0].mxu0 %v429
    %v976 = vpop.f32.mrb[0].mxu0
    %v977 = vadd.f32 %v515, %v976
    %v978 = vpop.f32.mrb[0].mxu0
    %v979 = vadd.f32 %v519, %v978
    %v980 = vpop.f32.mrb[0].mxu0
    %v981 = vadd.f32 %v515, %v980
    %v982 = vpop.f32.mrb[0].mxu0
    %v983 = vadd.f32 %v519, %v982
    %984 = vdwg.mxu0
    %985 = vmatprep.subr.bf16.mxu0 %v735
    %986 = vmatpush1.bf16.msra.mxu0 %v734
    %987 = vmatprep.subr.bf16.mxu0 %v743
    %988 = vmatpush1.bf16.msra.mxu0 %v742
    %989 = vmatprep.subr.bf16.mxu0 %v751
    %990 = vmatpush1.bf16.msra.mxu0 %v750
    %991 = vmatprep.subr.bf16.mxu0 %v759
    %992 = vmatpush1.bf16.msra.mxu0 %v758
    %993 = vmatprep.subr.bf16.mxu0 %v767
    %994 = vmatpush1.bf16.msra.mxu0 %v766
    %995 = vmatprep.subr.bf16.mxu0 %v775
    %996 = vmatpush1.bf16.msra.mxu0 %v774
    %997 = vmatprep.subr.bf16.mxu0 %v783
    %998 = vmatpush1.bf16.msra.mxu0 %v782
    %999 = vmatprep.subr.bf16.mxu0 %v791
    %1000 = vmatpush1.bf16.msra.mxu0 %v790
    %1001 = vmatprep.subr.bf16.mxu0 0
    %1002 = vmatpush1.bf16.msra.mxu0 0
    %1003 = vmatprep.subr.bf16.mxu0 0
    %1004 = vmatpush1.bf16.msra.mxu0 0
    %1005 = vmatprep.subr.bf16.mxu0 0
    %1006 = vmatpush1.bf16.msra.mxu0 0
    %1007 = vmatprep.subr.bf16.mxu0 0
    %1008 = vmatpush1.bf16.msra.mxu0 0
    %1009 = vmatprep.subr.bf16.mxu0 0
    %1010 = vmatpush1.bf16.msra.mxu0 0
    %1011 = vmatprep.subr.bf16.mxu0 0
    %1012 = vmatpush1.bf16.msra.mxu0 0
    %1013 = vmatprep.subr.bf16.mxu0 0
    %1014 = vmatpush1.bf16.msra.mxu0 0
    %1015 = vmatprep.subr.bf16.mxu0 0
    %1016 = vmatpush1.bf16.msra.mxu0 0
    %1017 = vmatprep.mubr.bf16.mxu0 0
    %1018 = vmatmul.mubr.bf16.gmra.mrb[0].mxu0 %v429
    %v1019 = vpop.f32.mrb[0].mxu0
    %v1020 = vadd.f32 %v523, %v1019
    %v1021 = vpop.f32.mrb[0].mxu0
    %v1022 = vadd.f32 %v527, %v1021
    %v1023 = vpop.f32.mrb[0].mxu0
    %v1024 = vadd.f32 %v523, %v1023
    %v1025 = vpop.f32.mrb[0].mxu0
    %v1026 = vadd.f32 %v527, %v1025
    %1027 = vdwg.mxu0
    %v1028 = vld [vmem:[#allocation9] sm:$0x1]
    %v1029 = vld [vmem:[#allocation10] sm:$0x1]
    %v1030 = vld [vmem:[#allocation12] sm:$0x1]
    %v1031 = vld [vmem:[%s8] sm:$0x1]
    %v1032 = vpack.c.bf16 %v376, %v376
    %v1033 = vpack.c.bf16 %v891, %v891
    %1034 = vmatprep.subr.bf16.mxu0 0
    %1035 = vmatpush1.bf16.xpose.msra.mxu0 %v1033
    %1036 = vmatprep.subr.bf16.mxu0 0
    %1037 = vmatpush1.bf16.xpose.msra.mxu0 0
    %1038 = vmatprep.subr.bf16.mxu0 0
    %1039 = vmatpush1.bf16.xpose.msra.mxu0 0
    %1040 = vmatprep.subr.bf16.mxu0 0
    %1041 = vmatpush1.bf16.xpose.msra.mxu0 0
    %1042 = vmatprep.subr.bf16.mxu0 0
    %1043 = vmatpush1.bf16.xpose.msra.mxu0 0
    %1044 = vmatprep.subr.bf16.mxu0 0
    %1045 = vmatpush1.bf16.xpose.msra.mxu0 0
    %1046 = vmatprep.subr.bf16.mxu0 0
    %1047 = vmatpush1.bf16.xpose.msra.mxu0 0
    %1048 = vmatprep.subr.bf16.mxu0 0
    %1049 = vmatpush1.bf16.xpose.msra.mxu0 0
    %1050 = vmatprep.subr.bf16.mxu0 0
    %1051 = vmatpush1.bf16.xpose.msra.mxu0 0
    %1052 = vmatprep.subr.bf16.mxu0 0
    %1053 = vmatpush1.bf16.xpose.msra.mxu0 0
    %1054 = vmatprep.subr.bf16.mxu0 0
    %1055 = vmatpush1.bf16.xpose.msra.mxu0 0
    %1056 = vmatprep.subr.bf16.mxu0 0
    %1057 = vmatpush1.bf16.xpose.msra.mxu0 0
    %1058 = vmatprep.subr.bf16.mxu0 0
    %1059 = vmatpush1.bf16.xpose.msra.mxu0 0
    %1060 = vmatprep.subr.bf16.mxu0 0
    %1061 = vmatpush1.bf16.xpose.msra.mxu0 0
    %1062 = vmatprep.subr.bf16.mxu0 0
    %1063 = vmatpush1.bf16.xpose.msra.mxu0 0
    %1064 = vmatprep.subr.bf16.mxu0 0
    %1065 = vmatpush1.bf16.xpose.msra.mxu0 0
    %1066 = vmatprep.mubr.bf16.mxu0 0
    %1067 = vmatmul.mubr.bf16.gmra.mrb[0].mxu0 %v1032
    %v1068 = vpop.f32.mrb[0].mxu0
    %v1069 = vadd.f32 0.0, %v1068
    %v1070 = vpop.f32.mrb[0].mxu0
    %v1071 = vpop.f32.mrb[0].mxu0
    %v1072 = vpop.f32.mrb[0].mxu0
    %1073 = vdwg.mxu0
    %v1074 = vmul.f32 %v1069, 0.35355338
    %v1076 = vlaneseq
    %v1077 = vshrl.u32 %v1076, 7
    %v1078 = vsub.s32 0, %v1077
    %v1079 = vrot.slane %v1031, %v1078
    %v1081 = vadd.f32 %v1074, %v1079
    %vm1082 = vcmask 64512
    %v1083 = vsel %vm1082, %v1081, -inf
    %1084 = vmax.xlane.f32.xlu0 %v1083
    %v1085 = vpop.xlane.xlu0 %1084
    %v1086 = vsub.f32 %v1081, %v1085
    %v1087 = vmul.f32 %v1086, 1.442695
    %v1088 = vpow.pop %v1087
    %v1089 = vsel %vm1082, %v1088, 0.0
    %1090 = vadd.xlane.f32.xlu0 %v1089
    %v1091 = vpop.xlane.xlu0 %1090
    %v1092 = vrcp.pop %v1091
    %v1093 = vmul.f32 %v1088, %v1092
    %v1094 = vpack.c.bf16 %v1093, %v1093
    %v1095 = vpack.c.bf16 %v977, %v977
    %v1097 = vsel %vm1082, %v1094, 0
    %vm1099 = vcmask 1043456
    %v1101 = vsel %vm1099, %v1095, 0
    %1103 = vmatprep.subr.bf16.mxu0 0
    %1104 = vmatpush1.bf16.msra.mxu0 %v1101
    %1105 = vmatprep.subr.bf16.mxu0 0
    %1106 = vmatpush1.bf16.msra.mxu0 0
    %1107 = vmatprep.subr.bf16.mxu0 0
    %1108 = vmatpush1.bf16.msra.mxu0 0
    %1109 = vmatprep.subr.bf16.mxu0 0
    %1110 = vmatpush1.bf16.msra.mxu0 0
    %1111 = vmatprep.subr.bf16.mxu0 0
    %1112 = vmatpush1.bf16.msra.mxu0 0
    %1113 = vmatprep.subr.bf16.mxu0 0
    %1114 = vmatpush1.bf16.msra.mxu0 0
    %1115 = vmatprep.subr.bf16.mxu0 0
    %1116 = vmatpush1.bf16.msra.mxu0 0
    %1117 = vmatprep.subr.bf16.mxu0 0
    %1118 = vmatpush1.bf16.msra.mxu0 0
    %1119 = vmatprep.subr.bf16.mxu0 0
    %1120 = vmatpush1.bf16.msra.mxu0 0
    %1121 = vmatprep.subr.bf16.mxu0 0
    %1122 = vmatpush1.bf16.msra.mxu0 0
    %1123 = vmatprep.subr.bf16.mxu0 0
    %1124 = vmatpush1.bf16.msra.mxu0 0
    %1125 = vmatprep.subr.bf16.mxu0 0
    %1126 = vmatpush1.bf16.msra.mxu0 0
    %1127 = vmatprep.subr.bf16.mxu0 0
    %1128 = vmatpush1.bf16.msra.mxu0 0
    %1129 = vmatprep.subr.bf16.mxu0 0
    %1130 = vmatpush1.bf16.msra.mxu0 0
    %1131 = vmatprep.subr.bf16.mxu0 0
    %1132 = vmatpush1.bf16.msra.mxu0 0
    %1133 = vmatprep.subr.bf16.mxu0 0
    %1134 = vmatpush1.bf16.msra.mxu0 0
    %1135 = vmatprep.mubr.bf16.mxu0 0
    %1136 = vmatmul.mubr.bf16.gmra.mrb[0].mxu0 %v1097
    %v1137 = vpop.f32.mrb[0].mxu0
    %v1138 = vadd.f32 0.0, %v1137
    %v1139 = vpop.f32.mrb[0].mxu0
    %v1140 = vpop.f32.mrb[0].mxu0
    %v1141 = vpop.f32.mrb[0].mxu0
    %1142 = vdwg.mxu0
    %v1143 = vpack.c.bf16 %v1138, %v1138
    %v1144 = vld [vmem:[#allocation7] sm:$0xf]
    %v1145 = vld [vmem:[#allocation7 + $0x4] sm:$0xf]
    %v1146 = vld [vmem:[#allocation7 + $0x8] sm:$0xf]
    %v1147 = vld [vmem:[#allocation7 + $0xc] sm:$0xf]
    %v1148 = vld [vmem:[#allocation7 + $0x10] sm:$0xf]
    %v1149 = vld [vmem:[#allocation7 + $0x14] sm:$0xf]
    %v1150 = vld [vmem:[#allocation7 + $0x18] sm:$0xf]
    %v1151 = vld [vmem:[#allocation7 + $0x1c] sm:$0xf]
    %v1152 = vld [vmem:[#allocation7 + $0x20] sm:$0xf]
    %v1153 = vld [vmem:[#allocation7 + $0x24] sm:$0xf]
    %v1154 = vld [vmem:[#allocation7 + $0x28] sm:$0xf]
    %v1155 = vld [vmem:[#allocation7 + $0x2c] sm:$0xf]
    %v1156 = vld [vmem:[#allocation7 + $0x30] sm:$0xf]
    %v1157 = vld [vmem:[#allocation7 + $0x34] sm:$0xf]
    %v1158 = vld [vmem:[#allocation7 + $0x38] sm:$0xf]
    %v1159 = vld [vmem:[#allocation7 + $0x3c] sm:$0xf]
    %v1160 = vpack.c.bf16 %v378, %v378
    %v1161 = vpack.c.bf16 %v893, %v893
    %1162 = vmatprep.subr.bf16.mxu0 0
    %1163 = vmatpush1.bf16.xpose.msra.mxu0 %v1161
    %1164 = vmatprep.subr.bf16.mxu0 0
    %1165 = vmatpush1.bf16.xpose.msra.mxu0 0
    %1166 = vmatprep.subr.bf16.mxu0 0
    %1167 = vmatpush1.bf16.xpose.msra.mxu0 0
    %1168 = vmatprep.subr.bf16.mxu0 0
    %1169 = vmatpush1.bf16.xpose.msra.mxu0 0
    %1170 = vmatprep.subr.bf16.mxu0 0
    %1171 = vmatpush1.bf16.xpose.msra.mxu0 0
    %1172 = vmatprep.subr.bf16.mxu0 0
    %1173 = vmatpush1.bf16.xpose.msra.mxu0 0
    %1174 = vmatprep.subr.bf16.mxu0 0
    %1175 = vmatpush1.bf16.xpose.msra.mxu0 0
    %1176 = vmatprep.subr.bf16.mxu0 0
    %1177 = vmatpush1.bf16.xpose.msra.mxu0 0
    %1178 = vmatprep.subr.bf16.mxu0 0
    %1179 = vmatpush1.bf16.xpose.msra.mxu0 0
    %1180 = vmatprep.subr.bf16.mxu0 0
    %1181 = vmatpush1.bf16.xpose.msra.mxu0 0
    %1182 = vmatprep.subr.bf16.mxu0 0
    %1183 = vmatpush1.bf16.xpose.msra.mxu0 0
    %1184 = vmatprep.subr.bf16.mxu0 0
    %1185 = vmatpush1.bf16.xpose.msra.mxu0 0
    %1186 = vmatprep.subr.bf16.mxu0 0
    %1187 = vmatpush1.bf16.xpose.msra.mxu0 0
    %1188 = vmatprep.subr.bf16.mxu0 0
    %1189 = vmatpush1.bf16.xpose.msra.mxu0 0
    %1190 = vmatprep.subr.bf16.mxu0 0
    %1191 = vmatpush1.bf16.xpose.msra.mxu0 0
    %1192 = vmatprep.subr.bf16.mxu0 0
    %1193 = vmatpush1.bf16.xpose.msra.mxu0 0
    %1194 = vmatprep.mubr.bf16.mxu0 0
    %1195 = vmatmul.mubr.bf16.gmra.mrb[0].mxu0 %v1160
    %v1196 = vpop.f32.mrb[0].mxu0
    %v1197 = vadd.f32 0.0, %v1196
    %v1198 = vpop.f32.mrb[0].mxu0
    %v1199 = vpop.f32.mrb[0].mxu0
    %v1200 = vpop.f32.mrb[0].mxu0
    %1201 = vdwg.mxu0
    %v1202 = vmul.f32 %v1197, 0.35355338
    %v1203 = vadd.f32 %v1202, %v1079
    %v1204 = vsel %vm1082, %v1203, -inf
    %1205 = vmax.xlane.f32.xlu0 %v1204
    %v1206 = vpop.xlane.xlu0 %1205
    %v1207 = vsub.f32 %v1203, %v1206
    %v1208 = vmul.f32 %v1207, 1.442695
    %v1209 = vpow.pop %v1208
    %v1210 = vsel %vm1082, %v1209, 0.0
    %1211 = vadd.xlane.f32.xlu0 %v1210
    %v1212 = vpop.xlane.xlu0 %1211
    %v1213 = vrcp.pop %v1212
    %v1214 = vmul.f32 %v1209, %v1213
    %v1215 = vpack.c.bf16 %v1214, %v1214
    %v1216 = vpack.c.bf16 %v979, %v979
    %v1218 = vsel %vm1082, %v1215, 0
    %v1221 = vsel %vm1099, %v1216, 0
    %1223 = vmatprep.subr.bf16.mxu0 0
    %1224 = vmatpush1.bf16.msra.mxu0 %v1221
    %1225 = vmatprep.subr.bf16.mxu0 0
    %1226 = vmatpush1.bf16.msra.mxu0 0
    %1227 = vmatprep.subr.bf16.mxu0 0
    %1228 = vmatpush1.bf16.msra.mxu0 0
    %1229 = vmatprep.subr.bf16.mxu0 0
    %1230 = vmatpush1.bf16.msra.mxu0 0
    %1231 = vmatprep.subr.bf16.mxu0 0
    %1232 = vmatpush1.bf16.msra.mxu0 0
    %1233 = vmatprep.subr.bf16.mxu0 0
    %1234 = vmatpush1.bf16.msra.mxu0 0
    %1235 = vmatprep.subr.bf16.mxu0 0
    %1236 = vmatpush1.bf16.msra.mxu0 0
    %1237 = vmatprep.subr.bf16.mxu0 0
    %1238 = vmatpush1.bf16.msra.mxu0 0
    %1239 = vmatprep.subr.bf16.mxu0 0
    %1240 = vmatpush1.bf16.msra.mxu0 0
    %1241 = vmatprep.subr.bf16.mxu0 0
    %1242 = vmatpush1.bf16.msra.mxu0 0
    %1243 = vmatprep.subr.bf16.mxu0 0
    %1244 = vmatpush1.bf16.msra.mxu0 0
    %1245 = vmatprep.subr.bf16.mxu0 0
    %1246 = vmatpush1.bf16.msra.mxu0 0
    %1247 = vmatprep.subr.bf16.mxu0 0
    %1248 = vmatpush1.bf16.msra.mxu0 0
    %1249 = vmatprep.subr.bf16.mxu0 0
    %1250 = vmatpush1.bf16.msra.mxu0 0
    %1251 = vmatprep.subr.bf16.mxu0 0
    %1252 = vmatpush1.bf16.msra.mxu0 0
    %1253 = vmatprep.subr.bf16.mxu0 0
    %1254 = vmatpush1.bf16.msra.mxu0 0
    %1255 = vmatprep.mubr.bf16.mxu0 0
    %1256 = vmatmul.mubr.bf16.gmra.mrb[0].mxu0 %v1218
    %v1257 = vpop.f32.mrb[0].mxu0
    %v1258 = vadd.f32 0.0, %v1257
    %v1259 = vpop.f32.mrb[0].mxu0
    %v1260 = vpop.f32.mrb[0].mxu0
    %v1261 = vpop.f32.mrb[0].mxu0
    %1262 = vdwg.mxu0
    %v1263 = vpack.c.bf16 %v1258, %v1258
    %s1264 = scalar_lea.vmem [#allocation7], 64
    %v1265 = vld [vmem:[%s1264] sm:$0xf]
    %v1266 = vld [vmem:[%s1264 + $0x4] sm:$0xf]
    %v1267 = vld [vmem:[%s1264 + $0x8] sm:$0xf]
    %v1268 = vld [vmem:[%s1264 + $0xc] sm:$0xf]
    %v1269 = vld [vmem:[%s1264 + $0x10] sm:$0xf]
    %v1270 = vld [vmem:[%s1264 + $0x14] sm:$0xf]
    %v1271 = vld [vmem:[%s1264 + $0x18] sm:$0xf]
    %v1272 = vld [vmem:[%s1264 + $0x1c] sm:$0xf]
    %v1273 = vld [vmem:[%s1264 + $0x20] sm:$0xf]
    %v1274 = vld [vmem:[%s1264 + $0x24] sm:$0xf]
    %v1275 = vld [vmem:[%s1264 + $0x28] sm:$0xf]
    %v1276 = vld [vmem:[%s1264 + $0x2c] sm:$0xf]
    %v1277 = vld [vmem:[%s1264 + $0x30] sm:$0xf]
    %v1278 = vld [vmem:[%s1264 + $0x34] sm:$0xf]
    %v1279 = vld [vmem:[%s1264 + $0x38] sm:$0xf]
    %v1280 = vld [vmem:[%s1264 + $0x3c] sm:$0xf]
    %v1297 = vunpack.c.l.b16 %v1265
    %v1298 = vunpack.c.l.b16 %v1266
    %v1299 = vunpack.c.l.b16 %v1267
    %v1300 = vunpack.c.l.b16 %v1268
    %v1301 = vunpack.c.l.b16 %v1269
    %v1302 = vunpack.c.l.b16 %v1270
    %v1303 = vunpack.c.l.b16 %v1271
    %v1304 = vunpack.c.l.b16 %v1272
    %v1305 = vunpack.c.l.b16 %v1273
    %v1306 = vunpack.c.l.b16 %v1274
    %v1307 = vunpack.c.l.b16 %v1275
    %v1308 = vunpack.c.l.b16 %v1276
    %v1309 = vunpack.c.l.b16 %v1277
    %v1310 = vunpack.c.l.b16 %v1278
    %v1311 = vunpack.c.l.b16 %v1279
    %v1312 = vunpack.c.l.b16 %v1280
    %v1313 = vpack.c.b16 %v1298, %v1297
    %v1314 = vpack.c.b16 %v1300, %v1299
    %v1315 = vpack.c.b16 %v1302, %v1301
    %v1316 = vpack.c.b16 %v1304, %v1303
    %v1317 = vpack.c.b16 %v1306, %v1305
    %v1318 = vpack.c.b16 %v1308, %v1307
    %v1319 = vpack.c.b16 %v1310, %v1309
    %v1320 = vpack.c.b16 %v1312, %v1311
    %1329 = vmatprep.subr.bf16.mxu0 0
    %1330 = vmatpush1.bf16.msra.mxu0 %v1313
    %1331 = vmatprep.subr.bf16.mxu0 0
    %1332 = vmatpush1.bf16.msra.mxu0 %v1314
    %1333 = vmatprep.subr.bf16.mxu0 0
    %1334 = vmatpush1.bf16.msra.mxu0 %v1315
    %1335 = vmatprep.subr.bf16.mxu0 0
    %1336 = vmatpush1.bf16.msra.mxu0 %v1316
    %1337 = vmatprep.subr.bf16.mxu0 0
    %1338 = vmatpush1.bf16.msra.mxu0 %v1317
    %1339 = vmatprep.subr.bf16.mxu0 0
    %1340 = vmatpush1.bf16.msra.mxu0 %v1318
    %1341 = vmatprep.subr.bf16.mxu0 0
    %1342 = vmatpush1.bf16.msra.mxu0 %v1319
    %1343 = vmatprep.subr.bf16.mxu0 0
    %1344 = vmatpush1.bf16.msra.mxu0 %v1320
    %1345 = vmatprep.subr.bf16.mxu0 0
    %1346 = vmatpush1.bf16.msra.mxu0 0
    %1347 = vmatprep.subr.bf16.mxu0 0
    %1348 = vmatpush1.bf16.msra.mxu0 0
    %1349 = vmatprep.subr.bf16.mxu0 0
    %1350 = vmatpush1.bf16.msra.mxu0 0
    %1351 = vmatprep.subr.bf16.mxu0 0
    %1352 = vmatpush1.bf16.msra.mxu0 0
    %1353 = vmatprep.subr.bf16.mxu0 0
    %1354 = vmatpush1.bf16.msra.mxu0 0
    %1355 = vmatprep.subr.bf16.mxu0 0
    %1356 = vmatpush1.bf16.msra.mxu0 0
    %1357 = vmatprep.subr.bf16.mxu0 0
    %1358 = vmatpush1.bf16.msra.mxu0 0
    %1359 = vmatprep.subr.bf16.mxu0 0
    %1360 = vmatpush1.bf16.msra.mxu0 0
    %1361 = vmatprep.mubr.bf16.mxu0 0
    %1362 = vmatmul.mubr.bf16.gmra.mrb[0].mxu0 %v1263
    %v1363 = vpop.f32.mrb[0].mxu0
    %v1364 = vadd.f32 0.0, %v1363
    %v1365 = vpop.f32.mrb[0].mxu0
    %v1366 = vpop.f32.mrb[0].mxu0
    %v1367 = vpop.f32.mrb[0].mxu0
    %1368 = vdwg.mxu0
    %v1385 = vunpack.c.l.b16 %v1144
    %v1386 = vunpack.c.l.b16 %v1145
    %v1387 = vunpack.c.l.b16 %v1146
    %v1388 = vunpack.c.l.b16 %v1147
    %v1389 = vunpack.c.l.b16 %v1148
    %v1390 = vunpack.c.l.b16 %v1149
    %v1391 = vunpack.c.l.b16 %v1150
    %v1392 = vunpack.c.l.b16 %v1151
    %v1393 = vunpack.c.l.b16 %v1152
    %v1394 = vunpack.c.l.b16 %v1153
    %v1395 = vunpack.c.l.b16 %v1154
    %v1396 = vunpack.c.l.b16 %v1155
    %v1397 = vunpack.c.l.b16 %v1156
    %v1398 = vunpack.c.l.b16 %v1157
    %v1399 = vunpack.c.l.b16 %v1158
    %v1400 = vunpack.c.l.b16 %v1159
    %v1401 = vpack.c.b16 %v1386, %v1385
    %v1402 = vpack.c.b16 %v1388, %v1387
    %v1403 = vpack.c.b16 %v1390, %v1389
    %v1404 = vpack.c.b16 %v1392, %v1391
    %v1405 = vpack.c.b16 %v1394, %v1393
    %v1406 = vpack.c.b16 %v1396, %v1395
    %v1407 = vpack.c.b16 %v1398, %v1397
    %v1408 = vpack.c.b16 %v1400, %v1399
    %1417 = vmatprep.subr.bf16.mxu0 0
    %1418 = vmatpush1.bf16.msra.mxu0 %v1401
    %1419 = vmatprep.subr.bf16.mxu0 0
    %1420 = vmatpush1.bf16.msra.mxu0 %v1402
    %1421 = vmatprep.subr.bf16.mxu0 0
    %1422 = vmatpush1.bf16.msra.mxu0 %v1403
    %1423 = vmatprep.subr.bf16.mxu0 0
    %1424 = vmatpush1.bf16.msra.mxu0 %v1404
    %1425 = vmatprep.subr.bf16.mxu0 0
    %1426 = vmatpush1.bf16.msra.mxu0 %v1405
    %1427 = vmatprep.subr.bf16.mxu0 0
    %1428 = vmatpush1.bf16.msra.mxu0 %v1406
    %1429 = vmatprep.subr.bf16.mxu0 0
    %1430 = vmatpush1.bf16.msra.mxu0 %v1407
    %1431 = vmatprep.subr.bf16.mxu0 0
    %1432 = vmatpush1.bf16.msra.mxu0 %v1408
    %1433 = vmatprep.subr.bf16.mxu0 0
    %1434 = vmatpush1.bf16.msra.mxu0 0
    %1435 = vmatprep.subr.bf16.mxu0 0
    %1436 = vmatpush1.bf16.msra.mxu0 0
    %1437 = vmatprep.subr.bf16.mxu0 0
    %1438 = vmatpush1.bf16.msra.mxu0 0
    %1439 = vmatprep.subr.bf16.mxu0 0
    %1440 = vmatpush1.bf16.msra.mxu0 0
    %1441 = vmatprep.subr.bf16.mxu0 0
    %1442 = vmatpush1.bf16.msra.mxu0 0
    %1443 = vmatprep.subr.bf16.mxu0 0
    %1444 = vmatpush1.bf16.msra.mxu0 0
    %1445 = vmatprep.subr.bf16.mxu0 0
    %1446 = vmatpush1.bf16.msra.mxu0 0
    %1447 = vmatprep.subr.bf16.mxu0 0
    %1448 = vmatpush1.bf16.msra.mxu0 0
    %1449 = vmatprep.mubr.bf16.mxu0 0
    %1450 = vmatmul.mubr.bf16.gmra.mrb[0].mxu0 %v1143
    %v1451 = vpop.f32.mrb[0].mxu0
    %v1452 = vadd.f32 %v1364, %v1451
    %v1453 = vpop.f32.mrb[0].mxu0
    %v1454 = vpop.f32.mrb[0].mxu0
    %v1455 = vpop.f32.mrb[0].mxu0
    %1456 = vdwg.mxu0
    %v1457 = vpack.c.bf16 %v419, %v419
    %v1458 = vpack.c.bf16 %v934, %v934
    %1459 = vmatprep.subr.bf16.mxu0 0
    %1460 = vmatpush1.bf16.xpose.msra.mxu0 %v1458
    %1461 = vmatprep.subr.bf16.mxu0 0
    %1462 = vmatpush1.bf16.xpose.msra.mxu0 0
    %1463 = vmatprep.subr.bf16.mxu0 0
    %1464 = vmatpush1.bf16.xpose.msra.mxu0 0
    %1465 = vmatprep.subr.bf16.mxu0 0
    %1466 = vmatpush1.bf16.xpose.msra.mxu0 0
    %1467 = vmatprep.subr.bf16.mxu0 0
    %1468 = vmatpush1.bf16.xpose.msra.mxu0 0
    %1469 = vmatprep.subr.bf16.mxu0 0
    %1470 = vmatpush1.bf16.xpose.msra.mxu0 0
    %1471 = vmatprep.subr.bf16.mxu0 0
    %1472 = vmatpush1.bf16.xpose.msra.mxu0 0
    %1473 = vmatprep.subr.bf16.mxu0 0
    %1474 = vmatpush1.bf16.xpose.msra.mxu0 0
    %1475 = vmatprep.subr.bf16.mxu0 0
    %1476 = vmatpush1.bf16.xpose.msra.mxu0 0
    %1477 = vmatprep.subr.bf16.mxu0 0
    %1478 = vmatpush1.bf16.xpose.msra.mxu0 0
    %1479 = vmatprep.subr.bf16.mxu0 0
    %1480 = vmatpush1.bf16.xpose.msra.mxu0 0
    %1481 = vmatprep.subr.bf16.mxu0 0
    %1482 = vmatpush1.bf16.xpose.msra.mxu0 0
    %1483 = vmatprep.subr.bf16.mxu0 0
    %1484 = vmatpush1.bf16.xpose.msra.mxu0 0
    %1485 = vmatprep.subr.bf16.mxu0 0
    %1486 = vmatpush1.bf16.xpose.msra.mxu0 0
    %1487 = vmatprep.subr.bf16.mxu0 0
    %1488 = vmatpush1.bf16.xpose.msra.mxu0 0
    %1489 = vmatprep.subr.bf16.mxu0 0
    %1490 = vmatpush1.bf16.xpose.msra.mxu0 0
    %1491 = vmatprep.mubr.bf16.mxu0 0
    %1492 = vmatmul.mubr.bf16.gmra.mrb[0].mxu0 %v1457
    %v1493 = vpop.f32.mrb[0].mxu0
    %v1494 = vadd.f32 0.0, %v1493
    %v1495 = vpop.f32.mrb[0].mxu0
    %v1496 = vpop.f32.mrb[0].mxu0
    %v1497 = vpop.f32.mrb[0].mxu0
    %1498 = vdwg.mxu0
    %v1499 = vmul.f32 %v1494, 0.35355338
    %v1500 = vadd.f32 %v1499, %v1079
    %v1501 = vsel %vm1082, %v1500, -inf
    %1502 = vmax.xlane.f32.xlu0 %v1501
    %v1503 = vpop.xlane.xlu0 %1502
    %v1504 = vsub.f32 %v1500, %v1503
    %v1505 = vmul.f32 %v1504, 1.442695
    %v1506 = vpow.pop %v1505
    %v1507 = vsel %vm1082, %v1506, 0.0
    %1508 = vadd.xlane.f32.xlu0 %v1507
    %v1509 = vpop.xlane.xlu0 %1508
    %v1510 = vrcp.pop %v1509
    %v1511 = vmul.f32 %v1506, %v1510
    %v1512 = vpack.c.bf16 %v1511, %v1511
    %v1513 = vpack.c.bf16 %v1020, %v1020
    %v1515 = vsel %vm1082, %v1512, 0
    %v1518 = vsel %vm1099, %v1513, 0
    %1520 = vmatprep.subr.bf16.mxu0 0
    %1521 = vmatpush1.bf16.msra.mxu0 %v1518
    %1522 = vmatprep.subr.bf16.mxu0 0
    %1523 = vmatpush1.bf16.msra.mxu0 0
    %1524 = vmatprep.subr.bf16.mxu0 0
    %1525 = vmatpush1.bf16.msra.mxu0 0
    %1526 = vmatprep.subr.bf16.mxu0 0
    %1527 = vmatpush1.bf16.msra.mxu0 0
    %1528 = vmatprep.subr.bf16.mxu0 0
    %1529 = vmatpush1.bf16.msra.mxu0 0
    %1530 = vmatprep.subr.bf16.mxu0 0
    %1531 = vmatpush1.bf16.msra.mxu0 0
    %1532 = vmatprep.subr.bf16.mxu0 0
    %1533 = vmatpush1.bf16.msra.mxu0 0
    %1534 = vmatprep.subr.bf16.mxu0 0
    %1535 = vmatpush1.bf16.msra.mxu0 0
    %1536 = vmatprep.subr.bf16.mxu0 0
    %1537 = vmatpush1.bf16.msra.mxu0 0
    %1538 = vmatprep.subr.bf16.mxu0 0
    %1539 = vmatpush1.bf16.msra.mxu0 0
    %1540 = vmatprep.subr.bf16.mxu0 0
    %1541 = vmatpush1.bf16.msra.mxu0 0
    %1542 = vmatprep.subr.bf16.mxu0 0
    %1543 = vmatpush1.bf16.msra.mxu0 0
    %1544 = vmatprep.subr.bf16.mxu0 0
    %1545 = vmatpush1.bf16.msra.mxu0 0
    %1546 = vmatprep.subr.bf16.mxu0 0
    %1547 = vmatpush1.bf16.msra.mxu0 0
    %1548 = vmatprep.subr.bf16.mxu0 0
    %1549 = vmatpush1.bf16.msra.mxu0 0
    %1550 = vmatprep.subr.bf16.mxu0 0
    %1551 = vmatpush1.bf16.msra.mxu0 0
    %1552 = vmatprep.mubr.bf16.mxu0 0
    %1553 = vmatmul.mubr.bf16.gmra.mrb[0].mxu0 %v1515
    %v1554 = vpop.f32.mrb[0].mxu0
    %v1555 = vadd.f32 0.0, %v1554
    %v1556 = vpop.f32.mrb[0].mxu0
    %v1557 = vpop.f32.mrb[0].mxu0
    %v1558 = vpop.f32.mrb[0].mxu0
    %1559 = vdwg.mxu0
    %v1560 = vpack.c.bf16 %v1555, %v1555
    %s1561 = scalar_lea.vmem [#allocation7], 128
    %v1562 = vld [vmem:[%s1561] sm:$0xf]
    %v1563 = vld [vmem:[%s1561 + $0x4] sm:$0xf]
    %v1564 = vld [vmem:[%s1561 + $0x8] sm:$0xf]
    %v1565 = vld [vmem:[%s1561 + $0xc] sm:$0xf]
    %v1566 = vld [vmem:[%s1561 + $0x10] sm:$0xf]
    %v1567 = vld [vmem:[%s1561 + $0x14] sm:$0xf]
    %v1568 = vld [vmem:[%s1561 + $0x18] sm:$0xf]
    %v1569 = vld [vmem:[%s1561 + $0x1c] sm:$0xf]
    %v1570 = vld [vmem:[%s1561 + $0x20] sm:$0xf]
    %v1571 = vld [vmem:[%s1561 + $0x24] sm:$0xf]
    %v1572 = vld [vmem:[%s1561 + $0x28] sm:$0xf]
    %v1573 = vld [vmem:[%s1561 + $0x2c] sm:$0xf]
    %v1574 = vld [vmem:[%s1561 + $0x30] sm:$0xf]
    %v1575 = vld [vmem:[%s1561 + $0x34] sm:$0xf]
    %v1576 = vld [vmem:[%s1561 + $0x38] sm:$0xf]
    %v1577 = vld [vmem:[%s1561 + $0x3c] sm:$0xf]
    %v1594 = vunpack.c.l.b16 %v1562
    %v1595 = vunpack.c.l.b16 %v1563
    %v1596 = vunpack.c.l.b16 %v1564
    %v1597 = vunpack.c.l.b16 %v1565
    %v1598 = vunpack.c.l.b16 %v1566
    %v1599 = vunpack.c.l.b16 %v1567
    %v1600 = vunpack.c.l.b16 %v1568
    %v1601 = vunpack.c.l.b16 %v1569
    %v1602 = vunpack.c.l.b16 %v1570
    %v1603 = vunpack.c.l.b16 %v1571
    %v1604 = vunpack.c.l.b16 %v1572
    %v1605 = vunpack.c.l.b16 %v1573
    %v1606 = vunpack.c.l.b16 %v1574
    %v1607 = vunpack.c.l.b16 %v1575
    %v1608 = vunpack.c.l.b16 %v1576
    %v1609 = vunpack.c.l.b16 %v1577
    %v1610 = vpack.c.b16 %v1595, %v1594
    %v1611 = vpack.c.b16 %v1597, %v1596
    %v1612 = vpack.c.b16 %v1599, %v1598
    %v1613 = vpack.c.b16 %v1601, %v1600
    %v1614 = vpack.c.b16 %v1603, %v1602
    %v1615 = vpack.c.b16 %v1605, %v1604
    %v1616 = vpack.c.b16 %v1607, %v1606
    %v1617 = vpack.c.b16 %v1609, %v1608
    %1626 = vmatprep.subr.bf16.mxu0 0
    %1627 = vmatpush1.bf16.msra.mxu0 %v1610
    %1628 = vmatprep.subr.bf16.mxu0 0
    %1629 = vmatpush1.bf16.msra.mxu0 %v1611
    %1630 = vmatprep.subr.bf16.mxu0 0
    %1631 = vmatpush1.bf16.msra.mxu0 %v1612
    %1632 = vmatprep.subr.bf16.mxu0 0
    %1633 = vmatpush1.bf16.msra.mxu0 %v1613
    %1634 = vmatprep.subr.bf16.mxu0 0
    %1635 = vmatpush1.bf16.msra.mxu0 %v1614
    %1636 = vmatprep.subr.bf16.mxu0 0
    %1637 = vmatpush1.bf16.msra.mxu0 %v1615
    %1638 = vmatprep.subr.bf16.mxu0 0
    %1639 = vmatpush1.bf16.msra.mxu0 %v1616
    %1640 = vmatprep.subr.bf16.mxu0 0
    %1641 = vmatpush1.bf16.msra.mxu0 %v1617
    %1642 = vmatprep.subr.bf16.mxu0 0
    %1643 = vmatpush1.bf16.msra.mxu0 0
    %1644 = vmatprep.subr.bf16.mxu0 0
    %1645 = vmatpush1.bf16.msra.mxu0 0
    %1646 = vmatprep.subr.bf16.mxu0 0
    %1647 = vmatpush1.bf16.msra.mxu0 0
    %1648 = vmatprep.subr.bf16.mxu0 0
    %1649 = vmatpush1.bf16.msra.mxu0 0
    %1650 = vmatprep.subr.bf16.mxu0 0
    %1651 = vmatpush1.bf16.msra.mxu0 0
    %1652 = vmatprep.subr.bf16.mxu0 0
    %1653 = vmatpush1.bf16.msra.mxu0 0
    %1654 = vmatprep.subr.bf16.mxu0 0
    %1655 = vmatpush1.bf16.msra.mxu0 0
    %1656 = vmatprep.subr.bf16.mxu0 0
    %1657 = vmatpush1.bf16.msra.mxu0 0
    %1658 = vmatprep.mubr.bf16.mxu0 0
    %1659 = vmatmul.mubr.bf16.gmra.mrb[0].mxu0 %v1560
    %v1660 = vpop.f32.mrb[0].mxu0
    %v1661 = vadd.f32 0.0, %v1660
    %v1662 = vpop.f32.mrb[0].mxu0
    %v1663 = vpop.f32.mrb[0].mxu0
    %v1664 = vpop.f32.mrb[0].mxu0
    %1665 = vdwg.mxu0
    %v1666 = vadd.f32 %v1452, %v1661
    %v1667 = vpack.c.bf16 %v421, %v421
    %v1668 = vpack.c.bf16 %v936, %v936
    %1669 = vmatprep.subr.bf16.mxu0 0
    %1670 = vmatpush1.bf16.xpose.msra.mxu0 %v1668
    %1671 = vmatprep.subr.bf16.mxu0 0
    %1672 = vmatpush1.bf16.xpose.msra.mxu0 0
    %1673 = vmatprep.subr.bf16.mxu0 0
    %1674 = vmatpush1.bf16.xpose.msra.mxu0 0
    %1675 = vmatprep.subr.bf16.mxu0 0
    %1676 = vmatpush1.bf16.xpose.msra.mxu0 0
    %1677 = vmatprep.subr.bf16.mxu0 0
    %1678 = vmatpush1.bf16.xpose.msra.mxu0 0
    %1679 = vmatprep.subr.bf16.mxu0 0
    %1680 = vmatpush1.bf16.xpose.msra.mxu0 0
    %1681 = vmatprep.subr.bf16.mxu0 0
    %1682 = vmatpush1.bf16.xpose.msra.mxu0 0
    %1683 = vmatprep.subr.bf16.mxu0 0
    %1684 = vmatpush1.bf16.xpose.msra.mxu0 0
    %1685 = vmatprep.subr.bf16.mxu0 0
    %1686 = vmatpush1.bf16.xpose.msra.mxu0 0
    %1687 = vmatprep.subr.bf16.mxu0 0
    %1688 = vmatpush1.bf16.xpose.msra.mxu0 0
    %1689 = vmatprep.subr.bf16.mxu0 0
    %1690 = vmatpush1.bf16.xpose.msra.mxu0 0
    %1691 = vmatprep.subr.bf16.mxu0 0
    %1692 = vmatpush1.bf16.xpose.msra.mxu0 0
    %1693 = vmatprep.subr.bf16.mxu0 0
    %1694 = vmatpush1.bf16.xpose.msra.mxu0 0
    %1695 = vmatprep.subr.bf16.mxu0 0
    %1696 = vmatpush1.bf16.xpose.msra.mxu0 0
    %1697 = vmatprep.subr.bf16.mxu0 0
    %1698 = vmatpush1.bf16.xpose.msra.mxu0 0
    %1699 = vmatprep.subr.bf16.mxu0 0
    %1700 = vmatpush1.bf16.xpose.msra.mxu0 0
    %1701 = vmatprep.mubr.bf16.mxu0 0
    %1702 = vmatmul.mubr.bf16.gmra.mrb[0].mxu0 %v1667
    %v1703 = vpop.f32.mrb[0].mxu0
    %v1704 = vadd.f32 0.0, %v1703
    %v1705 = vpop.f32.mrb[0].mxu0
    %v1706 = vpop.f32.mrb[0].mxu0
    %v1707 = vpop.f32.mrb[0].mxu0
    %1708 = vdwg.mxu0
    %v1709 = vmul.f32 %v1704, 0.35355338
    %v1710 = vadd.f32 %v1709, %v1079
    %v1711 = vsel %vm1082, %v1710, -inf
    %1712 = vmax.xlane.f32.xlu0 %v1711
    %v1713 = vpop.xlane.xlu0 %1712
    %v1714 = vsub.f32 %v1710, %v1713
    %v1715 = vmul.f32 %v1714, 1.442695
    %v1716 = vpow.pop %v1715
    %v1717 = vsel %vm1082, %v1716, 0.0
    %1718 = vadd.xlane.f32.xlu0 %v1717
    %v1719 = vpop.xlane.xlu0 %1718
    %v1720 = vrcp.pop %v1719
    %v1721 = vmul.f32 %v1716, %v1720
    %v1722 = vpack.c.bf16 %v1721, %v1721
    %v1723 = vpack.c.bf16 %v1022, %v1022
    %v1725 = vsel %vm1082, %v1722, 0
    %v1728 = vsel %vm1099, %v1723, 0
    %1730 = vmatprep.subr.bf16.mxu0 0
    %1731 = vmatpush1.bf16.msra.mxu0 %v1728
    %1732 = vmatprep.subr.bf16.mxu0 0
    %1733 = vmatpush1.bf16.msra.mxu0 0
    %1734 = vmatprep.subr.bf16.mxu0 0
    %1735 = vmatpush1.bf16.msra.mxu0 0
    %1736 = vmatprep.subr.bf16.mxu0 0
    %1737 = vmatpush1.bf16.msra.mxu0 0
    %1738 = vmatprep.subr.bf16.mxu0 0
    %1739 = vmatpush1.bf16.msra.mxu0 0
    %1740 = vmatprep.subr.bf16.mxu0 0
    %1741 = vmatpush1.bf16.msra.mxu0 0
    %1742 = vmatprep.subr.bf16.mxu0 0
    %1743 = vmatpush1.bf16.msra.mxu0 0
    %1744 = vmatprep.subr.bf16.mxu0 0
    %1745 = vmatpush1.bf16.msra.mxu0 0
    %1746 = vmatprep.subr.bf16.mxu0 0
    %1747 = vmatpush1.bf16.msra.mxu0 0
    %1748 = vmatprep.subr.bf16.mxu0 0
    %1749 = vmatpush1.bf16.msra.mxu0 0
    %1750 = vmatprep.subr.bf16.mxu0 0
    %1751 = vmatpush1.bf16.msra.mxu0 0
    %1752 = vmatprep.subr.bf16.mxu0 0
    %1753 = vmatpush1.bf16.msra.mxu0 0
    %1754 = vmatprep.subr.bf16.mxu0 0
    %1755 = vmatpush1.bf16.msra.mxu0 0
    %1756 = vmatprep.subr.bf16.mxu0 0
    %1757 = vmatpush1.bf16.msra.mxu0 0
    %1758 = vmatprep.subr.bf16.mxu0 0
    %1759 = vmatpush1.bf16.msra.mxu0 0
    %1760 = vmatprep.subr.bf16.mxu0 0
    %1761 = vmatpush1.bf16.msra.mxu0 0
    %1762 = vmatprep.mubr.bf16.mxu0 0
    %1763 = vmatmul.mubr.bf16.gmra.mrb[0].mxu0 %v1725
    %v1764 = vpop.f32.mrb[0].mxu0
    %v1765 = vadd.f32 0.0, %v1764
    %v1766 = vpop.f32.mrb[0].mxu0
    %v1767 = vpop.f32.mrb[0].mxu0
    %v1768 = vpop.f32.mrb[0].mxu0
    %1769 = vdwg.mxu0
    %v1770 = vpack.c.bf16 %v1765, %v1765
    %s1771 = scalar_lea.vmem [#allocation7], 192
    %v1772 = vld [vmem:[%s1771] sm:$0xf]
    %v1773 = vld [vmem:[%s1771 + $0x4] sm:$0xf]
    %v1774 = vld [vmem:[%s1771 + $0x8] sm:$0xf]
    %v1775 = vld [vmem:[%s1771 + $0xc] sm:$0xf]
    %v1776 = vld [vmem:[%s1771 + $0x10] sm:$0xf]
    %v1777 = vld [vmem:[%s1771 + $0x14] sm:$0xf]
    %v1778 = vld [vmem:[%s1771 + $0x18] sm:$0xf]
    %v1779 = vld [vmem:[%s1771 + $0x1c] sm:$0xf]
    %v1780 = vld [vmem:[%s1771 + $0x20] sm:$0xf]
    %v1781 = vld [vmem:[%s1771 + $0x24] sm:$0xf]
    %v1782 = vld [vmem:[%s1771 + $0x28] sm:$0xf]
    %v1783 = vld [vmem:[%s1771 + $0x2c] sm:$0xf]
    %v1784 = vld [vmem:[%s1771 + $0x30] sm:$0xf]
    %v1785 = vld [vmem:[%s1771 + $0x34] sm:$0xf]
    %v1786 = vld [vmem:[%s1771 + $0x38] sm:$0xf]
    %v1787 = vld [vmem:[%s1771 + $0x3c] sm:$0xf]
    %v1804 = vunpack.c.l.b16 %v1772
    %v1805 = vunpack.c.l.b16 %v1773
    %v1806 = vunpack.c.l.b16 %v1774
    %v1807 = vunpack.c.l.b16 %v1775
    %v1808 = vunpack.c.l.b16 %v1776
    %v1809 = vunpack.c.l.b16 %v1777
    %v1810 = vunpack.c.l.b16 %v1778
    %v1811 = vunpack.c.l.b16 %v1779
    %v1812 = vunpack.c.l.b16 %v1780
    %v1813 = vunpack.c.l.b16 %v1781
    %v1814 = vunpack.c.l.b16 %v1782
    %v1815 = vunpack.c.l.b16 %v1783
    %v1816 = vunpack.c.l.b16 %v1784
    %v1817 = vunpack.c.l.b16 %v1785
    %v1818 = vunpack.c.l.b16 %v1786
    %v1819 = vunpack.c.l.b16 %v1787
    %v1820 = vpack.c.b16 %v1805, %v1804
    %v1821 = vpack.c.b16 %v1807, %v1806
    %v1822 = vpack.c.b16 %v1809, %v1808
    %v1823 = vpack.c.b16 %v1811, %v1810
    %v1824 = vpack.c.b16 %v1813, %v1812
    %v1825 = vpack.c.b16 %v1815, %v1814
    %v1826 = vpack.c.b16 %v1817, %v1816
    %v1827 = vpack.c.b16 %v1819, %v1818
    %1836 = vmatprep.subr.bf16.mxu0 0
    %1837 = vmatpush1.bf16.msra.mxu0 %v1820
    %1838 = vmatprep.subr.bf16.mxu0 0
    %1839 = vmatpush1.bf16.msra.mxu0 %v1821
    %1840 = vmatprep.subr.bf16.mxu0 0
    %1841 = vmatpush1.bf16.msra.mxu0 %v1822
    %1842 = vmatprep.subr.bf16.mxu0 0
    %1843 = vmatpush1.bf16.msra.mxu0 %v1823
    %1844 = vmatprep.subr.bf16.mxu0 0
    %1845 = vmatpush1.bf16.msra.mxu0 %v1824
    %1846 = vmatprep.subr.bf16.mxu0 0
    %1847 = vmatpush1.bf16.msra.mxu0 %v1825
    %1848 = vmatprep.subr.bf16.mxu0 0
    %1849 = vmatpush1.bf16.msra.mxu0 %v1826
    %1850 = vmatprep.subr.bf16.mxu0 0
    %1851 = vmatpush1.bf16.msra.mxu0 %v1827
    %1852 = vmatprep.subr.bf16.mxu0 0
    %1853 = vmatpush1.bf16.msra.mxu0 0
    %1854 = vmatprep.subr.bf16.mxu0 0
    %1855 = vmatpush1.bf16.msra.mxu0 0
    %1856 = vmatprep.subr.bf16.mxu0 0
    %1857 = vmatpush1.bf16.msra.mxu0 0
    %1858 = vmatprep.subr.bf16.mxu0 0
    %1859 = vmatpush1.bf16.msra.mxu0 0
    %1860 = vmatprep.subr.bf16.mxu0 0
    %1861 = vmatpush1.bf16.msra.mxu0 0
    %1862 = vmatprep.subr.bf16.mxu0 0
    %1863 = vmatpush1.bf16.msra.mxu0 0
    %1864 = vmatprep.subr.bf16.mxu0 0
    %1865 = vmatpush1.bf16.msra.mxu0 0
    %1866 = vmatprep.subr.bf16.mxu0 0
    %1867 = vmatpush1.bf16.msra.mxu0 0
    %1868 = vmatprep.mubr.bf16.mxu0 0
    %1869 = vmatmul.mubr.bf16.gmra.mrb[0].mxu0 %v1770
    %v1870 = vpop.f32.mrb[0].mxu0
    %v1871 = vadd.f32 0.0, %v1870
    %v1872 = vpop.f32.mrb[0].mxu0
    %v1873 = vpop.f32.mrb[0].mxu0
    %v1874 = vpop.f32.mrb[0].mxu0
    %1875 = vdwg.mxu0
    %v1876 = vadd.f32 %v1666, %v1871
    %v1877 = vadd.f32 %v124, %v1876
    %v1879 = vlaneseq
    %v1880 = vshrl.u32 %v1879, 7
    %v1881 = vsub.s32 0, %v1880
    %v1882 = vrot.slane %v1028, %v1881
    %v1884 = vadd.f32 %v1877, %v1882
    %v1885 = vlaneseq
    %v1886 = vand.u32 %v1885, 127
    %vm1887 = vcmp.lt.s32.totalorder %v1886, 32
    %v1888 = vsel %vm1887, 1, 0
    %v1889 = vcvt.s32.f32 %v1888
    %1890 = vadd.xlane.f32.xlu0 %v1884
    %v1891 = vpop.xlane.xlu0 %1890
    %v1892 = vmul.f32 %v1891, 0.03125
    %v1893 = vsub.f32 %v1884, %v1892
    %v1894 = vmul.f32 %v1893, %v1889
    %v1895 = vmul.f32 %v1894, %v1894
    %1896 = vadd.xlane.f32.xlu0 %v1895
    %v1897 = vpop.xlane.xlu0 %1896
    %v1898 = vmul.f32 %v1897, 0.03125
    %v1899 = vadd.f32 %v1898, 1e-05
    %v1900 = vrsqrt.pop %v1899
    %v1901 = vmul.f32 %v1894, %v1900
    %v1903 = vlaneseq
    %v1904 = vshrl.u32 %v1903, 7
    %v1905 = vsub.s32 0, %v1904
    %v1906 = vrot.slane %v1029, %v1905
    %v1908 = vmul.f32 %v1901, %v1906
    %v1910 = vlaneseq
    %v1911 = vshrl.u32 %v1910, 7
    %v1912 = vsub.s32 0, %v1911
    %v1913 = vrot.slane %v1030, %v1912
    %v1915 = vadd.f32 %v1908, %v1913
    %1916 = vst [vmem:[%s11] sm:$0xff] %v1915
    %s1917 = scalar_lea.vmem %s8, 1
    %v1918 = vld [vmem:[%s1917] sm:$0x1]
    %v1919 = vpack.c.bf16 %v380, %v380
    %v1920 = vpack.c.bf16 %v895, %v895
    %1921 = vmatprep.subr.bf16.mxu0 0
    %1922 = vmatpush1.bf16.xpose.msra.mxu0 %v1920
    %1923 = vmatprep.subr.bf16.mxu0 0
    %1924 = vmatpush1.bf16.xpose.msra.mxu0 0
    %1925 = vmatprep.subr.bf16.mxu0 0
    %1926 = vmatpush1.bf16.xpose.msra.mxu0 0
    %1927 = vmatprep.subr.bf16.mxu0 0
    %1928 = vmatpush1.bf16.xpose.msra.mxu0 0
    %1929 = vmatprep.subr.bf16.mxu0 0
    %1930 = vmatpush1.bf16.xpose.msra.mxu0 0
    %1931 = vmatprep.subr.bf16.mxu0 0
    %1932 = vmatpush1.bf16.xpose.msra.mxu0 0
    %1933 = vmatprep.subr.bf16.mxu0 0
    %1934 = vmatpush1.bf16.xpose.msra.mxu0 0
    %1935 = vmatprep.subr.bf16.mxu0 0
    %1936 = vmatpush1.bf16.xpose.msra.mxu0 0
    %1937 = vmatprep.subr.bf16.mxu0 0
    %1938 = vmatpush1.bf16.xpose.msra.mxu0 0
    %1939 = vmatprep.subr.bf16.mxu0 0
    %1940 = vmatpush1.bf16.xpose.msra.mxu0 0
    %1941 = vmatprep.subr.bf16.mxu0 0
    %1942 = vmatpush1.bf16.xpose.msra.mxu0 0
    %1943 = vmatprep.subr.bf16.mxu0 0
    %1944 = vmatpush1.bf16.xpose.msra.mxu0 0
    %1945 = vmatprep.subr.bf16.mxu0 0
    %1946 = vmatpush1.bf16.xpose.msra.mxu0 0
    %1947 = vmatprep.subr.bf16.mxu0 0
    %1948 = vmatpush1.bf16.xpose.msra.mxu0 0
    %1949 = vmatprep.subr.bf16.mxu0 0
    %1950 = vmatpush1.bf16.xpose.msra.mxu0 0
    %1951 = vmatprep.subr.bf16.mxu0 0
    %1952 = vmatpush1.bf16.xpose.msra.mxu0 0
    %1953 = vmatprep.mubr.bf16.mxu0 0
    %1954 = vmatmul.mubr.bf16.gmra.mrb[0].mxu0 %v1919
    %v1955 = vpop.f32.mrb[0].mxu0
    %v1956 = vadd.f32 0.0, %v1955
    %v1957 = vpop.f32.mrb[0].mxu0
    %v1958 = vpop.f32.mrb[0].mxu0
    %v1959 = vpop.f32.mrb[0].mxu0
    %1960 = vdwg.mxu0
    %v1961 = vmul.f32 %v1956, 0.35355338
    %v1963 = vlaneseq
    %v1964 = vshrl.u32 %v1963, 7
    %v1965 = vsub.s32 0, %v1964
    %v1966 = vrot.slane %v1918, %v1965
    %v1968 = vadd.f32 %v1961, %v1966
    %v1969 = vsel %vm1082, %v1968, -inf
    %1970 = vmax.xlane.f32.xlu0 %v1969
    %v1971 = vpop.xlane.xlu0 %1970
    %v1972 = vsub.f32 %v1968, %v1971
    %v1973 = vmul.f32 %v1972, 1.442695
    %v1974 = vpow.pop %v1973
    %v1975 = vsel %vm1082, %v1974, 0.0
    %1976 = vadd.xlane.f32.xlu0 %v1975
    %v1977 = vpop.xlane.xlu0 %1976
    %v1978 = vrcp.pop %v1977
    %v1979 = vmul.f32 %v1974, %v1978
    %v1980 = vpack.c.bf16 %v1979, %v1979
    %v1981 = vpack.c.bf16 %v981, %v981
    %v1983 = vsel %vm1082, %v1980, 0
    %v1986 = vsel %vm1099, %v1981, 0
    %1988 = vmatprep.subr.bf16.mxu0 0
    %1989 = vmatpush1.bf16.msra.mxu0 %v1986
    %1990 = vmatprep.subr.bf16.mxu0 0
    %1991 = vmatpush1.bf16.msra.mxu0 0
    %1992 = vmatprep.subr.bf16.mxu0 0
    %1993 = vmatpush1.bf16.msra.mxu0 0
    %1994 = vmatprep.subr.bf16.mxu0 0
    %1995 = vmatpush1.bf16.msra.mxu0 0
    %1996 = vmatprep.subr.bf16.mxu0 0
    %1997 = vmatpush1.bf16.msra.mxu0 0
    %1998 = vmatprep.subr.bf16.mxu0 0
    %1999 = vmatpush1.bf16.msra.mxu0 0
    %2000 = vmatprep.subr.bf16.mxu0 0
    %2001 = vmatpush1.bf16.msra.mxu0 0
    %2002 = vmatprep.subr.bf16.mxu0 0
    %2003 = vmatpush1.bf16.msra.mxu0 0
    %2004 = vmatprep.subr.bf16.mxu0 0
    %2005 = vmatpush1.bf16.msra.mxu0 0
    %2006 = vmatprep.subr.bf16.mxu0 0
    %2007 = vmatpush1.bf16.msra.mxu0 0
    %2008 = vmatprep.subr.bf16.mxu0 0
    %2009 = vmatpush1.bf16.msra.mxu0 0
    %2010 = vmatprep.subr.bf16.mxu0 0
    %2011 = vmatpush1.bf16.msra.mxu0 0
    %2012 = vmatprep.subr.bf16.mxu0 0
    %2013 = vmatpush1.bf16.msra.mxu0 0
    %2014 = vmatprep.subr.bf16.mxu0 0
    %2015 = vmatpush1.bf16.msra.mxu0 0
    %2016 = vmatprep.subr.bf16.mxu0 0
    %2017 = vmatpush1.bf16.msra.mxu0 0
    %2018 = vmatprep.subr.bf16.mxu0 0
    %2019 = vmatpush1.bf16.msra.mxu0 0
    %2020 = vmatprep.mubr.bf16.mxu0 0
    %2021 = vmatmul.mubr.bf16.gmra.mrb[0].mxu0 %v1983
    %v2022 = vpop.f32.mrb[0].mxu0
    %v2023 = vadd.f32 0.0, %v2022
    %v2024 = vpop.f32.mrb[0].mxu0
    %v2025 = vpop.f32.mrb[0].mxu0
    %v2026 = vpop.f32.mrb[0].mxu0
    %2027 = vdwg.mxu0
    %v2028 = vpack.c.bf16 %v2023, %v2023
    %v2029 = vld [vmem:[#allocation7] sm:$0xf]
    %v2030 = vld [vmem:[#allocation7 + $0x4] sm:$0xf]
    %v2031 = vld [vmem:[#allocation7 + $0x8] sm:$0xf]
    %v2032 = vld [vmem:[#allocation7 + $0xc] sm:$0xf]
    %v2033 = vld [vmem:[#allocation7 + $0x10] sm:$0xf]
    %v2034 = vld [vmem:[#allocation7 + $0x14] sm:$0xf]
    %v2035 = vld [vmem:[#allocation7 + $0x18] sm:$0xf]
    %v2036 = vld [vmem:[#allocation7 + $0x1c] sm:$0xf]
    %v2037 = vld [vmem:[#allocation7 + $0x20] sm:$0xf]
    %v2038 = vld [vmem:[#allocation7 + $0x24] sm:$0xf]
    %v2039 = vld [vmem:[#allocation7 + $0x28] sm:$0xf]
    %v2040 = vld [vmem:[#allocation7 + $0x2c] sm:$0xf]
    %v2041 = vld [vmem:[#allocation7 + $0x30] sm:$0xf]
    %v2042 = vld [vmem:[#allocation7 + $0x34] sm:$0xf]
    %v2043 = vld [vmem:[#allocation7 + $0x38] sm:$0xf]
    %v2044 = vld [vmem:[#allocation7 + $0x3c] sm:$0xf]
    %v2045 = vpack.c.bf16 %v382, %v382
    %v2046 = vpack.c.bf16 %v897, %v897
    %2047 = vmatprep.subr.bf16.mxu0 0
    %2048 = vmatpush1.bf16.xpose.msra.mxu0 %v2046
    %2049 = vmatprep.subr.bf16.mxu0 0
    %2050 = vmatpush1.bf16.xpose.msra.mxu0 0
    %2051 = vmatprep.subr.bf16.mxu0 0
    %2052 = vmatpush1.bf16.xpose.msra.mxu0 0
    %2053 = vmatprep.subr.bf16.mxu0 0
    %2054 = vmatpush1.bf16.xpose.msra.mxu0 0
    %2055 = vmatprep.subr.bf16.mxu0 0
    %2056 = vmatpush1.bf16.xpose.msra.mxu0 0
    %2057 = vmatprep.subr.bf16.mxu0 0
    %2058 = vmatpush1.bf16.xpose.msra.mxu0 0
    %2059 = vmatprep.subr.bf16.mxu0 0
    %2060 = vmatpush1.bf16.xpose.msra.mxu0 0
    %2061 = vmatprep.subr.bf16.mxu0 0
    %2062 = vmatpush1.bf16.xpose.msra.mxu0 0
    %2063 = vmatprep.subr.bf16.mxu0 0
    %2064 = vmatpush1.bf16.xpose.msra.mxu0 0
    %2065 = vmatprep.subr.bf16.mxu0 0
    %2066 = vmatpush1.bf16.xpose.msra.mxu0 0
    %2067 = vmatprep.subr.bf16.mxu0 0
    %2068 = vmatpush1.bf16.xpose.msra.mxu0 0
    %2069 = vmatprep.subr.bf16.mxu0 0
    %2070 = vmatpush1.bf16.xpose.msra.mxu0 0
    %2071 = vmatprep.subr.bf16.mxu0 0
    %2072 = vmatpush1.bf16.xpose.msra.mxu0 0
    %2073 = vmatprep.subr.bf16.mxu0 0
    %2074 = vmatpush1.bf16.xpose.msra.mxu0 0
    %2075 = vmatprep.subr.bf16.mxu0 0
    %2076 = vmatpush1.bf16.xpose.msra.mxu0 0
    %2077 = vmatprep.subr.bf16.mxu0 0
    %2078 = vmatpush1.bf16.xpose.msra.mxu0 0
    %2079 = vmatprep.mubr.bf16.mxu0 0
    %2080 = vmatmul.mubr.bf16.gmra.mrb[0].mxu0 %v2045
    %v2081 = vpop.f32.mrb[0].mxu0
    %v2082 = vadd.f32 0.0, %v2081
    %v2083 = vpop.f32.mrb[0].mxu0
    %v2084 = vpop.f32.mrb[0].mxu0
    %v2085 = vpop.f32.mrb[0].mxu0
    %2086 = vdwg.mxu0
    %v2087 = vmul.f32 %v2082, 0.35355338
    %v2088 = vadd.f32 %v2087, %v1966
    %v2089 = vsel %vm1082, %v2088, -inf
    %2090 = vmax.xlane.f32.xlu0 %v2089
    %v2091 = vpop.xlane.xlu0 %2090
    %v2092 = vsub.f32 %v2088, %v2091
    %v2093 = vmul.f32 %v2092, 1.442695
    %v2094 = vpow.pop %v2093
    %v2095 = vsel %vm1082, %v2094, 0.0
    %2096 = vadd.xlane.f32.xlu0 %v2095
    %v2097 = vpop.xlane.xlu0 %2096
    %v2098 = vrcp.pop %v2097
    %v2099 = vmul.f32 %v2094, %v2098
    %v2100 = vpack.c.bf16 %v2099, %v2099
    %v2101 = vpack.c.bf16 %v983, %v983
    %v2103 = vsel %vm1082, %v2100, 0
    %v2106 = vsel %vm1099, %v2101, 0
    %2108 = vmatprep.subr.bf16.mxu0 0
    %2109 = vmatpush1.bf16.msra.mxu0 %v2106
    %2110 = vmatprep.subr.bf16.mxu0 0
    %2111 = vmatpush1.bf16.msra.mxu0 0
    %2112 = vmatprep.subr.bf16.mxu0 0
    %2113 = vmatpush1.bf16.msra.mxu0 0
    %2114 = vmatprep.subr.bf16.mxu0 0
    %2115 = vmatpush1.bf16.msra.mxu0 0
    %2116 = vmatprep.subr.bf16.mxu0 0
    %2117 = vmatpush1.bf16.msra.mxu0 0
    %2118 = vmatprep.subr.bf16.mxu0 0
    %2119 = vmatpush1.bf16.msra.mxu0 0
    %2120 = vmatprep.subr.bf16.mxu0 0
    %2121 = vmatpush1.bf16.msra.mxu0 0
    %2122 = vmatprep.subr.bf16.mxu0 0
    %2123 = vmatpush1.bf16.msra.mxu0 0
    %2124 = vmatprep.subr.bf16.mxu0 0
    %2125 = vmatpush1.bf16.msra.mxu0 0
    %2126 = vmatprep.subr.bf16.mxu0 0
    %2127 = vmatpush1.bf16.msra.mxu0 0
    %2128 = vmatprep.subr.bf16.mxu0 0
    %2129 = vmatpush1.bf16.msra.mxu0 0
    %2130 = vmatprep.subr.bf16.mxu0 0
    %2131 = vmatpush1.bf16.msra.mxu0 0
    %2132 = vmatprep.subr.bf16.mxu0 0
    %2133 = vmatpush1.bf16.msra.mxu0 0
    %2134 = vmatprep.subr.bf16.mxu0 0
    %2135 = vmatpush1.bf16.msra.mxu0 0
    %2136 = vmatprep.subr.bf16.mxu0 0
    %2137 = vmatpush1.bf16.msra.mxu0 0
    %2138 = vmatprep.subr.bf16.mxu0 0
    %2139 = vmatpush1.bf16.msra.mxu0 0
    %2140 = vmatprep.mubr.bf16.mxu0 0
    %2141 = vmatmul.mubr.bf16.gmra.mrb[0].mxu0 %v2103
    %v2142 = vpop.f32.mrb[0].mxu0
    %v2143 = vadd.f32 0.0, %v2142
    %v2144 = vpop.f32.mrb[0].mxu0
    %v2145 = vpop.f32.mrb[0].mxu0
    %v2146 = vpop.f32.mrb[0].mxu0
    %2147 = vdwg.mxu0
    %v2148 = vpack.c.bf16 %v2143, %v2143
    %v2149 = vld [vmem:[%s1264] sm:$0xf]
    %v2150 = vld [vmem:[%s1264 + $0x4] sm:$0xf]
    %v2151 = vld [vmem:[%s1264 + $0x8] sm:$0xf]
    %v2152 = vld [vmem:[%s1264 + $0xc] sm:$0xf]
    %v2153 = vld [vmem:[%s1264 + $0x10] sm:$0xf]
    %v2154 = vld [vmem:[%s1264 + $0x14] sm:$0xf]
    %v2155 = vld [vmem:[%s1264 + $0x18] sm:$0xf]
    %v2156 = vld [vmem:[%s1264 + $0x1c] sm:$0xf]
    %v2157 = vld [vmem:[%s1264 + $0x20] sm:$0xf]
    %v2158 = vld [vmem:[%s1264 + $0x24] sm:$0xf]
    %v2159 = vld [vmem:[%s1264 + $0x28] sm:$0xf]
    %v2160 = vld [vmem:[%s1264 + $0x2c] sm:$0xf]
    %v2161 = vld [vmem:[%s1264 + $0x30] sm:$0xf]
    %v2162 = vld [vmem:[%s1264 + $0x34] sm:$0xf]
    %v2163 = vld [vmem:[%s1264 + $0x38] sm:$0xf]
    %v2164 = vld [vmem:[%s1264 + $0x3c] sm:$0xf]
    %v2181 = vunpack.c.l.b16 %v2149
    %v2182 = vunpack.c.l.b16 %v2150
    %v2183 = vunpack.c.l.b16 %v2151
    %v2184 = vunpack.c.l.b16 %v2152
    %v2185 = vunpack.c.l.b16 %v2153
    %v2186 = vunpack.c.l.b16 %v2154
    %v2187 = vunpack.c.l.b16 %v2155
    %v2188 = vunpack.c.l.b16 %v2156
    %v2189 = vunpack.c.l.b16 %v2157
    %v2190 = vunpack.c.l.b16 %v2158
    %v2191 = vunpack.c.l.b16 %v2159
    %v2192 = vunpack.c.l.b16 %v2160
    %v2193 = vunpack.c.l.b16 %v2161
    %v2194 = vunpack.c.l.b16 %v2162
    %v2195 = vunpack.c.l.b16 %v2163
    %v2196 = vunpack.c.l.b16 %v2164
    %v2197 = vpack.c.b16 %v2182, %v2181
    %v2198 = vpack.c.b16 %v2184, %v2183
    %v2199 = vpack.c.b16 %v2186, %v2185
    %v2200 = vpack.c.b16 %v2188, %v2187
    %v2201 = vpack.c.b16 %v2190, %v2189
    %v2202 = vpack.c.b16 %v2192, %v2191
    %v2203 = vpack.c.b16 %v2194, %v2193
    %v2204 = vpack.c.b16 %v2196, %v2195
    %2213 = vmatprep.subr.bf16.mxu0 0
    %2214 = vmatpush1.bf16.msra.mxu0 %v2197
    %2215 = vmatprep.subr.bf16.mxu0 0
    %2216 = vmatpush1.bf16.msra.mxu0 %v2198
    %2217 = vmatprep.subr.bf16.mxu0 0
    %2218 = vmatpush1.bf16.msra.mxu0 %v2199
    %2219 = vmatprep.subr.bf16.mxu0 0
    %2220 = vmatpush1.bf16.msra.mxu0 %v2200
    %2221 = vmatprep.subr.bf16.mxu0 0
    %2222 = vmatpush1.bf16.msra.mxu0 %v2201
    %2223 = vmatprep.subr.bf16.mxu0 0
    %2224 = vmatpush1.bf16.msra.mxu0 %v2202
    %2225 = vmatprep.subr.bf16.mxu0 0
    %2226 = vmatpush1.bf16.msra.mxu0 %v2203
    %2227 = vmatprep.subr.bf16.mxu0 0
    %2228 = vmatpush1.bf16.msra.mxu0 %v2204
    %2229 = vmatprep.subr.bf16.mxu0 0
    %2230 = vmatpush1.bf16.msra.mxu0 0
    %2231 = vmatprep.subr.bf16.mxu0 0
    %2232 = vmatpush1.bf16.msra.mxu0 0
    %2233 = vmatprep.subr.bf16.mxu0 0
    %2234 = vmatpush1.bf16.msra.mxu0 0
    %2235 = vmatprep.subr.bf16.mxu0 0
    %2236 = vmatpush1.bf16.msra.mxu0 0
    %2237 = vmatprep.subr.bf16.mxu0 0
    %2238 = vmatpush1.bf16.msra.mxu0 0
    %2239 = vmatprep.subr.bf16.mxu0 0
    %2240 = vmatpush1.bf16.msra.mxu0 0
    %2241 = vmatprep.subr.bf16.mxu0 0
    %2242 = vmatpush1.bf16.msra.mxu0 0
    %2243 = vmatprep.subr.bf16.mxu0 0
    %2244 = vmatpush1.bf16.msra.mxu0 0
    %2245 = vmatprep.mubr.bf16.mxu0 0
    %2246 = vmatmul.mubr.bf16.gmra.mrb[0].mxu0 %v2148
    %v2247 = vpop.f32.mrb[0].mxu0
    %v2248 = vadd.f32 0.0, %v2247
    %v2249 = vpop.f32.mrb[0].mxu0
    %v2250 = vpop.f32.mrb[0].mxu0
    %v2251 = vpop.f32.mrb[0].mxu0
    %2252 = vdwg.mxu0
    %v2269 = vunpack.c.l.b16 %v2029
    %v2270 = vunpack.c.l.b16 %v2030
    %v2271 = vunpack.c.l.b16 %v2031
    %v2272 = vunpack.c.l.b16 %v2032
    %v2273 = vunpack.c.l.b16 %v2033
    %v2274 = vunpack.c.l.b16 %v2034
    %v2275 = vunpack.c.l.b16 %v2035
    %v2276 = vunpack.c.l.b16 %v2036
    %v2277 = vunpack.c.l.b16 %v2037
    %v2278 = vunpack.c.l.b16 %v2038
    %v2279 = vunpack.c.l.b16 %v2039
    %v2280 = vunpack.c.l.b16 %v2040
    %v2281 = vunpack.c.l.b16 %v2041
    %v2282 = vunpack.c.l.b16 %v2042
    %v2283 = vunpack.c.l.b16 %v2043
    %v2284 = vunpack.c.l.b16 %v2044
    %v2285 = vpack.c.b16 %v2270, %v2269
    %v2286 = vpack.c.b16 %v2272, %v2271
    %v2287 = vpack.c.b16 %v2274, %v2273
    %v2288 = vpack.c.b16 %v2276, %v2275
    %v2289 = vpack.c.b16 %v2278, %v2277
    %v2290 = vpack.c.b16 %v2280, %v2279
    %v2291 = vpack.c.b16 %v2282, %v2281
    %v2292 = vpack.c.b16 %v2284, %v2283
    %2301 = vmatprep.subr.bf16.mxu0 0
    %2302 = vmatpush1.bf16.msra.mxu0 %v2285
    %2303 = vmatprep.subr.bf16.mxu0 0
    %2304 = vmatpush1.bf16.msra.mxu0 %v2286
    %2305 = vmatprep.subr.bf16.mxu0 0
    %2306 = vmatpush1.bf16.msra.mxu0 %v2287
    %2307 = vmatprep.subr.bf16.mxu0 0
    %2308 = vmatpush1.bf16.msra.mxu0 %v2288
    %2309 = vmatprep.subr.bf16.mxu0 0
    %2310 = vmatpush1.bf16.msra.mxu0 %v2289
    %2311 = vmatprep.subr.bf16.mxu0 0
    %2312 = vmatpush1.bf16.msra.mxu0 %v2290
    %2313 = vmatprep.subr.bf16.mxu0 0
    %2314 = vmatpush1.bf16.msra.mxu0 %v2291
    %2315 = vmatprep.subr.bf16.mxu0 0
    %2316 = vmatpush1.bf16.msra.mxu0 %v2292
    %2317 = vmatprep.subr.bf16.mxu0 0
    %2318 = vmatpush1.bf16.msra.mxu0 0
    %2319 = vmatprep.subr.bf16.mxu0 0
    %2320 = vmatpush1.bf16.msra.mxu0 0
    %2321 = vmatprep.subr.bf16.mxu0 0
    %2322 = vmatpush1.bf16.msra.mxu0 0
    %2323 = vmatprep.subr.bf16.mxu0 0
    %2324 = vmatpush1.bf16.msra.mxu0 0
    %2325 = vmatprep.subr.bf16.mxu0 0
    %2326 = vmatpush1.bf16.msra.mxu0 0
    %2327 = vmatprep.subr.bf16.mxu0 0
    %2328 = vmatpush1.bf16.msra.mxu0 0
    %2329 = vmatprep.subr.bf16.mxu0 0
    %2330 = vmatpush1.bf16.msra.mxu0 0
    %2331 = vmatprep.subr.bf16.mxu0 0
    %2332 = vmatpush1.bf16.msra.mxu0 0
    %2333 = vmatprep.mubr.bf16.mxu0 0
    %2334 = vmatmul.mubr.bf16.gmra.mrb[0].mxu0 %v2028
    %v2335 = vpop.f32.mrb[0].mxu0
    %v2336 = vadd.f32 %v2248, %v2335
    %v2337 = vpop.f32.mrb[0].mxu0
    %v2338 = vpop.f32.mrb[0].mxu0
    %v2339 = vpop.f32.mrb[0].mxu0
    %2340 = vdwg.mxu0
    %v2341 = vpack.c.bf16 %v423, %v423
    %v2342 = vpack.c.bf16 %v938, %v938
    %2343 = vmatprep.subr.bf16.mxu0 0
    %2344 = vmatpush1.bf16.xpose.msra.mxu0 %v2342
    %2345 = vmatprep.subr.bf16.mxu0 0
    %2346 = vmatpush1.bf16.xpose.msra.mxu0 0
    %2347 = vmatprep.subr.bf16.mxu0 0
    %2348 = vmatpush1.bf16.xpose.msra.mxu0 0
    %2349 = vmatprep.subr.bf16.mxu0 0
    %2350 = vmatpush1.bf16.xpose.msra.mxu0 0
    %2351 = vmatprep.subr.bf16.mxu0 0
    %2352 = vmatpush1.bf16.xpose.msra.mxu0 0
    %2353 = vmatprep.subr.bf16.mxu0 0
    %2354 = vmatpush1.bf16.xpose.msra.mxu0 0
    %2355 = vmatprep.subr.bf16.mxu0 0
    %2356 = vmatpush1.bf16.xpose.msra.mxu0 0
    %2357 = vmatprep.subr.bf16.mxu0 0
    %2358 = vmatpush1.bf16.xpose.msra.mxu0 0
    %2359 = vmatprep.subr.bf16.mxu0 0
    %2360 = vmatpush1.bf16.xpose.msra.mxu0 0
    %2361 = vmatprep.subr.bf16.mxu0 0
    %2362 = vmatpush1.bf16.xpose.msra.mxu0 0
    %2363 = vmatprep.subr.bf16.mxu0 0
    %2364 = vmatpush1.bf16.xpose.msra.mxu0 0
    %2365 = vmatprep.subr.bf16.mxu0 0
    %2366 = vmatpush1.bf16.xpose.msra.mxu0 0
    %2367 = vmatprep.subr.bf16.mxu0 0
    %2368 = vmatpush1.bf16.xpose.msra.mxu0 0
    %2369 = vmatprep.subr.bf16.mxu0 0
    %2370 = vmatpush1.bf16.xpose.msra.mxu0 0
    %2371 = vmatprep.subr.bf16.mxu0 0
    %2372 = vmatpush1.bf16.xpose.msra.mxu0 0
    %2373 = vmatprep.subr.bf16.mxu0 0
    %2374 = vmatpush1.bf16.xpose.msra.mxu0 0
    %2375 = vmatprep.mubr.bf16.mxu0 0
    %2376 = vmatmul.mubr.bf16.gmra.mrb[0].mxu0 %v2341
    %v2377 = vpop.f32.mrb[0].mxu0
    %v2378 = vadd.f32 0.0, %v2377
    %v2379 = vpop.f32.mrb[0].mxu0
    %v2380 = vpop.f32.mrb[0].mxu0
    %v2381 = vpop.f32.mrb[0].mxu0
    %2382 = vdwg.mxu0
    %v2383 = vmul.f32 %v2378, 0.35355338
    %v2384 = vadd.f32 %v2383, %v1966
    %v2385 = vsel %vm1082, %v2384, -inf
    %2386 = vmax.xlane.f32.xlu0 %v2385
    %v2387 = vpop.xlane.xlu0 %2386
    %v2388 = vsub.f32 %v2384, %v2387
    %v2389 = vmul.f32 %v2388, 1.442695
    %v2390 = vpow.pop %v2389
    %v2391 = vsel %vm1082, %v2390, 0.0
    %2392 = vadd.xlane.f32.xlu0 %v2391
    %v2393 = vpop.xlane.xlu0 %2392
    %v2394 = vrcp.pop %v2393
    %v2395 = vmul.f32 %v2390, %v2394
    %v2396 = vpack.c.bf16 %v2395, %v2395
    %v2397 = vpack.c.bf16 %v1024, %v1024
    %v2399 = vsel %vm1082, %v2396, 0
    %v2402 = vsel %vm1099, %v2397, 0
    %2404 = vmatprep.subr.bf16.mxu0 0
    %2405 = vmatpush1.bf16.msra.mxu0 %v2402
    %2406 = vmatprep.subr.bf16.mxu0 0
    %2407 = vmatpush1.bf16.msra.mxu0 0
    %2408 = vmatprep.subr.bf16.mxu0 0
    %2409 = vmatpush1.bf16.msra.mxu0 0
    %2410 = vmatprep.subr.bf16.mxu0 0
    %2411 = vmatpush1.bf16.msra.mxu0 0
    %2412 = vmatprep.subr.bf16.mxu0 0
    %2413 = vmatpush1.bf16.msra.mxu0 0
    %2414 = vmatprep.subr.bf16.mxu0 0
    %2415 = vmatpush1.bf16.msra.mxu0 0
    %2416 = vmatprep.subr.bf16.mxu0 0
    %2417 = vmatpush1.bf16.msra.mxu0 0
    %2418 = vmatprep.subr.bf16.mxu0 0
    %2419 = vmatpush1.bf16.msra.mxu0 0
    %2420 = vmatprep.subr.bf16.mxu0 0
    %2421 = vmatpush1.bf16.msra.mxu0 0
    %2422 = vmatprep.subr.bf16.mxu0 0
    %2423 = vmatpush1.bf16.msra.mxu0 0
    %2424 = vmatprep.subr.bf16.mxu0 0
    %2425 = vmatpush1.bf16.msra.mxu0 0
    %2426 = vmatprep.subr.bf16.mxu0 0
    %2427 = vmatpush1.bf16.msra.mxu0 0
    %2428 = vmatprep.subr.bf16.mxu0 0
    %2429 = vmatpush1.bf16.msra.mxu0 0
    %2430 = vmatprep.subr.bf16.mxu0 0
    %2431 = vmatpush1.bf16.msra.mxu0 0
    %2432 = vmatprep.subr.bf16.mxu0 0
    %2433 = vmatpush1.bf16.msra.mxu0 0
    %2434 = vmatprep.subr.bf16.mxu0 0
    %2435 = vmatpush1.bf16.msra.mxu0 0
    %2436 = vmatprep.mubr.bf16.mxu0 0
    %2437 = vmatmul.mubr.bf16.gmra.mrb[0].mxu0 %v2399
    %v2438 = vpop.f32.mrb[0].mxu0
    %v2439 = vadd.f32 0.0, %v2438
    %v2440 = vpop.f32.mrb[0].mxu0
    %v2441 = vpop.f32.mrb[0].mxu0
    %v2442 = vpop.f32.mrb[0].mxu0
    %2443 = vdwg.mxu0
    %v2444 = vpack.c.bf16 %v2439, %v2439
    %v2445 = vld [vmem:[%s1561] sm:$0xf]
    %v2446 = vld [vmem:[%s1561 + $0x4] sm:$0xf]
    %v2447 = vld [vmem:[%s1561 + $0x8] sm:$0xf]
    %v2448 = vld [vmem:[%s1561 + $0xc] sm:$0xf]
    %v2449 = vld [vmem:[%s1561 + $0x10] sm:$0xf]
    %v2450 = vld [vmem:[%s1561 + $0x14] sm:$0xf]
    %v2451 = vld [vmem:[%s1561 + $0x18] sm:$0xf]
    %v2452 = vld [vmem:[%s1561 + $0x1c] sm:$0xf]
    %v2453 = vld [vmem:[%s1561 + $0x20] sm:$0xf]
    %v2454 = vld [vmem:[%s1561 + $0x24] sm:$0xf]
    %v2455 = vld [vmem:[%s1561 + $0x28] sm:$0xf]
    %v2456 = vld [vmem:[%s1561 + $0x2c] sm:$0xf]
    %v2457 = vld [vmem:[%s1561 + $0x30] sm:$0xf]
    %v2458 = vld [vmem:[%s1561 + $0x34] sm:$0xf]
    %v2459 = vld [vmem:[%s1561 + $0x38] sm:$0xf]
    %v2460 = vld [vmem:[%s1561 + $0x3c] sm:$0xf]
    %v2477 = vunpack.c.l.b16 %v2445
    %v2478 = vunpack.c.l.b16 %v2446
    %v2479 = vunpack.c.l.b16 %v2447
    %v2480 = vunpack.c.l.b16 %v2448
    %v2481 = vunpack.c.l.b16 %v2449
    %v2482 = vunpack.c.l.b16 %v2450
    %v2483 = vunpack.c.l.b16 %v2451
    %v2484 = vunpack.c.l.b16 %v2452
    %v2485 = vunpack.c.l.b16 %v2453
    %v2486 = vunpack.c.l.b16 %v2454
    %v2487 = vunpack.c.l.b16 %v2455
    %v2488 = vunpack.c.l.b16 %v2456
    %v2489 = vunpack.c.l.b16 %v2457
    %v2490 = vunpack.c.l.b16 %v2458
    %v2491 = vunpack.c.l.b16 %v2459
    %v2492 = vunpack.c.l.b16 %v2460
    %v2493 = vpack.c.b16 %v2478, %v2477
    %v2494 = vpack.c.b16 %v2480, %v2479
    %v2495 = vpack.c.b16 %v2482, %v2481
    %v2496 = vpack.c.b16 %v2484, %v2483
    %v2497 = vpack.c.b16 %v2486, %v2485
    %v2498 = vpack.c.b16 %v2488, %v2487
    %v2499 = vpack.c.b16 %v2490, %v2489
    %v2500 = vpack.c.b16 %v2492, %v2491
    %2509 = vmatprep.subr.bf16.mxu0 0
    %2510 = vmatpush1.bf16.msra.mxu0 %v2493
    %2511 = vmatprep.subr.bf16.mxu0 0
    %2512 = vmatpush1.bf16.msra.mxu0 %v2494
    %2513 = vmatprep.subr.bf16.mxu0 0
    %2514 = vmatpush1.bf16.msra.mxu0 %v2495
    %2515 = vmatprep.subr.bf16.mxu0 0
    %2516 = vmatpush1.bf16.msra.mxu0 %v2496
    %2517 = vmatprep.subr.bf16.mxu0 0
    %2518 = vmatpush1.bf16.msra.mxu0 %v2497
    %2519 = vmatprep.subr.bf16.mxu0 0
    %2520 = vmatpush1.bf16.msra.mxu0 %v2498
    %2521 = vmatprep.subr.bf16.mxu0 0
    %2522 = vmatpush1.bf16.msra.mxu0 %v2499
    %2523 = vmatprep.subr.bf16.mxu0 0
    %2524 = vmatpush1.bf16.msra.mxu0 %v2500
    %2525 = vmatprep.subr.bf16.mxu0 0
    %2526 = vmatpush1.bf16.msra.mxu0 0
    %2527 = vmatprep.subr.bf16.mxu0 0
    %2528 = vmatpush1.bf16.msra.mxu0 0
    %2529 = vmatprep.subr.bf16.mxu0 0
    %2530 = vmatpush1.bf16.msra.mxu0 0
    %2531 = vmatprep.subr.bf16.mxu0 0
    %2532 = vmatpush1.bf16.msra.mxu0 0
    %2533 = vmatprep.subr.bf16.mxu0 0
    %2534 = vmatpush1.bf16.msra.mxu0 0
    %2535 = vmatprep.subr.bf16.mxu0 0
    %2536 = vmatpush1.bf16.msra.mxu0 0
    %2537 = vmatprep.subr.bf16.mxu0 0
    %2538 = vmatpush1.bf16.msra.mxu0 0
    %2539 = vmatprep.subr.bf16.mxu0 0
    %2540 = vmatpush1.bf16.msra.mxu0 0
    %2541 = vmatprep.mubr.bf16.mxu0 0
    %2542 = vmatmul.mubr.bf16.gmra.mrb[0].mxu0 %v2444
    %v2543 = vpop.f32.mrb[0].mxu0
    %v2544 = vadd.f32 0.0, %v2543
    %v2545 = vpop.f32.mrb[0].mxu0
    %v2546 = vpop.f32.mrb[0].mxu0
    %v2547 = vpop.f32.mrb[0].mxu0
    %2548 = vdwg.mxu0
    %v2549 = vadd.f32 %v2336, %v2544
    %v2550 = vpack.c.bf16 %v425, %v425
    %v2551 = vpack.c.bf16 %v940, %v940
    %2552 = vmatprep.subr.bf16.mxu0 0
    %2553 = vmatpush1.bf16.xpose.msra.mxu0 %v2551
    %2554 = vmatprep.subr.bf16.mxu0 0
    %2555 = vmatpush1.bf16.xpose.msra.mxu0 0
    %2556 = vmatprep.subr.bf16.mxu0 0
    %2557 = vmatpush1.bf16.xpose.msra.mxu0 0
    %2558 = vmatprep.subr.bf16.mxu0 0
    %2559 = vmatpush1.bf16.xpose.msra.mxu0 0
    %2560 = vmatprep.subr.bf16.mxu0 0
    %2561 = vmatpush1.bf16.xpose.msra.mxu0 0
    %2562 = vmatprep.subr.bf16.mxu0 0
    %2563 = vmatpush1.bf16.xpose.msra.mxu0 0
    %2564 = vmatprep.subr.bf16.mxu0 0
    %2565 = vmatpush1.bf16.xpose.msra.mxu0 0
    %2566 = vmatprep.subr.bf16.mxu0 0
    %2567 = vmatpush1.bf16.xpose.msra.mxu0 0
    %2568 = vmatprep.subr.bf16.mxu0 0
    %2569 = vmatpush1.bf16.xpose.msra.mxu0 0
    %2570 = vmatprep.subr.bf16.mxu0 0
    %2571 = vmatpush1.bf16.xpose.msra.mxu0 0
    %2572 = vmatprep.subr.bf16.mxu0 0
    %2573 = vmatpush1.bf16.xpose.msra.mxu0 0
    %2574 = vmatprep.subr.bf16.mxu0 0
    %2575 = vmatpush1.bf16.xpose.msra.mxu0 0
    %2576 = vmatprep.subr.bf16.mxu0 0
    %2577 = vmatpush1.bf16.xpose.msra.mxu0 0
    %2578 = vmatprep.subr.bf16.mxu0 0
    %2579 = vmatpush1.bf16.xpose.msra.mxu0 0
    %2580 = vmatprep.subr.bf16.mxu0 0
    %2581 = vmatpush1.bf16.xpose.msra.mxu0 0
    %2582 = vmatprep.subr.bf16.mxu0 0
    %2583 = vmatpush1.bf16.xpose.msra.mxu0 0
    %2584 = vmatprep.mubr.bf16.mxu0 0
    %2585 = vmatmul.mubr.bf16.gmra.mrb[0].mxu0 %v2550
    %v2586 = vpop.f32.mrb[0].mxu0
    %v2587 = vadd.f32 0.0, %v2586
    %v2588 = vpop.f32.mrb[0].mxu0
    %v2589 = vpop.f32.mrb[0].mxu0
    %v2590 = vpop.f32.mrb[0].mxu0
    %2591 = vdwg.mxu0
    %v2592 = vmul.f32 %v2587, 0.35355338
    %v2593 = vadd.f32 %v2592, %v1966
    %v2594 = vsel %vm1082, %v2593, -inf
    %2595 = vmax.xlane.f32.xlu0 %v2594
    %v2596 = vpop.xlane.xlu0 %2595
    %v2597 = vsub.f32 %v2593, %v2596
    %v2598 = vmul.f32 %v2597, 1.442695
    %v2599 = vpow.pop %v2598
    %v2600 = vsel %vm1082, %v2599, 0.0
    %2601 = vadd.xlane.f32.xlu0 %v2600
    %v2602 = vpop.xlane.xlu0 %2601
    %v2603 = vrcp.pop %v2602
    %v2604 = vmul.f32 %v2599, %v2603
    %v2605 = vpack.c.bf16 %v2604, %v2604
    %v2606 = vpack.c.bf16 %v1026, %v1026
    %v2608 = vsel %vm1082, %v2605, 0
    %v2611 = vsel %vm1099, %v2606, 0
    %2613 = vmatprep.subr.bf16.mxu0 0
    %2614 = vmatpush1.bf16.msra.mxu0 %v2611
    %2615 = vmatprep.subr.bf16.mxu0 0
    %2616 = vmatpush1.bf16.msra.mxu0 0
    %2617 = vmatprep.subr.bf16.mxu0 0
    %2618 = vmatpush1.bf16.msra.mxu0 0
    %2619 = vmatprep.subr.bf16.mxu0 0
    %2620 = vmatpush1.bf16.msra.mxu0 0
    %2621 = vmatprep.subr.bf16.mxu0 0
    %2622 = vmatpush1.bf16.msra.mxu0 0
    %2623 = vmatprep.subr.bf16.mxu0 0
    %2624 = vmatpush1.bf16.msra.mxu0 0
    %2625 = vmatprep.subr.bf16.mxu0 0
    %2626 = vmatpush1.bf16.msra.mxu0 0
    %2627 = vmatprep.subr.bf16.mxu0 0
    %2628 = vmatpush1.bf16.msra.mxu0 0
    %2629 = vmatprep.subr.bf16.mxu0 0
    %2630 = vmatpush1.bf16.msra.mxu0 0
    %2631 = vmatprep.subr.bf16.mxu0 0
    %2632 = vmatpush1.bf16.msra.mxu0 0
    %2633 = vmatprep.subr.bf16.mxu0 0
    %2634 = vmatpush1.bf16.msra.mxu0 0
    %2635 = vmatprep.subr.bf16.mxu0 0
    %2636 = vmatpush1.bf16.msra.mxu0 0
    %2637 = vmatprep.subr.bf16.mxu0 0
    %2638 = vmatpush1.bf16.msra.mxu0 0
    %2639 = vmatprep.subr.bf16.mxu0 0
    %2640 = vmatpush1.bf16.msra.mxu0 0
    %2641 = vmatprep.subr.bf16.mxu0 0
    %2642 = vmatpush1.bf16.msra.mxu0 0
    %2643 = vmatprep.subr.bf16.mxu0 0
    %2644 = vmatpush1.bf16.msra.mxu0 0
    %2645 = vmatprep.mubr.bf16.mxu0 0
    %2646 = vmatmul.mubr.bf16.gmra.mrb[0].mxu0 %v2608
    %v2647 = vpop.f32.mrb[0].mxu0
    %v2648 = vadd.f32 0.0, %v2647
    %v2649 = vpop.f32.mrb[0].mxu0
    %v2650 = vpop.f32.mrb[0].mxu0
    %v2651 = vpop.f32.mrb[0].mxu0
    %2652 = vdwg.mxu0
    %v2653 = vpack.c.bf16 %v2648, %v2648
    %v2654 = vld [vmem:[%s1771] sm:$0xf]
    %v2655 = vld [vmem:[%s1771 + $0x4] sm:$0xf]
    %v2656 = vld [vmem:[%s1771 + $0x8] sm:$0xf]
    %v2657 = vld [vmem:[%s1771 + $0xc] sm:$0xf]
    %v2658 = vld [vmem:[%s1771 + $0x10] sm:$0xf]
    %v2659 = vld [vmem:[%s1771 + $0x14] sm:$0xf]
    %v2660 = vld [vmem:[%s1771 + $0x18] sm:$0xf]
    %v2661 = vld [vmem:[%s1771 + $0x1c] sm:$0xf]
    %v2662 = vld [vmem:[%s1771 + $0x20] sm:$0xf]
    %v2663 = vld [vmem:[%s1771 + $0x24] sm:$0xf]
    %v2664 = vld [vmem:[%s1771 + $0x28] sm:$0xf]
    %v2665 = vld [vmem:[%s1771 + $0x2c] sm:$0xf]
    %v2666 = vld [vmem:[%s1771 + $0x30] sm:$0xf]
    %v2667 = vld [vmem:[%s1771 + $0x34] sm:$0xf]
    %v2668 = vld [vmem:[%s1771 + $0x38] sm:$0xf]
    %v2669 = vld [vmem:[%s1771 + $0x3c] sm:$0xf]
    %v2686 = vunpack.c.l.b16 %v2654
    %v2687 = vunpack.c.l.b16 %v2655
    %v2688 = vunpack.c.l.b16 %v2656
    %v2689 = vunpack.c.l.b16 %v2657
    %v2690 = vunpack.c.l.b16 %v2658
    %v2691 = vunpack.c.l.b16 %v2659
    %v2692 = vunpack.c.l.b16 %v2660
    %v2693 = vunpack.c.l.b16 %v2661
    %v2694 = vunpack.c.l.b16 %v2662
    %v2695 = vunpack.c.l.b16 %v2663
    %v2696 = vunpack.c.l.b16 %v2664
    %v2697 = vunpack.c.l.b16 %v2665
    %v2698 = vunpack.c.l.b16 %v2666
    %v2699 = vunpack.c.l.b16 %v2667
    %v2700 = vunpack.c.l.b16 %v2668
    %v2701 = vunpack.c.l.b16 %v2669
    %v2702 = vpack.c.b16 %v2687, %v2686
    %v2703 = vpack.c.b16 %v2689, %v2688
    %v2704 = vpack.c.b16 %v2691, %v2690
    %v2705 = vpack.c.b16 %v2693, %v2692
    %v2706 = vpack.c.b16 %v2695, %v2694
    %v2707 = vpack.c.b16 %v2697, %v2696
    %v2708 = vpack.c.b16 %v2699, %v2698
    %v2709 = vpack.c.b16 %v2701, %v2700
    %2718 = vmatprep.subr.bf16.mxu0 0
    %2719 = vmatpush1.bf16.msra.mxu0 %v2702
    %2720 = vmatprep.subr.bf16.mxu0 0
    %2721 = vmatpush1.bf16.msra.mxu0 %v2703
    %2722 = vmatprep.subr.bf16.mxu0 0
    %2723 = vmatpush1.bf16.msra.mxu0 %v2704
    %2724 = vmatprep.subr.bf16.mxu0 0
    %2725 = vmatpush1.bf16.msra.mxu0 %v2705
    %2726 = vmatprep.subr.bf16.mxu0 0
    %2727 = vmatpush1.bf16.msra.mxu0 %v2706
    %2728 = vmatprep.subr.bf16.mxu0 0
    %2729 = vmatpush1.bf16.msra.mxu0 %v2707
    %2730 = vmatprep.subr.bf16.mxu0 0
    %2731 = vmatpush1.bf16.msra.mxu0 %v2708
    %2732 = vmatprep.subr.bf16.mxu0 0
    %2733 = vmatpush1.bf16.msra.mxu0 %v2709
    %2734 = vmatprep.subr.bf16.mxu0 0
    %2735 = vmatpush1.bf16.msra.mxu0 0
    %2736 = vmatprep.subr.bf16.mxu0 0
    %2737 = vmatpush1.bf16.msra.mxu0 0
    %2738 = vmatprep.subr.bf16.mxu0 0
    %2739 = vmatpush1.bf16.msra.mxu0 0
    %2740 = vmatprep.subr.bf16.mxu0 0
    %2741 = vmatpush1.bf16.msra.mxu0 0
    %2742 = vmatprep.subr.bf16.mxu0 0
    %2743 = vmatpush1.bf16.msra.mxu0 0
    %2744 = vmatprep.subr.bf16.mxu0 0
    %2745 = vmatpush1.bf16.msra.mxu0 0
    %2746 = vmatprep.subr.bf16.mxu0 0
    %2747 = vmatpush1.bf16.msra.mxu0 0
    %2748 = vmatprep.subr.bf16.mxu0 0
    %2749 = vmatpush1.bf16.msra.mxu0 0
    %2750 = vmatprep.mubr.bf16.mxu0 0
    %2751 = vmatmul.mubr.bf16.gmra.mrb[0].mxu0 %v2653
    %v2752 = vpop.f32.mrb[0].mxu0
    %v2753 = vadd.f32 0.0, %v2752
    %v2754 = vpop.f32.mrb[0].mxu0
    %v2755 = vpop.f32.mrb[0].mxu0
    %v2756 = vpop.f32.mrb[0].mxu0
    %2757 = vdwg.mxu0
    %v2758 = vadd.f32 %v2549, %v2753
    %v2759 = vadd.f32 %v125, %v2758
    %v2760 = vadd.f32 %v2759, %v1882
    %2761 = vadd.xlane.f32.xlu0 %v2760
    %v2762 = vpop.xlane.xlu0 %2761
    %v2763 = vmul.f32 %v2762, 0.03125
    %v2764 = vsub.f32 %v2760, %v2763
    %v2765 = vmul.f32 %v2764, %v1889
    %v2766 = vmul.f32 %v2765, %v2765
    %2767 = vadd.xlane.f32.xlu0 %v2766
    %v2768 = vpop.xlane.xlu0 %2767
    %v2769 = vmul.f32 %v2768, 0.03125
    %v2770 = vadd.f32 %v2769, 1e-05
    %v2771 = vrsqrt.pop %v2770
    %v2772 = vmul.f32 %v2765, %v2771
    %v2773 = vmul.f32 %v2772, %v1906
    %v2774 = vadd.f32 %v2773, %v1913
    %2775 = vst [vmem:[%s11 + $0x8] sm:$0xff] %v2774
    // Predicated region
    $region74: #{transformer_forward.7} parent=1 // pred_check
      _
    $region75: #{transformer_forward.7} parent=1 // pred_check_branch
      %2777 = sbr.rel (0) target = $region77
    $region76: #{transformer_forward.7} parent=1 // pred_region
      _
    $region77: #{transformer_forward.7} parent=1 // pred_fallthru
      _
    // Predicated region
    $region78: #{transformer_forward.7} parent=1 // pred_check
      _
    $region79: #{transformer_forward.7} parent=1 // pred_check_branch
      %2779 = sbr.rel (0) target = $region81
    $region80: #{transformer_forward.7} parent=1 // pred_region
      _
    $region81: #{transformer_forward.7} parent=1 // pred_fallthru
      _
    %2780 = vsyncpa [#allocation3], 1
    %2781 = vsyncpa [#allocation5], 1
    %2782 = vsyncpa [#allocation8], 1
    %2783 = vsyncpa [#allocation11], 1

// kernel: transformer_forward.13
$region0: #{transformer_forward.13}
  #allocation0 [shape = 'u32[]', space=smem, size = 0x4, offset = 0x4, fixed_abs, tag = 'smem constant byte address 0x4 - core index']
  #allocation1 [shape = 'u32[144,128]{1,0:T(1,128)}', space=vmem, size = 0x12000, scoped, tag = 'internal scratch']
  %s0 = inlined_call_operand.vmem [shape: f32[16,128], index: 0, kind: input, shape index: {}]
  %s1 = inlined_call_operand.vmem [shape: bf16[128,128], index: 1, kind: input, shape index: {}]
  %s2 = inlined_call_operand.vmem [shape: f32[1,128], index: 2, kind: input, shape index: {}]
  %s3 = inlined_call_operand.vmem [shape: bf16[128,128], index: 3, kind: input, shape index: {}]
  %s4 = inlined_call_operand.vmem [shape: f32[1,128], index: 4, kind: input, shape index: {}]
  %s5 = inlined_call_operand.vmem [shape: f32[1,128], index: 5, kind: input, shape index: {}]
  %s6 = inlined_call_operand.vmem [shape: f32[1,128], index: 6, kind: input, shape index: {}]
  %s7 = inlined_call_operand.hbm [shape: f32[16,128], index: 7, kind: output, shape index: {}]
  %s8 = sld [smem:[#allocation0]]
  $region38: #{transformer_forward.13} parent=0
    _
  %s10 = ssub.s32 1, %s8
  %s11 = scalar_select 0, %s10, %s8
  $region1: #{transformer_forward.13} parent=0
    #allocation2 [shape = 'u8[8192]{0}', space=vmem, size = 0x2000, scoped, tag = 'output window, operand 0, single buffered']
    #allocation3 [shape = 's32[1]{0}', space=sflag, size = 0x4, scoped, tag = 'scoped memory for transformer_forward.13']
    %12 = vsyncpa [#allocation3], 0
    // Predicated region
    $region2: #{transformer_forward.13} parent=1 // pred_check
      _
    $region3: #{transformer_forward.13} parent=1 // pred_check_branch
      %14 = sbr.rel (0) target = $region5
    $region4: #{transformer_forward.13} parent=1 // pred_region
      _
    $region5: #{transformer_forward.13} parent=1 // pred_fallthru
      _
    // Predicated region
    $region6: #{transformer_forward.13} parent=1 // pred_check
      _
    $region7: #{transformer_forward.13} parent=1 // pred_check_branch
      %16 = sbr.rel (0) target = $region9
    $region8: #{transformer_forward.13} parent=1 // pred_region
      _
    $region9: #{transformer_forward.13} parent=1 // pred_fallthru
      _
    // Predicated region
    $region10: #{transformer_forward.13} parent=1 // pred_check
      _
    $region11: #{transformer_forward.13} parent=1 // pred_check_branch
      %18 = sbr.rel (0) target = $region13
    $region12: #{transformer_forward.13} parent=1 // pred_region
      _
    $region13: #{transformer_forward.13} parent=1 // pred_fallthru
      _
    // Predicated region
    $region14: #{transformer_forward.13} parent=1 // pred_check
      _
    $region15: #{transformer_forward.13} parent=1 // pred_check_branch
      %20 = sbr.rel (0) target = $region17
    $region16: #{transformer_forward.13} parent=1 // pred_region
      _
    $region17: #{transformer_forward.13} parent=1 // pred_fallthru
      _
    // Predicated region
    $region18: #{transformer_forward.13} parent=1 // pred_check
      _
    $region19: #{transformer_forward.13} parent=1 // pred_check_branch
      %22 = sbr.rel (0) target = $region21
    $region20: #{transformer_forward.13} parent=1 // pred_region
      _
    $region21: #{transformer_forward.13} parent=1 // pred_fallthru
      _
    // Predicated region
    $region22: #{transformer_forward.13} parent=1 // pred_check
      _
    $region23: #{transformer_forward.13} parent=1 // pred_check_branch
      %24 = sbr.rel (0) target = $region25
    $region24: #{transformer_forward.13} parent=1 // pred_region
      _
    $region25: #{transformer_forward.13} parent=1 // pred_fallthru
      _
    // Predicated region
    $region26: #{transformer_forward.13} parent=1 // pred_check
      _
    $region27: #{transformer_forward.13} parent=1 // pred_check_branch
      %26 = sbr.rel (0) target = $region29
    $region28: #{transformer_forward.13} parent=1 // pred_region
      _
    $region29: #{transformer_forward.13} parent=1 // pred_fallthru
      _
    %v28 = vld [vmem:[%s0] sm:$0xff]
    %v29 = vld [vmem:[%s0 + $0x8] sm:$0xff]
    %v30 = vpack.c.bf16 %v29, %v28
    %v31 = vld [vmem:[%s1] sm:$0xf]
    %v32 = vld [vmem:[%s1 + $0x4] sm:$0xf]
    %v33 = vld [vmem:[%s1 + $0x8] sm:$0xf]
    %v34 = vld [vmem:[%s1 + $0xc] sm:$0xf]
    %v35 = vld [vmem:[%s1 + $0x10] sm:$0xf]
    %v36 = vld [vmem:[%s1 + $0x14] sm:$0xf]
    %v37 = vld [vmem:[%s1 + $0x18] sm:$0xf]
    %v38 = vld [vmem:[%s1 + $0x1c] sm:$0xf]
    %v39 = vld [vmem:[%s1 + $0x20] sm:$0xf]
    %v40 = vld [vmem:[%s1 + $0x24] sm:$0xf]
    %v41 = vld [vmem:[%s1 + $0x28] sm:$0xf]
    %v42 = vld [vmem:[%s1 + $0x2c] sm:$0xf]
    %v43 = vld [vmem:[%s1 + $0x30] sm:$0xf]
    %v44 = vld [vmem:[%s1 + $0x34] sm:$0xf]
    %v45 = vld [vmem:[%s1 + $0x38] sm:$0xf]
    %v46 = vld [vmem:[%s1 + $0x3c] sm:$0xf]
    %v47 = vld [vmem:[%s2] sm:$0x1]
    %v49 = vlaneseq
    %v50 = vshrl.u32 %v49, 7
    %v51 = vsub.s32 0, %v50
    %v52 = vrot.slane %v47, %v51
    %v70 = vunpack.c.l.b16 %v31
    %v71 = vunpack.c.l.b16 %v32
    %v72 = vunpack.c.l.b16 %v33
    %v73 = vunpack.c.l.b16 %v34
    %v74 = vunpack.c.l.b16 %v35
    %v75 = vunpack.c.l.b16 %v36
    %v76 = vunpack.c.l.b16 %v37
    %v77 = vunpack.c.l.b16 %v38
    %v78 = vunpack.c.l.b16 %v39
    %v79 = vunpack.c.l.b16 %v40
    %v80 = vunpack.c.l.b16 %v41
    %v81 = vunpack.c.l.b16 %v42
    %v82 = vunpack.c.l.b16 %v43
    %v83 = vunpack.c.l.b16 %v44
    %v84 = vunpack.c.l.b16 %v45
    %v85 = vunpack.c.l.b16 %v46
    %v86 = vpack.c.b16 %v71, %v70
    %v87 = vpack.c.b16 %v73, %v72
    %v88 = vpack.c.b16 %v75, %v74
    %v89 = vpack.c.b16 %v77, %v76
    %v90 = vpack.c.b16 %v79, %v78
    %v91 = vpack.c.b16 %v81, %v80
    %v92 = vpack.c.b16 %v83, %v82
    %v93 = vpack.c.b16 %v85, %v84
    %102 = vmatprep.subr.bf16.mxu0 0
    %103 = vmatpush1.bf16.msra.mxu0 %v86
    %104 = vmatprep.subr.bf16.mxu0 0
    %105 = vmatpush1.bf16.msra.mxu0 %v87
    %106 = vmatprep.subr.bf16.mxu0 0
    %107 = vmatpush1.bf16.msra.mxu0 %v88
    %108 = vmatprep.subr.bf16.mxu0 0
    %109 = vmatpush1.bf16.msra.mxu0 %v89
    %110 = vmatprep.subr.bf16.mxu0 0
    %111 = vmatpush1.bf16.msra.mxu0 %v90
    %112 = vmatprep.subr.bf16.mxu0 0
    %113 = vmatpush1.bf16.msra.mxu0 %v91
    %114 = vmatprep.subr.bf16.mxu0 0
    %115 = vmatpush1.bf16.msra.mxu0 %v92
    %116 = vmatprep.subr.bf16.mxu0 0
    %117 = vmatpush1.bf16.msra.mxu0 %v93
    %118 = vmatprep.subr.bf16.mxu0 0
    %119 = vmatpush1.bf16.msra.mxu0 0
    %120 = vmatprep.subr.bf16.mxu0 0
    %121 = vmatpush1.bf16.msra.mxu0 0
    %122 = vmatprep.subr.bf16.mxu0 0
    %123 = vmatpush1.bf16.msra.mxu0 0
    %124 = vmatprep.subr.bf16.mxu0 0
    %125 = vmatpush1.bf16.msra.mxu0 0
    %126 = vmatprep.subr.bf16.mxu0 0
    %127 = vmatpush1.bf16.msra.mxu0 0
    %128 = vmatprep.subr.bf16.mxu0 0
    %129 = vmatpush1.bf16.msra.mxu0 0
    %130 = vmatprep.subr.bf16.mxu0 0
    %131 = vmatpush1.bf16.msra.mxu0 0
    %132 = vmatprep.subr.bf16.mxu0 0
    %133 = vmatpush1.bf16.msra.mxu0 0
    %134 = vmatprep.mubr.bf16.mxu0 0
    %135 = vmatmul.mubr.bf16.gmra.mrb[0].mxu0 %v30
    %v136 = vpop.f32.mrb[0].mxu0
    %v137 = vadd.f32 %v52, %v136
    %v138 = vpop.f32.mrb[0].mxu0
    %v139 = vpop.f32.mrb[0].mxu0
    %v140 = vadd.f32 %v52, %v139
    %v141 = vpop.f32.mrb[0].mxu0
    %142 = vdwg.mxu0
    %v143 = vmax.f32 %v137, 0.0
    %v144 = vmax.f32 %v140, 0.0
    %v145 = vpack.c.bf16 %v144, %v143
    %v146 = vld [vmem:[%s3] sm:$0xf]
    %v147 = vld [vmem:[%s3 + $0x4] sm:$0xf]
    %v148 = vld [vmem:[%s3 + $0x8] sm:$0xf]
    %v149 = vld [vmem:[%s3 + $0xc] sm:$0xf]
    %v150 = vld [vmem:[%s3 + $0x10] sm:$0xf]
    %v151 = vld [vmem:[%s3 + $0x14] sm:$0xf]
    %v152 = vld [vmem:[%s3 + $0x18] sm:$0xf]
    %v153 = vld [vmem:[%s3 + $0x1c] sm:$0xf]
    %v154 = vld [vmem:[%s3 + $0x20] sm:$0xf]
    %v155 = vld [vmem:[%s3 + $0x24] sm:$0xf]
    %v156 = vld [vmem:[%s3 + $0x28] sm:$0xf]
    %v157 = vld [vmem:[%s3 + $0x2c] sm:$0xf]
    %v158 = vld [vmem:[%s3 + $0x30] sm:$0xf]
    %v159 = vld [vmem:[%s3 + $0x34] sm:$0xf]
    %v160 = vld [vmem:[%s3 + $0x38] sm:$0xf]
    %v161 = vld [vmem:[%s3 + $0x3c] sm:$0xf]
    %v162 = vld [vmem:[%s4] sm:$0x1]
    %v164 = vlaneseq
    %v165 = vshrl.u32 %v164, 7
    %v166 = vsub.s32 0, %v165
    %v167 = vrot.slane %v162, %v166
    %v185 = vunpack.c.l.b16 %v146
    %v186 = vunpack.c.l.b16 %v147
    %v187 = vunpack.c.l.b16 %v148
    %v188 = vunpack.c.l.b16 %v149
    %v189 = vunpack.c.l.b16 %v150
    %v190 = vunpack.c.l.b16 %v151
    %v191 = vunpack.c.l.b16 %v152
    %v192 = vunpack.c.l.b16 %v153
    %v193 = vunpack.c.l.b16 %v154
    %v194 = vunpack.c.l.b16 %v155
    %v195 = vunpack.c.l.b16 %v156
    %v196 = vunpack.c.l.b16 %v157
    %v197 = vunpack.c.l.b16 %v158
    %v198 = vunpack.c.l.b16 %v159
    %v199 = vunpack.c.l.b16 %v160
    %v200 = vunpack.c.l.b16 %v161
    %v201 = vpack.c.b16 %v186, %v185
    %v202 = vpack.c.b16 %v188, %v187
    %v203 = vpack.c.b16 %v190, %v189
    %v204 = vpack.c.b16 %v192, %v191
    %v205 = vpack.c.b16 %v194, %v193
    %v206 = vpack.c.b16 %v196, %v195
    %v207 = vpack.c.b16 %v198, %v197
    %v208 = vpack.c.b16 %v200, %v199
    %217 = vmatprep.subr.bf16.mxu0 0
    %218 = vmatpush1.bf16.msra.mxu0 %v201
    %219 = vmatprep.subr.bf16.mxu0 0
    %220 = vmatpush1.bf16.msra.mxu0 %v202
    %221 = vmatprep.subr.bf16.mxu0 0
    %222 = vmatpush1.bf16.msra.mxu0 %v203
    %223 = vmatprep.subr.bf16.mxu0 0
    %224 = vmatpush1.bf16.msra.mxu0 %v204
    %225 = vmatprep.subr.bf16.mxu0 0
    %226 = vmatpush1.bf16.msra.mxu0 %v205
    %227 = vmatprep.subr.bf16.mxu0 0
    %228 = vmatpush1.bf16.msra.mxu0 %v206
    %229 = vmatprep.subr.bf16.mxu0 0
    %230 = vmatpush1.bf16.msra.mxu0 %v207
    %231 = vmatprep.subr.bf16.mxu0 0
    %232 = vmatpush1.bf16.msra.mxu0 %v208
    %233 = vmatprep.subr.bf16.mxu0 0
    %234 = vmatpush1.bf16.msra.mxu0 0
    %235 = vmatprep.subr.bf16.mxu0 0
    %236 = vmatpush1.bf16.msra.mxu0 0
    %237 = vmatprep.subr.bf16.mxu0 0
    %238 = vmatpush1.bf16.msra.mxu0 0
    %239 = vmatprep.subr.bf16.mxu0 0
    %240 = vmatpush1.bf16.msra.mxu0 0
    %241 = vmatprep.subr.bf16.mxu0 0
    %242 = vmatpush1.bf16.msra.mxu0 0
    %243 = vmatprep.subr.bf16.mxu0 0
    %244 = vmatpush1.bf16.msra.mxu0 0
    %245 = vmatprep.subr.bf16.mxu0 0
    %246 = vmatpush1.bf16.msra.mxu0 0
    %247 = vmatprep.subr.bf16.mxu0 0
    %248 = vmatpush1.bf16.msra.mxu0 0
    %249 = vmatprep.mubr.bf16.mxu0 0
    %250 = vmatmul.mubr.bf16.gmra.mrb[0].mxu0 %v145
    %v251 = vpop.f32.mrb[0].mxu0
    %v252 = vadd.f32 %v167, %v251
    %v253 = vpop.f32.mrb[0].mxu0
    %v254 = vpop.f32.mrb[0].mxu0
    %v255 = vadd.f32 %v167, %v254
    %v256 = vpop.f32.mrb[0].mxu0
    %257 = vdwg.mxu0
    %v258 = vadd.f32 %v28, %v252
    %v259 = vadd.f32 %v29, %v255
    %v260 = vld [vmem:[%s5] sm:$0x1]
    %v261 = vld [vmem:[%s6] sm:$0x1]
    %v262 = vlaneseq
    %v263 = vand.u32 %v262, 127
    %vm264 = vcmp.lt.s32.totalorder %v263, 32
    %v265 = vsel %vm264, 1, 0
    %v266 = vcvt.s32.f32 %v265
    %267 = vadd.xlane.f32.xlu0 %v258
    %v268 = vpop.xlane.xlu0 %267
    %269 = vadd.xlane.f32.xlu0 %v259
    %v270 = vpop.xlane.xlu0 %269
    %v271 = vmul.f32 %v268, 0.03125
    %v272 = vmul.f32 %v270, 0.03125
    %v273 = vsub.f32 %v258, %v271
    %v274 = vsub.f32 %v259, %v272
    %v275 = vmul.f32 %v273, %v266
    %v276 = vmul.f32 %v274, %v266
    %v277 = vmul.f32 %v275, %v275
    %v278 = vmul.f32 %v276, %v276
    %279 = vadd.xlane.f32.xlu0 %v277
    %v280 = vpop.xlane.xlu0 %279
    %281 = vadd.xlane.f32.xlu0 %v278
    %v282 = vpop.xlane.xlu0 %281
    %v283 = vmul.f32 %v280, 0.03125
    %v284 = vmul.f32 %v282, 0.03125
    %v285 = vadd.f32 %v283, 1e-05
    %v286 = vadd.f32 %v284, 1e-05
    %v287 = vrsqrt.pop %v285
    %v288 = vrsqrt.pop %v286
    %v289 = vmul.f32 %v275, %v287
    %v290 = vmul.f32 %v276, %v288
    %v292 = vlaneseq
    %v293 = vshrl.u32 %v292, 7
    %v294 = vsub.s32 0, %v293
    %v295 = vrot.slane %v260, %v294
    %v297 = vmul.f32 %v289, %v295
    %v298 = vmul.f32 %v290, %v295
    %v300 = vlaneseq
    %v301 = vshrl.u32 %v300, 7
    %v302 = vsub.s32 0, %v301
    %v303 = vrot.slane %v261, %v302
    %v305 = vadd.f32 %v297, %v303
    %v306 = vadd.f32 %v298, %v303
    %307 = vst [vmem:[#allocation2] sm:$0xff] %v305
    %308 = vst [vmem:[#allocation2 + $0x8] sm:$0xff] %v306
    // Predicated region
    $region30: #{transformer_forward.13} parent=1 // pred_check
      _
    $region31: #{transformer_forward.13} parent=1 // pred_check_branch
      %310 = sbr.rel (0) target = $region33
    $region32: #{transformer_forward.13} parent=1 // pred_region
      %s312 = ssub.s32 256, 256
      %313 = vsyncadd [#allocation3], %s312
      %s314 = sshll.u32 [#allocation2], 4
      %s315 = int_to_ptr.vmem [resolvable:$true] %s314
      %320 = dma.vmem_to_hbm [thread:$0]  %s315, 256, %s7, [#allocation3], 128, 128, 8
    $region33: #{transformer_forward.13} parent=1 // pred_fallthru
      _
    // Predicated region
    $region34: #{transformer_forward.13} parent=1 // pred_check
      _
    $region35: #{transformer_forward.13} parent=1 // pred_check_branch
      %322 = sbr.rel (0) target = $region37
    $region36: #{transformer_forward.13} parent=1 // pred_region
      %323 = dma.done [#allocation3], 256
    $region37: #{transformer_forward.13} parent=1 // pred_fallthru
      _
    %324 = vsyncpa [#allocation3], 1

// kernel: transformer_forward.11
$region0: #{transformer_forward.11}
  #allocation0 [shape = 'u32[]', space=smem, size = 0x4, offset = 0x4, fixed_abs, tag = 'smem constant byte address 0x4 - core index']
  #allocation1 [shape = 'u32[144,128]{1,0:T(1,128)}', space=vmem, size = 0x12000, scoped, tag = 'internal scratch']
  %s0 = inlined_call_operand.vmem [shape: f32[16,128], index: 0, kind: input, shape index: {}, may-alias: {0,1}]
  %s1 = inlined_call_operand.vmem [shape: f32[16,128], index: 1, kind: input, shape index: {}, may-alias: {0,1}]
  %s2 = inlined_call_operand.vmem [shape: bf16[128,512], index: 2, kind: input, shape index: {}]
  %s3 = inlined_call_operand.vmem [shape: f32[1,512], index: 3, kind: input, shape index: {}]
  %s4 = inlined_call_operand.vmem [shape: bf16[128,1024], index: 4, kind: input, shape index: {}]
  %s5 = inlined_call_operand.vmem [shape: f32[1,1024], index: 5, kind: input, shape index: {}]
  %s6 = inlined_call_operand.vmem [shape: bf16[4,128,128], index: 6, kind: input, shape index: {}]
  %s7 = inlined_call_operand.vmem [shape: f32[1,128], index: 7, kind: input, shape index: {}]
  %s8 = inlined_call_operand.vmem [shape: f32[2,1,8], index: 8, kind: input, shape index: {}]
  %s9 = inlined_call_operand.vmem [shape: f32[1,128], index: 9, kind: input, shape index: {}]
  %s10 = inlined_call_operand.vmem [shape: f32[1,128], index: 10, kind: input, shape index: {}]
  %s11 = inlined_call_operand.vmem [shape: f32[16,128], index: 11, kind: output, shape index: {}]
  %s12 = sld [smem:[#allocation0]]
  $region54: #{transformer_forward.11} parent=0
    _
  %s14 = ssub.s32 1, %s12
  %s15 = scalar_select 0, %s14, %s12
  // Predicated region
  $region2: #{transformer_forward.11} parent=0 // pred_check
    _
  $region3: #{transformer_forward.11} parent=0 // pred_check_branch
    %17 = sbr.rel (0) target = $region5
  $region4: #{transformer_forward.11} parent=0 // pred_region
    _
  $region5: #{transformer_forward.11} parent=0 // pred_fallthru
    _
  // Predicated region
  $region6: #{transformer_forward.11} parent=0 // pred_check
    _
  $region7: #{transformer_forward.11} parent=0 // pred_check_branch
    %19 = sbr.rel (0) target = $region9
  $region8: #{transformer_forward.11} parent=0 // pred_region
    _
  $region9: #{transformer_forward.11} parent=0 // pred_fallthru
    _
  // Predicated region
  $region10: #{transformer_forward.11} parent=0 // pred_check
    _
  $region11: #{transformer_forward.11} parent=0 // pred_check_branch
    %21 = sbr.rel (0) target = $region13
  $region12: #{transformer_forward.11} parent=0 // pred_region
    _
  $region13: #{transformer_forward.11} parent=0 // pred_fallthru
    _
  // Predicated region
  $region14: #{transformer_forward.11} parent=0 // pred_check
    _
  $region15: #{transformer_forward.11} parent=0 // pred_check_branch
    %23 = sbr.rel (0) target = $region17
  $region16: #{transformer_forward.11} parent=0 // pred_region
    _
  $region17: #{transformer_forward.11} parent=0 // pred_fallthru
    _
  // Predicated region
  $region18: #{transformer_forward.11} parent=0 // pred_check
    _
  $region19: #{transformer_forward.11} parent=0 // pred_check_branch
    %25 = sbr.rel (0) target = $region21
  $region20: #{transformer_forward.11} parent=0 // pred_region
    _
  $region21: #{transformer_forward.11} parent=0 // pred_fallthru
    _
  // Predicated region
  $region22: #{transformer_forward.11} parent=0 // pred_check
    _
  $region23: #{transformer_forward.11} parent=0 // pred_check_branch
    %27 = sbr.rel (0) target = $region25
  $region24: #{transformer_forward.11} parent=0 // pred_region
    _
  $region25: #{transformer_forward.11} parent=0 // pred_fallthru
    _
  // Predicated region
  $region26: #{transformer_forward.11} parent=0 // pred_check
    _
  $region27: #{transformer_forward.11} parent=0 // pred_check_branch
    %29 = sbr.rel (0) target = $region29
  $region28: #{transformer_forward.11} parent=0 // pred_region
    _
  $region29: #{transformer_forward.11} parent=0 // pred_fallthru
    _
  // Predicated region
  $region30: #{transformer_forward.11} parent=0 // pred_check
    _
  $region31: #{transformer_forward.11} parent=0 // pred_check_branch
    %31 = sbr.rel (0) target = $region33
  $region32: #{transformer_forward.11} parent=0 // pred_region
    _
  $region33: #{transformer_forward.11} parent=0 // pred_fallthru
    _
  // Predicated region
  $region34: #{transformer_forward.11} parent=0 // pred_check
    _
  $region35: #{transformer_forward.11} parent=0 // pred_check_branch
    %33 = sbr.rel (0) target = $region37
  $region36: #{transformer_forward.11} parent=0 // pred_region
    _
  $region37: #{transformer_forward.11} parent=0 // pred_fallthru
    _
  // Predicated region
  $region38: #{transformer_forward.11} parent=0 // pred_check
    _
  $region39: #{transformer_forward.11} parent=0 // pred_check_branch
    %35 = sbr.rel (0) target = $region41
  $region40: #{transformer_forward.11} parent=0 // pred_region
    _
  $region41: #{transformer_forward.11} parent=0 // pred_fallthru
    _
  // Predicated region
  $region42: #{transformer_forward.11} parent=0 // pred_check
    _
  $region43: #{transformer_forward.11} parent=0 // pred_check_branch
    %37 = sbr.rel (0) target = $region45
  $region44: #{transformer_forward.11} parent=0 // pred_region
    _
  $region45: #{transformer_forward.11} parent=0 // pred_fallthru
    _
  %v39 = vld [vmem:[%s0] sm:$0xff]
  %v40 = vld [vmem:[%s0 + $0x8] sm:$0xff]
  %v41 = vpack.c.bf16 %v40, %v39
  %v42 = vld [vmem:[%s2] sm:$0xff]
  %v43 = vld [vmem:[%s2 + $0x8] sm:$0xff]
  %v44 = vld [vmem:[%s2 + $0x10] sm:$0xff]
  %v45 = vld [vmem:[%s2 + $0x18] sm:$0xff]
  %v46 = vld [vmem:[%s2 + $0x20] sm:$0xff]
  %v47 = vld [vmem:[%s2 + $0x28] sm:$0xff]
  %v48 = vld [vmem:[%s2 + $0x30] sm:$0xff]
  %v49 = vld [vmem:[%s2 + $0x38] sm:$0xff]
  %v50 = vld [vmem:[%s2 + $0x40] sm:$0xff]
  %v51 = vld [vmem:[%s2 + $0x48] sm:$0xff]
  %v52 = vld [vmem:[%s2 + $0x50] sm:$0xff]
  %v53 = vld [vmem:[%s2 + $0x58] sm:$0xff]
  %v54 = vld [vmem:[%s2 + $0x60] sm:$0xff]
  %v55 = vld [vmem:[%s2 + $0x68] sm:$0xff]
  %v56 = vld [vmem:[%s2 + $0x70] sm:$0xff]
  %v57 = vld [vmem:[%s2 + $0x78] sm:$0xff]
  %v58 = vld [vmem:[%s2 + $0x80] sm:$0xff]
  %v59 = vld [vmem:[%s2 + $0x88] sm:$0xff]
  %v60 = vld [vmem:[%s2 + $0x90] sm:$0xff]
  %v61 = vld [vmem:[%s2 + $0x98] sm:$0xff]
  %v62 = vld [vmem:[%s2 + $0xa0] sm:$0xff]
  %v63 = vld [vmem:[%s2 + $0xa8] sm:$0xff]
  %v64 = vld [vmem:[%s2 + $0xb0] sm:$0xff]
  %v65 = vld [vmem:[%s2 + $0xb8] sm:$0xff]
  %v66 = vld [vmem:[%s2 + $0xc0] sm:$0xff]
  %v67 = vld [vmem:[%s2 + $0xc8] sm:$0xff]
  %v68 = vld [vmem:[%s2 + $0xd0] sm:$0xff]
  %v69 = vld [vmem:[%s2 + $0xd8] sm:$0xff]
  %v70 = vld [vmem:[%s2 + $0xe0] sm:$0xff]
  %v71 = vld [vmem:[%s2 + $0xe8] sm:$0xff]
  %v72 = vld [vmem:[%s2 + $0xf0] sm:$0xff]
  %v73 = vld [vmem:[%s2 + $0xf8] sm:$0xff]
  %v74 = vld [vmem:[%s3] sm:$0xf]
  %v76 = vlaneseq
  %v77 = vshrl.u32 %v76, 7
  %v78 = vsub.s32 0, %v77
  %v79 = vrot.slane %v74, %v78
  %v80 = vlaneseq
  %v81 = vshrl.u32 %v80, 7
  %v82 = vsub.s32 1, %v81
  %v83 = vrot.slane %v74, %v82
  %v84 = vlaneseq
  %v85 = vshrl.u32 %v84, 7
  %v86 = vsub.s32 2, %v85
  %v87 = vrot.slane %v74, %v86
  %v88 = vlaneseq
  %v89 = vshrl.u32 %v88, 7
  %v90 = vsub.s32 3, %v89
  %v91 = vrot.slane %v74, %v90
  %v128 = vunpack.c.l.b16 %v42
  %v129 = vunpack.c.h.b16 %v42
  %v130 = vunpack.c.l.b16 %v43
  %v131 = vunpack.c.h.b16 %v43
  %v132 = vunpack.c.l.b16 %v44
  %v133 = vunpack.c.h.b16 %v44
  %v134 = vunpack.c.l.b16 %v45
  %v135 = vunpack.c.h.b16 %v45
  %v136 = vunpack.c.l.b16 %v46
  %v137 = vunpack.c.h.b16 %v46
  %v138 = vunpack.c.l.b16 %v47
  %v139 = vunpack.c.h.b16 %v47
  %v140 = vunpack.c.l.b16 %v48
  %v141 = vunpack.c.h.b16 %v48
  %v142 = vunpack.c.l.b16 %v49
  %v143 = vunpack.c.h.b16 %v49
  %v144 = vunpack.c.l.b16 %v50
  %v145 = vunpack.c.h.b16 %v50
  %v146 = vunpack.c.l.b16 %v51
  %v147 = vunpack.c.h.b16 %v51
  %v148 = vunpack.c.l.b16 %v52
  %v149 = vunpack.c.h.b16 %v52
  %v150 = vunpack.c.l.b16 %v53
  %v151 = vunpack.c.h.b16 %v53
  %v152 = vunpack.c.l.b16 %v54
  %v153 = vunpack.c.h.b16 %v54
  %v154 = vunpack.c.l.b16 %v55
  %v155 = vunpack.c.h.b16 %v55
  %v156 = vunpack.c.l.b16 %v56
  %v157 = vunpack.c.h.b16 %v56
  %v158 = vunpack.c.l.b16 %v57
  %v159 = vunpack.c.h.b16 %v57
  %v160 = vunpack.c.l.b16 %v58
  %v161 = vunpack.c.h.b16 %v58
  %v162 = vunpack.c.l.b16 %v59
  %v163 = vunpack.c.h.b16 %v59
  %v164 = vunpack.c.l.b16 %v60
  %v165 = vunpack.c.h.b16 %v60
  %v166 = vunpack.c.l.b16 %v61
  %v167 = vunpack.c.h.b16 %v61
  %v168 = vunpack.c.l.b16 %v62
  %v169 = vunpack.c.h.b16 %v62
  %v170 = vunpack.c.l.b16 %v63
  %v171 = vunpack.c.h.b16 %v63
  %v172 = vunpack.c.l.b16 %v64
  %v173 = vunpack.c.h.b16 %v64
  %v174 = vunpack.c.l.b16 %v65
  %v175 = vunpack.c.h.b16 %v65
  %v176 = vunpack.c.l.b16 %v66
  %v177 = vunpack.c.h.b16 %v66
  %v178 = vunpack.c.l.b16 %v67
  %v179 = vunpack.c.h.b16 %v67
  %v180 = vunpack.c.l.b16 %v68
  %v181 = vunpack.c.h.b16 %v68
  %v182 = vunpack.c.l.b16 %v69
  %v183 = vunpack.c.h.b16 %v69
  %v184 = vunpack.c.l.b16 %v70
  %v185 = vunpack.c.h.b16 %v70
  %v186 = vunpack.c.l.b16 %v71
  %v187 = vunpack.c.h.b16 %v71
  %v188 = vunpack.c.l.b16 %v72
  %v189 = vunpack.c.h.b16 %v72
  %v190 = vunpack.c.l.b16 %v73
  %v191 = vunpack.c.h.b16 %v73
  %v192 = vpack.c.b16 %v132, %v128
  %v193 = vpack.c.b16 %v133, %v129
  %v194 = vpack.c.b16 %v134, %v130
  %v195 = vpack.c.b16 %v135, %v131
  %v196 = vpack.c.b16 %v140, %v136
  %v197 = vpack.c.b16 %v141, %v137
  %v198 = vpack.c.b16 %v142, %v138
  %v199 = vpack.c.b16 %v143, %v139
  %v200 = vpack.c.b16 %v148, %v144
  %v201 = vpack.c.b16 %v149, %v145
  %v202 = vpack.c.b16 %v150, %v146
  %v203 = vpack.c.b16 %v151, %v147
  %v204 = vpack.c.b16 %v156, %v152
  %v205 = vpack.c.b16 %v157, %v153
  %v206 = vpack.c.b16 %v158, %v154
  %v207 = vpack.c.b16 %v159, %v155
  %v208 = vpack.c.b16 %v164, %v160
  %v209 = vpack.c.b16 %v165, %v161
  %v210 = vpack.c.b16 %v166, %v162
  %v211 = vpack.c.b16 %v167, %v163
  %v212 = vpack.c.b16 %v172, %v168
  %v213 = vpack.c.b16 %v173, %v169
  %v214 = vpack.c.b16 %v174, %v170
  %v215 = vpack.c.b16 %v175, %v171
  %v216 = vpack.c.b16 %v180, %v176
  %v217 = vpack.c.b16 %v181, %v177
  %v218 = vpack.c.b16 %v182, %v178
  %v219 = vpack.c.b16 %v183, %v179
  %v220 = vpack.c.b16 %v188, %v184
  %v221 = vpack.c.b16 %v189, %v185
  %v222 = vpack.c.b16 %v190, %v186
  %v223 = vpack.c.b16 %v191, %v187
  %256 = vmatprep.subr.bf16.mxu0 %v193
  %257 = vmatpush1.bf16.msra.mxu0 %v192
  %258 = vmatprep.subr.bf16.mxu0 %v197
  %259 = vmatpush1.bf16.msra.mxu0 %v196
  %260 = vmatprep.subr.bf16.mxu0 %v201
  %261 = vmatpush1.bf16.msra.mxu0 %v200
  %262 = vmatprep.subr.bf16.mxu0 %v205
  %263 = vmatpush1.bf16.msra.mxu0 %v204
  %264 = vmatprep.subr.bf16.mxu0 %v209
  %265 = vmatpush1.bf16.msra.mxu0 %v208
  %266 = vmatprep.subr.bf16.mxu0 %v213
  %267 = vmatpush1.bf16.msra.mxu0 %v212
  %268 = vmatprep.subr.bf16.mxu0 %v217
  %269 = vmatpush1.bf16.msra.mxu0 %v216
  %270 = vmatprep.subr.bf16.mxu0 %v221
  %271 = vmatpush1.bf16.msra.mxu0 %v220
  %272 = vmatprep.subr.bf16.mxu0 0
  %273 = vmatpush1.bf16.msra.mxu0 0
  %274 = vmatprep.subr.bf16.mxu0 0
  %275 = vmatpush1.bf16.msra.mxu0 0
  %276 = vmatprep.subr.bf16.mxu0 0
  %277 = vmatpush1.bf16.msra.mxu0 0
  %278 = vmatprep.subr.bf16.mxu0 0
  %279 = vmatpush1.bf16.msra.mxu0 0
  %280 = vmatprep.subr.bf16.mxu0 0
  %281 = vmatpush1.bf16.msra.mxu0 0
  %282 = vmatprep.subr.bf16.mxu0 0
  %283 = vmatpush1.bf16.msra.mxu0 0
  %284 = vmatprep.subr.bf16.mxu0 0
  %285 = vmatpush1.bf16.msra.mxu0 0
  %286 = vmatprep.subr.bf16.mxu0 0
  %287 = vmatpush1.bf16.msra.mxu0 0
  %288 = vmatprep.mubr.bf16.mxu0 0
  %289 = vmatmul.mubr.bf16.gmra.mrb[0].mxu0 %v41
  %v290 = vpop.f32.mrb[0].mxu0
  %v291 = vadd.f32 %v79, %v290
  %v292 = vpop.f32.mrb[0].mxu0
  %v293 = vadd.f32 %v83, %v292
  %v294 = vpop.f32.mrb[0].mxu0
  %v295 = vadd.f32 %v79, %v294
  %v296 = vpop.f32.mrb[0].mxu0
  %v297 = vadd.f32 %v83, %v296
  %298 = vdwg.mxu0
  %299 = vmatprep.subr.bf16.mxu0 %v195
  %300 = vmatpush1.bf16.msra.mxu0 %v194
  %301 = vmatprep.subr.bf16.mxu0 %v199
  %302 = vmatpush1.bf16.msra.mxu0 %v198
  %303 = vmatprep.subr.bf16.mxu0 %v203
  %304 = vmatpush1.bf16.msra.mxu0 %v202
  %305 = vmatprep.subr.bf16.mxu0 %v207
  %306 = vmatpush1.bf16.msra.mxu0 %v206
  %307 = vmatprep.subr.bf16.mxu0 %v211
  %308 = vmatpush1.bf16.msra.mxu0 %v210
  %309 = vmatprep.subr.bf16.mxu0 %v215
  %310 = vmatpush1.bf16.msra.mxu0 %v214
  %311 = vmatprep.subr.bf16.mxu0 %v219
  %312 = vmatpush1.bf16.msra.mxu0 %v218
  %313 = vmatprep.subr.bf16.mxu0 %v223
  %314 = vmatpush1.bf16.msra.mxu0 %v222
  %315 = vmatprep.subr.bf16.mxu0 0
  %316 = vmatpush1.bf16.msra.mxu0 0
  %317 = vmatprep.subr.bf16.mxu0 0
  %318 = vmatpush1.bf16.msra.mxu0 0
  %319 = vmatprep.subr.bf16.mxu0 0
  %320 = vmatpush1.bf16.msra.mxu0 0
  %321 = vmatprep.subr.bf16.mxu0 0
  %322 = vmatpush1.bf16.msra.mxu0 0
  %323 = vmatprep.subr.bf16.mxu0 0
  %324 = vmatpush1.bf16.msra.mxu0 0
  %325 = vmatprep.subr.bf16.mxu0 0
  %326 = vmatpush1.bf16.msra.mxu0 0
  %327 = vmatprep.subr.bf16.mxu0 0
  %328 = vmatpush1.bf16.msra.mxu0 0
  %329 = vmatprep.subr.bf16.mxu0 0
  %330 = vmatpush1.bf16.msra.mxu0 0
  %331 = vmatprep.mubr.bf16.mxu0 0
  %332 = vmatmul.mubr.bf16.gmra.mrb[0].mxu0 %v41
  %v333 = vpop.f32.mrb[0].mxu0
  %v334 = vadd.f32 %v87, %v333
  %v335 = vpop.f32.mrb[0].mxu0
  %v336 = vadd.f32 %v91, %v335
  %v337 = vpop.f32.mrb[0].mxu0
  %v338 = vadd.f32 %v87, %v337
  %v339 = vpop.f32.mrb[0].mxu0
  %v340 = vadd.f32 %v91, %v339
  %341 = vdwg.mxu0
  %v342 = vld [vmem:[%s1] sm:$0xff]
  %v343 = vld [vmem:[%s1 + $0x8] sm:$0xff]
  %v344 = vpack.c.bf16 %v343, %v342
  %v345 = vld [vmem:[%s4] sm:$0xff]
  %v346 = vld [vmem:[%s4 + $0x8] sm:$0xff]
  %v347 = vld [vmem:[%s4 + $0x10] sm:$0xff]
  %v348 = vld [vmem:[%s4 + $0x18] sm:$0xff]
  %v349 = vld [vmem:[%s4 + $0x20] sm:$0xff]
  %v350 = vld [vmem:[%s4 + $0x28] sm:$0xff]
  %v351 = vld [vmem:[%s4 + $0x30] sm:$0xff]
  %v352 = vld [vmem:[%s4 + $0x38] sm:$0xff]
  %v353 = vld [vmem:[%s4 + $0x40] sm:$0xff]
  %v354 = vld [vmem:[%s4 + $0x48] sm:$0xff]
  %v355 = vld [vmem:[%s4 + $0x50] sm:$0xff]
  %v356 = vld [vmem:[%s4 + $0x58] sm:$0xff]
  %v357 = vld [vmem:[%s4 + $0x60] sm:$0xff]
  %v358 = vld [vmem:[%s4 + $0x68] sm:$0xff]
  %v359 = vld [vmem:[%s4 + $0x70] sm:$0xff]
  %v360 = vld [vmem:[%s4 + $0x78] sm:$0xff]
  %v361 = vld [vmem:[%s4 + $0x80] sm:$0xff]
  %v362 = vld [vmem:[%s4 + $0x88] sm:$0xff]
  %v363 = vld [vmem:[%s4 + $0x90] sm:$0xff]
  %v364 = vld [vmem:[%s4 + $0x98] sm:$0xff]
  %v365 = vld [vmem:[%s4 + $0xa0] sm:$0xff]
  %v366 = vld [vmem:[%s4 + $0xa8] sm:$0xff]
  %v367 = vld [vmem:[%s4 + $0xb0] sm:$0xff]
  %v368 = vld [vmem:[%s4 + $0xb8] sm:$0xff]
  %v369 = vld [vmem:[%s4 + $0xc0] sm:$0xff]
  %v370 = vld [vmem:[%s4 + $0xc8] sm:$0xff]
  %v371 = vld [vmem:[%s4 + $0xd0] sm:$0xff]
  %v372 = vld [vmem:[%s4 + $0xd8] sm:$0xff]
  %v373 = vld [vmem:[%s4 + $0xe0] sm:$0xff]
  %v374 = vld [vmem:[%s4 + $0xe8] sm:$0xff]
  %v375 = vld [vmem:[%s4 + $0xf0] sm:$0xff]
  %v376 = vld [vmem:[%s4 + $0xf8] sm:$0xff]
  %v377 = vld [vmem:[%s4 + $0x100] sm:$0xff]
  %v378 = vld [vmem:[%s4 + $0x108] sm:$0xff]
  %v379 = vld [vmem:[%s4 + $0x110] sm:$0xff]
  %v380 = vld [vmem:[%s4 + $0x118] sm:$0xff]
  %v381 = vld [vmem:[%s4 + $0x120] sm:$0xff]
  %v382 = vld [vmem:[%s4 + $0x128] sm:$0xff]
  %v383 = vld [vmem:[%s4 + $0x130] sm:$0xff]
  %v384 = vld [vmem:[%s4 + $0x138] sm:$0xff]
  %v385 = vld [vmem:[%s4 + $0x140] sm:$0xff]
  %v386 = vld [vmem:[%s4 + $0x148] sm:$0xff]
  %v387 = vld [vmem:[%s4 + $0x150] sm:$0xff]
  %v388 = vld [vmem:[%s4 + $0x158] sm:$0xff]
  %v389 = vld [vmem:[%s4 + $0x160] sm:$0xff]
  %v390 = vld [vmem:[%s4 + $0x168] sm:$0xff]
  %v391 = vld [vmem:[%s4 + $0x170] sm:$0xff]
  %v392 = vld [vmem:[%s4 + $0x178] sm:$0xff]
  %v393 = vld [vmem:[%s4 + $0x180] sm:$0xff]
  %v394 = vld [vmem:[%s4 + $0x188] sm:$0xff]
  %v395 = vld [vmem:[%s4 + $0x190] sm:$0xff]
  %v396 = vld [vmem:[%s4 + $0x198] sm:$0xff]
  %v397 = vld [vmem:[%s4 + $0x1a0] sm:$0xff]
  %v398 = vld [vmem:[%s4 + $0x1a8] sm:$0xff]
  %v399 = vld [vmem:[%s4 + $0x1b0] sm:$0xff]
  %v400 = vld [vmem:[%s4 + $0x1b8] sm:$0xff]
  %v401 = vld [vmem:[%s4 + $0x1c0] sm:$0xff]
  %v402 = vld [vmem:[%s4 + $0x1c8] sm:$0xff]
  %v403 = vld [vmem:[%s4 + $0x1d0] sm:$0xff]
  %v404 = vld [vmem:[%s4 + $0x1d8] sm:$0xff]
  %v405 = vld [vmem:[%s4 + $0x1e0] sm:$0xff]
  %v406 = vld [vmem:[%s4 + $0x1e8] sm:$0xff]
  %v407 = vld [vmem:[%s4 + $0x1f0] sm:$0xff]
  %v408 = vld [vmem:[%s4 + $0x1f8] sm:$0xff]
  %v409 = vld [vmem:[%s5] sm:$0xff]
  %v411 = vlaneseq
  %v412 = vshrl.u32 %v411, 7
  %v413 = vsub.s32 0, %v412
  %v414 = vrot.slane %v409, %v413
  %v415 = vlaneseq
  %v416 = vshrl.u32 %v415, 7
  %v417 = vsub.s32 1, %v416
  %v418 = vrot.slane %v409, %v417
  %v419 = vlaneseq
  %v420 = vshrl.u32 %v419, 7
  %v421 = vsub.s32 2, %v420
  %v422 = vrot.slane %v409, %v421
  %v423 = vlaneseq
  %v424 = vshrl.u32 %v423, 7
  %v425 = vsub.s32 3, %v424
  %v426 = vrot.slane %v409, %v425
  %v427 = vlaneseq
  %v428 = vshrl.u32 %v427, 7
  %v429 = vsub.s32 4, %v428
  %v430 = vrot.slane %v409, %v429
  %v431 = vlaneseq
  %v432 = vshrl.u32 %v431, 7
  %v433 = vsub.s32 5, %v432
  %v434 = vrot.slane %v409, %v433
  %v435 = vlaneseq
  %v436 = vshrl.u32 %v435, 7
  %v437 = vsub.s32 6, %v436
  %v438 = vrot.slane %v409, %v437
  %v439 = vlaneseq
  %v440 = vshrl.u32 %v439, 7
  %v441 = vsub.s32 7, %v440
  %v442 = vrot.slane %v409, %v441
  %v515 = vunpack.c.l.b16 %v345
  %v516 = vunpack.c.h.b16 %v345
  %v517 = vunpack.c.l.b16 %v346
  %v518 = vunpack.c.h.b16 %v346
  %v519 = vunpack.c.l.b16 %v347
  %v520 = vunpack.c.h.b16 %v347
  %v521 = vunpack.c.l.b16 %v348
  %v522 = vunpack.c.h.b16 %v348
  %v523 = vunpack.c.l.b16 %v349
  %v524 = vunpack.c.h.b16 %v349
  %v525 = vunpack.c.l.b16 %v350
  %v526 = vunpack.c.h.b16 %v350
  %v527 = vunpack.c.l.b16 %v351
  %v528 = vunpack.c.h.b16 %v351
  %v529 = vunpack.c.l.b16 %v352
  %v530 = vunpack.c.h.b16 %v352
  %v531 = vunpack.c.l.b16 %v353
  %v532 = vunpack.c.h.b16 %v353
  %v533 = vunpack.c.l.b16 %v354
  %v534 = vunpack.c.h.b16 %v354
  %v535 = vunpack.c.l.b16 %v355
  %v536 = vunpack.c.h.b16 %v355
  %v537 = vunpack.c.l.b16 %v356
  %v538 = vunpack.c.h.b16 %v356
  %v539 = vunpack.c.l.b16 %v357
  %v540 = vunpack.c.h.b16 %v357
  %v541 = vunpack.c.l.b16 %v358
  %v542 = vunpack.c.h.b16 %v358
  %v543 = vunpack.c.l.b16 %v359
  %v544 = vunpack.c.h.b16 %v359
  %v545 = vunpack.c.l.b16 %v360
  %v546 = vunpack.c.h.b16 %v360
  %v547 = vunpack.c.l.b16 %v361
  %v548 = vunpack.c.h.b16 %v361
  %v549 = vunpack.c.l.b16 %v362
  %v550 = vunpack.c.h.b16 %v362
  %v551 = vunpack.c.l.b16 %v363
  %v552 = vunpack.c.h.b16 %v363
  %v553 = vunpack.c.l.b16 %v364
  %v554 = vunpack.c.h.b16 %v364
  %v555 = vunpack.c.l.b16 %v365
  %v556 = vunpack.c.h.b16 %v365
  %v557 = vunpack.c.l.b16 %v366
  %v558 = vunpack.c.h.b16 %v366
  %v559 = vunpack.c.l.b16 %v367
  %v560 = vunpack.c.h.b16 %v367
  %v561 = vunpack.c.l.b16 %v368
  %v562 = vunpack.c.h.b16 %v368
  %v563 = vunpack.c.l.b16 %v369
  %v564 = vunpack.c.h.b16 %v369
  %v565 = vunpack.c.l.b16 %v370
  %v566 = vunpack.c.h.b16 %v370
  %v567 = vunpack.c.l.b16 %v371
  %v568 = vunpack.c.h.b16 %v371
  %v569 = vunpack.c.l.b16 %v372
  %v570 = vunpack.c.h.b16 %v372
  %v571 = vunpack.c.l.b16 %v373
  %v572 = vunpack.c.h.b16 %v373
  %v573 = vunpack.c.l.b16 %v374
  %v574 = vunpack.c.h.b16 %v374
  %v575 = vunpack.c.l.b16 %v375
  %v576 = vunpack.c.h.b16 %v375
  %v577 = vunpack.c.l.b16 %v376
  %v578 = vunpack.c.h.b16 %v376
  %v579 = vunpack.c.l.b16 %v377
  %v580 = vunpack.c.h.b16 %v377
  %v581 = vunpack.c.l.b16 %v378
  %v582 = vunpack.c.h.b16 %v378
  %v583 = vunpack.c.l.b16 %v379
  %v584 = vunpack.c.h.b16 %v379
  %v585 = vunpack.c.l.b16 %v380
  %v586 = vunpack.c.h.b16 %v380
  %v587 = vunpack.c.l.b16 %v381
  %v588 = vunpack.c.h.b16 %v381
  %v589 = vunpack.c.l.b16 %v382
  %v590 = vunpack.c.h.b16 %v382
  %v591 = vunpack.c.l.b16 %v383
  %v592 = vunpack.c.h.b16 %v383
  %v593 = vunpack.c.l.b16 %v384
  %v594 = vunpack.c.h.b16 %v384
  %v595 = vunpack.c.l.b16 %v385
  %v596 = vunpack.c.h.b16 %v385
  %v597 = vunpack.c.l.b16 %v386
  %v598 = vunpack.c.h.b16 %v386
  %v599 = vunpack.c.l.b16 %v387
  %v600 = vunpack.c.h.b16 %v387
  %v601 = vunpack.c.l.b16 %v388
  %v602 = vunpack.c.h.b16 %v388
  %v603 = vunpack.c.l.b16 %v389
  %v604 = vunpack.c.h.b16 %v389
  %v605 = vunpack.c.l.b16 %v390
  %v606 = vunpack.c.h.b16 %v390
  %v607 = vunpack.c.l.b16 %v391
  %v608 = vunpack.c.h.b16 %v391
  %v609 = vunpack.c.l.b16 %v392
  %v610 = vunpack.c.h.b16 %v392
  %v611 = vunpack.c.l.b16 %v393
  %v612 = vunpack.c.h.b16 %v393
  %v613 = vunpack.c.l.b16 %v394
  %v614 = vunpack.c.h.b16 %v394
  %v615 = vunpack.c.l.b16 %v395
  %v616 = vunpack.c.h.b16 %v395
  %v617 = vunpack.c.l.b16 %v396
  %v618 = vunpack.c.h.b16 %v396
  %v619 = vunpack.c.l.b16 %v397
  %v620 = vunpack.c.h.b16 %v397
  %v621 = vunpack.c.l.b16 %v398
  %v622 = vunpack.c.h.b16 %v398
  %v623 = vunpack.c.l.b16 %v399
  %v624 = vunpack.c.h.b16 %v399
  %v625 = vunpack.c.l.b16 %v400
  %v626 = vunpack.c.h.b16 %v400
  %v627 = vunpack.c.l.b16 %v401
  %v628 = vunpack.c.h.b16 %v401
  %v629 = vunpack.c.l.b16 %v402
  %v630 = vunpack.c.h.b16 %v402
  %v631 = vunpack.c.l.b16 %v403
  %v632 = vunpack.c.h.b16 %v403
  %v633 = vunpack.c.l.b16 %v404
  %v634 = vunpack.c.h.b16 %v404
  %v635 = vunpack.c.l.b16 %v405
  %v636 = vunpack.c.h.b16 %v405
  %v637 = vunpack.c.l.b16 %v406
  %v638 = vunpack.c.h.b16 %v406
  %v639 = vunpack.c.l.b16 %v407
  %v640 = vunpack.c.h.b16 %v407
  %v641 = vunpack.c.l.b16 %v408
  %v642 = vunpack.c.h.b16 %v408
  %v643 = vpack.c.b16 %v523, %v515
  %v644 = vpack.c.b16 %v524, %v516
  %v645 = vpack.c.b16 %v525, %v517
  %v646 = vpack.c.b16 %v526, %v518
  %v647 = vpack.c.b16 %v527, %v519
  %v648 = vpack.c.b16 %v528, %v520
  %v649 = vpack.c.b16 %v529, %v521
  %v650 = vpack.c.b16 %v530, %v522
  %v651 = vpack.c.b16 %v539, %v531
  %v652 = vpack.c.b16 %v540, %v532
  %v653 = vpack.c.b16 %v541, %v533
  %v654 = vpack.c.b16 %v542, %v534
  %v655 = vpack.c.b16 %v543, %v535
  %v656 = vpack.c.b16 %v544, %v536
  %v657 = vpack.c.b16 %v545, %v537
  %v658 = vpack.c.b16 %v546, %v538
  %v659 = vpack.c.b16 %v555, %v547
  %v660 = vpack.c.b16 %v556, %v548
  %v661 = vpack.c.b16 %v557, %v549
  %v662 = vpack.c.b16 %v558, %v550
  %v663 = vpack.c.b16 %v559, %v551
  %v664 = vpack.c.b16 %v560, %v552
  %v665 = vpack.c.b16 %v561, %v553
  %v666 = vpack.c.b16 %v562, %v554
  %v667 = vpack.c.b16 %v571, %v563
  %v668 = vpack.c.b16 %v572, %v564
  %v669 = vpack.c.b16 %v573, %v565
  %v670 = vpack.c.b16 %v574, %v566
  %v671 = vpack.c.b16 %v575, %v567
  %v672 = vpack.c.b16 %v576, %v568
  %v673 = vpack.c.b16 %v577, %v569
  %v674 = vpack.c.b16 %v578, %v570
  %v675 = vpack.c.b16 %v587, %v579
  %v676 = vpack.c.b16 %v588, %v580
  %v677 = vpack.c.b16 %v589, %v581
  %v678 = vpack.c.b16 %v590, %v582
  %v679 = vpack.c.b16 %v591, %v583
  %v680 = vpack.c.b16 %v592, %v584
  %v681 = vpack.c.b16 %v593, %v585
  %v682 = vpack.c.b16 %v594, %v586
  %v683 = vpack.c.b16 %v603, %v595
  %v684 = vpack.c.b16 %v604, %v596
  %v685 = vpack.c.b16 %v605, %v597
  %v686 = vpack.c.b16 %v606, %v598
  %v687 = vpack.c.b16 %v607, %v599
  %v688 = vpack.c.b16 %v608, %v600
  %v689 = vpack.c.b16 %v609, %v601
  %v690 = vpack.c.b16 %v610, %v602
  %v691 = vpack.c.b16 %v619, %v611
  %v692 = vpack.c.b16 %v620, %v612
  %v693 = vpack.c.b16 %v621, %v613
  %v694 = vpack.c.b16 %v622, %v614
  %v695 = vpack.c.b16 %v623, %v615
  %v696 = vpack.c.b16 %v624, %v616
  %v697 = vpack.c.b16 %v625, %v617
  %v698 = vpack.c.b16 %v626, %v618
  %v699 = vpack.c.b16 %v635, %v627
  %v700 = vpack.c.b16 %v636, %v628
  %v701 = vpack.c.b16 %v637, %v629
  %v702 = vpack.c.b16 %v638, %v630
  %v703 = vpack.c.b16 %v639, %v631
  %v704 = vpack.c.b16 %v640, %v632
  %v705 = vpack.c.b16 %v641, %v633
  %v706 = vpack.c.b16 %v642, %v634
  %771 = vmatprep.subr.bf16.mxu0 %v644
  %772 = vmatpush1.bf16.msra.mxu0 %v643
  %773 = vmatprep.subr.bf16.mxu0 %v652
  %774 = vmatpush1.bf16.msra.mxu0 %v651
  %775 = vmatprep.subr.bf16.mxu0 %v660
  %776 = vmatpush1.bf16.msra.mxu0 %v659
  %777 = vmatprep.subr.bf16.mxu0 %v668
  %778 = vmatpush1.bf16.msra.mxu0 %v667
  %779 = vmatprep.subr.bf16.mxu0 %v676
  %780 = vmatpush1.bf16.msra.mxu0 %v675
  %781 = vmatprep.subr.bf16.mxu0 %v684
  %782 = vmatpush1.bf16.msra.mxu0 %v683
  %783 = vmatprep.subr.bf16.mxu0 %v692
  %784 = vmatpush1.bf16.msra.mxu0 %v691
  %785 = vmatprep.subr.bf16.mxu0 %v700
  %786 = vmatpush1.bf16.msra.mxu0 %v699
  %787 = vmatprep.subr.bf16.mxu0 0
  %788 = vmatpush1.bf16.msra.mxu0 0
  %789 = vmatprep.subr.bf16.mxu0 0
  %790 = vmatpush1.bf16.msra.mxu0 0
  %791 = vmatprep.subr.bf16.mxu0 0
  %792 = vmatpush1.bf16.msra.mxu0 0
  %793 = vmatprep.subr.bf16.mxu0 0
  %794 = vmatpush1.bf16.msra.mxu0 0
  %795 = vmatprep.subr.bf16.mxu0 0
  %796 = vmatpush1.bf16.msra.mxu0 0
  %797 = vmatprep.subr.bf16.mxu0 0
  %798 = vmatpush1.bf16.msra.mxu0 0
  %799 = vmatprep.subr.bf16.mxu0 0
  %800 = vmatpush1.bf16.msra.mxu0 0
  %801 = vmatprep.subr.bf16.mxu0 0
  %802 = vmatpush1.bf16.msra.mxu0 0
  %803 = vmatprep.mubr.bf16.mxu0 0
  %804 = vmatmul.mubr.bf16.gmra.mrb[0].mxu0 %v344
  %v805 = vpop.f32.mrb[0].mxu0
  %v806 = vadd.f32 %v414, %v805
  %v807 = vpop.f32.mrb[0].mxu0
  %v808 = vadd.f32 %v418, %v807
  %v809 = vpop.f32.mrb[0].mxu0
  %v810 = vadd.f32 %v414, %v809
  %v811 = vpop.f32.mrb[0].mxu0
  %v812 = vadd.f32 %v418, %v811
  %813 = vdwg.mxu0
  %814 = vmatprep.subr.bf16.mxu0 %v646
  %815 = vmatpush1.bf16.msra.mxu0 %v645
  %816 = vmatprep.subr.bf16.mxu0 %v654
  %817 = vmatpush1.bf16.msra.mxu0 %v653
  %818 = vmatprep.subr.bf16.mxu0 %v662
  %819 = vmatpush1.bf16.msra.mxu0 %v661
  %820 = vmatprep.subr.bf16.mxu0 %v670
  %821 = vmatpush1.bf16.msra.mxu0 %v669
  %822 = vmatprep.subr.bf16.mxu0 %v678
  %823 = vmatpush1.bf16.msra.mxu0 %v677
  %824 = vmatprep.subr.bf16.mxu0 %v686
  %825 = vmatpush1.bf16.msra.mxu0 %v685
  %826 = vmatprep.subr.bf16.mxu0 %v694
  %827 = vmatpush1.bf16.msra.mxu0 %v693
  %828 = vmatprep.subr.bf16.mxu0 %v702
  %829 = vmatpush1.bf16.msra.mxu0 %v701
  %830 = vmatprep.subr.bf16.mxu0 0
  %831 = vmatpush1.bf16.msra.mxu0 0
  %832 = vmatprep.subr.bf16.mxu0 0
  %833 = vmatpush1.bf16.msra.mxu0 0
  %834 = vmatprep.subr.bf16.mxu0 0
  %835 = vmatpush1.bf16.msra.mxu0 0
  %836 = vmatprep.subr.bf16.mxu0 0
  %837 = vmatpush1.bf16.msra.mxu0 0
  %838 = vmatprep.subr.bf16.mxu0 0
  %839 = vmatpush1.bf16.msra.mxu0 0
  %840 = vmatprep.subr.bf16.mxu0 0
  %841 = vmatpush1.bf16.msra.mxu0 0
  %842 = vmatprep.subr.bf16.mxu0 0
  %843 = vmatpush1.bf16.msra.mxu0 0
  %844 = vmatprep.subr.bf16.mxu0 0
  %845 = vmatpush1.bf16.msra.mxu0 0
  %846 = vmatprep.mubr.bf16.mxu0 0
  %847 = vmatmul.mubr.bf16.gmra.mrb[0].mxu0 %v344
  %v848 = vpop.f32.mrb[0].mxu0
  %v849 = vadd.f32 %v422, %v848
  %v850 = vpop.f32.mrb[0].mxu0
  %v851 = vadd.f32 %v426, %v850
  %v852 = vpop.f32.mrb[0].mxu0
  %v853 = vadd.f32 %v422, %v852
  %v854 = vpop.f32.mrb[0].mxu0
  %v855 = vadd.f32 %v426, %v854
  %856 = vdwg.mxu0
  %857 = vmatprep.subr.bf16.mxu0 %v648
  %858 = vmatpush1.bf16.msra.mxu0 %v647
  %859 = vmatprep.subr.bf16.mxu0 %v656
  %860 = vmatpush1.bf16.msra.mxu0 %v655
  %861 = vmatprep.subr.bf16.mxu0 %v664
  %862 = vmatpush1.bf16.msra.mxu0 %v663
  %863 = vmatprep.subr.bf16.mxu0 %v672
  %864 = vmatpush1.bf16.msra.mxu0 %v671
  %865 = vmatprep.subr.bf16.mxu0 %v680
  %866 = vmatpush1.bf16.msra.mxu0 %v679
  %867 = vmatprep.subr.bf16.mxu0 %v688
  %868 = vmatpush1.bf16.msra.mxu0 %v687
  %869 = vmatprep.subr.bf16.mxu0 %v696
  %870 = vmatpush1.bf16.msra.mxu0 %v695
  %871 = vmatprep.subr.bf16.mxu0 %v704
  %872 = vmatpush1.bf16.msra.mxu0 %v703
  %873 = vmatprep.subr.bf16.mxu0 0
  %874 = vmatpush1.bf16.msra.mxu0 0
  %875 = vmatprep.subr.bf16.mxu0 0
  %876 = vmatpush1.bf16.msra.mxu0 0
  %877 = vmatprep.subr.bf16.mxu0 0
  %878 = vmatpush1.bf16.msra.mxu0 0
  %879 = vmatprep.subr.bf16.mxu0 0
  %880 = vmatpush1.bf16.msra.mxu0 0
  %881 = vmatprep.subr.bf16.mxu0 0
  %882 = vmatpush1.bf16.msra.mxu0 0
  %883 = vmatprep.subr.bf16.mxu0 0
  %884 = vmatpush1.bf16.msra.mxu0 0
  %885 = vmatprep.subr.bf16.mxu0 0
  %886 = vmatpush1.bf16.msra.mxu0 0
  %887 = vmatprep.subr.bf16.mxu0 0
  %888 = vmatpush1.bf16.msra.mxu0 0
  %889 = vmatprep.mubr.bf16.mxu0 0
  %890 = vmatmul.mubr.bf16.gmra.mrb[0].mxu0 %v344
  %v891 = vpop.f32.mrb[0].mxu0
  %v892 = vadd.f32 %v430, %v891
  %v893 = vpop.f32.mrb[0].mxu0
  %v894 = vadd.f32 %v434, %v893
  %v895 = vpop.f32.mrb[0].mxu0
  %v896 = vadd.f32 %v430, %v895
  %v897 = vpop.f32.mrb[0].mxu0
  %v898 = vadd.f32 %v434, %v897
  %899 = vdwg.mxu0
  %900 = vmatprep.subr.bf16.mxu0 %v650
  %901 = vmatpush1.bf16.msra.mxu0 %v649
  %902 = vmatprep.subr.bf16.mxu0 %v658
  %903 = vmatpush1.bf16.msra.mxu0 %v657
  %904 = vmatprep.subr.bf16.mxu0 %v666
  %905 = vmatpush1.bf16.msra.mxu0 %v665
  %906 = vmatprep.subr.bf16.mxu0 %v674
  %907 = vmatpush1.bf16.msra.mxu0 %v673
  %908 = vmatprep.subr.bf16.mxu0 %v682
  %909 = vmatpush1.bf16.msra.mxu0 %v681
  %910 = vmatprep.subr.bf16.mxu0 %v690
  %911 = vmatpush1.bf16.msra.mxu0 %v689
  %912 = vmatprep.subr.bf16.mxu0 %v698
  %913 = vmatpush1.bf16.msra.mxu0 %v697
  %914 = vmatprep.subr.bf16.mxu0 %v706
  %915 = vmatpush1.bf16.msra.mxu0 %v705
  %916 = vmatprep.subr.bf16.mxu0 0
  %917 = vmatpush1.bf16.msra.mxu0 0
  %918 = vmatprep.subr.bf16.mxu0 0
  %919 = vmatpush1.bf16.msra.mxu0 0
  %920 = vmatprep.subr.bf16.mxu0 0
  %921 = vmatpush1.bf16.msra.mxu0 0
  %922 = vmatprep.subr.bf16.mxu0 0
  %923 = vmatpush1.bf16.msra.mxu0 0
  %924 = vmatprep.subr.bf16.mxu0 0
  %925 = vmatpush1.bf16.msra.mxu0 0
  %926 = vmatprep.subr.bf16.mxu0 0
  %927 = vmatpush1.bf16.msra.mxu0 0
  %928 = vmatprep.subr.bf16.mxu0 0
  %929 = vmatpush1.bf16.msra.mxu0 0
  %930 = vmatprep.subr.bf16.mxu0 0
  %931 = vmatpush1.bf16.msra.mxu0 0
  %932 = vmatprep.mubr.bf16.mxu0 0
  %933 = vmatmul.mubr.bf16.gmra.mrb[0].mxu0 %v344
  %v934 = vpop.f32.mrb[0].mxu0
  %v935 = vadd.f32 %v438, %v934
  %v936 = vpop.f32.mrb[0].mxu0
  %v937 = vadd.f32 %v442, %v936
  %v938 = vpop.f32.mrb[0].mxu0
  %v939 = vadd.f32 %v438, %v938
  %v940 = vpop.f32.mrb[0].mxu0
  %v941 = vadd.f32 %v442, %v940
  %942 = vdwg.mxu0
  %v943 = vld [vmem:[%s7] sm:$0x1]
  %v944 = vld [vmem:[%s9] sm:$0x1]
  %v945 = vld [vmem:[%s10] sm:$0x1]
  %v946 = vlaneseq
  %v947 = vshrl.u32 %v946, 7
  %v948 = vlaneseq
  %v949 = vand.u32 %v948, 127
  %vm950 = vcmp.le.s32.totalorder %v949, %v947
  %v951 = vsel %vm950, 0.0, -1e+09
  %v952 = vld [vmem:[%s8] sm:$0x1]
  %v953 = vpack.c.bf16 %v291, %v291
  %v954 = vpack.c.bf16 %v806, %v806
  %955 = vmatprep.subr.bf16.mxu0 0
  %956 = vmatpush1.bf16.xpose.msra.mxu0 %v954
  %957 = vmatprep.subr.bf16.mxu0 0
  %958 = vmatpush1.bf16.xpose.msra.mxu0 0
  %959 = vmatprep.subr.bf16.mxu0 0
  %960 = vmatpush1.bf16.xpose.msra.mxu0 0
  %961 = vmatprep.subr.bf16.mxu0 0
  %962 = vmatpush1.bf16.xpose.msra.mxu0 0
  %963 = vmatprep.subr.bf16.mxu0 0
  %964 = vmatpush1.bf16.xpose.msra.mxu0 0
  %965 = vmatprep.subr.bf16.mxu0 0
  %966 = vmatpush1.bf16.xpose.msra.mxu0 0
  %967 = vmatprep.subr.bf16.mxu0 0
  %968 = vmatpush1.bf16.xpose.msra.mxu0 0
  %969 = vmatprep.subr.bf16.mxu0 0
  %970 = vmatpush1.bf16.xpose.msra.mxu0 0
  %971 = vmatprep.subr.bf16.mxu0 0
  %972 = vmatpush1.bf16.xpose.msra.mxu0 0
  %973 = vmatprep.subr.bf16.mxu0 0
  %974 = vmatpush1.bf16.xpose.msra.mxu0 0
  %975 = vmatprep.subr.bf16.mxu0 0
  %976 = vmatpush1.bf16.xpose.msra.mxu0 0
  %977 = vmatprep.subr.bf16.mxu0 0
  %978 = vmatpush1.bf16.xpose.msra.mxu0 0
  %979 = vmatprep.subr.bf16.mxu0 0
  %980 = vmatpush1.bf16.xpose.msra.mxu0 0
  %981 = vmatprep.subr.bf16.mxu0 0
  %982 = vmatpush1.bf16.xpose.msra.mxu0 0
  %983 = vmatprep.subr.bf16.mxu0 0
  %984 = vmatpush1.bf16.xpose.msra.mxu0 0
  %985 = vmatprep.subr.bf16.mxu0 0
  %986 = vmatpush1.bf16.xpose.msra.mxu0 0
  %987 = vmatprep.mubr.bf16.mxu0 0
  %988 = vmatmul.mubr.bf16.gmra.mrb[0].mxu0 %v953
  %v989 = vpop.f32.mrb[0].mxu0
  %v990 = vadd.f32 0.0, %v989
  %v991 = vpop.f32.mrb[0].mxu0
  %v992 = vpop.f32.mrb[0].mxu0
  %v993 = vpop.f32.mrb[0].mxu0
  %994 = vdwg.mxu0
  %v995 = vmul.f32 %v990, 0.35355338
  %v997 = vlaneseq
  %v998 = vshrl.u32 %v997, 7
  %v999 = vsub.s32 0, %v998
  %v1000 = vrot.slane %v952, %v999
  %v1002 = vadd.f32 %v995, %v1000
  %v1003 = vadd.f32 %v1002, %v951
  %vm1004 = vcmask 64512
  %v1005 = vsel %vm1004, %v1003, -inf
  %1006 = vmax.xlane.f32.xlu0 %v1005
  %v1007 = vpop.xlane.xlu0 %1006
  %v1008 = vsub.f32 %v1003, %v1007
  %v1009 = vmul.f32 %v1008, 1.442695
  %v1010 = vpow.pop %v1009
  %v1011 = vsel %vm1004, %v1010, 0.0
  %1012 = vadd.xlane.f32.xlu0 %v1011
  %v1013 = vpop.xlane.xlu0 %1012
  %v1014 = vrcp.pop %v1013
  %v1015 = vmul.f32 %v1010, %v1014
  %v1016 = vpack.c.bf16 %v1015, %v1015
  %v1017 = vpack.c.bf16 %v892, %v892
  %v1019 = vsel %vm1004, %v1016, 0
  %vm1021 = vcmask 1043456
  %v1023 = vsel %vm1021, %v1017, 0
  %1025 = vmatprep.subr.bf16.mxu0 0
  %1026 = vmatpush1.bf16.msra.mxu0 %v1023
  %1027 = vmatprep.subr.bf16.mxu0 0
  %1028 = vmatpush1.bf16.msra.mxu0 0
  %1029 = vmatprep.subr.bf16.mxu0 0
  %1030 = vmatpush1.bf16.msra.mxu0 0
  %1031 = vmatprep.subr.bf16.mxu0 0
  %1032 = vmatpush1.bf16.msra.mxu0 0
  %1033 = vmatprep.subr.bf16.mxu0 0
  %1034 = vmatpush1.bf16.msra.mxu0 0
  %1035 = vmatprep.subr.bf16.mxu0 0
  %1036 = vmatpush1.bf16.msra.mxu0 0
  %1037 = vmatprep.subr.bf16.mxu0 0
  %1038 = vmatpush1.bf16.msra.mxu0 0
  %1039 = vmatprep.subr.bf16.mxu0 0
  %1040 = vmatpush1.bf16.msra.mxu0 0
  %1041 = vmatprep.subr.bf16.mxu0 0
  %1042 = vmatpush1.bf16.msra.mxu0 0
  %1043 = vmatprep.subr.bf16.mxu0 0
  %1044 = vmatpush1.bf16.msra.mxu0 0
  %1045 = vmatprep.subr.bf16.mxu0 0
  %1046 = vmatpush1.bf16.msra.mxu0 0
  %1047 = vmatprep.subr.bf16.mxu0 0
  %1048 = vmatpush1.bf16.msra.mxu0 0
  %1049 = vmatprep.subr.bf16.mxu0 0
  %1050 = vmatpush1.bf16.msra.mxu0 0
  %1051 = vmatprep.subr.bf16.mxu0 0
  %1052 = vmatpush1.bf16.msra.mxu0 0
  %1053 = vmatprep.subr.bf16.mxu0 0
  %1054 = vmatpush1.bf16.msra.mxu0 0
  %1055 = vmatprep.subr.bf16.mxu0 0
  %1056 = vmatpush1.bf16.msra.mxu0 0
  %1057 = vmatprep.mubr.bf16.mxu0 0
  %1058 = vmatmul.mubr.bf16.gmra.mrb[0].mxu0 %v1019
  %v1059 = vpop.f32.mrb[0].mxu0
  %v1060 = vadd.f32 0.0, %v1059
  %v1061 = vpop.f32.mrb[0].mxu0
  %v1062 = vpop.f32.mrb[0].mxu0
  %v1063 = vpop.f32.mrb[0].mxu0
  %1064 = vdwg.mxu0
  %v1065 = vpack.c.bf16 %v1060, %v1060
  %v1066 = vld [vmem:[%s6] sm:$0xf]
  %v1067 = vld [vmem:[%s6 + $0x4] sm:$0xf]
  %v1068 = vld [vmem:[%s6 + $0x8] sm:$0xf]
  %v1069 = vld [vmem:[%s6 + $0xc] sm:$0xf]
  %v1070 = vld [vmem:[%s6 + $0x10] sm:$0xf]
  %v1071 = vld [vmem:[%s6 + $0x14] sm:$0xf]
  %v1072 = vld [vmem:[%s6 + $0x18] sm:$0xf]
  %v1073 = vld [vmem:[%s6 + $0x1c] sm:$0xf]
  %v1074 = vld [vmem:[%s6 + $0x20] sm:$0xf]
  %v1075 = vld [vmem:[%s6 + $0x24] sm:$0xf]
  %v1076 = vld [vmem:[%s6 + $0x28] sm:$0xf]
  %v1077 = vld [vmem:[%s6 + $0x2c] sm:$0xf]
  %v1078 = vld [vmem:[%s6 + $0x30] sm:$0xf]
  %v1079 = vld [vmem:[%s6 + $0x34] sm:$0xf]
  %v1080 = vld [vmem:[%s6 + $0x38] sm:$0xf]
  %v1081 = vld [vmem:[%s6 + $0x3c] sm:$0xf]
  %v1082 = vpack.c.bf16 %v293, %v293
  %v1083 = vpack.c.bf16 %v808, %v808
  %1084 = vmatprep.subr.bf16.mxu0 0
  %1085 = vmatpush1.bf16.xpose.msra.mxu0 %v1083
  %1086 = vmatprep.subr.bf16.mxu0 0
  %1087 = vmatpush1.bf16.xpose.msra.mxu0 0
  %1088 = vmatprep.subr.bf16.mxu0 0
  %1089 = vmatpush1.bf16.xpose.msra.mxu0 0
  %1090 = vmatprep.subr.bf16.mxu0 0
  %1091 = vmatpush1.bf16.xpose.msra.mxu0 0
  %1092 = vmatprep.subr.bf16.mxu0 0
  %1093 = vmatpush1.bf16.xpose.msra.mxu0 0
  %1094 = vmatprep.subr.bf16.mxu0 0
  %1095 = vmatpush1.bf16.xpose.msra.mxu0 0
  %1096 = vmatprep.subr.bf16.mxu0 0
  %1097 = vmatpush1.bf16.xpose.msra.mxu0 0
  %1098 = vmatprep.subr.bf16.mxu0 0
  %1099 = vmatpush1.bf16.xpose.msra.mxu0 0
  %1100 = vmatprep.subr.bf16.mxu0 0
  %1101 = vmatpush1.bf16.xpose.msra.mxu0 0
  %1102 = vmatprep.subr.bf16.mxu0 0
  %1103 = vmatpush1.bf16.xpose.msra.mxu0 0
  %1104 = vmatprep.subr.bf16.mxu0 0
  %1105 = vmatpush1.bf16.xpose.msra.mxu0 0
  %1106 = vmatprep.subr.bf16.mxu0 0
  %1107 = vmatpush1.bf16.xpose.msra.mxu0 0
  %1108 = vmatprep.subr.bf16.mxu0 0
  %1109 = vmatpush1.bf16.xpose.msra.mxu0 0
  %1110 = vmatprep.subr.bf16.mxu0 0
  %1111 = vmatpush1.bf16.xpose.msra.mxu0 0
  %1112 = vmatprep.subr.bf16.mxu0 0
  %1113 = vmatpush1.bf16.xpose.msra.mxu0 0
  %1114 = vmatprep.subr.bf16.mxu0 0
  %1115 = vmatpush1.bf16.xpose.msra.mxu0 0
  %1116 = vmatprep.mubr.bf16.mxu0 0
  %1117 = vmatmul.mubr.bf16.gmra.mrb[0].mxu0 %v1082
  %v1118 = vpop.f32.mrb[0].mxu0
  %v1119 = vadd.f32 0.0, %v1118
  %v1120 = vpop.f32.mrb[0].mxu0
  %v1121 = vpop.f32.mrb[0].mxu0
  %v1122 = vpop.f32.mrb[0].mxu0
  %1123 = vdwg.mxu0
  %v1124 = vmul.f32 %v1119, 0.35355338
  %v1125 = vadd.f32 %v1124, %v1000
  %v1126 = vadd.f32 %v1125, %v951
  %v1127 = vsel %vm1004, %v1126, -inf
  %1128 = vmax.xlane.f32.xlu0 %v1127
  %v1129 = vpop.xlane.xlu0 %1128
  %v1130 = vsub.f32 %v1126, %v1129
  %v1131 = vmul.f32 %v1130, 1.442695
  %v1132 = vpow.pop %v1131
  %v1133 = vsel %vm1004, %v1132, 0.0
  %1134 = vadd.xlane.f32.xlu0 %v1133
  %v1135 = vpop.xlane.xlu0 %1134
  %v1136 = vrcp.pop %v1135
  %v1137 = vmul.f32 %v1132, %v1136
  %v1138 = vpack.c.bf16 %v1137, %v1137
  %v1139 = vpack.c.bf16 %v894, %v894
  %v1141 = vsel %vm1004, %v1138, 0
  %v1144 = vsel %vm1021, %v1139, 0
  %1146 = vmatprep.subr.bf16.mxu0 0
  %1147 = vmatpush1.bf16.msra.mxu0 %v1144
  %1148 = vmatprep.subr.bf16.mxu0 0
  %1149 = vmatpush1.bf16.msra.mxu0 0
  %1150 = vmatprep.subr.bf16.mxu0 0
  %1151 = vmatpush1.bf16.msra.mxu0 0
  %1152 = vmatprep.subr.bf16.mxu0 0
  %1153 = vmatpush1.bf16.msra.mxu0 0
  %1154 = vmatprep.subr.bf16.mxu0 0
  %1155 = vmatpush1.bf16.msra.mxu0 0
  %1156 = vmatprep.subr.bf16.mxu0 0
  %1157 = vmatpush1.bf16.msra.mxu0 0
  %1158 = vmatprep.subr.bf16.mxu0 0
  %1159 = vmatpush1.bf16.msra.mxu0 0
  %1160 = vmatprep.subr.bf16.mxu0 0
  %1161 = vmatpush1.bf16.msra.mxu0 0
  %1162 = vmatprep.subr.bf16.mxu0 0
  %1163 = vmatpush1.bf16.msra.mxu0 0
  %1164 = vmatprep.subr.bf16.mxu0 0
  %1165 = vmatpush1.bf16.msra.mxu0 0
  %1166 = vmatprep.subr.bf16.mxu0 0
  %1167 = vmatpush1.bf16.msra.mxu0 0
  %1168 = vmatprep.subr.bf16.mxu0 0
  %1169 = vmatpush1.bf16.msra.mxu0 0
  %1170 = vmatprep.subr.bf16.mxu0 0
  %1171 = vmatpush1.bf16.msra.mxu0 0
  %1172 = vmatprep.subr.bf16.mxu0 0
  %1173 = vmatpush1.bf16.msra.mxu0 0
  %1174 = vmatprep.subr.bf16.mxu0 0
  %1175 = vmatpush1.bf16.msra.mxu0 0
  %1176 = vmatprep.subr.bf16.mxu0 0
  %1177 = vmatpush1.bf16.msra.mxu0 0
  %1178 = vmatprep.mubr.bf16.mxu0 0
  %1179 = vmatmul.mubr.bf16.gmra.mrb[0].mxu0 %v1141
  %v1180 = vpop.f32.mrb[0].mxu0
  %v1181 = vadd.f32 0.0, %v1180
  %v1182 = vpop.f32.mrb[0].mxu0
  %v1183 = vpop.f32.mrb[0].mxu0
  %v1184 = vpop.f32.mrb[0].mxu0
  %1185 = vdwg.mxu0
  %v1186 = vpack.c.bf16 %v1181, %v1181
  %s1187 = scalar_lea.vmem %s6, 64
  %v1188 = vld [vmem:[%s1187] sm:$0xf]
  %v1189 = vld [vmem:[%s1187 + $0x4] sm:$0xf]
  %v1190 = vld [vmem:[%s1187 + $0x8] sm:$0xf]
  %v1191 = vld [vmem:[%s1187 + $0xc] sm:$0xf]
  %v1192 = vld [vmem:[%s1187 + $0x10] sm:$0xf]
  %v1193 = vld [vmem:[%s1187 + $0x14] sm:$0xf]
  %v1194 = vld [vmem:[%s1187 + $0x18] sm:$0xf]
  %v1195 = vld [vmem:[%s1187 + $0x1c] sm:$0xf]
  %v1196 = vld [vmem:[%s1187 + $0x20] sm:$0xf]
  %v1197 = vld [vmem:[%s1187 + $0x24] sm:$0xf]
  %v1198 = vld [vmem:[%s1187 + $0x28] sm:$0xf]
  %v1199 = vld [vmem:[%s1187 + $0x2c] sm:$0xf]
  %v1200 = vld [vmem:[%s1187 + $0x30] sm:$0xf]
  %v1201 = vld [vmem:[%s1187 + $0x34] sm:$0xf]
  %v1202 = vld [vmem:[%s1187 + $0x38] sm:$0xf]
  %v1203 = vld [vmem:[%s1187 + $0x3c] sm:$0xf]
  %v1220 = vunpack.c.l.b16 %v1188
  %v1221 = vunpack.c.l.b16 %v1189
  %v1222 = vunpack.c.l.b16 %v1190
  %v1223 = vunpack.c.l.b16 %v1191
  %v1224 = vunpack.c.l.b16 %v1192
  %v1225 = vunpack.c.l.b16 %v1193
  %v1226 = vunpack.c.l.b16 %v1194
  %v1227 = vunpack.c.l.b16 %v1195
  %v1228 = vunpack.c.l.b16 %v1196
  %v1229 = vunpack.c.l.b16 %v1197
  %v1230 = vunpack.c.l.b16 %v1198
  %v1231 = vunpack.c.l.b16 %v1199
  %v1232 = vunpack.c.l.b16 %v1200
  %v1233 = vunpack.c.l.b16 %v1201
  %v1234 = vunpack.c.l.b16 %v1202
  %v1235 = vunpack.c.l.b16 %v1203
  %v1236 = vpack.c.b16 %v1221, %v1220
  %v1237 = vpack.c.b16 %v1223, %v1222
  %v1238 = vpack.c.b16 %v1225, %v1224
  %v1239 = vpack.c.b16 %v1227, %v1226
  %v1240 = vpack.c.b16 %v1229, %v1228
  %v1241 = vpack.c.b16 %v1231, %v1230
  %v1242 = vpack.c.b16 %v1233, %v1232
  %v1243 = vpack.c.b16 %v1235, %v1234
  %1252 = vmatprep.subr.bf16.mxu0 0
  %1253 = vmatpush1.bf16.msra.mxu0 %v1236
  %1254 = vmatprep.subr.bf16.mxu0 0
  %1255 = vmatpush1.bf16.msra.mxu0 %v1237
  %1256 = vmatprep.subr.bf16.mxu0 0
  %1257 = vmatpush1.bf16.msra.mxu0 %v1238
  %1258 = vmatprep.subr.bf16.mxu0 0
  %1259 = vmatpush1.bf16.msra.mxu0 %v1239
  %1260 = vmatprep.subr.bf16.mxu0 0
  %1261 = vmatpush1.bf16.msra.mxu0 %v1240
  %1262 = vmatprep.subr.bf16.mxu0 0
  %1263 = vmatpush1.bf16.msra.mxu0 %v1241
  %1264 = vmatprep.subr.bf16.mxu0 0
  %1265 = vmatpush1.bf16.msra.mxu0 %v1242
  %1266 = vmatprep.subr.bf16.mxu0 0
  %1267 = vmatpush1.bf16.msra.mxu0 %v1243
  %1268 = vmatprep.subr.bf16.mxu0 0
  %1269 = vmatpush1.bf16.msra.mxu0 0
  %1270 = vmatprep.subr.bf16.mxu0 0
  %1271 = vmatpush1.bf16.msra.mxu0 0
  %1272 = vmatprep.subr.bf16.mxu0 0
  %1273 = vmatpush1.bf16.msra.mxu0 0
  %1274 = vmatprep.subr.bf16.mxu0 0
  %1275 = vmatpush1.bf16.msra.mxu0 0
  %1276 = vmatprep.subr.bf16.mxu0 0
  %1277 = vmatpush1.bf16.msra.mxu0 0
  %1278 = vmatprep.subr.bf16.mxu0 0
  %1279 = vmatpush1.bf16.msra.mxu0 0
  %1280 = vmatprep.subr.bf16.mxu0 0
  %1281 = vmatpush1.bf16.msra.mxu0 0
  %1282 = vmatprep.subr.bf16.mxu0 0
  %1283 = vmatpush1.bf16.msra.mxu0 0
  %1284 = vmatprep.mubr.bf16.mxu0 0
  %1285 = vmatmul.mubr.bf16.gmra.mrb[0].mxu0 %v1186
  %v1286 = vpop.f32.mrb[0].mxu0
  %v1287 = vadd.f32 0.0, %v1286
  %v1288 = vpop.f32.mrb[0].mxu0
  %v1289 = vpop.f32.mrb[0].mxu0
  %v1290 = vpop.f32.mrb[0].mxu0
  %1291 = vdwg.mxu0
  %v1308 = vunpack.c.l.b16 %v1066
  %v1309 = vunpack.c.l.b16 %v1067
  %v1310 = vunpack.c.l.b16 %v1068
  %v1311 = vunpack.c.l.b16 %v1069
  %v1312 = vunpack.c.l.b16 %v1070
  %v1313 = vunpack.c.l.b16 %v1071
  %v1314 = vunpack.c.l.b16 %v1072
  %v1315 = vunpack.c.l.b16 %v1073
  %v1316 = vunpack.c.l.b16 %v1074
  %v1317 = vunpack.c.l.b16 %v1075
  %v1318 = vunpack.c.l.b16 %v1076
  %v1319 = vunpack.c.l.b16 %v1077
  %v1320 = vunpack.c.l.b16 %v1078
  %v1321 = vunpack.c.l.b16 %v1079
  %v1322 = vunpack.c.l.b16 %v1080
  %v1323 = vunpack.c.l.b16 %v1081
  %v1324 = vpack.c.b16 %v1309, %v1308
  %v1325 = vpack.c.b16 %v1311, %v1310
  %v1326 = vpack.c.b16 %v1313, %v1312
  %v1327 = vpack.c.b16 %v1315, %v1314
  %v1328 = vpack.c.b16 %v1317, %v1316
  %v1329 = vpack.c.b16 %v1319, %v1318
  %v1330 = vpack.c.b16 %v1321, %v1320
  %v1331 = vpack.c.b16 %v1323, %v1322
  %1340 = vmatprep.subr.bf16.mxu0 0
  %1341 = vmatpush1.bf16.msra.mxu0 %v1324
  %1342 = vmatprep.subr.bf16.mxu0 0
  %1343 = vmatpush1.bf16.msra.mxu0 %v1325
  %1344 = vmatprep.subr.bf16.mxu0 0
  %1345 = vmatpush1.bf16.msra.mxu0 %v1326
  %1346 = vmatprep.subr.bf16.mxu0 0
  %1347 = vmatpush1.bf16.msra.mxu0 %v1327
  %1348 = vmatprep.subr.bf16.mxu0 0
  %1349 = vmatpush1.bf16.msra.mxu0 %v1328
  %1350 = vmatprep.subr.bf16.mxu0 0
  %1351 = vmatpush1.bf16.msra.mxu0 %v1329
  %1352 = vmatprep.subr.bf16.mxu0 0
  %1353 = vmatpush1.bf16.msra.mxu0 %v1330
  %1354 = vmatprep.subr.bf16.mxu0 0
  %1355 = vmatpush1.bf16.msra.mxu0 %v1331
  %1356 = vmatprep.subr.bf16.mxu0 0
  %1357 = vmatpush1.bf16.msra.mxu0 0
  %1358 = vmatprep.subr.bf16.mxu0 0
  %1359 = vmatpush1.bf16.msra.mxu0 0
  %1360 = vmatprep.subr.bf16.mxu0 0
  %1361 = vmatpush1.bf16.msra.mxu0 0
  %1362 = vmatprep.subr.bf16.mxu0 0
  %1363 = vmatpush1.bf16.msra.mxu0 0
  %1364 = vmatprep.subr.bf16.mxu0 0
  %1365 = vmatpush1.bf16.msra.mxu0 0
  %1366 = vmatprep.subr.bf16.mxu0 0
  %1367 = vmatpush1.bf16.msra.mxu0 0
  %1368 = vmatprep.subr.bf16.mxu0 0
  %1369 = vmatpush1.bf16.msra.mxu0 0
  %1370 = vmatprep.subr.bf16.mxu0 0
  %1371 = vmatpush1.bf16.msra.mxu0 0
  %1372 = vmatprep.mubr.bf16.mxu0 0
  %1373 = vmatmul.mubr.bf16.gmra.mrb[0].mxu0 %v1065
  %v1374 = vpop.f32.mrb[0].mxu0
  %v1375 = vadd.f32 %v1287, %v1374
  %v1376 = vpop.f32.mrb[0].mxu0
  %v1377 = vpop.f32.mrb[0].mxu0
  %v1378 = vpop.f32.mrb[0].mxu0
  %1379 = vdwg.mxu0
  %v1380 = vpack.c.bf16 %v334, %v334
  %v1381 = vpack.c.bf16 %v849, %v849
  %1382 = vmatprep.subr.bf16.mxu0 0
  %1383 = vmatpush1.bf16.xpose.msra.mxu0 %v1381
  %1384 = vmatprep.subr.bf16.mxu0 0
  %1385 = vmatpush1.bf16.xpose.msra.mxu0 0
  %1386 = vmatprep.subr.bf16.mxu0 0
  %1387 = vmatpush1.bf16.xpose.msra.mxu0 0
  %1388 = vmatprep.subr.bf16.mxu0 0
  %1389 = vmatpush1.bf16.xpose.msra.mxu0 0
  %1390 = vmatprep.subr.bf16.mxu0 0
  %1391 = vmatpush1.bf16.xpose.msra.mxu0 0
  %1392 = vmatprep.subr.bf16.mxu0 0
  %1393 = vmatpush1.bf16.xpose.msra.mxu0 0
  %1394 = vmatprep.subr.bf16.mxu0 0
  %1395 = vmatpush1.bf16.xpose.msra.mxu0 0
  %1396 = vmatprep.subr.bf16.mxu0 0
  %1397 = vmatpush1.bf16.xpose.msra.mxu0 0
  %1398 = vmatprep.subr.bf16.mxu0 0
  %1399 = vmatpush1.bf16.xpose.msra.mxu0 0
  %1400 = vmatprep.subr.bf16.mxu0 0
  %1401 = vmatpush1.bf16.xpose.msra.mxu0 0
  %1402 = vmatprep.subr.bf16.mxu0 0
  %1403 = vmatpush1.bf16.xpose.msra.mxu0 0
  %1404 = vmatprep.subr.bf16.mxu0 0
  %1405 = vmatpush1.bf16.xpose.msra.mxu0 0
  %1406 = vmatprep.subr.bf16.mxu0 0
  %1407 = vmatpush1.bf16.xpose.msra.mxu0 0
  %1408 = vmatprep.subr.bf16.mxu0 0
  %1409 = vmatpush1.bf16.xpose.msra.mxu0 0
  %1410 = vmatprep.subr.bf16.mxu0 0
  %1411 = vmatpush1.bf16.xpose.msra.mxu0 0
  %1412 = vmatprep.subr.bf16.mxu0 0
  %1413 = vmatpush1.bf16.xpose.msra.mxu0 0
  %1414 = vmatprep.mubr.bf16.mxu0 0
  %1415 = vmatmul.mubr.bf16.gmra.mrb[0].mxu0 %v1380
  %v1416 = vpop.f32.mrb[0].mxu0
  %v1417 = vadd.f32 0.0, %v1416
  %v1418 = vpop.f32.mrb[0].mxu0
  %v1419 = vpop.f32.mrb[0].mxu0
  %v1420 = vpop.f32.mrb[0].mxu0
  %1421 = vdwg.mxu0
  %v1422 = vmul.f32 %v1417, 0.35355338
  %v1423 = vadd.f32 %v1422, %v1000
  %v1424 = vadd.f32 %v1423, %v951
  %v1425 = vsel %vm1004, %v1424, -inf
  %1426 = vmax.xlane.f32.xlu0 %v1425
  %v1427 = vpop.xlane.xlu0 %1426
  %v1428 = vsub.f32 %v1424, %v1427
  %v1429 = vmul.f32 %v1428, 1.442695
  %v1430 = vpow.pop %v1429
  %v1431 = vsel %vm1004, %v1430, 0.0
  %1432 = vadd.xlane.f32.xlu0 %v1431
  %v1433 = vpop.xlane.xlu0 %1432
  %v1434 = vrcp.pop %v1433
  %v1435 = vmul.f32 %v1430, %v1434
  %v1436 = vpack.c.bf16 %v1435, %v1435
  %v1437 = vpack.c.bf16 %v935, %v935
  %v1439 = vsel %vm1004, %v1436, 0
  %v1442 = vsel %vm1021, %v1437, 0
  %1444 = vmatprep.subr.bf16.mxu0 0
  %1445 = vmatpush1.bf16.msra.mxu0 %v1442
  %1446 = vmatprep.subr.bf16.mxu0 0
  %1447 = vmatpush1.bf16.msra.mxu0 0
  %1448 = vmatprep.subr.bf16.mxu0 0
  %1449 = vmatpush1.bf16.msra.mxu0 0
  %1450 = vmatprep.subr.bf16.mxu0 0
  %1451 = vmatpush1.bf16.msra.mxu0 0
  %1452 = vmatprep.subr.bf16.mxu0 0
  %1453 = vmatpush1.bf16.msra.mxu0 0
  %1454 = vmatprep.subr.bf16.mxu0 0
  %1455 = vmatpush1.bf16.msra.mxu0 0
  %1456 = vmatprep.subr.bf16.mxu0 0
  %1457 = vmatpush1.bf16.msra.mxu0 0
  %1458 = vmatprep.subr.bf16.mxu0 0
  %1459 = vmatpush1.bf16.msra.mxu0 0
  %1460 = vmatprep.subr.bf16.mxu0 0
  %1461 = vmatpush1.bf16.msra.mxu0 0
  %1462 = vmatprep.subr.bf16.mxu0 0
  %1463 = vmatpush1.bf16.msra.mxu0 0
  %1464 = vmatprep.subr.bf16.mxu0 0
  %1465 = vmatpush1.bf16.msra.mxu0 0
  %1466 = vmatprep.subr.bf16.mxu0 0
  %1467 = vmatpush1.bf16.msra.mxu0 0
  %1468 = vmatprep.subr.bf16.mxu0 0
  %1469 = vmatpush1.bf16.msra.mxu0 0
  %1470 = vmatprep.subr.bf16.mxu0 0
  %1471 = vmatpush1.bf16.msra.mxu0 0
  %1472 = vmatprep.subr.bf16.mxu0 0
  %1473 = vmatpush1.bf16.msra.mxu0 0
  %1474 = vmatprep.subr.bf16.mxu0 0
  %1475 = vmatpush1.bf16.msra.mxu0 0
  %1476 = vmatprep.mubr.bf16.mxu0 0
  %1477 = vmatmul.mubr.bf16.gmra.mrb[0].mxu0 %v1439
  %v1478 = vpop.f32.mrb[0].mxu0
  %v1479 = vadd.f32 0.0, %v1478
  %v1480 = vpop.f32.mrb[0].mxu0
  %v1481 = vpop.f32.mrb[0].mxu0
  %v1482 = vpop.f32.mrb[0].mxu0
  %1483 = vdwg.mxu0
  %v1484 = vpack.c.bf16 %v1479, %v1479
  %s1485 = scalar_lea.vmem %s6, 128
  %v1486 = vld [vmem:[%s1485] sm:$0xf]
  %v1487 = vld [vmem:[%s1485 + $0x4] sm:$0xf]
  %v1488 = vld [vmem:[%s1485 + $0x8] sm:$0xf]
  %v1489 = vld [vmem:[%s1485 + $0xc] sm:$0xf]
  %v1490 = vld [vmem:[%s1485 + $0x10] sm:$0xf]
  %v1491 = vld [vmem:[%s1485 + $0x14] sm:$0xf]
  %v1492 = vld [vmem:[%s1485 + $0x18] sm:$0xf]
  %v1493 = vld [vmem:[%s1485 + $0x1c] sm:$0xf]
  %v1494 = vld [vmem:[%s1485 + $0x20] sm:$0xf]
  %v1495 = vld [vmem:[%s1485 + $0x24] sm:$0xf]
  %v1496 = vld [vmem:[%s1485 + $0x28] sm:$0xf]
  %v1497 = vld [vmem:[%s1485 + $0x2c] sm:$0xf]
  %v1498 = vld [vmem:[%s1485 + $0x30] sm:$0xf]
  %v1499 = vld [vmem:[%s1485 + $0x34] sm:$0xf]
  %v1500 = vld [vmem:[%s1485 + $0x38] sm:$0xf]
  %v1501 = vld [vmem:[%s1485 + $0x3c] sm:$0xf]
  %v1518 = vunpack.c.l.b16 %v1486
  %v1519 = vunpack.c.l.b16 %v1487
  %v1520 = vunpack.c.l.b16 %v1488
  %v1521 = vunpack.c.l.b16 %v1489
  %v1522 = vunpack.c.l.b16 %v1490
  %v1523 = vunpack.c.l.b16 %v1491
  %v1524 = vunpack.c.l.b16 %v1492
  %v1525 = vunpack.c.l.b16 %v1493
  %v1526 = vunpack.c.l.b16 %v1494
  %v1527 = vunpack.c.l.b16 %v1495
  %v1528 = vunpack.c.l.b16 %v1496
  %v1529 = vunpack.c.l.b16 %v1497
  %v1530 = vunpack.c.l.b16 %v1498
  %v1531 = vunpack.c.l.b16 %v1499
  %v1532 = vunpack.c.l.b16 %v1500
  %v1533 = vunpack.c.l.b16 %v1501
  %v1534 = vpack.c.b16 %v1519, %v1518
  %v1535 = vpack.c.b16 %v1521, %v1520
  %v1536 = vpack.c.b16 %v1523, %v1522
  %v1537 = vpack.c.b16 %v1525, %v1524
  %v1538 = vpack.c.b16 %v1527, %v1526
  %v1539 = vpack.c.b16 %v1529, %v1528
  %v1540 = vpack.c.b16 %v1531, %v1530
  %v1541 = vpack.c.b16 %v1533, %v1532
  %1550 = vmatprep.subr.bf16.mxu0 0
  %1551 = vmatpush1.bf16.msra.mxu0 %v1534
  %1552 = vmatprep.subr.bf16.mxu0 0
  %1553 = vmatpush1.bf16.msra.mxu0 %v1535
  %1554 = vmatprep.subr.bf16.mxu0 0
  %1555 = vmatpush1.bf16.msra.mxu0 %v1536
  %1556 = vmatprep.subr.bf16.mxu0 0
  %1557 = vmatpush1.bf16.msra.mxu0 %v1537
  %1558 = vmatprep.subr.bf16.mxu0 0
  %1559 = vmatpush1.bf16.msra.mxu0 %v1538
  %1560 = vmatprep.subr.bf16.mxu0 0
  %1561 = vmatpush1.bf16.msra.mxu0 %v1539
  %1562 = vmatprep.subr.bf16.mxu0 0
  %1563 = vmatpush1.bf16.msra.mxu0 %v1540
  %1564 = vmatprep.subr.bf16.mxu0 0
  %1565 = vmatpush1.bf16.msra.mxu0 %v1541
  %1566 = vmatprep.subr.bf16.mxu0 0
  %1567 = vmatpush1.bf16.msra.mxu0 0
  %1568 = vmatprep.subr.bf16.mxu0 0
  %1569 = vmatpush1.bf16.msra.mxu0 0
  %1570 = vmatprep.subr.bf16.mxu0 0
  %1571 = vmatpush1.bf16.msra.mxu0 0
  %1572 = vmatprep.subr.bf16.mxu0 0
  %1573 = vmatpush1.bf16.msra.mxu0 0
  %1574 = vmatprep.subr.bf16.mxu0 0
  %1575 = vmatpush1.bf16.msra.mxu0 0
  %1576 = vmatprep.subr.bf16.mxu0 0
  %1577 = vmatpush1.bf16.msra.mxu0 0
  %1578 = vmatprep.subr.bf16.mxu0 0
  %1579 = vmatpush1.bf16.msra.mxu0 0
  %1580 = vmatprep.subr.bf16.mxu0 0
  %1581 = vmatpush1.bf16.msra.mxu0 0
  %1582 = vmatprep.mubr.bf16.mxu0 0
  %1583 = vmatmul.mubr.bf16.gmra.mrb[0].mxu0 %v1484
  %v1584 = vpop.f32.mrb[0].mxu0
  %v1585 = vadd.f32 0.0, %v1584
  %v1586 = vpop.f32.mrb[0].mxu0
  %v1587 = vpop.f32.mrb[0].mxu0
  %v1588 = vpop.f32.mrb[0].mxu0
  %1589 = vdwg.mxu0
  %v1590 = vadd.f32 %v1375, %v1585
  %v1591 = vpack.c.bf16 %v336, %v336
  %v1592 = vpack.c.bf16 %v851, %v851
  %1593 = vmatprep.subr.bf16.mxu0 0
  %1594 = vmatpush1.bf16.xpose.msra.mxu0 %v1592
  %1595 = vmatprep.subr.bf16.mxu0 0
  %1596 = vmatpush1.bf16.xpose.msra.mxu0 0
  %1597 = vmatprep.subr.bf16.mxu0 0
  %1598 = vmatpush1.bf16.xpose.msra.mxu0 0
  %1599 = vmatprep.subr.bf16.mxu0 0
  %1600 = vmatpush1.bf16.xpose.msra.mxu0 0
  %1601 = vmatprep.subr.bf16.mxu0 0
  %1602 = vmatpush1.bf16.xpose.msra.mxu0 0
  %1603 = vmatprep.subr.bf16.mxu0 0
  %1604 = vmatpush1.bf16.xpose.msra.mxu0 0
  %1605 = vmatprep.subr.bf16.mxu0 0
  %1606 = vmatpush1.bf16.xpose.msra.mxu0 0
  %1607 = vmatprep.subr.bf16.mxu0 0
  %1608 = vmatpush1.bf16.xpose.msra.mxu0 0
  %1609 = vmatprep.subr.bf16.mxu0 0
  %1610 = vmatpush1.bf16.xpose.msra.mxu0 0
  %1611 = vmatprep.subr.bf16.mxu0 0
  %1612 = vmatpush1.bf16.xpose.msra.mxu0 0
  %1613 = vmatprep.subr.bf16.mxu0 0
  %1614 = vmatpush1.bf16.xpose.msra.mxu0 0
  %1615 = vmatprep.subr.bf16.mxu0 0
  %1616 = vmatpush1.bf16.xpose.msra.mxu0 0
  %1617 = vmatprep.subr.bf16.mxu0 0
  %1618 = vmatpush1.bf16.xpose.msra.mxu0 0
  %1619 = vmatprep.subr.bf16.mxu0 0
  %1620 = vmatpush1.bf16.xpose.msra.mxu0 0
  %1621 = vmatprep.subr.bf16.mxu0 0
  %1622 = vmatpush1.bf16.xpose.msra.mxu0 0
  %1623 = vmatprep.subr.bf16.mxu0 0
  %1624 = vmatpush1.bf16.xpose.msra.mxu0 0
  %1625 = vmatprep.mubr.bf16.mxu0 0
  %1626 = vmatmul.mubr.bf16.gmra.mrb[0].mxu0 %v1591
  %v1627 = vpop.f32.mrb[0].mxu0
  %v1628 = vadd.f32 0.0, %v1627
  %v1629 = vpop.f32.mrb[0].mxu0
  %v1630 = vpop.f32.mrb[0].mxu0
  %v1631 = vpop.f32.mrb[0].mxu0
  %1632 = vdwg.mxu0
  %v1633 = vmul.f32 %v1628, 0.35355338
  %v1634 = vadd.f32 %v1633, %v1000
  %v1635 = vadd.f32 %v1634, %v951
  %v1636 = vsel %vm1004, %v1635, -inf
  %1637 = vmax.xlane.f32.xlu0 %v1636
  %v1638 = vpop.xlane.xlu0 %1637
  %v1639 = vsub.f32 %v1635, %v1638
  %v1640 = vmul.f32 %v1639, 1.442695
  %v1641 = vpow.pop %v1640
  %v1642 = vsel %vm1004, %v1641, 0.0
  %1643 = vadd.xlane.f32.xlu0 %v1642
  %v1644 = vpop.xlane.xlu0 %1643
  %v1645 = vrcp.pop %v1644
  %v1646 = vmul.f32 %v1641, %v1645
  %v1647 = vpack.c.bf16 %v1646, %v1646
  %v1648 = vpack.c.bf16 %v937, %v937
  %v1650 = vsel %vm1004, %v1647, 0
  %v1653 = vsel %vm1021, %v1648, 0
  %1655 = vmatprep.subr.bf16.mxu0 0
  %1656 = vmatpush1.bf16.msra.mxu0 %v1653
  %1657 = vmatprep.subr.bf16.mxu0 0
  %1658 = vmatpush1.bf16.msra.mxu0 0
  %1659 = vmatprep.subr.bf16.mxu0 0
  %1660 = vmatpush1.bf16.msra.mxu0 0
  %1661 = vmatprep.subr.bf16.mxu0 0
  %1662 = vmatpush1.bf16.msra.mxu0 0
  %1663 = vmatprep.subr.bf16.mxu0 0
  %1664 = vmatpush1.bf16.msra.mxu0 0
  %1665 = vmatprep.subr.bf16.mxu0 0
  %1666 = vmatpush1.bf16.msra.mxu0 0
  %1667 = vmatprep.subr.bf16.mxu0 0
  %1668 = vmatpush1.bf16.msra.mxu0 0
  %1669 = vmatprep.subr.bf16.mxu0 0
  %1670 = vmatpush1.bf16.msra.mxu0 0
  %1671 = vmatprep.subr.bf16.mxu0 0
  %1672 = vmatpush1.bf16.msra.mxu0 0
  %1673 = vmatprep.subr.bf16.mxu0 0
  %1674 = vmatpush1.bf16.msra.mxu0 0
  %1675 = vmatprep.subr.bf16.mxu0 0
  %1676 = vmatpush1.bf16.msra.mxu0 0
  %1677 = vmatprep.subr.bf16.mxu0 0
  %1678 = vmatpush1.bf16.msra.mxu0 0
  %1679 = vmatprep.subr.bf16.mxu0 0
  %1680 = vmatpush1.bf16.msra.mxu0 0
  %1681 = vmatprep.subr.bf16.mxu0 0
  %1682 = vmatpush1.bf16.msra.mxu0 0
  %1683 = vmatprep.subr.bf16.mxu0 0
  %1684 = vmatpush1.bf16.msra.mxu0 0
  %1685 = vmatprep.subr.bf16.mxu0 0
  %1686 = vmatpush1.bf16.msra.mxu0 0
  %1687 = vmatprep.mubr.bf16.mxu0 0
  %1688 = vmatmul.mubr.bf16.gmra.mrb[0].mxu0 %v1650
  %v1689 = vpop.f32.mrb[0].mxu0
  %v1690 = vadd.f32 0.0, %v1689
  %v1691 = vpop.f32.mrb[0].mxu0
  %v1692 = vpop.f32.mrb[0].mxu0
  %v1693 = vpop.f32.mrb[0].mxu0
  %1694 = vdwg.mxu0
  %v1695 = vpack.c.bf16 %v1690, %v1690
  %s1696 = scalar_lea.vmem %s6, 192
  %v1697 = vld [vmem:[%s1696] sm:$0xf]
  %v1698 = vld [vmem:[%s1696 + $0x4] sm:$0xf]
  %v1699 = vld [vmem:[%s1696 + $0x8] sm:$0xf]
  %v1700 = vld [vmem:[%s1696 + $0xc] sm:$0xf]
  %v1701 = vld [vmem:[%s1696 + $0x10] sm:$0xf]
  %v1702 = vld [vmem:[%s1696 + $0x14] sm:$0xf]
  %v1703 = vld [vmem:[%s1696 + $0x18] sm:$0xf]
  %v1704 = vld [vmem:[%s1696 + $0x1c] sm:$0xf]
  %v1705 = vld [vmem:[%s1696 + $0x20] sm:$0xf]
  %v1706 = vld [vmem:[%s1696 + $0x24] sm:$0xf]
  %v1707 = vld [vmem:[%s1696 + $0x28] sm:$0xf]
  %v1708 = vld [vmem:[%s1696 + $0x2c] sm:$0xf]
  %v1709 = vld [vmem:[%s1696 + $0x30] sm:$0xf]
  %v1710 = vld [vmem:[%s1696 + $0x34] sm:$0xf]
  %v1711 = vld [vmem:[%s1696 + $0x38] sm:$0xf]
  %v1712 = vld [vmem:[%s1696 + $0x3c] sm:$0xf]
  %v1729 = vunpack.c.l.b16 %v1697
  %v1730 = vunpack.c.l.b16 %v1698
  %v1731 = vunpack.c.l.b16 %v1699
  %v1732 = vunpack.c.l.b16 %v1700
  %v1733 = vunpack.c.l.b16 %v1701
  %v1734 = vunpack.c.l.b16 %v1702
  %v1735 = vunpack.c.l.b16 %v1703
  %v1736 = vunpack.c.l.b16 %v1704
  %v1737 = vunpack.c.l.b16 %v1705
  %v1738 = vunpack.c.l.b16 %v1706
  %v1739 = vunpack.c.l.b16 %v1707
  %v1740 = vunpack.c.l.b16 %v1708
  %v1741 = vunpack.c.l.b16 %v1709
  %v1742 = vunpack.c.l.b16 %v1710
  %v1743 = vunpack.c.l.b16 %v1711
  %v1744 = vunpack.c.l.b16 %v1712
  %v1745 = vpack.c.b16 %v1730, %v1729
  %v1746 = vpack.c.b16 %v1732, %v1731
  %v1747 = vpack.c.b16 %v1734, %v1733
  %v1748 = vpack.c.b16 %v1736, %v1735
  %v1749 = vpack.c.b16 %v1738, %v1737
  %v1750 = vpack.c.b16 %v1740, %v1739
  %v1751 = vpack.c.b16 %v1742, %v1741
  %v1752 = vpack.c.b16 %v1744, %v1743
  %1761 = vmatprep.subr.bf16.mxu0 0
  %1762 = vmatpush1.bf16.msra.mxu0 %v1745
  %1763 = vmatprep.subr.bf16.mxu0 0
  %1764 = vmatpush1.bf16.msra.mxu0 %v1746
  %1765 = vmatprep.subr.bf16.mxu0 0
  %1766 = vmatpush1.bf16.msra.mxu0 %v1747
  %1767 = vmatprep.subr.bf16.mxu0 0
  %1768 = vmatpush1.bf16.msra.mxu0 %v1748
  %1769 = vmatprep.subr.bf16.mxu0 0
  %1770 = vmatpush1.bf16.msra.mxu0 %v1749
  %1771 = vmatprep.subr.bf16.mxu0 0
  %1772 = vmatpush1.bf16.msra.mxu0 %v1750
  %1773 = vmatprep.subr.bf16.mxu0 0
  %1774 = vmatpush1.bf16.msra.mxu0 %v1751
  %1775 = vmatprep.subr.bf16.mxu0 0
  %1776 = vmatpush1.bf16.msra.mxu0 %v1752
  %1777 = vmatprep.subr.bf16.mxu0 0
  %1778 = vmatpush1.bf16.msra.mxu0 0
  %1779 = vmatprep.subr.bf16.mxu0 0
  %1780 = vmatpush1.bf16.msra.mxu0 0
  %1781 = vmatprep.subr.bf16.mxu0 0
  %1782 = vmatpush1.bf16.msra.mxu0 0
  %1783 = vmatprep.subr.bf16.mxu0 0
  %1784 = vmatpush1.bf16.msra.mxu0 0
  %1785 = vmatprep.subr.bf16.mxu0 0
  %1786 = vmatpush1.bf16.msra.mxu0 0
  %1787 = vmatprep.subr.bf16.mxu0 0
  %1788 = vmatpush1.bf16.msra.mxu0 0
  %1789 = vmatprep.subr.bf16.mxu0 0
  %1790 = vmatpush1.bf16.msra.mxu0 0
  %1791 = vmatprep.subr.bf16.mxu0 0
  %1792 = vmatpush1.bf16.msra.mxu0 0
  %1793 = vmatprep.mubr.bf16.mxu0 0
  %1794 = vmatmul.mubr.bf16.gmra.mrb[0].mxu0 %v1695
  %v1795 = vpop.f32.mrb[0].mxu0
  %v1796 = vadd.f32 0.0, %v1795
  %v1797 = vpop.f32.mrb[0].mxu0
  %v1798 = vpop.f32.mrb[0].mxu0
  %v1799 = vpop.f32.mrb[0].mxu0
  %1800 = vdwg.mxu0
  %v1801 = vadd.f32 %v1590, %v1796
  %v1802 = vadd.f32 %v39, %v1801
  %v1804 = vlaneseq
  %v1805 = vshrl.u32 %v1804, 7
  %v1806 = vsub.s32 0, %v1805
  %v1807 = vrot.slane %v943, %v1806
  %v1809 = vadd.f32 %v1802, %v1807
  %vm1810 = vcmp.lt.s32.totalorder %v949, 32
  %v1811 = vsel %vm1810, 1, 0
  %v1812 = vcvt.s32.f32 %v1811
  %1813 = vadd.xlane.f32.xlu0 %v1809
  %v1814 = vpop.xlane.xlu0 %1813
  %v1815 = vmul.f32 %v1814, 0.03125
  %v1816 = vsub.f32 %v1809, %v1815
  %v1817 = vmul.f32 %v1816, %v1812
  %v1818 = vmul.f32 %v1817, %v1817
  %1819 = vadd.xlane.f32.xlu0 %v1818
  %v1820 = vpop.xlane.xlu0 %1819
  %v1821 = vmul.f32 %v1820, 0.03125
  %v1822 = vadd.f32 %v1821, 1e-05
  %v1823 = vrsqrt.pop %v1822
  %v1824 = vmul.f32 %v1817, %v1823
  %v1826 = vlaneseq
  %v1827 = vshrl.u32 %v1826, 7
  %v1828 = vsub.s32 0, %v1827
  %v1829 = vrot.slane %v944, %v1828
  %v1831 = vmul.f32 %v1824, %v1829
  %v1833 = vlaneseq
  %v1834 = vshrl.u32 %v1833, 7
  %v1835 = vsub.s32 0, %v1834
  %v1836 = vrot.slane %v945, %v1835
  %v1838 = vadd.f32 %v1831, %v1836
  %1839 = vst [vmem:[%s11] sm:$0xff] %v1838
  %s1840 = scalar_lea.vmem %s8, 1
  %v1841 = vld [vmem:[%s1840] sm:$0x1]
  %v1842 = vpack.c.bf16 %v295, %v295
  %v1843 = vpack.c.bf16 %v810, %v810
  %1844 = vmatprep.subr.bf16.mxu0 0
  %1845 = vmatpush1.bf16.xpose.msra.mxu0 %v1843
  %1846 = vmatprep.subr.bf16.mxu0 0
  %1847 = vmatpush1.bf16.xpose.msra.mxu0 0
  %1848 = vmatprep.subr.bf16.mxu0 0
  %1849 = vmatpush1.bf16.xpose.msra.mxu0 0
  %1850 = vmatprep.subr.bf16.mxu0 0
  %1851 = vmatpush1.bf16.xpose.msra.mxu0 0
  %1852 = vmatprep.subr.bf16.mxu0 0
  %1853 = vmatpush1.bf16.xpose.msra.mxu0 0
  %1854 = vmatprep.subr.bf16.mxu0 0
  %1855 = vmatpush1.bf16.xpose.msra.mxu0 0
  %1856 = vmatprep.subr.bf16.mxu0 0
  %1857 = vmatpush1.bf16.xpose.msra.mxu0 0
  %1858 = vmatprep.subr.bf16.mxu0 0
  %1859 = vmatpush1.bf16.xpose.msra.mxu0 0
  %1860 = vmatprep.subr.bf16.mxu0 0
  %1861 = vmatpush1.bf16.xpose.msra.mxu0 0
  %1862 = vmatprep.subr.bf16.mxu0 0
  %1863 = vmatpush1.bf16.xpose.msra.mxu0 0
  %1864 = vmatprep.subr.bf16.mxu0 0
  %1865 = vmatpush1.bf16.xpose.msra.mxu0 0
  %1866 = vmatprep.subr.bf16.mxu0 0
  %1867 = vmatpush1.bf16.xpose.msra.mxu0 0
  %1868 = vmatprep.subr.bf16.mxu0 0
  %1869 = vmatpush1.bf16.xpose.msra.mxu0 0
  %1870 = vmatprep.subr.bf16.mxu0 0
  %1871 = vmatpush1.bf16.xpose.msra.mxu0 0
  %1872 = vmatprep.subr.bf16.mxu0 0
  %1873 = vmatpush1.bf16.xpose.msra.mxu0 0
  %1874 = vmatprep.subr.bf16.mxu0 0
  %1875 = vmatpush1.bf16.xpose.msra.mxu0 0
  %1876 = vmatprep.mubr.bf16.mxu0 0
  %1877 = vmatmul.mubr.bf16.gmra.mrb[0].mxu0 %v1842
  %v1878 = vpop.f32.mrb[0].mxu0
  %v1879 = vadd.f32 0.0, %v1878
  %v1880 = vpop.f32.mrb[0].mxu0
  %v1881 = vpop.f32.mrb[0].mxu0
  %v1882 = vpop.f32.mrb[0].mxu0
  %1883 = vdwg.mxu0
  %v1884 = vmul.f32 %v1879, 0.35355338
  %v1886 = vlaneseq
  %v1887 = vshrl.u32 %v1886, 7
  %v1888 = vsub.s32 0, %v1887
  %v1889 = vrot.slane %v1841, %v1888
  %v1891 = vadd.f32 %v1884, %v1889
  %v1892 = vadd.f32 %v1891, %v951
  %v1893 = vsel %vm1004, %v1892, -inf
  %1894 = vmax.xlane.f32.xlu0 %v1893
  %v1895 = vpop.xlane.xlu0 %1894
  %v1896 = vsub.f32 %v1892, %v1895
  %v1897 = vmul.f32 %v1896, 1.442695
  %v1898 = vpow.pop %v1897
  %v1899 = vsel %vm1004, %v1898, 0.0
  %1900 = vadd.xlane.f32.xlu0 %v1899
  %v1901 = vpop.xlane.xlu0 %1900
  %v1902 = vrcp.pop %v1901
  %v1903 = vmul.f32 %v1898, %v1902
  %v1904 = vpack.c.bf16 %v1903, %v1903
  %v1905 = vpack.c.bf16 %v896, %v896
  %v1907 = vsel %vm1004, %v1904, 0
  %v1910 = vsel %vm1021, %v1905, 0
  %1912 = vmatprep.subr.bf16.mxu0 0
  %1913 = vmatpush1.bf16.msra.mxu0 %v1910
  %1914 = vmatprep.subr.bf16.mxu0 0
  %1915 = vmatpush1.bf16.msra.mxu0 0
  %1916 = vmatprep.subr.bf16.mxu0 0
  %1917 = vmatpush1.bf16.msra.mxu0 0
  %1918 = vmatprep.subr.bf16.mxu0 0
  %1919 = vmatpush1.bf16.msra.mxu0 0
  %1920 = vmatprep.subr.bf16.mxu0 0
  %1921 = vmatpush1.bf16.msra.mxu0 0
  %1922 = vmatprep.subr.bf16.mxu0 0
  %1923 = vmatpush1.bf16.msra.mxu0 0
  %1924 = vmatprep.subr.bf16.mxu0 0
  %1925 = vmatpush1.bf16.msra.mxu0 0
  %1926 = vmatprep.subr.bf16.mxu0 0
  %1927 = vmatpush1.bf16.msra.mxu0 0
  %1928 = vmatprep.subr.bf16.mxu0 0
  %1929 = vmatpush1.bf16.msra.mxu0 0
  %1930 = vmatprep.subr.bf16.mxu0 0
  %1931 = vmatpush1.bf16.msra.mxu0 0
  %1932 = vmatprep.subr.bf16.mxu0 0
  %1933 = vmatpush1.bf16.msra.mxu0 0
  %1934 = vmatprep.subr.bf16.mxu0 0
  %1935 = vmatpush1.bf16.msra.mxu0 0
  %1936 = vmatprep.subr.bf16.mxu0 0
  %1937 = vmatpush1.bf16.msra.mxu0 0
  %1938 = vmatprep.subr.bf16.mxu0 0
  %1939 = vmatpush1.bf16.msra.mxu0 0
  %1940 = vmatprep.subr.bf16.mxu0 0
  %1941 = vmatpush1.bf16.msra.mxu0 0
  %1942 = vmatprep.subr.bf16.mxu0 0
  %1943 = vmatpush1.bf16.msra.mxu0 0
  %1944 = vmatprep.mubr.bf16.mxu0 0
  %1945 = vmatmul.mubr.bf16.gmra.mrb[0].mxu0 %v1907
  %v1946 = vpop.f32.mrb[0].mxu0
  %v1947 = vadd.f32 0.0, %v1946
  %v1948 = vpop.f32.mrb[0].mxu0
  %v1949 = vpop.f32.mrb[0].mxu0
  %v1950 = vpop.f32.mrb[0].mxu0
  %1951 = vdwg.mxu0
  %v1952 = vpack.c.bf16 %v1947, %v1947
  %v1953 = vld [vmem:[%s6] sm:$0xf]
  %v1954 = vld [vmem:[%s6 + $0x4] sm:$0xf]
  %v1955 = vld [vmem:[%s6 + $0x8] sm:$0xf]
  %v1956 = vld [vmem:[%s6 + $0xc] sm:$0xf]
  %v1957 = vld [vmem:[%s6 + $0x10] sm:$0xf]
  %v1958 = vld [vmem:[%s6 + $0x14] sm:$0xf]
  %v1959 = vld [vmem:[%s6 + $0x18] sm:$0xf]
  %v1960 = vld [vmem:[%s6 + $0x1c] sm:$0xf]
  %v1961 = vld [vmem:[%s6 + $0x20] sm:$0xf]
  %v1962 = vld [vmem:[%s6 + $0x24] sm:$0xf]
  %v1963 = vld [vmem:[%s6 + $0x28] sm:$0xf]
  %v1964 = vld [vmem:[%s6 + $0x2c] sm:$0xf]
  %v1965 = vld [vmem:[%s6 + $0x30] sm:$0xf]
  %v1966 = vld [vmem:[%s6 + $0x34] sm:$0xf]
  %v1967 = vld [vmem:[%s6 + $0x38] sm:$0xf]
  %v1968 = vld [vmem:[%s6 + $0x3c] sm:$0xf]
  %v1969 = vpack.c.bf16 %v297, %v297
  %v1970 = vpack.c.bf16 %v812, %v812
  %1971 = vmatprep.subr.bf16.mxu0 0
  %1972 = vmatpush1.bf16.xpose.msra.mxu0 %v1970
  %1973 = vmatprep.subr.bf16.mxu0 0
  %1974 = vmatpush1.bf16.xpose.msra.mxu0 0
  %1975 = vmatprep.subr.bf16.mxu0 0
  %1976 = vmatpush1.bf16.xpose.msra.mxu0 0
  %1977 = vmatprep.subr.bf16.mxu0 0
  %1978 = vmatpush1.bf16.xpose.msra.mxu0 0
  %1979 = vmatprep.subr.bf16.mxu0 0
  %1980 = vmatpush1.bf16.xpose.msra.mxu0 0
  %1981 = vmatprep.subr.bf16.mxu0 0
  %1982 = vmatpush1.bf16.xpose.msra.mxu0 0
  %1983 = vmatprep.subr.bf16.mxu0 0
  %1984 = vmatpush1.bf16.xpose.msra.mxu0 0
  %1985 = vmatprep.subr.bf16.mxu0 0
  %1986 = vmatpush1.bf16.xpose.msra.mxu0 0
  %1987 = vmatprep.subr.bf16.mxu0 0
  %1988 = vmatpush1.bf16.xpose.msra.mxu0 0
  %1989 = vmatprep.subr.bf16.mxu0 0
  %1990 = vmatpush1.bf16.xpose.msra.mxu0 0
  %1991 = vmatprep.subr.bf16.mxu0 0
  %1992 = vmatpush1.bf16.xpose.msra.mxu0 0
  %1993 = vmatprep.subr.bf16.mxu0 0
  %1994 = vmatpush1.bf16.xpose.msra.mxu0 0
  %1995 = vmatprep.subr.bf16.mxu0 0
  %1996 = vmatpush1.bf16.xpose.msra.mxu0 0
  %1997 = vmatprep.subr.bf16.mxu0 0
  %1998 = vmatpush1.bf16.xpose.msra.mxu0 0
  %1999 = vmatprep.subr.bf16.mxu0 0
  %2000 = vmatpush1.bf16.xpose.msra.mxu0 0
  %2001 = vmatprep.subr.bf16.mxu0 0
  %2002 = vmatpush1.bf16.xpose.msra.mxu0 0
  %2003 = vmatprep.mubr.bf16.mxu0 0
  %2004 = vmatmul.mubr.bf16.gmra.mrb[0].mxu0 %v1969
  %v2005 = vpop.f32.mrb[0].mxu0
  %v2006 = vadd.f32 0.0, %v2005
  %v2007 = vpop.f32.mrb[0].mxu0
  %v2008 = vpop.f32.mrb[0].mxu0
  %v2009 = vpop.f32.mrb[0].mxu0
  %2010 = vdwg.mxu0
  %v2011 = vmul.f32 %v2006, 0.35355338
  %v2012 = vadd.f32 %v2011, %v1889
  %v2013 = vadd.f32 %v2012, %v951
  %v2014 = vsel %vm1004, %v2013, -inf
  %2015 = vmax.xlane.f32.xlu0 %v2014
  %v2016 = vpop.xlane.xlu0 %2015
  %v2017 = vsub.f32 %v2013, %v2016
  %v2018 = vmul.f32 %v2017, 1.442695
  %v2019 = vpow.pop %v2018
  %v2020 = vsel %vm1004, %v2019, 0.0
  %2021 = vadd.xlane.f32.xlu0 %v2020
  %v2022 = vpop.xlane.xlu0 %2021
  %v2023 = vrcp.pop %v2022
  %v2024 = vmul.f32 %v2019, %v2023
  %v2025 = vpack.c.bf16 %v2024, %v2024
  %v2026 = vpack.c.bf16 %v898, %v898
  %v2028 = vsel %vm1004, %v2025, 0
  %v2031 = vsel %vm1021, %v2026, 0
  %2033 = vmatprep.subr.bf16.mxu0 0
  %2034 = vmatpush1.bf16.msra.mxu0 %v2031
  %2035 = vmatprep.subr.bf16.mxu0 0
  %2036 = vmatpush1.bf16.msra.mxu0 0
  %2037 = vmatprep.subr.bf16.mxu0 0
  %2038 = vmatpush1.bf16.msra.mxu0 0
  %2039 = vmatprep.subr.bf16.mxu0 0
  %2040 = vmatpush1.bf16.msra.mxu0 0
  %2041 = vmatprep.subr.bf16.mxu0 0
  %2042 = vmatpush1.bf16.msra.mxu0 0
  %2043 = vmatprep.subr.bf16.mxu0 0
  %2044 = vmatpush1.bf16.msra.mxu0 0
  %2045 = vmatprep.subr.bf16.mxu0 0
  %2046 = vmatpush1.bf16.msra.mxu0 0
  %2047 = vmatprep.subr.bf16.mxu0 0
  %2048 = vmatpush1.bf16.msra.mxu0 0
  %2049 = vmatprep.subr.bf16.mxu0 0
  %2050 = vmatpush1.bf16.msra.mxu0 0
  %2051 = vmatprep.subr.bf16.mxu0 0
  %2052 = vmatpush1.bf16.msra.mxu0 0
  %2053 = vmatprep.subr.bf16.mxu0 0
  %2054 = vmatpush1.bf16.msra.mxu0 0
  %2055 = vmatprep.subr.bf16.mxu0 0
  %2056 = vmatpush1.bf16.msra.mxu0 0
  %2057 = vmatprep.subr.bf16.mxu0 0
  %2058 = vmatpush1.bf16.msra.mxu0 0
  %2059 = vmatprep.subr.bf16.mxu0 0
  %2060 = vmatpush1.bf16.msra.mxu0 0
  %2061 = vmatprep.subr.bf16.mxu0 0
  %2062 = vmatpush1.bf16.msra.mxu0 0
  %2063 = vmatprep.subr.bf16.mxu0 0
  %2064 = vmatpush1.bf16.msra.mxu0 0
  %2065 = vmatprep.mubr.bf16.mxu0 0
  %2066 = vmatmul.mubr.bf16.gmra.mrb[0].mxu0 %v2028
  %v2067 = vpop.f32.mrb[0].mxu0
  %v2068 = vadd.f32 0.0, %v2067
  %v2069 = vpop.f32.mrb[0].mxu0
  %v2070 = vpop.f32.mrb[0].mxu0
  %v2071 = vpop.f32.mrb[0].mxu0
  %2072 = vdwg.mxu0
  %v2073 = vpack.c.bf16 %v2068, %v2068
  %v2074 = vld [vmem:[%s1187] sm:$0xf]
  %v2075 = vld [vmem:[%s1187 + $0x4] sm:$0xf]
  %v2076 = vld [vmem:[%s1187 + $0x8] sm:$0xf]
  %v2077 = vld [vmem:[%s1187 + $0xc] sm:$0xf]
  %v2078 = vld [vmem:[%s1187 + $0x10] sm:$0xf]
  %v2079 = vld [vmem:[%s1187 + $0x14] sm:$0xf]
  %v2080 = vld [vmem:[%s1187 + $0x18] sm:$0xf]
  %v2081 = vld [vmem:[%s1187 + $0x1c] sm:$0xf]
  %v2082 = vld [vmem:[%s1187 + $0x20] sm:$0xf]
  %v2083 = vld [vmem:[%s1187 + $0x24] sm:$0xf]
  %v2084 = vld [vmem:[%s1187 + $0x28] sm:$0xf]
  %v2085 = vld [vmem:[%s1187 + $0x2c] sm:$0xf]
  %v2086 = vld [vmem:[%s1187 + $0x30] sm:$0xf]
  %v2087 = vld [vmem:[%s1187 + $0x34] sm:$0xf]
  %v2088 = vld [vmem:[%s1187 + $0x38] sm:$0xf]
  %v2089 = vld [vmem:[%s1187 + $0x3c] sm:$0xf]
  %v2106 = vunpack.c.l.b16 %v2074
  %v2107 = vunpack.c.l.b16 %v2075
  %v2108 = vunpack.c.l.b16 %v2076
  %v2109 = vunpack.c.l.b16 %v2077
  %v2110 = vunpack.c.l.b16 %v2078
  %v2111 = vunpack.c.l.b16 %v2079
  %v2112 = vunpack.c.l.b16 %v2080
  %v2113 = vunpack.c.l.b16 %v2081
  %v2114 = vunpack.c.l.b16 %v2082
  %v2115 = vunpack.c.l.b16 %v2083
  %v2116 = vunpack.c.l.b16 %v2084
  %v2117 = vunpack.c.l.b16 %v2085
  %v2118 = vunpack.c.l.b16 %v2086
  %v2119 = vunpack.c.l.b16 %v2087
  %v2120 = vunpack.c.l.b16 %v2088
  %v2121 = vunpack.c.l.b16 %v2089
  %v2122 = vpack.c.b16 %v2107, %v2106
  %v2123 = vpack.c.b16 %v2109, %v2108
  %v2124 = vpack.c.b16 %v2111, %v2110
  %v2125 = vpack.c.b16 %v2113, %v2112
  %v2126 = vpack.c.b16 %v2115, %v2114
  %v2127 = vpack.c.b16 %v2117, %v2116
  %v2128 = vpack.c.b16 %v2119, %v2118
  %v2129 = vpack.c.b16 %v2121, %v2120
  %2138 = vmatprep.subr.bf16.mxu0 0
  %2139 = vmatpush1.bf16.msra.mxu0 %v2122
  %2140 = vmatprep.subr.bf16.mxu0 0
  %2141 = vmatpush1.bf16.msra.mxu0 %v2123
  %2142 = vmatprep.subr.bf16.mxu0 0
  %2143 = vmatpush1.bf16.msra.mxu0 %v2124
  %2144 = vmatprep.subr.bf16.mxu0 0
  %2145 = vmatpush1.bf16.msra.mxu0 %v2125
  %2146 = vmatprep.subr.bf16.mxu0 0
  %2147 = vmatpush1.bf16.msra.mxu0 %v2126
  %2148 = vmatprep.subr.bf16.mxu0 0
  %2149 = vmatpush1.bf16.msra.mxu0 %v2127
  %2150 = vmatprep.subr.bf16.mxu0 0
  %2151 = vmatpush1.bf16.msra.mxu0 %v2128
  %2152 = vmatprep.subr.bf16.mxu0 0
  %2153 = vmatpush1.bf16.msra.mxu0 %v2129
  %2154 = vmatprep.subr.bf16.mxu0 0
  %2155 = vmatpush1.bf16.msra.mxu0 0
  %2156 = vmatprep.subr.bf16.mxu0 0
  %2157 = vmatpush1.bf16.msra.mxu0 0
  %2158 = vmatprep.subr.bf16.mxu0 0
  %2159 = vmatpush1.bf16.msra.mxu0 0
  %2160 = vmatprep.subr.bf16.mxu0 0
  %2161 = vmatpush1.bf16.msra.mxu0 0
  %2162 = vmatprep.subr.bf16.mxu0 0
  %2163 = vmatpush1.bf16.msra.mxu0 0
  %2164 = vmatprep.subr.bf16.mxu0 0
  %2165 = vmatpush1.bf16.msra.mxu0 0
  %2166 = vmatprep.subr.bf16.mxu0 0
  %2167 = vmatpush1.bf16.msra.mxu0 0
  %2168 = vmatprep.subr.bf16.mxu0 0
  %2169 = vmatpush1.bf16.msra.mxu0 0
  %2170 = vmatprep.mubr.bf16.mxu0 0
  %2171 = vmatmul.mubr.bf16.gmra.mrb[0].mxu0 %v2073
  %v2172 = vpop.f32.mrb[0].mxu0
  %v2173 = vadd.f32 0.0, %v2172
  %v2174 = vpop.f32.mrb[0].mxu0
  %v2175 = vpop.f32.mrb[0].mxu0
  %v2176 = vpop.f32.mrb[0].mxu0
  %2177 = vdwg.mxu0
  %v2194 = vunpack.c.l.b16 %v1953
  %v2195 = vunpack.c.l.b16 %v1954
  %v2196 = vunpack.c.l.b16 %v1955
  %v2197 = vunpack.c.l.b16 %v1956
  %v2198 = vunpack.c.l.b16 %v1957
  %v2199 = vunpack.c.l.b16 %v1958
  %v2200 = vunpack.c.l.b16 %v1959
  %v2201 = vunpack.c.l.b16 %v1960
  %v2202 = vunpack.c.l.b16 %v1961
  %v2203 = vunpack.c.l.b16 %v1962
  %v2204 = vunpack.c.l.b16 %v1963
  %v2205 = vunpack.c.l.b16 %v1964
  %v2206 = vunpack.c.l.b16 %v1965
  %v2207 = vunpack.c.l.b16 %v1966
  %v2208 = vunpack.c.l.b16 %v1967
  %v2209 = vunpack.c.l.b16 %v1968
  %v2210 = vpack.c.b16 %v2195, %v2194
  %v2211 = vpack.c.b16 %v2197, %v2196
  %v2212 = vpack.c.b16 %v2199, %v2198
  %v2213 = vpack.c.b16 %v2201, %v2200
  %v2214 = vpack.c.b16 %v2203, %v2202
  %v2215 = vpack.c.b16 %v2205, %v2204
  %v2216 = vpack.c.b16 %v2207, %v2206
  %v2217 = vpack.c.b16 %v2209, %v2208
  %2226 = vmatprep.subr.bf16.mxu0 0
  %2227 = vmatpush1.bf16.msra.mxu0 %v2210
  %2228 = vmatprep.subr.bf16.mxu0 0
  %2229 = vmatpush1.bf16.msra.mxu0 %v2211
  %2230 = vmatprep.subr.bf16.mxu0 0
  %2231 = vmatpush1.bf16.msra.mxu0 %v2212
  %2232 = vmatprep.subr.bf16.mxu0 0
  %2233 = vmatpush1.bf16.msra.mxu0 %v2213
  %2234 = vmatprep.subr.bf16.mxu0 0
  %2235 = vmatpush1.bf16.msra.mxu0 %v2214
  %2236 = vmatprep.subr.bf16.mxu0 0
  %2237 = vmatpush1.bf16.msra.mxu0 %v2215
  %2238 = vmatprep.subr.bf16.mxu0 0
  %2239 = vmatpush1.bf16.msra.mxu0 %v2216
  %2240 = vmatprep.subr.bf16.mxu0 0
  %2241 = vmatpush1.bf16.msra.mxu0 %v2217
  %2242 = vmatprep.subr.bf16.mxu0 0
  %2243 = vmatpush1.bf16.msra.mxu0 0
  %2244 = vmatprep.subr.bf16.mxu0 0
  %2245 = vmatpush1.bf16.msra.mxu0 0
  %2246 = vmatprep.subr.bf16.mxu0 0
  %2247 = vmatpush1.bf16.msra.mxu0 0
  %2248 = vmatprep.subr.bf16.mxu0 0
  %2249 = vmatpush1.bf16.msra.mxu0 0
  %2250 = vmatprep.subr.bf16.mxu0 0
  %2251 = vmatpush1.bf16.msra.mxu0 0
  %2252 = vmatprep.subr.bf16.mxu0 0
  %2253 = vmatpush1.bf16.msra.mxu0 0
  %2254 = vmatprep.subr.bf16.mxu0 0
  %2255 = vmatpush1.bf16.msra.mxu0 0
  %2256 = vmatprep.subr.bf16.mxu0 0
  %2257 = vmatpush1.bf16.msra.mxu0 0
  %2258 = vmatprep.mubr.bf16.mxu0 0
  %2259 = vmatmul.mubr.bf16.gmra.mrb[0].mxu0 %v1952
  %v2260 = vpop.f32.mrb[0].mxu0
  %v2261 = vadd.f32 %v2173, %v2260
  %v2262 = vpop.f32.mrb[0].mxu0
  %v2263 = vpop.f32.mrb[0].mxu0
  %v2264 = vpop.f32.mrb[0].mxu0
  %2265 = vdwg.mxu0
  %v2266 = vpack.c.bf16 %v338, %v338
  %v2267 = vpack.c.bf16 %v853, %v853
  %2268 = vmatprep.subr.bf16.mxu0 0
  %2269 = vmatpush1.bf16.xpose.msra.mxu0 %v2267
  %2270 = vmatprep.subr.bf16.mxu0 0
  %2271 = vmatpush1.bf16.xpose.msra.mxu0 0
  %2272 = vmatprep.subr.bf16.mxu0 0
  %2273 = vmatpush1.bf16.xpose.msra.mxu0 0
  %2274 = vmatprep.subr.bf16.mxu0 0
  %2275 = vmatpush1.bf16.xpose.msra.mxu0 0
  %2276 = vmatprep.subr.bf16.mxu0 0
  %2277 = vmatpush1.bf16.xpose.msra.mxu0 0
  %2278 = vmatprep.subr.bf16.mxu0 0
  %2279 = vmatpush1.bf16.xpose.msra.mxu0 0
  %2280 = vmatprep.subr.bf16.mxu0 0
  %2281 = vmatpush1.bf16.xpose.msra.mxu0 0
  %2282 = vmatprep.subr.bf16.mxu0 0
  %2283 = vmatpush1.bf16.xpose.msra.mxu0 0
  %2284 = vmatprep.subr.bf16.mxu0 0
  %2285 = vmatpush1.bf16.xpose.msra.mxu0 0
  %2286 = vmatprep.subr.bf16.mxu0 0
  %2287 = vmatpush1.bf16.xpose.msra.mxu0 0
  %2288 = vmatprep.subr.bf16.mxu0 0
  %2289 = vmatpush1.bf16.xpose.msra.mxu0 0
  %2290 = vmatprep.subr.bf16.mxu0 0
  %2291 = vmatpush1.bf16.xpose.msra.mxu0 0
  %2292 = vmatprep.subr.bf16.mxu0 0
  %2293 = vmatpush1.bf16.xpose.msra.mxu0 0
  %2294 = vmatprep.subr.bf16.mxu0 0
  %2295 = vmatpush1.bf16.xpose.msra.mxu0 0
  %2296 = vmatprep.subr.bf16.mxu0 0
  %2297 = vmatpush1.bf16.xpose.msra.mxu0 0
  %2298 = vmatprep.subr.bf16.mxu0 0
  %2299 = vmatpush1.bf16.xpose.msra.mxu0 0
  %2300 = vmatprep.mubr.bf16.mxu0 0
  %2301 = vmatmul.mubr.bf16.gmra.mrb[0].mxu0 %v2266
  %v2302 = vpop.f32.mrb[0].mxu0
  %v2303 = vadd.f32 0.0, %v2302
  %v2304 = vpop.f32.mrb[0].mxu0
  %v2305 = vpop.f32.mrb[0].mxu0
  %v2306 = vpop.f32.mrb[0].mxu0
  %2307 = vdwg.mxu0
  %v2308 = vmul.f32 %v2303, 0.35355338
  %v2309 = vadd.f32 %v2308, %v1889
  %v2310 = vadd.f32 %v2309, %v951
  %v2311 = vsel %vm1004, %v2310, -inf
  %2312 = vmax.xlane.f32.xlu0 %v2311
  %v2313 = vpop.xlane.xlu0 %2312
  %v2314 = vsub.f32 %v2310, %v2313
  %v2315 = vmul.f32 %v2314, 1.442695
  %v2316 = vpow.pop %v2315
  %v2317 = vsel %vm1004, %v2316, 0.0
  %2318 = vadd.xlane.f32.xlu0 %v2317
  %v2319 = vpop.xlane.xlu0 %2318
  %v2320 = vrcp.pop %v2319
  %v2321 = vmul.f32 %v2316, %v2320
  %v2322 = vpack.c.bf16 %v2321, %v2321
  %v2323 = vpack.c.bf16 %v939, %v939
  %v2325 = vsel %vm1004, %v2322, 0
  %v2328 = vsel %vm1021, %v2323, 0
  %2330 = vmatprep.subr.bf16.mxu0 0
  %2331 = vmatpush1.bf16.msra.mxu0 %v2328
  %2332 = vmatprep.subr.bf16.mxu0 0
  %2333 = vmatpush1.bf16.msra.mxu0 0
  %2334 = vmatprep.subr.bf16.mxu0 0
  %2335 = vmatpush1.bf16.msra.mxu0 0
  %2336 = vmatprep.subr.bf16.mxu0 0
  %2337 = vmatpush1.bf16.msra.mxu0 0
  %2338 = vmatprep.subr.bf16.mxu0 0
  %2339 = vmatpush1.bf16.msra.mxu0 0
  %2340 = vmatprep.subr.bf16.mxu0 0
  %2341 = vmatpush1.bf16.msra.mxu0 0
  %2342 = vmatprep.subr.bf16.mxu0 0
  %2343 = vmatpush1.bf16.msra.mxu0 0
  %2344 = vmatprep.subr.bf16.mxu0 0
  %2345 = vmatpush1.bf16.msra.mxu0 0
  %2346 = vmatprep.subr.bf16.mxu0 0
  %2347 = vmatpush1.bf16.msra.mxu0 0
  %2348 = vmatprep.subr.bf16.mxu0 0
  %2349 = vmatpush1.bf16.msra.mxu0 0
  %2350 = vmatprep.subr.bf16.mxu0 0
  %2351 = vmatpush1.bf16.msra.mxu0 0
  %2352 = vmatprep.subr.bf16.mxu0 0
  %2353 = vmatpush1.bf16.msra.mxu0 0
  %2354 = vmatprep.subr.bf16.mxu0 0
  %2355 = vmatpush1.bf16.msra.mxu0 0
  %2356 = vmatprep.subr.bf16.mxu0 0
  %2357 = vmatpush1.bf16.msra.mxu0 0
  %2358 = vmatprep.subr.bf16.mxu0 0
  %2359 = vmatpush1.bf16.msra.mxu0 0
  %2360 = vmatprep.subr.bf16.mxu0 0
  %2361 = vmatpush1.bf16.msra.mxu0 0
  %2362 = vmatprep.mubr.bf16.mxu0 0
  %2363 = vmatmul.mubr.bf16.gmra.mrb[0].mxu0 %v2325
  %v2364 = vpop.f32.mrb[0].mxu0
  %v2365 = vadd.f32 0.0, %v2364
  %v2366 = vpop.f32.mrb[0].mxu0
  %v2367 = vpop.f32.mrb[0].mxu0
  %v2368 = vpop.f32.mrb[0].mxu0
  %2369 = vdwg.mxu0
  %v2370 = vpack.c.bf16 %v2365, %v2365
  %v2371 = vld [vmem:[%s1485] sm:$0xf]
  %v2372 = vld [vmem:[%s1485 + $0x4] sm:$0xf]
  %v2373 = vld [vmem:[%s1485 + $0x8] sm:$0xf]
  %v2374 = vld [vmem:[%s1485 + $0xc] sm:$0xf]
  %v2375 = vld [vmem:[%s1485 + $0x10] sm:$0xf]
  %v2376 = vld [vmem:[%s1485 + $0x14] sm:$0xf]
  %v2377 = vld [vmem:[%s1485 + $0x18] sm:$0xf]
  %v2378 = vld [vmem:[%s1485 + $0x1c] sm:$0xf]
  %v2379 = vld [vmem:[%s1485 + $0x20] sm:$0xf]
  %v2380 = vld [vmem:[%s1485 + $0x24] sm:$0xf]
  %v2381 = vld [vmem:[%s1485 + $0x28] sm:$0xf]
  %v2382 = vld [vmem:[%s1485 + $0x2c] sm:$0xf]
  %v2383 = vld [vmem:[%s1485 + $0x30] sm:$0xf]
  %v2384 = vld [vmem:[%s1485 + $0x34] sm:$0xf]
  %v2385 = vld [vmem:[%s1485 + $0x38] sm:$0xf]
  %v2386 = vld [vmem:[%s1485 + $0x3c] sm:$0xf]
  %v2403 = vunpack.c.l.b16 %v2371
  %v2404 = vunpack.c.l.b16 %v2372
  %v2405 = vunpack.c.l.b16 %v2373
  %v2406 = vunpack.c.l.b16 %v2374
  %v2407 = vunpack.c.l.b16 %v2375
  %v2408 = vunpack.c.l.b16 %v2376
  %v2409 = vunpack.c.l.b16 %v2377
  %v2410 = vunpack.c.l.b16 %v2378
  %v2411 = vunpack.c.l.b16 %v2379
  %v2412 = vunpack.c.l.b16 %v2380
  %v2413 = vunpack.c.l.b16 %v2381
  %v2414 = vunpack.c.l.b16 %v2382
  %v2415 = vunpack.c.l.b16 %v2383
  %v2416 = vunpack.c.l.b16 %v2384
  %v2417 = vunpack.c.l.b16 %v2385
  %v2418 = vunpack.c.l.b16 %v2386
  %v2419 = vpack.c.b16 %v2404, %v2403
  %v2420 = vpack.c.b16 %v2406, %v2405
  %v2421 = vpack.c.b16 %v2408, %v2407
  %v2422 = vpack.c.b16 %v2410, %v2409
  %v2423 = vpack.c.b16 %v2412, %v2411
  %v2424 = vpack.c.b16 %v2414, %v2413
  %v2425 = vpack.c.b16 %v2416, %v2415
  %v2426 = vpack.c.b16 %v2418, %v2417
  %2435 = vmatprep.subr.bf16.mxu0 0
  %2436 = vmatpush1.bf16.msra.mxu0 %v2419
  %2437 = vmatprep.subr.bf16.mxu0 0
  %2438 = vmatpush1.bf16.msra.mxu0 %v2420
  %2439 = vmatprep.subr.bf16.mxu0 0
  %2440 = vmatpush1.bf16.msra.mxu0 %v2421
  %2441 = vmatprep.subr.bf16.mxu0 0
  %2442 = vmatpush1.bf16.msra.mxu0 %v2422
  %2443 = vmatprep.subr.bf16.mxu0 0
  %2444 = vmatpush1.bf16.msra.mxu0 %v2423
  %2445 = vmatprep.subr.bf16.mxu0 0
  %2446 = vmatpush1.bf16.msra.mxu0 %v2424
  %2447 = vmatprep.subr.bf16.mxu0 0
  %2448 = vmatpush1.bf16.msra.mxu0 %v2425
  %2449 = vmatprep.subr.bf16.mxu0 0
  %2450 = vmatpush1.bf16.msra.mxu0 %v2426
  %2451 = vmatprep.subr.bf16.mxu0 0
  %2452 = vmatpush1.bf16.msra.mxu0 0
  %2453 = vmatprep.subr.bf16.mxu0 0
  %2454 = vmatpush1.bf16.msra.mxu0 0
  %2455 = vmatprep.subr.bf16.mxu0 0
  %2456 = vmatpush1.bf16.msra.mxu0 0
  %2457 = vmatprep.subr.bf16.mxu0 0
  %2458 = vmatpush1.bf16.msra.mxu0 0
  %2459 = vmatprep.subr.bf16.mxu0 0
  %2460 = vmatpush1.bf16.msra.mxu0 0
  %2461 = vmatprep.subr.bf16.mxu0 0
  %2462 = vmatpush1.bf16.msra.mxu0 0
  %2463 = vmatprep.subr.bf16.mxu0 0
  %2464 = vmatpush1.bf16.msra.mxu0 0
  %2465 = vmatprep.subr.bf16.mxu0 0
  %2466 = vmatpush1.bf16.msra.mxu0 0
  %2467 = vmatprep.mubr.bf16.mxu0 0
  %2468 = vmatmul.mubr.bf16.gmra.mrb[0].mxu0 %v2370
  %v2469 = vpop.f32.mrb[0].mxu0
  %v2470 = vadd.f32 0.0, %v2469
  %v2471 = vpop.f32.mrb[0].mxu0
  %v2472 = vpop.f32.mrb[0].mxu0
  %v2473 = vpop.f32.mrb[0].mxu0
  %2474 = vdwg.mxu0
  %v2475 = vadd.f32 %v2261, %v2470
  %v2476 = vpack.c.bf16 %v340, %v340
  %v2477 = vpack.c.bf16 %v855, %v855
  %2478 = vmatprep.subr.bf16.mxu0 0
  %2479 = vmatpush1.bf16.xpose.msra.mxu0 %v2477
  %2480 = vmatprep.subr.bf16.mxu0 0
  %2481 = vmatpush1.bf16.xpose.msra.mxu0 0
  %2482 = vmatprep.subr.bf16.mxu0 0
  %2483 = vmatpush1.bf16.xpose.msra.mxu0 0
  %2484 = vmatprep.subr.bf16.mxu0 0
  %2485 = vmatpush1.bf16.xpose.msra.mxu0 0
  %2486 = vmatprep.subr.bf16.mxu0 0
  %2487 = vmatpush1.bf16.xpose.msra.mxu0 0
  %2488 = vmatprep.subr.bf16.mxu0 0
  %2489 = vmatpush1.bf16.xpose.msra.mxu0 0
  %2490 = vmatprep.subr.bf16.mxu0 0
  %2491 = vmatpush1.bf16.xpose.msra.mxu0 0
  %2492 = vmatprep.subr.bf16.mxu0 0
  %2493 = vmatpush1.bf16.xpose.msra.mxu0 0
  %2494 = vmatprep.subr.bf16.mxu0 0
  %2495 = vmatpush1.bf16.xpose.msra.mxu0 0
  %2496 = vmatprep.subr.bf16.mxu0 0
  %2497 = vmatpush1.bf16.xpose.msra.mxu0 0
  %2498 = vmatprep.subr.bf16.mxu0 0
  %2499 = vmatpush1.bf16.xpose.msra.mxu0 0
  %2500 = vmatprep.subr.bf16.mxu0 0
  %2501 = vmatpush1.bf16.xpose.msra.mxu0 0
  %2502 = vmatprep.subr.bf16.mxu0 0
  %2503 = vmatpush1.bf16.xpose.msra.mxu0 0
  %2504 = vmatprep.subr.bf16.mxu0 0
  %2505 = vmatpush1.bf16.xpose.msra.mxu0 0
  %2506 = vmatprep.subr.bf16.mxu0 0
  %2507 = vmatpush1.bf16.xpose.msra.mxu0 0
  %2508 = vmatprep.subr.bf16.mxu0 0
  %2509 = vmatpush1.bf16.xpose.msra.mxu0 0
  %2510 = vmatprep.mubr.bf16.mxu0 0
  %2511 = vmatmul.mubr.bf16.gmra.mrb[0].mxu0 %v2476
  %v2512 = vpop.f32.mrb[0].mxu0
  %v2513 = vadd.f32 0.0, %v2512
  %v2514 = vpop.f32.mrb[0].mxu0
  %v2515 = vpop.f32.mrb[0].mxu0
  %v2516 = vpop.f32.mrb[0].mxu0
  %2517 = vdwg.mxu0
  %v2518 = vmul.f32 %v2513, 0.35355338
  %v2519 = vadd.f32 %v2518, %v1889
  %v2520 = vadd.f32 %v2519, %v951
  %v2521 = vsel %vm1004, %v2520, -inf
  %2522 = vmax.xlane.f32.xlu0 %v2521
  %v2523 = vpop.xlane.xlu0 %2522
  %v2524 = vsub.f32 %v2520, %v2523
  %v2525 = vmul.f32 %v2524, 1.442695
  %v2526 = vpow.pop %v2525
  %v2527 = vsel %vm1004, %v2526, 0.0
  %2528 = vadd.xlane.f32.xlu0 %v2527
  %v2529 = vpop.xlane.xlu0 %2528
  %v2530 = vrcp.pop %v2529
  %v2531 = vmul.f32 %v2526, %v2530
  %v2532 = vpack.c.bf16 %v2531, %v2531
  %v2533 = vpack.c.bf16 %v941, %v941
  %v2535 = vsel %vm1004, %v2532, 0
  %v2538 = vsel %vm1021, %v2533, 0
  %2540 = vmatprep.subr.bf16.mxu0 0
  %2541 = vmatpush1.bf16.msra.mxu0 %v2538
  %2542 = vmatprep.subr.bf16.mxu0 0
  %2543 = vmatpush1.bf16.msra.mxu0 0
  %2544 = vmatprep.subr.bf16.mxu0 0
  %2545 = vmatpush1.bf16.msra.mxu0 0
  %2546 = vmatprep.subr.bf16.mxu0 0
  %2547 = vmatpush1.bf16.msra.mxu0 0
  %2548 = vmatprep.subr.bf16.mxu0 0
  %2549 = vmatpush1.bf16.msra.mxu0 0
  %2550 = vmatprep.subr.bf16.mxu0 0
  %2551 = vmatpush1.bf16.msra.mxu0 0
  %2552 = vmatprep.subr.bf16.mxu0 0
  %2553 = vmatpush1.bf16.msra.mxu0 0
  %2554 = vmatprep.subr.bf16.mxu0 0
  %2555 = vmatpush1.bf16.msra.mxu0 0
  %2556 = vmatprep.subr.bf16.mxu0 0
  %2557 = vmatpush1.bf16.msra.mxu0 0
  %2558 = vmatprep.subr.bf16.mxu0 0
  %2559 = vmatpush1.bf16.msra.mxu0 0
  %2560 = vmatprep.subr.bf16.mxu0 0
  %2561 = vmatpush1.bf16.msra.mxu0 0
  %2562 = vmatprep.subr.bf16.mxu0 0
  %2563 = vmatpush1.bf16.msra.mxu0 0
  %2564 = vmatprep.subr.bf16.mxu0 0
  %2565 = vmatpush1.bf16.msra.mxu0 0
  %2566 = vmatprep.subr.bf16.mxu0 0
  %2567 = vmatpush1.bf16.msra.mxu0 0
  %2568 = vmatprep.subr.bf16.mxu0 0
  %2569 = vmatpush1.bf16.msra.mxu0 0
  %2570 = vmatprep.subr.bf16.mxu0 0
  %2571 = vmatpush1.bf16.msra.mxu0 0
  %2572 = vmatprep.mubr.bf16.mxu0 0
  %2573 = vmatmul.mubr.bf16.gmra.mrb[0].mxu0 %v2535
  %v2574 = vpop.f32.mrb[0].mxu0
  %v2575 = vadd.f32 0.0, %v2574
  %v2576 = vpop.f32.mrb[0].mxu0
  %v2577 = vpop.f32.mrb[0].mxu0
  %v2578 = vpop.f32.mrb[0].mxu0
  %2579 = vdwg.mxu0
  %v2580 = vpack.c.bf16 %v2575, %v2575
  %v2581 = vld [vmem:[%s1696] sm:$0xf]
  %v2582 = vld [vmem:[%s1696 + $0x4] sm:$0xf]
  %v2583 = vld [vmem:[%s1696 + $0x8] sm:$0xf]
  %v2584 = vld [vmem:[%s1696 + $0xc] sm:$0xf]
  %v2585 = vld [vmem:[%s1696 + $0x10] sm:$0xf]
  %v2586 = vld [vmem:[%s1696 + $0x14] sm:$0xf]
  %v2587 = vld [vmem:[%s1696 + $0x18] sm:$0xf]
  %v2588 = vld [vmem:[%s1696 + $0x1c] sm:$0xf]
  %v2589 = vld [vmem:[%s1696 + $0x20] sm:$0xf]
  %v2590 = vld [vmem:[%s1696 + $0x24] sm:$0xf]
  %v2591 = vld [vmem:[%s1696 + $0x28] sm:$0xf]
  %v2592 = vld [vmem:[%s1696 + $0x2c] sm:$0xf]
  %v2593 = vld [vmem:[%s1696 + $0x30] sm:$0xf]
  %v2594 = vld [vmem:[%s1696 + $0x34] sm:$0xf]
  %v2595 = vld [vmem:[%s1696 + $0x38] sm:$0xf]
  %v2596 = vld [vmem:[%s1696 + $0x3c] sm:$0xf]
  %v2613 = vunpack.c.l.b16 %v2581
  %v2614 = vunpack.c.l.b16 %v2582
  %v2615 = vunpack.c.l.b16 %v2583
  %v2616 = vunpack.c.l.b16 %v2584
  %v2617 = vunpack.c.l.b16 %v2585
  %v2618 = vunpack.c.l.b16 %v2586
  %v2619 = vunpack.c.l.b16 %v2587
  %v2620 = vunpack.c.l.b16 %v2588
  %v2621 = vunpack.c.l.b16 %v2589
  %v2622 = vunpack.c.l.b16 %v2590
  %v2623 = vunpack.c.l.b16 %v2591
  %v2624 = vunpack.c.l.b16 %v2592
  %v2625 = vunpack.c.l.b16 %v2593
  %v2626 = vunpack.c.l.b16 %v2594
  %v2627 = vunpack.c.l.b16 %v2595
  %v2628 = vunpack.c.l.b16 %v2596
  %v2629 = vpack.c.b16 %v2614, %v2613
  %v2630 = vpack.c.b16 %v2616, %v2615
  %v2631 = vpack.c.b16 %v2618, %v2617
  %v2632 = vpack.c.b16 %v2620, %v2619
  %v2633 = vpack.c.b16 %v2622, %v2621
  %v2634 = vpack.c.b16 %v2624, %v2623
  %v2635 = vpack.c.b16 %v2626, %v2625
  %v2636 = vpack.c.b16 %v2628, %v2627
  %2645 = vmatprep.subr.bf16.mxu0 0
  %2646 = vmatpush1.bf16.msra.mxu0 %v2629
  %2647 = vmatprep.subr.bf16.mxu0 0
  %2648 = vmatpush1.bf16.msra.mxu0 %v2630
  %2649 = vmatprep.subr.bf16.mxu0 0
  %2650 = vmatpush1.bf16.msra.mxu0 %v2631
  %2651 = vmatprep.subr.bf16.mxu0 0
  %2652 = vmatpush1.bf16.msra.mxu0 %v2632
  %2653 = vmatprep.subr.bf16.mxu0 0
  %2654 = vmatpush1.bf16.msra.mxu0 %v2633
  %2655 = vmatprep.subr.bf16.mxu0 0
  %2656 = vmatpush1.bf16.msra.mxu0 %v2634
  %2657 = vmatprep.subr.bf16.mxu0 0
  %2658 = vmatpush1.bf16.msra.mxu0 %v2635
  %2659 = vmatprep.subr.bf16.mxu0 0
  %2660 = vmatpush1.bf16.msra.mxu0 %v2636
  %2661 = vmatprep.subr.bf16.mxu0 0
  %2662 = vmatpush1.bf16.msra.mxu0 0
  %2663 = vmatprep.subr.bf16.mxu0 0
  %2664 = vmatpush1.bf16.msra.mxu0 0
  %2665 = vmatprep.subr.bf16.mxu0 0
  %2666 = vmatpush1.bf16.msra.mxu0 0
  %2667 = vmatprep.subr.bf16.mxu0 0
  %2668 = vmatpush1.bf16.msra.mxu0 0
  %2669 = vmatprep.subr.bf16.mxu0 0
  %2670 = vmatpush1.bf16.msra.mxu0 0
  %2671 = vmatprep.subr.bf16.mxu0 0
  %2672 = vmatpush1.bf16.msra.mxu0 0
  %2673 = vmatprep.subr.bf16.mxu0 0
  %2674 = vmatpush1.bf16.msra.mxu0 0
  %2675 = vmatprep.subr.bf16.mxu0 0
  %2676 = vmatpush1.bf16.msra.mxu0 0
  %2677 = vmatprep.mubr.bf16.mxu0 0
  %2678 = vmatmul.mubr.bf16.gmra.mrb[0].mxu0 %v2580
  %v2679 = vpop.f32.mrb[0].mxu0
  %v2680 = vadd.f32 0.0, %v2679
  %v2681 = vpop.f32.mrb[0].mxu0
  %v2682 = vpop.f32.mrb[0].mxu0
  %v2683 = vpop.f32.mrb[0].mxu0
  %2684 = vdwg.mxu0
  %v2685 = vadd.f32 %v2475, %v2680
  %v2686 = vadd.f32 %v40, %v2685
  %v2687 = vadd.f32 %v2686, %v1807
  %2688 = vadd.xlane.f32.xlu0 %v2687
  %v2689 = vpop.xlane.xlu0 %2688
  %v2690 = vmul.f32 %v2689, 0.03125
  %v2691 = vsub.f32 %v2687, %v2690
  %v2692 = vmul.f32 %v2691, %v1812
  %v2693 = vmul.f32 %v2692, %v2692
  %2694 = vadd.xlane.f32.xlu0 %v2693
  %v2695 = vpop.xlane.xlu0 %2694
  %v2696 = vmul.f32 %v2695, 0.03125
  %v2697 = vadd.f32 %v2696, 1e-05
  %v2698 = vrsqrt.pop %v2697
  %v2699 = vmul.f32 %v2692, %v2698
  %v2700 = vmul.f32 %v2699, %v1829
  %v2701 = vadd.f32 %v2700, %v1836
  %2702 = vst [vmem:[%s11 + $0x8] sm:$0xff] %v2701
  // Predicated region
  $region46: #{transformer_forward.11} parent=0 // pred_check
    _
  $region47: #{transformer_forward.11} parent=0 // pred_check_branch
    %2704 = sbr.rel (0) target = $region49
  $region48: #{transformer_forward.11} parent=0 // pred_region
    _
  $region49: #{transformer_forward.11} parent=0 // pred_fallthru
    _
  // Predicated region
  $region50: #{transformer_forward.11} parent=0 // pred_check
    _
  $region51: #{transformer_forward.11} parent=0 // pred_check_branch
    %2706 = sbr.rel (0) target = $region53
  $region52: #{transformer_forward.11} parent=0 // pred_region
    _
  $region53: #{transformer_forward.11} parent=0 // pred_fallthru
    _

</llo_original>
